<compile_context>
chip_gen: v6e
topology: v6e:2x2x1
jax: 0.10.0
libtpu: 0.0.40
codegen_flags: <defaults>
</compile_context>

<pallas_src>
import functools

import jax
import jax.numpy as jnp
from jax.experimental import pallas as pl
from jax.experimental.pallas import tpu as pltpu


# ----------------------------------------------------------------------------
# The fused kernel (per batch element)
# ----------------------------------------------------------------------------

def _fused_forward_kernel(
    x_ref,                      # (1, H, W, Cin) f32
    bb_w_ref,                   # (9*Cin, Cf)    bf16  backbone conv, im2col layout
    se_w_ref,                   # (9*Cf, 32)     bf16  merged seg+edge conv, im2col layout
    h_w1_ref,                   # (Cf, 80)       bf16  shared GAP-MLP layer 1
    h2_w_ref,                   # (80, 3)        bf16  merged cls(2)+noise(1) layer 2
    uh_ref,                     # (2H, H)        bf16  bilinear row-upsample matrix
    uwt_ref,                    # (W, 2W)        bf16  bilinear col-upsample matrix (transposed)
    consts_ref,                 # (16, 128)      f32   packed biases / BN affines / 1x1 weights
    clsnoise_ref,               # (1, 1, 3)      f32   out: [cls0, cls1, sigmoid(noise)]
    seg_ref,                    # (1, 2H, 2W)    f32   out: upsampled seg logits
    edge_ref,                   # (1, H, W)      f32   out: sigmoid(edge)
    xpad_ref,                   # (H+2, W+2, Cin) bf16 scratch (input halo)
    featpad_ref,                # (H+2, W+2, Cf)  bf16 scratch (feature halo)
    *, H, W,
):
    cin = x_ref.shape[-1]
    cf = h_w1_ref.shape[0]
    hh = h_w1_ref.shape[1]
    cse = se_w_ref.shape[-1]
    f32, bf16 = jnp.float32, jnp.bfloat16

    # ---- zero only the 1-pixel halo border (interior is overwritten below) --
    zx_row = jnp.zeros((1, W + 2, cin), bf16)
    zx_col = jnp.zeros((H + 2, 1, cin), bf16)
    xpad_ref[0:1, :, :] = zx_row
    xpad_ref[H + 1:H + 2, :, :] = zx_row
    xpad_ref[:, 0:1, :] = zx_col
    xpad_ref[:, W + 1:W + 2, :] = zx_col
    zf_row = jnp.zeros((1, W + 2, cf), bf16)
    zf_col = jnp.zeros((H + 2, 1, cf), bf16)
    featpad_ref[0:1, :, :] = zf_row
    featpad_ref[H + 1:H + 2, :, :] = zf_row
    featpad_ref[:, 0:1, :] = zf_col
    featpad_ref[:, W + 1:W + 2, :] = zf_col

    # ---- input halo fill (single f32 -> bf16 cast) --------------------------
    xpad_ref[1:H + 1, 1:W + 1, :] = x_ref[0].astype(bf16)

    # ---- backbone stub: Conv3x3(Cin->Cf) + bias + ReLU as ONE im2col matmul -
    patches = [xpad_ref[dy:dy + H, dx:dx + W, :]
               for dy in range(3) for dx in range(3)]
    im2col1 = jnp.concatenate(patches, axis=-1).reshape(H * W, 9 * cin)   # bf16
    feat = jnp.maximum(
        jnp.dot(im2col1, bb_w_ref[...], preferred_element_type=f32)
        + consts_ref[0:1, 0:cf], 0.0)                                     # (H*W, Cf) f32

    # ---- GAP (f32) then retire `feat` into the bf16 feature halo ------------
    pooled = jnp.mean(feat, axis=0, keepdims=True).astype(bf16)           # (1, Cf)
    featpad_ref[1:H + 1, 1:W + 1, :] = feat.reshape(H, W, cf).astype(bf16)

    # ---- shared GAP-MLP: cls(2) + noise(1) in one (80, 3) matmul ------------
    h1 = jnp.maximum(
        jnp.dot(pooled, h_w1_ref[...], preferred_element_type=f32)
        + consts_ref[1:2, 0:hh], 0.0).astype(bf16)                        # (1, 80)
    out2 = (jnp.dot(h1, h2_w_ref[...], preferred_element_type=f32)
            + consts_ref[6:7, 0:3])                                       # (1, 3)
    lane = jax.lax.broadcasted_iota(jnp.int32, out2.shape, 1)
    clsnoise_ref[0] = jnp.where(lane == 2, jax.nn.sigmoid(out2), out2)    # sigmoid only on noise

    # ---- merged seg/edge Conv3x3(Cf->32) + folded BN + ReLU (one matmul) ----
    patches2 = [featpad_ref[dy:dy + H, dx:dx + W, :]
                for dy in range(3) for dx in range(3)]
    im2col2 = jnp.concatenate(patches2, axis=-1).reshape(H * W, 9 * cf)   # bf16
    se = jnp.maximum(
        jnp.dot(im2col2, se_w_ref[...], preferred_element_type=f32)
        * consts_ref[2:3, 0:cse] + consts_ref[3:4, 0:cse], 0.0)           # (H*W, 32) f32

    # ---- 1x1 heads as per-channel multiply + lane-reduce (no relayout) ------
    se3d = se.reshape(H, W, cse)                                          # leading-dim split (safe)
    seg_map = (jnp.sum(se3d * consts_ref[4:5, 0:cse], axis=-1)
               + consts_ref[7:8, 0:1])                                    # (H, W) f32
    edge_map = jax.nn.sigmoid(
        jnp.sum(se3d * consts_ref[5:6, 0:cse], axis=-1)
        + consts_ref[8:9, 0:1])                                           # (H, W) f32
    edge_ref[0] = edge_map

    # ---- fused 2x bilinear upsample: y = Uh @ seg @ Uw^T (two tiny matmuls) -
    t = jnp.dot(uh_ref[...], seg_map.astype(bf16), preferred_element_type=f32)   # (2H, W)
    seg_ref[0] = jnp.dot(t.astype(bf16), uwt_ref[...], preferred_element_type=f32)


# ----------------------------------------------------------------------------
# pallas_call wrapper
# ----------------------------------------------------------------------------

def _const_spec(arr):
    n = arr.ndim
    return pl.BlockSpec(arr.shape, lambda b, _n=n: (0,) * _n)


def fused_forgery_forward(x, P):
    B, H, W, cin = x.shape
    cf = P["h_w1"].shape[0]
    kernel = functools.partial(_fused_forward_kernel, H=H, W=W)
    return pl.pallas_call(
        kernel,
        out_shape=(
            jax.ShapeDtypeStruct((B, 1, 3), jnp.float32),          # [cls0, cls1, noise]
            jax.ShapeDtypeStruct((B, 2 * H, 2 * W), jnp.float32),  # upsampled seg logits
            jax.ShapeDtypeStruct((B, H, W), jnp.float32),          # edge (sigmoid)
        ),
        grid=(B,),
        in_specs=[
            pl.BlockSpec((1, H, W, cin), lambda b: (b, 0, 0, 0)),
            _const_spec(P["bb_w"]),
            _const_spec(P["se_w"]),
            _const_spec(P["h_w1"]),
            _const_spec(P["h2_w"]),
            _const_spec(P["uh"]),
            _const_spec(P["uwt"]),
            _const_spec(P["consts"]),
        ],
        out_specs=(
            pl.BlockSpec((1, 1, 3), lambda b: (b, 0, 0)),
            pl.BlockSpec((1, 2 * H, 2 * W), lambda b: (b, 0, 0)),
            pl.BlockSpec((1, H, W), lambda b: (b, 0, 0)),
        ),
        scratch_shapes=[
            pltpu.VMEM((H + 2, W + 2, cin), jnp.bfloat16),         # padded input halo
            pltpu.VMEM((H + 2, W + 2, cf), jnp.bfloat16),          # padded feature halo
        ],
        compiler_params=pltpu.CompilerParams(dimension_semantics=("parallel",)),
    )(x, P["bb_w"], P["se_w"], P["h_w1"], P["h2_w"], P["uh"], P["uwt"], P["consts"])


# ----------------------------------------------------------------------------
# Host-side parameter preparation (done ONCE, outside the jitted forward)
# ----------------------------------------------------------------------------

def fold_bn(conv_bias, gamma, beta, mean, var, eps=1e-5):
    s = gamma / jnp.sqrt(var + eps)
    t = beta + (conv_bias - mean) * s
    return s, t


def bilinear_upsample_matrix(n):
    """(2n, n) matrix M such that M @ v is the 2x bilinear upsample of v
    (align_corners=False, border-clamped) == nn.Upsample(scale_factor=2)."""
    i = jnp.arange(2 * n, dtype=jnp.float32)
    src = jnp.clip((i + 0.5) / 2.0 - 0.5, 0.0, float(n - 1))
    lo = jnp.floor(src)
    frac = src - lo
    lo_i = lo.astype(jnp.int32)
    hi_i = jnp.minimum(lo_i + 1, n - 1)
    cols = jnp.arange(n, dtype=jnp.int32)[None, :]
    return ((cols == lo_i[:, None]).astype(jnp.float32) * (1.0 - frac)[:, None]
            + (cols == hi_i[:, None]).astype(jnp.float32) * frac[:, None])


def prepare_fused_params(p, H, W):
    f32, bf16 = jnp.float32, jnp.bfloat16
    cin, cf = p["backbone_w"].shape[2], p["backbone_w"].shape[3]
    hc, hn = p["cls_w1"].shape[1], p["noise_w1"].shape[1]
    hh = hc + hn
    cs, ce = p["seg_w"].shape[-1], p["edge_w"].shape[-1]
    cse = cs + ce

    s_scale, s_shift = fold_bn(p["seg_b"], p["seg_bn_gamma"], p["seg_bn_beta"],
                               p["seg_bn_mean"], p["seg_bn_var"])
    e_scale, e_shift = fold_bn(p["edge_b"], p["edge_bn_gamma"], p["edge_bn_beta"],
                               p["edge_bn_mean"], p["edge_bn_var"])

    # im2col weight layouts: rows ordered (dy, dx, c) to match in-kernel concat.
    bb_w = p["backbone_w"].reshape(9 * cin, cf).astype(bf16)
    se_w = jnp.concatenate([p["seg_w"], p["edge_w"]], axis=3).reshape(9 * cf, cse).astype(bf16)

    # cls + noise share one GAP and one first-layer matmul.
    h_w1 = jnp.concatenate([p["cls_w1"], p["noise_w1"]], axis=1).astype(bf16)    # (cf, 80)

    # merged second layer (block-structured): cols 0:2 cls logits, col 2 noise logit.
    h2_w = jnp.zeros((hh, 3), f32)
    h2_w = h2_w.at[:hc, 0:2].set(p["cls_w2"])
    h2_w = h2_w.at[hc:, 2:3].set(p["noise_w2"])
    h2_w = h2_w.astype(bf16)

    # 1x1 head weight vectors over the merged 32 channels (block-structured).
    pw_seg = jnp.concatenate([p["seg_out_w"][:, 0], jnp.zeros((ce,), f32)])
    pw_edge = jnp.concatenate([jnp.zeros((cs,), f32), p["edge_out_w"][:, 0]])

    # all small per-channel constants packed into ONE (16, 128) f32 operand.
    consts = jnp.zeros((16, 128), f32)
    consts = consts.at[0, :cf].set(p["backbone_b"])
    consts = consts.at[1, :hh].set(jnp.concatenate([p["cls_b1"], p["noise_b1"]]))
    consts = consts.at[2, :cse].set(jnp.concatenate([s_scale, e_scale]))
    consts = consts.at[3, :cse].set(jnp.concatenate([s_shift, e_shift]))
    consts = consts.at[4, :cse].set(pw_seg)
    consts = consts.at[5, :cse].set(pw_edge)
    consts = consts.at[6, :3].set(jnp.concatenate([p["cls_b2"], p["noise_b2"]]))
    consts = consts.at[7, 0].set(p["seg_out_b"][0])
    consts = consts.at[8, 0].set(p["edge_out_b"][0])

    uh = bilinear_upsample_matrix(H).astype(bf16)          # (2H, H)
    uwt = bilinear_upsample_matrix(W).T.astype(bf16)       # (W, 2W)

    return dict(bb_w=bb_w, se_w=se_w, h_w1=h_w1, h2_w=h2_w,
                uh=uh, uwt=uwt, consts=consts)


# ----------------------------------------------------------------------------
# Parameters (deterministic, matching the module's _init_weights semantics)
# ----------------------------------------------------------------------------

def init_params(key):
    C_in, C_feat = 3, 32
    cls_hidden, num_classes = 64, 2
    seg_dec, noise_hidden, edge_hidden = 16, 16, 16
    ks = jax.random.split(key, 16)

    def conv_w(k, kh, kw, ci, co):          # kaiming_normal_(mode='fan_out')
        fan_out = kh * kw * co
        return jax.random.normal(k, (kh, kw, ci, co), jnp.float32) * jnp.sqrt(2.0 / fan_out)

    def lin_w(k, ci, co):                   # normal_(0, 0.01)
        return jax.random.normal(k, (ci, co), jnp.float32) * 0.01

    p = {}
    p["backbone_w"] = conv_w(ks[0], 3, 3, C_in, C_feat)
    p["backbone_b"] = jnp.zeros((C_feat,), jnp.float32)
    p["cls_w1"], p["cls_b1"] = lin_w(ks[1], C_feat, cls_hidden), jnp.zeros((cls_hidden,), jnp.float32)
    p["cls_w2"], p["cls_b2"] = lin_w(ks[2], cls_hidden, num_classes), jnp.zeros((num_classes,), jnp.float32)
    p["seg_w"], p["seg_b"] = conv_w(ks[3], 3, 3, C_feat, seg_dec), jnp.zeros((seg_dec,), jnp.float32)
    p["seg_bn_gamma"], p["seg_bn_beta"] = jnp.ones((seg_dec,), jnp.float32), jnp.zeros((seg_dec,), jnp.float32)
    p["seg_bn_mean"], p["seg_bn_var"] = jnp.zeros((seg_dec,), jnp.float32), jnp.ones((seg_dec,), jnp.float32)
    p["seg_out_w"] = conv_w(ks[4], 1, 1, seg_dec, 1).reshape(seg_dec, 1)
    p["seg_out_b"] = jnp.zeros((1,), jnp.float32)
    p["noise_w1"], p["noise_b1"] = lin_w(ks[5], C_feat, noise_hidden), jnp.zeros((noise_hidden,), jnp.float32)
    p["noise_w2"], p["noise_b2"] = lin_w(ks[6], noise_hidden, 1), jnp.zeros((1,), jnp.float32)
    p["edge_w"], p["edge_b"] = conv_w(ks[7], 3, 3, C_feat, edge_hidden), jnp.zeros((edge_hidden,), jnp.float32)
    p["edge_bn_gamma"], p["edge_bn_beta"] = jnp.ones((edge_hidden,), jnp.float32), jnp.zeros((edge_hidden,), jnp.float32)
    p["edge_bn_mean"], p["edge_bn_var"] = jnp.zeros((edge_hidden,), jnp.float32), jnp.ones((edge_hidden,), jnp.float32)
    p["edge_out_w"] = conv_w(ks[8], 1, 1, edge_hidden, 1).reshape(edge_hidden, 1)
    p["edge_out_b"] = jnp.zeros((1,), jnp.float32)
    return p


# ----------------------------------------------------------------------------
# Forward pass (mirrors BaseForgeryDetector.forward, inference mode)
# ----------------------------------------------------------------------------

def forgery_detector_forward(prepared, x_nchw):
    x = jnp.transpose(x_nchw, (0, 2, 3, 1)).astype(jnp.float32)   # NCHW -> NHWC (boundary glue)
    B, H, W, _ = x.shape
    clsnoise, seg_up, edge = fused_forgery_forward(x, prepared)
    return {
        "cls": clsnoise[:, 0, 0:2],                     # (B, 2) logits
        "seg": seg_up[:, None, :, :],                   # (B, 1, 2H, 2W) logits
        "noise": clsnoise[:, 0, 2:3],                   # (B, 1) in [0, 1]
        "edge": edge[:, None, :, :],                    # (B, 1, H, W) in [0, 1]
    }


if __name__ == "__main__":
    key = jax.random.PRNGKey(0)
    kx, kp = jax.random.split(key)
    x = jax.random.normal(kx, (2, 3, 16, 16), jnp.float32)          # NCHW input
    params = init_params(kp)

    # Hoisted out of the per-call jitted path (performance feedback).
    prepared = prepare_fused_params(params, H=16, W=16)

    fwd = jax.jit(forgery_detector_forward)
    out = jax.block_until_ready(fwd(prepared, x))

    assert out["cls"].shape == (2, 2)
    assert out["seg"].shape == (2, 1, 32, 32)
    assert out["noise"].shape == (2, 1)
    assert out["edge"].shape == (2, 1, 16, 16)
    for leaf in jax.tree_util.tree_leaves(out):
        assert bool(jnp.all(jnp.isfinite(leaf)))
    assert bool(jnp.all((out["noise"] >= 0) & (out["noise"] <= 1)))
    assert bool(jnp.all((out["edge"] >= 0) & (out["edge"] <= 1)))

    print("KERNEL_OK")
</pallas_src>

<mosaic_0001>
module attributes {stable_mosaic.version = 11 : i64} {
  func.func @_fused_forward_kernel(%arg0: i32, %arg1: memref<1x16x16x3xf32, #tpu.memory_space<vmem>>, %arg2: memref<27x32xbf16, #tpu.memory_space<vmem>>, %arg3: memref<288x32xbf16, #tpu.memory_space<vmem>>, %arg4: memref<32x80xbf16, #tpu.memory_space<vmem>>, %arg5: memref<80x3xbf16, #tpu.memory_space<vmem>>, %arg6: memref<32x16xbf16, #tpu.memory_space<vmem>>, %arg7: memref<16x32xbf16, #tpu.memory_space<vmem>>, %arg8: memref<16x128xf32, #tpu.memory_space<vmem>>, %arg9: memref<1x1x3xf32, #tpu.memory_space<vmem>>, %arg10: memref<1x32x32xf32, #tpu.memory_space<vmem>>, %arg11: memref<1x16x16xf32, #tpu.memory_space<vmem>>, %arg12: memref<18x18x3xbf16, #tpu.memory_space<vmem>>, %arg13: memref<18x18x32xbf16, #tpu.memory_space<vmem>>) attributes {dimension_semantics = [#tpu.dimension_semantics<parallel>], iteration_bounds = array<i64: 2>, scalar_prefetch = 0 : i64, scratch_operands = 2 : i64, tpu.core_type = #tpu.core_type<tc>, window_params = [{transform_indices = @transform_0, window_bounds = array<i64: 1, 16, 16, 3>}, {pipeline_mode = #tpu.pipeline_mode<synchronous>, transform_indices = @transform_1, window_bounds = array<i64: 27, 32>}, {pipeline_mode = #tpu.pipeline_mode<synchronous>, transform_indices = @transform_2, window_bounds = array<i64: 288, 32>}, {pipeline_mode = #tpu.pipeline_mode<synchronous>, transform_indices = @transform_3, window_bounds = array<i64: 32, 80>}, {pipeline_mode = #tpu.pipeline_mode<synchronous>, transform_indices = @transform_4, window_bounds = array<i64: 80, 3>}, {pipeline_mode = #tpu.pipeline_mode<synchronous>, transform_indices = @transform_5, window_bounds = array<i64: 32, 16>}, {pipeline_mode = #tpu.pipeline_mode<synchronous>, transform_indices = @transform_6, window_bounds = array<i64: 16, 32>}, {pipeline_mode = #tpu.pipeline_mode<synchronous>, transform_indices = @transform_7, window_bounds = array<i64: 16, 128>}, {transform_indices = @transform_8, window_bounds = array<i64: 1, 1, 3>}, {transform_indices = @transform_9, window_bounds = array<i64: 1, 32, 32>}, {transform_indices = @transform_10, window_bounds = array<i64: 1, 16, 16>}]} {
    %cst = arith.constant 0.000000e+00 : bf16
    %0 = vector.broadcast %cst : bf16 to vector<1x18x3xbf16>
    %cst_0 = arith.constant 0.000000e+00 : bf16
    %1 = vector.broadcast %cst_0 : bf16 to vector<18x1x3xbf16>
    %c0 = arith.constant 0 : index
    %c0_1 = arith.constant 0 : index
    %c0_2 = arith.constant 0 : index
    %2 = vector.load %arg12[%c0, %c0_1, %c0_2] : memref<18x18x3xbf16, #tpu.memory_space<vmem>>, vector<1x18x3xbf16>
    tpu.vector_store %arg12[%c0, %c0_1, %c0_2], %0 {strides = array<i32>} : memref<18x18x3xbf16, #tpu.memory_space<vmem>>, vector<1x18x3xbf16>,
    %c17 = arith.constant 17 : index
    %c0_3 = arith.constant 0 : index
    %c0_4 = arith.constant 0 : index
    %3 = vector.load %arg12[%c17, %c0_3, %c0_4] : memref<18x18x3xbf16, #tpu.memory_space<vmem>>, vector<1x18x3xbf16>
    tpu.vector_store %arg12[%c17, %c0_3, %c0_4], %0 {strides = array<i32>} : memref<18x18x3xbf16, #tpu.memory_space<vmem>>, vector<1x18x3xbf16>,
    %c0_5 = arith.constant 0 : index
    %c0_6 = arith.constant 0 : index
    %c0_7 = arith.constant 0 : index
    %4 = vector.load %arg12[%c0_5, %c0_6, %c0_7] : memref<18x18x3xbf16, #tpu.memory_space<vmem>>, vector<18x1x3xbf16>
    tpu.vector_store %arg12[%c0_5, %c0_6, %c0_7], %1 {strides = array<i32>} : memref<18x18x3xbf16, #tpu.memory_space<vmem>>, vector<18x1x3xbf16>,
    %c0_8 = arith.constant 0 : index
    %c17_9 = arith.constant 17 : index
    %c0_10 = arith.constant 0 : index
    %5 = vector.load %arg12[%c0_8, %c17_9, %c0_10] : memref<18x18x3xbf16, #tpu.memory_space<vmem>>, vector<18x1x3xbf16>
    tpu.vector_store %arg12[%c0_8, %c17_9, %c0_10], %1 {strides = array<i32>} : memref<18x18x3xbf16, #tpu.memory_space<vmem>>, vector<18x1x3xbf16>,
    %cst_11 = arith.constant 0.000000e+00 : bf16
    %6 = vector.broadcast %cst_11 : bf16 to vector<1x18x32xbf16>
    %cst_12 = arith.constant 0.000000e+00 : bf16
    %7 = vector.broadcast %cst_12 : bf16 to vector<18x1x32xbf16>
    %c0_13 = arith.constant 0 : index
    %c0_14 = arith.constant 0 : index
    %c0_15 = arith.constant 0 : index
    %8 = vector.load %arg13[%c0_13, %c0_14, %c0_15] : memref<18x18x32xbf16, #tpu.memory_space<vmem>>, vector<1x18x32xbf16>
    tpu.vector_store %arg13[%c0_13, %c0_14, %c0_15], %6 {strides = array<i32>} : memref<18x18x32xbf16, #tpu.memory_space<vmem>>, vector<1x18x32xbf16>,
    %c17_16 = arith.constant 17 : index
    %c0_17 = arith.constant 0 : index
    %c0_18 = arith.constant 0 : index
    %9 = vector.load %arg13[%c17_16, %c0_17, %c0_18] : memref<18x18x32xbf16, #tpu.memory_space<vmem>>, vector<1x18x32xbf16>
    tpu.vector_store %arg13[%c17_16, %c0_17, %c0_18], %6 {strides = array<i32>} : memref<18x18x32xbf16, #tpu.memory_space<vmem>>, vector<1x18x32xbf16>,
    %c0_19 = arith.constant 0 : index
    %c0_20 = arith.constant 0 : index
    %c0_21 = arith.constant 0 : index
    %10 = vector.load %arg13[%c0_19, %c0_20, %c0_21] : memref<18x18x32xbf16, #tpu.memory_space<vmem>>, vector<18x1x32xbf16>
    tpu.vector_store %arg13[%c0_19, %c0_20, %c0_21], %7 {strides = array<i32>} : memref<18x18x32xbf16, #tpu.memory_space<vmem>>, vector<18x1x32xbf16>,
    %c0_22 = arith.constant 0 : index
    %c17_23 = arith.constant 17 : index
    %c0_24 = arith.constant 0 : index
    %11 = vector.load %arg13[%c0_22, %c17_23, %c0_24] : memref<18x18x32xbf16, #tpu.memory_space<vmem>>, vector<18x1x32xbf16>
    tpu.vector_store %arg13[%c0_22, %c17_23, %c0_24], %7 {strides = array<i32>} : memref<18x18x32xbf16, #tpu.memory_space<vmem>>, vector<18x1x32xbf16>,
    %c0_25 = arith.constant 0 : index
    %c0_26 = arith.constant 0 : index
    %c0_27 = arith.constant 0 : index
    %c0_28 = arith.constant 0 : index
    %12 = vector.load %arg1[%c0_25, %c0_26, %c0_27, %c0_28] : memref<1x16x16x3xf32, #tpu.memory_space<vmem>>, vector<1x16x16x3xf32>
    %13 = vector.shape_cast %12 : vector<1x16x16x3xf32> to vector<16x16x3xf32>
    %14 = arith.truncf %13 : vector<16x16x3xf32> to vector<16x16x3xbf16>
    %c1 = arith.constant 1 : index
    %c1_29 = arith.constant 1 : index
    %c0_30 = arith.constant 0 : index
    %15 = vector.load %arg12[%c1, %c1_29, %c0_30] : memref<18x18x3xbf16, #tpu.memory_space<vmem>>, vector<16x16x3xbf16>
    tpu.vector_store %arg12[%c1, %c1_29, %c0_30], %14 {strides = array<i32>} : memref<18x18x3xbf16, #tpu.memory_space<vmem>>, vector<16x16x3xbf16>,
    %c0_31 = arith.constant 0 : index
    %c0_32 = arith.constant 0 : index
    %c0_33 = arith.constant 0 : index
    %16 = vector.load %arg12[%c0_31, %c0_32, %c0_33] : memref<18x18x3xbf16, #tpu.memory_space<vmem>>, vector<16x16x3xbf16>
    %c0_34 = arith.constant 0 : index
    %c1_35 = arith.constant 1 : index
    %c0_36 = arith.constant 0 : index
    %17 = vector.load %arg12[%c0_34, %c1_35, %c0_36] : memref<18x18x3xbf16, #tpu.memory_space<vmem>>, vector<16x16x3xbf16>
    %c0_37 = arith.constant 0 : index
    %c2 = arith.constant 2 : index
    %c0_38 = arith.constant 0 : index
    %18 = vector.load %arg12[%c0_37, %c2, %c0_38] : memref<18x18x3xbf16, #tpu.memory_space<vmem>>, vector<16x16x3xbf16>
    %c1_39 = arith.constant 1 : index
    %c0_40 = arith.constant 0 : index
    %c0_41 = arith.constant 0 : index
    %19 = vector.load %arg12[%c1_39, %c0_40, %c0_41] : memref<18x18x3xbf16, #tpu.memory_space<vmem>>, vector<16x16x3xbf16>
    %c1_42 = arith.constant 1 : index
    %c1_43 = arith.constant 1 : index
    %c0_44 = arith.constant 0 : index
    %20 = vector.load %arg12[%c1_42, %c1_43, %c0_44] : memref<18x18x3xbf16, #tpu.memory_space<vmem>>, vector<16x16x3xbf16>
    %c1_45 = arith.constant 1 : index
    %c2_46 = arith.constant 2 : index
    %c0_47 = arith.constant 0 : index
    %21 = vector.load %arg12[%c1_45, %c2_46, %c0_47] : memref<18x18x3xbf16, #tpu.memory_space<vmem>>, vector<16x16x3xbf16>
    %c2_48 = arith.constant 2 : index
    %c0_49 = arith.constant 0 : index
    %c0_50 = arith.constant 0 : index
    %22 = vector.load %arg12[%c2_48, %c0_49, %c0_50] : memref<18x18x3xbf16, #tpu.memory_space<vmem>>, vector<16x16x3xbf16>
    %c2_51 = arith.constant 2 : index
    %c1_52 = arith.constant 1 : index
    %c0_53 = arith.constant 0 : index
    %23 = vector.load %arg12[%c2_51, %c1_52, %c0_53] : memref<18x18x3xbf16, #tpu.memory_space<vmem>>, vector<16x16x3xbf16>
    %c2_54 = arith.constant 2 : index
    %c2_55 = arith.constant 2 : index
    %c0_56 = arith.constant 0 : index
    %24 = vector.load %arg12[%c2_54, %c2_55, %c0_56] : memref<18x18x3xbf16, #tpu.memory_space<vmem>>, vector<16x16x3xbf16>
    %25 = tpu.concatenate %16, %17, %18, %19, %20, %21, %22, %23, %24 in 2 : vector<16x16x3xbf16>, vector<16x16x3xbf16>, vector<16x16x3xbf16>, vector<16x16x3xbf16>, vector<16x16x3xbf16>, vector<16x16x3xbf16>, vector<16x16x3xbf16>, vector<16x16x3xbf16>, vector<16x16x3xbf16> -> vector<16x16x27xbf16>
    %26 = vector.shape_cast %25 : vector<16x16x27xbf16> to vector<256x27xbf16>
    %c0_57 = arith.constant 0 : index
    %c0_58 = arith.constant 0 : index
    %27 = vector.load %arg2[%c0_57, %c0_58] : memref<27x32xbf16, #tpu.memory_space<vmem>>, vector<27x32xbf16>
    %cst_59 = arith.constant dense<0.000000e+00> : vector<256x32xf32>
    %28 = tpu.matmul %26, %27, %cst_59 {dimension_numbers = #tpu.dot_dimension_numbers<[1], [0], [0], [1], [0, 0, 1, 1], [], []>} : vector<256x27xbf16>, vector<27x32xbf16>, vector<256x32xf32> -> vector<256x32xf32>
    %c0_60 = arith.constant 0 : index
    %c0_61 = arith.constant 0 : index
    %29 = vector.load %arg8[%c0_60, %c0_61] : memref<16x128xf32, #tpu.memory_space<vmem>>, vector<1x32xf32>
    %30 = vector.broadcast %29 : vector<1x32xf32> to vector<256x32xf32>
    %31 = arith.addf %28, %30 : vector<256x32xf32>
    %cst_62 = arith.constant 0.000000e+00 : f32
    %32 = vector.broadcast %cst_62 : f32 to vector<256x32xf32>
    %33 = arith.maximumf %31, %32 : vector<256x32xf32>
    %cst_63 = arith.constant dense<0.000000e+00> : vector<32xf32>
    %34 = vector.multi_reduction <add>, %33, %cst_63 [0] : vector<256x32xf32> to vector<32xf32>
    %35 = vector.shape_cast %34 : vector<32xf32> to vector<1x32xf32>
    %cst_64 = arith.constant 2.560000e+02 : f32
    %36 = vector.broadcast %cst_64 : f32 to vector<1x32xf32>
    %37 = arith.divf %35, %36 : vector<1x32xf32>
    %38 = arith.truncf %37 : vector<1x32xf32> to vector<1x32xbf16>
    %39 = vector.shape_cast %33 : vector<256x32xf32> to vector<16x16x32xf32>
    %40 = arith.truncf %39 : vector<16x16x32xf32> to vector<16x16x32xbf16>
    %c1_65 = arith.constant 1 : index
    %c1_66 = arith.constant 1 : index
    %c0_67 = arith.constant 0 : index
    %41 = vector.load %arg13[%c1_65, %c1_66, %c0_67] : memref<18x18x32xbf16, #tpu.memory_space<vmem>>, vector<16x16x32xbf16>
    tpu.vector_store %arg13[%c1_65, %c1_66, %c0_67], %40 {strides = array<i32>} : memref<18x18x32xbf16, #tpu.memory_space<vmem>>, vector<16x16x32xbf16>,
    %c0_68 = arith.constant 0 : index
    %c0_69 = arith.constant 0 : index
    %42 = vector.load %arg4[%c0_68, %c0_69] : memref<32x80xbf16, #tpu.memory_space<vmem>>, vector<32x80xbf16>
    %cst_70 = arith.constant dense<0.000000e+00> : vector<1x80xf32>
    %43 = tpu.matmul %38, %42, %cst_70 {dimension_numbers = #tpu.dot_dimension_numbers<[1], [0], [0], [1], [0, 0, 1, 1], [], []>} : vector<1x32xbf16>, vector<32x80xbf16>, vector<1x80xf32> -> vector<1x80xf32>
    %c1_71 = arith.constant 1 : index
    %c0_72 = arith.constant 0 : index
    %44 = vector.load %arg8[%c1_71, %c0_72] : memref<16x128xf32, #tpu.memory_space<vmem>>, vector<1x80xf32>
    %45 = arith.addf %43, %44 : vector<1x80xf32>
    %cst_73 = arith.constant 0.000000e+00 : f32
    %46 = vector.broadcast %cst_73 : f32 to vector<1x80xf32>
    %47 = arith.maximumf %45, %46 : vector<1x80xf32>
    %48 = arith.truncf %47 : vector<1x80xf32> to vector<1x80xbf16>
    %c0_74 = arith.constant 0 : index
    %c0_75 = arith.constant 0 : index
    %49 = vector.load %arg5[%c0_74, %c0_75] : memref<80x3xbf16, #tpu.memory_space<vmem>>, vector<80x3xbf16>
    %cst_76 = arith.constant dense<0.000000e+00> : vector<1x3xf32>
    %50 = tpu.matmul %48, %49, %cst_76 {dimension_numbers = #tpu.dot_dimension_numbers<[1], [0], [0], [1], [0, 0, 1, 1], [], []>} : vector<1x80xbf16>, vector<80x3xbf16>, vector<1x3xf32> -> vector<1x3xf32>
    %c6 = arith.constant 6 : index
    %c0_77 = arith.constant 0 : index
    %51 = vector.load %arg8[%c6, %c0_77] : memref<16x128xf32, #tpu.memory_space<vmem>>, vector<1x3xf32>
    %52 = arith.addf %50, %51 : vector<1x3xf32>
    %53 = tpu.iota {dimensions = array<i32: 1>} : vector<1x3xi32>
    %c2_i32 = arith.constant 2 : i32
    %54 = vector.broadcast %c2_i32 : i32 to vector<1x3xi32>
    %55 = arith.cmpi eq, %53, %54 : vector<1x3xi32>
    %56 = arith.negf %52 : vector<1x3xf32>
    %57 = math.exp %56 : vector<1x3xf32>
    %cst_78 = arith.constant 1.000000e+00 : f32
    %58 = vector.broadcast %cst_78 : f32 to vector<1x3xf32>
    %59 = arith.addf %58, %57 : vector<1x3xf32>
    %60 = arith.divf %58, %59 : vector<1x3xf32>
    %61 = arith.select %55, %60, %52 : vector<1x3xi1>, vector<1x3xf32>
    %c0_79 = arith.constant 0 : index
    %c0_80 = arith.constant 0 : index
    %c0_81 = arith.constant 0 : index
    %62 = vector.load %arg9[%c0_79, %c0_80, %c0_81] : memref<1x1x3xf32, #tpu.memory_space<vmem>>, vector<1x1x3xf32>
    %63 = vector.shape_cast %62 : vector<1x1x3xf32> to vector<1x3xf32>
    %64 = vector.shape_cast %61 : vector<1x3xf32> to vector<1x1x3xf32>
    tpu.vector_store %arg9[%c0_79, %c0_80, %c0_81], %64 {strides = array<i32>} : memref<1x1x3xf32, #tpu.memory_space<vmem>>, vector<1x1x3xf32>,
    %c0_82 = arith.constant 0 : index
    %c0_83 = arith.constant 0 : index
    %c0_84 = arith.constant 0 : index
    %65 = vector.load %arg13[%c0_82, %c0_83, %c0_84] : memref<18x18x32xbf16, #tpu.memory_space<vmem>>, vector<16x16x32xbf16>
    %c0_85 = arith.constant 0 : index
    %c1_86 = arith.constant 1 : index
    %c0_87 = arith.constant 0 : index
    %66 = vector.load %arg13[%c0_85, %c1_86, %c0_87] : memref<18x18x32xbf16, #tpu.memory_space<vmem>>, vector<16x16x32xbf16>
    %c0_88 = arith.constant 0 : index
    %c2_89 = arith.constant 2 : index
    %c0_90 = arith.constant 0 : index
    %67 = vector.load %arg13[%c0_88, %c2_89, %c0_90] : memref<18x18x32xbf16, #tpu.memory_space<vmem>>, vector<16x16x32xbf16>
    %c1_91 = arith.constant 1 : index
    %c0_92 = arith.constant 0 : index
    %c0_93 = arith.constant 0 : index
    %68 = vector.load %arg13[%c1_91, %c0_92, %c0_93] : memref<18x18x32xbf16, #tpu.memory_space<vmem>>, vector<16x16x32xbf16>
    %c1_94 = arith.constant 1 : index
    %c1_95 = arith.constant 1 : index
    %c0_96 = arith.constant 0 : index
    %69 = vector.load %arg13[%c1_94, %c1_95, %c0_96] : memref<18x18x32xbf16, #tpu.memory_space<vmem>>, vector<16x16x32xbf16>
    %c1_97 = arith.constant 1 : index
    %c2_98 = arith.constant 2 : index
    %c0_99 = arith.constant 0 : index
    %70 = vector.load %arg13[%c1_97, %c2_98, %c0_99] : memref<18x18x32xbf16, #tpu.memory_space<vmem>>, vector<16x16x32xbf16>
    %c2_100 = arith.constant 2 : index
    %c0_101 = arith.constant 0 : index
    %c0_102 = arith.constant 0 : index
    %71 = vector.load %arg13[%c2_100, %c0_101, %c0_102] : memref<18x18x32xbf16, #tpu.memory_space<vmem>>, vector<16x16x32xbf16>
    %c2_103 = arith.constant 2 : index
    %c1_104 = arith.constant 1 : index
    %c0_105 = arith.constant 0 : index
    %72 = vector.load %arg13[%c2_103, %c1_104, %c0_105] : memref<18x18x32xbf16, #tpu.memory_space<vmem>>, vector<16x16x32xbf16>
    %c2_106 = arith.constant 2 : index
    %c2_107 = arith.constant 2 : index
    %c0_108 = arith.constant 0 : index
    %73 = vector.load %arg13[%c2_106, %c2_107, %c0_108] : memref<18x18x32xbf16, #tpu.memory_space<vmem>>, vector<16x16x32xbf16>
    %74 = tpu.concatenate %65, %66, %67, %68, %69, %70, %71, %72, %73 in 2 : vector<16x16x32xbf16>, vector<16x16x32xbf16>, vector<16x16x32xbf16>, vector<16x16x32xbf16>, vector<16x16x32xbf16>, vector<16x16x32xbf16>, vector<16x16x32xbf16>, vector<16x16x32xbf16>, vector<16x16x32xbf16> -> vector<16x16x288xbf16>
    %75 = vector.shape_cast %74 : vector<16x16x288xbf16> to vector<256x288xbf16>
    %c0_109 = arith.constant 0 : index
    %c0_110 = arith.constant 0 : index
    %76 = vector.load %arg3[%c0_109, %c0_110] : memref<288x32xbf16, #tpu.memory_space<vmem>>, vector<288x32xbf16>
    %cst_111 = arith.constant dense<0.000000e+00> : vector<256x32xf32>
    %77 = tpu.matmul %75, %76, %cst_111 {dimension_numbers = #tpu.dot_dimension_numbers<[1], [0], [0], [1], [0, 0, 1, 1], [], []>} : vector<256x288xbf16>, vector<288x32xbf16>, vector<256x32xf32> -> vector<256x32xf32>
    %c2_112 = arith.constant 2 : index
    %c0_113 = arith.constant 0 : index
    %78 = vector.load %arg8[%c2_112, %c0_113] : memref<16x128xf32, #tpu.memory_space<vmem>>, vector<1x32xf32>
    %79 = vector.broadcast %78 : vector<1x32xf32> to vector<256x32xf32>
    %80 = arith.mulf %77, %79 : vector<256x32xf32>
    %c3 = arith.constant 3 : index
    %c0_114 = arith.constant 0 : index
    %81 = vector.load %arg8[%c3, %c0_114] : memref<16x128xf32, #tpu.memory_space<vmem>>, vector<1x32xf32>
    %82 = vector.broadcast %81 : vector<1x32xf32> to vector<256x32xf32>
    %83 = arith.addf %80, %82 : vector<256x32xf32>
    %cst_115 = arith.constant 0.000000e+00 : f32
    %84 = vector.broadcast %cst_115 : f32 to vector<256x32xf32>
    %85 = arith.maximumf %83, %84 : vector<256x32xf32>
    %86 = vector.shape_cast %85 : vector<256x32xf32> to vector<16x16x32xf32>
    %c4 = arith.constant 4 : index
    %c0_116 = arith.constant 0 : index
    %87 = vector.load %arg8[%c4, %c0_116] : memref<16x128xf32, #tpu.memory_space<vmem>>, vector<1x32xf32>
    %88 = vector.shape_cast %87 : vector<1x32xf32> to vector<1x1x32xf32>
    %89 = vector.broadcast %88 : vector<1x1x32xf32> to vector<16x16x32xf32>
    %90 = arith.mulf %86, %89 : vector<16x16x32xf32>
    %cst_117 = arith.constant dense<0.000000e+00> : vector<16x16xf32>
    %91 = vector.multi_reduction <add>, %90, %cst_117 [2] : vector<16x16x32xf32> to vector<16x16xf32>
    %c7 = arith.constant 7 : index
    %c0_118 = arith.constant 0 : index
    %92 = vector.load %arg8[%c7, %c0_118] : memref<16x128xf32, #tpu.memory_space<vmem>>, vector<1x1xf32>
    %93 = vector.broadcast %92 : vector<1x1xf32> to vector<16x16xf32>
    %94 = arith.addf %91, %93 : vector<16x16xf32>
    %c5 = arith.constant 5 : index
    %c0_119 = arith.constant 0 : index
    %95 = vector.load %arg8[%c5, %c0_119] : memref<16x128xf32, #tpu.memory_space<vmem>>, vector<1x32xf32>
    %96 = vector.shape_cast %95 : vector<1x32xf32> to vector<1x1x32xf32>
    %97 = vector.broadcast %96 : vector<1x1x32xf32> to vector<16x16x32xf32>
    %98 = arith.mulf %86, %97 : vector<16x16x32xf32>
    %cst_120 = arith.constant dense<0.000000e+00> : vector<16x16xf32>
    %99 = vector.multi_reduction <add>, %98, %cst_120 [2] : vector<16x16x32xf32> to vector<16x16xf32>
    %c8 = arith.constant 8 : index
    %c0_121 = arith.constant 0 : index
    %100 = vector.load %arg8[%c8, %c0_121] : memref<16x128xf32, #tpu.memory_space<vmem>>, vector<1x1xf32>
    %101 = vector.broadcast %100 : vector<1x1xf32> to vector<16x16xf32>
    %102 = arith.addf %99, %101 : vector<16x16xf32>
    %103 = arith.negf %102 : vector<16x16xf32>
    %104 = math.exp %103 : vector<16x16xf32>
    %cst_122 = arith.constant 1.000000e+00 : f32
    %105 = vector.broadcast %cst_122 : f32 to vector<16x16xf32>
    %106 = arith.addf %105, %104 : vector<16x16xf32>
    %107 = arith.divf %105, %106 : vector<16x16xf32>
    %c0_123 = arith.constant 0 : index
    %c0_124 = arith.constant 0 : index
    %c0_125 = arith.constant 0 : index
    %108 = vector.load %arg11[%c0_123, %c0_124, %c0_125] : memref<1x16x16xf32, #tpu.memory_space<vmem>>, vector<1x16x16xf32>
    %109 = vector.shape_cast %108 : vector<1x16x16xf32> to vector<16x16xf32>
    %110 = vector.shape_cast %107 : vector<16x16xf32> to vector<1x16x16xf32>
    tpu.vector_store %arg11[%c0_123, %c0_124, %c0_125], %110 {strides = array<i32>} : memref<1x16x16xf32, #tpu.memory_space<vmem>>, vector<1x16x16xf32>,
    %c0_126 = arith.constant 0 : index
    %c0_127 = arith.constant 0 : index
    %111 = vector.load %arg6[%c0_126, %c0_127] : memref<32x16xbf16, #tpu.memory_space<vmem>>, vector<32x16xbf16>
    %112 = arith.truncf %94 : vector<16x16xf32> to vector<16x16xbf16>
    %cst_128 = arith.constant dense<0.000000e+00> : vector<32x16xf32>
    %113 = tpu.matmul %111, %112, %cst_128 {dimension_numbers = #tpu.dot_dimension_numbers<[1], [0], [0], [1], [0, 0, 1, 1], [], []>} : vector<32x16xbf16>, vector<16x16xbf16>, vector<32x16xf32> -> vector<32x16xf32>
    %114 = arith.truncf %113 : vector<32x16xf32> to vector<32x16xbf16>
    %c0_129 = arith.constant 0 : index
    %c0_130 = arith.constant 0 : index
    %115 = vector.load %arg7[%c0_129, %c0_130] : memref<16x32xbf16, #tpu.memory_space<vmem>>, vector<16x32xbf16>
    %cst_131 = arith.constant dense<0.000000e+00> : vector<32x32xf32>
    %116 = tpu.matmul %114, %115, %cst_131 {dimension_numbers = #tpu.dot_dimension_numbers<[1], [0], [0], [1], [0, 0, 1, 1], [], []>} : vector<32x16xbf16>, vector<16x32xbf16>, vector<32x32xf32> -> vector<32x32xf32>
    %c0_132 = arith.constant 0 : index
    %c0_133 = arith.constant 0 : index
    %c0_134 = arith.constant 0 : index
    %117 = vector.load %arg10[%c0_132, %c0_133, %c0_134] : memref<1x32x32xf32, #tpu.memory_space<vmem>>, vector<1x32x32xf32>
    %118 = vector.shape_cast %117 : vector<1x32x32xf32> to vector<32x32xf32>
    %119 = vector.shape_cast %116 : vector<32x32xf32> to vector<1x32x32xf32>
    tpu.vector_store %arg10[%c0_132, %c0_133, %c0_134], %119 {strides = array<i32>} : memref<1x32x32xf32, #tpu.memory_space<vmem>>, vector<1x32x32xf32>,
    return
  }
  func.func @transform_0(%arg0: i32) -> (i32, i32, i32, i32) {
    %c0_i32 = arith.constant 0 : i32
    %c0_i32_0 = arith.constant 0 : i32
    %c0_i32_1 = arith.constant 0 : i32
    %c0_i32_2 = arith.constant 0 : i32
    return %arg0, %c0_i32, %c0_i32_0, %c0_i32_1 : i32, i32, i32, i32
  }
  func.func @transform_1(%arg0: i32) -> (i32, i32) {
    %c0_i32 = arith.constant 0 : i32
    %c0_i32_0 = arith.constant 0 : i32
    %c0_i32_1 = arith.constant 0 : i32
    return %c0_i32, %c0_i32_0 : i32, i32
  }
  func.func @transform_2(%arg0: i32) -> (i32, i32) {
    %c0_i32 = arith.constant 0 : i32
    %c0_i32_0 = arith.constant 0 : i32
    %c0_i32_1 = arith.constant 0 : i32
    return %c0_i32, %c0_i32_0 : i32, i32
  }
  func.func @transform_3(%arg0: i32) -> (i32, i32) {
    %c0_i32 = arith.constant 0 : i32
    %c0_i32_0 = arith.constant 0 : i32
    %c0_i32_1 = arith.constant 0 : i32
    return %c0_i32, %c0_i32_0 : i32, i32
  }
  func.func @transform_4(%arg0: i32) -> (i32, i32) {
    %c0_i32 = arith.constant 0 : i32
    %c0_i32_0 = arith.constant 0 : i32
    %c0_i32_1 = arith.constant 0 : i32
    return %c0_i32, %c0_i32_0 : i32, i32
  }
  func.func @transform_5(%arg0: i32) -> (i32, i32) {
    %c0_i32 = arith.constant 0 : i32
    %c0_i32_0 = arith.constant 0 : i32
    %c0_i32_1 = arith.constant 0 : i32
    return %c0_i32, %c0_i32_0 : i32, i32
  }
  func.func @transform_6(%arg0: i32) -> (i32, i32) {
    %c0_i32 = arith.constant 0 : i32
    %c0_i32_0 = arith.constant 0 : i32
    %c0_i32_1 = arith.constant 0 : i32
    return %c0_i32, %c0_i32_0 : i32, i32
  }
  func.func @transform_7(%arg0: i32) -> (i32, i32) {
    %c0_i32 = arith.constant 0 : i32
    %c0_i32_0 = arith.constant 0 : i32
    %c0_i32_1 = arith.constant 0 : i32
    return %c0_i32, %c0_i32_0 : i32, i32
  }
  func.func @transform_8(%arg0: i32) -> (i32, i32, i32) {
    %c0_i32 = arith.constant 0 : i32
    %c0_i32_0 = arith.constant 0 : i32
    %c0_i32_1 = arith.constant 0 : i32
    return %arg0, %c0_i32, %c0_i32_0 : i32, i32, i32
  }
  func.func @transform_9(%arg0: i32) -> (i32, i32, i32) {
    %c0_i32 = arith.constant 0 : i32
    %c0_i32_0 = arith.constant 0 : i32
    %c0_i32_1 = arith.constant 0 : i32
    return %arg0, %c0_i32, %c0_i32_0 : i32, i32, i32
  }
  func.func @transform_10(%arg0: i32) -> (i32, i32, i32) {
    %c0_i32 = arith.constant 0 : i32
    %c0_i32_0 = arith.constant 0 : i32
    %c0_i32_1 = arith.constant 0 : i32
    return %arg0, %c0_i32, %c0_i32_0 : i32, i32, i32
  }
}

</mosaic_0001>

<llo_original>
// kernel: forgery_detector_forward.1
$region0: #{forgery_detector_forward.1}
  #allocation0 [shape = 'u32[]', space=smem, size = 0x4, offset = 0x4, fixed_abs, tag = 'smem constant byte address 0x4 - core index']
  #allocation1 [shape = 'u32[144,128]{1,0:T(1,128)}', space=vmem, size = 0x12000, scoped, tag = 'internal scratch']
  #allocation2 [shape = 'bf16[18,18,3]{2,1,0:T(8,128)(2,1)}', space=vmem, size = 0x1b000, scoped, tag = 'scratch operand']
  #allocation3 [shape = 'bf16[18,18,32]{2,1,0:T(8,128)(2,1)}', space=vmem, size = 0x1b000, scoped, tag = 'scratch operand']
  %s0 = inlined_call_operand.vmem [shape: f32[2,16,16,3], index: 0, kind: input, shape index: {}]
  %s1 = inlined_call_operand.vmem [shape: bf16[27,32], index: 1, kind: input, shape index: {}]
  %s2 = inlined_call_operand.vmem [shape: bf16[288,32], index: 2, kind: input, shape index: {}]
  %s3 = inlined_call_operand.vmem [shape: bf16[32,80], index: 3, kind: input, shape index: {}]
  %s4 = inlined_call_operand.vmem [shape: bf16[80,3], index: 4, kind: input, shape index: {}]
  %s5 = inlined_call_operand.vmem [shape: bf16[32,16], index: 5, kind: input, shape index: {}]
  %s6 = inlined_call_operand.vmem [shape: bf16[16,32], index: 6, kind: input, shape index: {}]
  %s7 = inlined_call_operand.vmem [shape: f32[16,128], index: 7, kind: input, shape index: {}]
  %s8 = inlined_call_operand.vmem [shape: f32[2,1,3], index: 8, kind: output, shape index: {0}]
  %s9 = inlined_call_operand.hbm [shape: f32[2,32,32], index: 9, kind: output, shape index: {1}]
  %s10 = inlined_call_operand.hbm [shape: f32[2,16,16], index: 10, kind: output, shape index: {2}]
  %11 = xla_tuple %s8, %s9, %s10
  %s12 = sld [smem:[#allocation0]]
  $region81: #{forgery_detector_forward.1} parent=0
    _
  %s14 = ssub.s32 1, %s12
  %s15 = scalar_select 0, %s14, %s12
  $region1: #{forgery_detector_forward.1} parent=0
    #allocation4 [shape = 'u8[32768]{0}', space=vmem, size = 0x8000, scoped, tag = 'output window, operand 1']
    #allocation5 [shape = 's32[2]{0}', space=sflag, size = 0x8, scoped, tag = 'scoped memory for forgery_detector_forward.1']
    #allocation6 [shape = 'u8[16384]{0}', space=vmem, size = 0x4000, scoped, tag = 'output window, operand 2']
    #allocation7 [shape = 's32[2]{0}', space=sflag, size = 0x8, scoped, tag = 'scoped memory for forgery_detector_forward.1']
    %16 = vsyncpa [#allocation5], 0
    %s17 = scalar_lea.sflag [#allocation5], 1
    %18 = vsyncpa %s17, 0
    %19 = vsyncpa [#allocation7], 0
    %s20 = scalar_lea.sflag [#allocation7], 1
    %21 = vsyncpa %s20, 0
    loop: start=0, step=1, limit=4
    $region2: #{forgery_detector_forward.1} parent=1 // loop_pre_header
      _
    $region3: #{forgery_detector_forward.1} parent=1 // loop_header
      %s23 = sphi 0, %s27
      %p24 = scmp.ge.s32.totalorder %s23, 4
      %s33 = sphi 0, %s35
      %s36 = sphi 0, %s33
      %s37 = sphi 0, %s36
      %s53 = sphi 0, %s37
      %s57 = sphi 0, %s57
      %s59 = sphi 0, %s57
      %s60 = sphi 0, %s59
      %s74 = sphi 0, %s60
      %s78 = sphi 0, %s78
      %s80 = sphi 0, %s78
      %s81 = sphi 0, %s80
      %s95 = sphi 0, %s81
      %s99 = sphi 0, %s99
      %s101 = sphi 0, %s99
      %s102 = sphi 0, %s101
      %s116 = sphi 0, %s102
      %s120 = sphi 0, %s120
      %s122 = sphi 0, %s120
      %s123 = sphi 0, %s122
      %s137 = sphi 0, %s123
      %s141 = sphi 0, %s141
      %s143 = sphi 0, %s141
      %s144 = sphi 0, %s143
      %s158 = sphi 0, %s144
      %s162 = sphi 0, %s162
      %s164 = sphi 0, %s162
      %s165 = sphi 0, %s164
      %s179 = sphi 0, %s165
      %s183 = sphi 0, %s183
      %s185 = sphi 0, %s183
      %s186 = sphi 0, %s185
      %s200 = sphi 0, %s186
      %s206 = sphi 0, %s208
      %s209 = sphi 0, %s206
      %s210 = sphi 0, %s209
      %s226 = sphi 0, %s210
      %s232 = sphi 0, %s234
      %s235 = sphi 0, %s232
      %s236 = sphi 0, %s235
      %s252 = sphi 0, %s236
      %s258 = sphi 0, %s260
      %s261 = sphi 0, %s258
      %s262 = sphi 0, %s261
      %s278 = sphi 0, %s262
    $region4: #{forgery_detector_forward.1} parent=1 // loop_header_branch
      %26 = sbr.rel (%p24) target = $region8
    $region5: #{forgery_detector_forward.1} parent=1 // loop_body
      %s28 = ssub.s32 %s23, 1
      %s29 = ssub.s32 %s23, 2
      %s30 = sadd.s32 %s23, 1
      %s31 = ssub.s32 %s23, %s30
      %p32 = scmp.eq.s32.totalorder %s31, 0
      %s34 = sadd.s32 %s33, 1
      %s35 = scalar_select %p32, %s33, %s34
      %p38 = pneg %p32
      %p39 = scmp.eq.s32.totalorder %s23, 1
      %p40 = por %p38, %p39
      %p41 = scmp.ne.s32.totalorder %s33, %s36
      %p42 = scmp.eq.s32.totalorder %s23, 0
      %p43 = por %p41, %p42
      %p44 = scmp.ne.s32.totalorder %s33, %s36
      %p45 = scmp.eq.s32.totalorder %s28, 1
      %p46 = por %p44, %p45
      %p47 = scmp.ne.s32.totalorder %s36, %s37
      %p48 = scmp.eq.s32.totalorder %s28, 0
      %p49 = por %p47, %p48
      %p50 = scmp.ne.s32.totalorder %s36, %s37
      %p51 = scmp.eq.s32.totalorder %s29, 1
      %p52 = por %p50, %p51
      %p54 = scmp.ne.s32.totalorder %s37, %s53
      %p55 = scmp.eq.s32.totalorder %s29, 0
      %p56 = por %p54, %p55
      %s58 = sadd.s32 %s57, 1
      %p61 = scmp.eq.s32.totalorder %s23, 1
      %p62 = scmp.ne.s32.totalorder %s57, %s59
      %p63 = scmp.eq.s32.totalorder %s23, 0
      %p64 = por %p62, %p63
      %p65 = scmp.ne.s32.totalorder %s57, %s59
      %p66 = scmp.eq.s32.totalorder %s28, 1
      %p67 = por %p65, %p66
      %p68 = scmp.ne.s32.totalorder %s59, %s60
      %p69 = scmp.eq.s32.totalorder %s28, 0
      %p70 = por %p68, %p69
      %p71 = scmp.ne.s32.totalorder %s59, %s60
      %p72 = scmp.eq.s32.totalorder %s29, 1
      %p73 = por %p71, %p72
      %p75 = scmp.ne.s32.totalorder %s60, %s74
      %p76 = scmp.eq.s32.totalorder %s29, 0
      %p77 = por %p75, %p76
      %s79 = sadd.s32 %s78, 1
      %p82 = scmp.eq.s32.totalorder %s23, 1
      %p83 = scmp.ne.s32.totalorder %s78, %s80
      %p84 = scmp.eq.s32.totalorder %s23, 0
      %p85 = por %p83, %p84
      %p86 = scmp.ne.s32.totalorder %s78, %s80
      %p87 = scmp.eq.s32.totalorder %s28, 1
      %p88 = por %p86, %p87
      %p89 = scmp.ne.s32.totalorder %s80, %s81
      %p90 = scmp.eq.s32.totalorder %s28, 0
      %p91 = por %p89, %p90
      %p92 = scmp.ne.s32.totalorder %s80, %s81
      %p93 = scmp.eq.s32.totalorder %s29, 1
      %p94 = por %p92, %p93
      %p96 = scmp.ne.s32.totalorder %s81, %s95
      %p97 = scmp.eq.s32.totalorder %s29, 0
      %p98 = por %p96, %p97
      %s100 = sadd.s32 %s99, 1
      %p103 = scmp.eq.s32.totalorder %s23, 1
      %p104 = scmp.ne.s32.totalorder %s99, %s101
      %p105 = scmp.eq.s32.totalorder %s23, 0
      %p106 = por %p104, %p105
      %p107 = scmp.ne.s32.totalorder %s99, %s101
      %p108 = scmp.eq.s32.totalorder %s28, 1
      %p109 = por %p107, %p108
      %p110 = scmp.ne.s32.totalorder %s101, %s102
      %p111 = scmp.eq.s32.totalorder %s28, 0
      %p112 = por %p110, %p111
      %p113 = scmp.ne.s32.totalorder %s101, %s102
      %p114 = scmp.eq.s32.totalorder %s29, 1
      %p115 = por %p113, %p114
      %p117 = scmp.ne.s32.totalorder %s102, %s116
      %p118 = scmp.eq.s32.totalorder %s29, 0
      %p119 = por %p117, %p118
      %s121 = sadd.s32 %s120, 1
      %p124 = scmp.eq.s32.totalorder %s23, 1
      %p125 = scmp.ne.s32.totalorder %s120, %s122
      %p126 = scmp.eq.s32.totalorder %s23, 0
      %p127 = por %p125, %p126
      %p128 = scmp.ne.s32.totalorder %s120, %s122
      %p129 = scmp.eq.s32.totalorder %s28, 1
      %p130 = por %p128, %p129
      %p131 = scmp.ne.s32.totalorder %s122, %s123
      %p132 = scmp.eq.s32.totalorder %s28, 0
      %p133 = por %p131, %p132
      %p134 = scmp.ne.s32.totalorder %s122, %s123
      %p135 = scmp.eq.s32.totalorder %s29, 1
      %p136 = por %p134, %p135
      %p138 = scmp.ne.s32.totalorder %s123, %s137
      %p139 = scmp.eq.s32.totalorder %s29, 0
      %p140 = por %p138, %p139
      %s142 = sadd.s32 %s141, 1
      %p145 = scmp.eq.s32.totalorder %s23, 1
      %p146 = scmp.ne.s32.totalorder %s141, %s143
      %p147 = scmp.eq.s32.totalorder %s23, 0
      %p148 = por %p146, %p147
      %p149 = scmp.ne.s32.totalorder %s141, %s143
      %p150 = scmp.eq.s32.totalorder %s28, 1
      %p151 = por %p149, %p150
      %p152 = scmp.ne.s32.totalorder %s143, %s144
      %p153 = scmp.eq.s32.totalorder %s28, 0
      %p154 = por %p152, %p153
      %p155 = scmp.ne.s32.totalorder %s143, %s144
      %p156 = scmp.eq.s32.totalorder %s29, 1
      %p157 = por %p155, %p156
      %p159 = scmp.ne.s32.totalorder %s144, %s158
      %p160 = scmp.eq.s32.totalorder %s29, 0
      %p161 = por %p159, %p160
      %s163 = sadd.s32 %s162, 1
      %p166 = scmp.eq.s32.totalorder %s23, 1
      %p167 = scmp.ne.s32.totalorder %s162, %s164
      %p168 = scmp.eq.s32.totalorder %s23, 0
      %p169 = por %p167, %p168
      %p170 = scmp.ne.s32.totalorder %s162, %s164
      %p171 = scmp.eq.s32.totalorder %s28, 1
      %p172 = por %p170, %p171
      %p173 = scmp.ne.s32.totalorder %s164, %s165
      %p174 = scmp.eq.s32.totalorder %s28, 0
      %p175 = por %p173, %p174
      %p176 = scmp.ne.s32.totalorder %s164, %s165
      %p177 = scmp.eq.s32.totalorder %s29, 1
      %p178 = por %p176, %p177
      %p180 = scmp.ne.s32.totalorder %s165, %s179
      %p181 = scmp.eq.s32.totalorder %s29, 0
      %p182 = por %p180, %p181
      %s184 = sadd.s32 %s183, 1
      %p187 = scmp.eq.s32.totalorder %s23, 1
      %p188 = scmp.ne.s32.totalorder %s183, %s185
      %p189 = scmp.eq.s32.totalorder %s23, 0
      %p190 = por %p188, %p189
      %p191 = scmp.ne.s32.totalorder %s183, %s185
      %p192 = scmp.eq.s32.totalorder %s28, 1
      %p193 = por %p191, %p192
      %p194 = scmp.ne.s32.totalorder %s185, %s186
      %p195 = scmp.eq.s32.totalorder %s28, 0
      %p196 = por %p194, %p195
      %p197 = scmp.ne.s32.totalorder %s185, %s186
      %p198 = scmp.eq.s32.totalorder %s29, 1
      %p199 = por %p197, %p198
      %p201 = scmp.ne.s32.totalorder %s186, %s200
      %p202 = scmp.eq.s32.totalorder %s29, 0
      %p203 = por %p201, %p202
      %s204 = ssub.s32 %s23, %s30
      %p205 = scmp.eq.s32.totalorder %s204, 0
      %s207 = sadd.s32 %s206, 1
      %s208 = scalar_select %p205, %s206, %s207
      %p211 = pneg %p205
      %p212 = scmp.eq.s32.totalorder %s23, 1
      %p213 = por %p211, %p212
      %p214 = scmp.ne.s32.totalorder %s206, %s209
      %p215 = scmp.eq.s32.totalorder %s23, 0
      %p216 = por %p214, %p215
      %p217 = scmp.ne.s32.totalorder %s206, %s209
      %p218 = scmp.eq.s32.totalorder %s28, 1
      %p219 = por %p217, %p218
      %p220 = scmp.ne.s32.totalorder %s209, %s210
      %p221 = scmp.eq.s32.totalorder %s28, 0
      %p222 = por %p220, %p221
      %p223 = scmp.ne.s32.totalorder %s209, %s210
      %p224 = scmp.eq.s32.totalorder %s29, 1
      %p225 = por %p223, %p224
      %p227 = scmp.ne.s32.totalorder %s210, %s226
      %p228 = scmp.eq.s32.totalorder %s29, 0
      %p229 = por %p227, %p228
      %s230 = ssub.s32 %s23, %s30
      %p231 = scmp.eq.s32.totalorder %s230, 0
      %s233 = sadd.s32 %s232, 1
      %s234 = scalar_select %p231, %s232, %s233
      %p237 = pneg %p231
      %p238 = scmp.eq.s32.totalorder %s23, 1
      %p239 = por %p237, %p238
      %p240 = scmp.ne.s32.totalorder %s232, %s235
      %p241 = scmp.eq.s32.totalorder %s23, 0
      %p242 = por %p240, %p241
      %p243 = scmp.ne.s32.totalorder %s232, %s235
      %p244 = scmp.eq.s32.totalorder %s28, 1
      %p245 = por %p243, %p244
      %p246 = scmp.ne.s32.totalorder %s235, %s236
      %p247 = scmp.eq.s32.totalorder %s28, 0
      %p248 = por %p246, %p247
      %p249 = scmp.ne.s32.totalorder %s235, %s236
      %p250 = scmp.eq.s32.totalorder %s29, 1
      %p251 = por %p249, %p250
      %p253 = scmp.ne.s32.totalorder %s236, %s252
      %p254 = scmp.eq.s32.totalorder %s29, 0
      %p255 = por %p253, %p254
      %s256 = ssub.s32 %s23, %s30
      %p257 = scmp.eq.s32.totalorder %s256, 0
      %s259 = sadd.s32 %s258, 1
      %s260 = scalar_select %p257, %s258, %s259
      %p263 = pneg %p257
      %p264 = scmp.eq.s32.totalorder %s23, 1
      %p265 = por %p263, %p264
      %p266 = scmp.ne.s32.totalorder %s258, %s261
      %p267 = scmp.eq.s32.totalorder %s23, 0
      %p268 = por %p266, %p267
      %p269 = scmp.ne.s32.totalorder %s258, %s261
      %p270 = scmp.eq.s32.totalorder %s28, 1
      %p271 = por %p269, %p270
      %p272 = scmp.ne.s32.totalorder %s261, %s262
      %p273 = scmp.eq.s32.totalorder %s28, 0
      %p274 = por %p272, %p273
      %p275 = scmp.ne.s32.totalorder %s261, %s262
      %p276 = scmp.eq.s32.totalorder %s29, 1
      %p277 = por %p275, %p276
      %p279 = scmp.ne.s32.totalorder %s262, %s278
      %p280 = scmp.eq.s32.totalorder %s29, 0
      %p281 = por %p279, %p280
      %p282 = scmp.le.s32.totalorder 1, %s23
      %p283 = scmp.lt.s32.totalorder %s23, 3
      %p284 = pnand %p282, %p283
      %p285 = pneg %p284
      // Predicated region
      $region9: #{forgery_detector_forward.1} parent=5 // pred_check
        _
      $region10: #{forgery_detector_forward.1} parent=5 // pred_check_branch
        %287 = sbr.rel (%p284) target = $region12
      $region11: #{forgery_detector_forward.1} parent=5 // pred_region
        %s288 = ssub.s32 %s23, 1
        // Predicated region
        $region13: #{forgery_detector_forward.1} parent=11 // pred_check
          %p289 = pneg %p70
        $region14: #{forgery_detector_forward.1} parent=11 // pred_check_branch
          %291 = sbr.rel (%p289) target = $region16
        $region15: #{forgery_detector_forward.1} parent=11 // pred_region
          _
        $region16: #{forgery_detector_forward.1} parent=11 // pred_fallthru
          _
        // Predicated region
        $region17: #{forgery_detector_forward.1} parent=11 // pred_check
          %p292 = pneg %p91
        $region18: #{forgery_detector_forward.1} parent=11 // pred_check_branch
          %294 = sbr.rel (%p292) target = $region20
        $region19: #{forgery_detector_forward.1} parent=11 // pred_region
          _
        $region20: #{forgery_detector_forward.1} parent=11 // pred_fallthru
          _
        // Predicated region
        $region21: #{forgery_detector_forward.1} parent=11 // pred_check
          %p295 = pneg %p112
        $region22: #{forgery_detector_forward.1} parent=11 // pred_check_branch
          %297 = sbr.rel (%p295) target = $region24
        $region23: #{forgery_detector_forward.1} parent=11 // pred_region
          _
        $region24: #{forgery_detector_forward.1} parent=11 // pred_fallthru
          _
        // Predicated region
        $region25: #{forgery_detector_forward.1} parent=11 // pred_check
          %p298 = pneg %p133
        $region26: #{forgery_detector_forward.1} parent=11 // pred_check_branch
          %300 = sbr.rel (%p298) target = $region28
        $region27: #{forgery_detector_forward.1} parent=11 // pred_region
          _
        $region28: #{forgery_detector_forward.1} parent=11 // pred_fallthru
          _
        // Predicated region
        $region29: #{forgery_detector_forward.1} parent=11 // pred_check
          %p301 = pneg %p154
        $region30: #{forgery_detector_forward.1} parent=11 // pred_check_branch
          %303 = sbr.rel (%p301) target = $region32
        $region31: #{forgery_detector_forward.1} parent=11 // pred_region
          _
        $region32: #{forgery_detector_forward.1} parent=11 // pred_fallthru
          _
        // Predicated region
        $region33: #{forgery_detector_forward.1} parent=11 // pred_check
          %p304 = pneg %p175
        $region34: #{forgery_detector_forward.1} parent=11 // pred_check_branch
          %306 = sbr.rel (%p304) target = $region36
        $region35: #{forgery_detector_forward.1} parent=11 // pred_region
          _
        $region36: #{forgery_detector_forward.1} parent=11 // pred_fallthru
          _
        // Predicated region
        $region37: #{forgery_detector_forward.1} parent=11 // pred_check
          %p307 = pneg %p196
        $region38: #{forgery_detector_forward.1} parent=11 // pred_check_branch
          %309 = sbr.rel (%p307) target = $region40
        $region39: #{forgery_detector_forward.1} parent=11 // pred_region
          _
        $region40: #{forgery_detector_forward.1} parent=11 // pred_fallthru
          _
      $region12: #{forgery_detector_forward.1} parent=5 // pred_fallthru
        _
      %p310 = scmp.lt.s32.totalorder %s23, 2
      // Predicated region
      $region41: #{forgery_detector_forward.1} parent=5 // pred_check
        %p311 = pneg %p310
      $region42: #{forgery_detector_forward.1} parent=5 // pred_check_branch
        %313 = sbr.rel (%p311) target = $region44
      $region43: #{forgery_detector_forward.1} parent=5 // pred_region
        // Predicated region
        $region45: #{forgery_detector_forward.1} parent=43 // pred_check
          %p314 = pneg %p43
        $region46: #{forgery_detector_forward.1} parent=43 // pred_check_branch
          %316 = sbr.rel (%p314) target = $region48
        $region47: #{forgery_detector_forward.1} parent=43 // pred_region
          %p317 = scmp.lt.s32.totalorder %s23, 1
          %s318 = scalar_select %p317, %s23, 1
          %s319 = smul.addr %s318, 32
          %s320 = smul.addr %s319, 8
          %s321 = scalar_lea.vmem %s0, %s320
        $region48: #{forgery_detector_forward.1} parent=43 // pred_fallthru
          _
      $region44: #{forgery_detector_forward.1} parent=5 // pred_fallthru
        _
      %p322 = scmp.le.s32.totalorder 1, %s23
      %p323 = scmp.lt.s32.totalorder %s23, 3
      %p324 = pnand %p322, %p323
      %p325 = pneg %p324
      // Predicated region
      $region49: #{forgery_detector_forward.1} parent=5 // pred_check
        _
      $region50: #{forgery_detector_forward.1} parent=5 // pred_check_branch
        %327 = sbr.rel (%p324) target = $region52
      $region51: #{forgery_detector_forward.1} parent=5 // pred_region
        %s328 = ssub.s32 %s23, 1
        %p329 = scmp.lt.s32.totalorder %s28, 1
        %s330 = scalar_select %p329, %s28, 1
        %s331 = smul.addr %s330, 32
        %s332 = smul.addr %s331, 8
        %s333 = scalar_lea.vmem %s0, %s332
        %p334 = pneg %p49
        %p335 = pneg %p46
        %p336 = pneg %p70
        %p337 = pneg %p67
        %p338 = pneg %p91
        %p339 = pneg %p88
        %p340 = pneg %p112
        %p341 = pneg %p109
        %p342 = pneg %p133
        %p343 = pneg %p130
        %p344 = pneg %p154
        %p345 = pneg %p151
        %p346 = pneg %p175
        %p347 = pneg %p172
        %p348 = pneg %p196
        %p349 = pneg %p193
        %p350 = pneg %p222
        %p351 = pneg %p219
        %p352 = scmp.lt.s32.totalorder %s28, 1
        %s353 = scalar_select %p352, %s28, 1
        %s354 = scalar_lea.vmem %s8, %s353
        %p355 = pneg %p248
        %p356 = pneg %p245
        %s357 = sand.u32 %s235, 1
        %s358 = scalar_lea.sflag [#allocation5], %s357
        %s359 = sand.u32 %s235, 1
        %s360 = smul.addr %s359, 32
        %s361 = scalar_lea.vmem [#allocation4], %s360
        %p362 = pneg %p274
        %p363 = pneg %p271
        %s364 = sand.u32 %s261, 1
        %s365 = scalar_lea.sflag [#allocation7], %s364
        %s366 = sand.u32 %s261, 1
        %s367 = smul.addr %s366, 16
        %s368 = scalar_lea.vmem [#allocation6], %s367
        %p369 = scmp.lt.s32.totalorder %s28, 1
        %s370 = scalar_select %p369, %s28, 1
        %s371 = smul.addr %s370, 32
        %s372 = smul.addr %s371, 8
        %s373 = scalar_lea.vmem %s0, %s372
        %p374 = scmp.lt.s32.totalorder %s28, 1
        %s375 = scalar_select %p374, %s28, 1
        %s376 = scalar_lea.vmem %s8, %s375
        %vm378 = vcmask 19456
        %379 = vst.msk [vmem:[#allocation2] sm:$0xf] %vm378, 0
        %380 = vst.msk [vmem:[#allocation2 + $0x4] sm:$0xf] %vm378, 0
        %vm381 = vcmask 16384
        %382 = vst.msk [vmem:[#allocation2 + $0x8] sm:$0x1] %vm381, 0
        %s383 = scalar_lea.vmem [#allocation2], 204
        %384 = vst.msk [vmem:[%s383] sm:$0xf] %vm378, 0
        %385 = vst.msk [vmem:[%s383 + $0x4] sm:$0xf] %vm378, 0
        %386 = vst.msk [vmem:[%s383 + $0x8] sm:$0x1] %vm381, 0
        %vm387 = vcmask 16384
        %vm388 = vsmask.f32 256
        %vm389 = vmand %vm387, %vm388
        %v390 = vld [vmem:[#allocation2] sm:$0x1]
        %v391 = vsel %vm389, 0, %v390
        %392 = vst [vmem:[#allocation2] sm:$0x1] %v391
        %v393 = vld [vmem:[#allocation2 + $0xc] sm:$0x1]
        %v394 = vsel %vm389, 0, %v393
        %395 = vst [vmem:[#allocation2 + $0xc] sm:$0x1] %v394
        %v396 = vld [vmem:[#allocation2 + $0x18] sm:$0x1]
        %v397 = vsel %vm389, 0, %v396
        %398 = vst [vmem:[#allocation2 + $0x18] sm:$0x1] %v397
        %v399 = vld [vmem:[#allocation2 + $0x24] sm:$0x1]
        %v400 = vsel %vm389, 0, %v399
        %401 = vst [vmem:[#allocation2 + $0x24] sm:$0x1] %v400
        %v402 = vld [vmem:[#allocation2 + $0x30] sm:$0x1]
        %v403 = vsel %vm389, 0, %v402
        %404 = vst [vmem:[#allocation2 + $0x30] sm:$0x1] %v403
        %v405 = vld [vmem:[#allocation2 + $0x3c] sm:$0x1]
        %v406 = vsel %vm389, 0, %v405
        %407 = vst [vmem:[#allocation2 + $0x3c] sm:$0x1] %v406
        %v408 = vld [vmem:[#allocation2 + $0x48] sm:$0x1]
        %v409 = vsel %vm389, 0, %v408
        %410 = vst [vmem:[#allocation2 + $0x48] sm:$0x1] %v409
        %v411 = vld [vmem:[#allocation2 + $0x54] sm:$0x1]
        %v412 = vsel %vm389, 0, %v411
        %413 = vst [vmem:[#allocation2 + $0x54] sm:$0x1] %v412
        %v414 = vld [vmem:[#allocation2 + $0x60] sm:$0x1]
        %v415 = vsel %vm389, 0, %v414
        %416 = vst [vmem:[#allocation2 + $0x60] sm:$0x1] %v415
        %v417 = vld [vmem:[#allocation2 + $0x6c] sm:$0x1]
        %v418 = vsel %vm389, 0, %v417
        %419 = vst [vmem:[#allocation2 + $0x6c] sm:$0x1] %v418
        %v420 = vld [vmem:[#allocation2 + $0x78] sm:$0x1]
        %v421 = vsel %vm389, 0, %v420
        %422 = vst [vmem:[#allocation2 + $0x78] sm:$0x1] %v421
        %v423 = vld [vmem:[#allocation2 + $0x84] sm:$0x1]
        %v424 = vsel %vm389, 0, %v423
        %425 = vst [vmem:[#allocation2 + $0x84] sm:$0x1] %v424
        %v426 = vld [vmem:[#allocation2 + $0x90] sm:$0x1]
        %v427 = vsel %vm389, 0, %v426
        %428 = vst [vmem:[#allocation2 + $0x90] sm:$0x1] %v427
        %v429 = vld [vmem:[#allocation2 + $0x9c] sm:$0x1]
        %v430 = vsel %vm389, 0, %v429
        %431 = vst [vmem:[#allocation2 + $0x9c] sm:$0x1] %v430
        %v432 = vld [vmem:[#allocation2 + $0xa8] sm:$0x1]
        %v433 = vsel %vm389, 0, %v432
        %434 = vst [vmem:[#allocation2 + $0xa8] sm:$0x1] %v433
        %v435 = vld [vmem:[#allocation2 + $0xb4] sm:$0x1]
        %v436 = vsel %vm389, 0, %v435
        %437 = vst [vmem:[#allocation2 + $0xb4] sm:$0x1] %v436
        %v438 = vld [vmem:[#allocation2 + $0xc0] sm:$0x1]
        %v439 = vsel %vm389, 0, %v438
        %440 = vst [vmem:[#allocation2 + $0xc0] sm:$0x1] %v439
        %v441 = vld [vmem:[#allocation2 + $0xcc] sm:$0x1]
        %v442 = vsel %vm389, 0, %v441
        %443 = vst [vmem:[#allocation2 + $0xcc] sm:$0x1] %v442
        %vm444 = vsmask.f32 7938
        %vm445 = vmand %vm387, %vm444
        %v446 = vld [vmem:[#allocation2 + $0x8] sm:$0x1]
        %v447 = vsel %vm445, 0, %v446
        %448 = vst [vmem:[#allocation2 + $0x8] sm:$0x1] %v447
        %v449 = vld [vmem:[#allocation2 + $0x14] sm:$0x1]
        %v450 = vsel %vm445, 0, %v449
        %451 = vst [vmem:[#allocation2 + $0x14] sm:$0x1] %v450
        %v452 = vld [vmem:[#allocation2 + $0x20] sm:$0x1]
        %v453 = vsel %vm445, 0, %v452
        %454 = vst [vmem:[#allocation2 + $0x20] sm:$0x1] %v453
        %v455 = vld [vmem:[#allocation2 + $0x2c] sm:$0x1]
        %v456 = vsel %vm445, 0, %v455
        %457 = vst [vmem:[#allocation2 + $0x2c] sm:$0x1] %v456
        %v458 = vld [vmem:[#allocation2 + $0x38] sm:$0x1]
        %v459 = vsel %vm445, 0, %v458
        %460 = vst [vmem:[#allocation2 + $0x38] sm:$0x1] %v459
        %v461 = vld [vmem:[#allocation2 + $0x44] sm:$0x1]
        %v462 = vsel %vm445, 0, %v461
        %463 = vst [vmem:[#allocation2 + $0x44] sm:$0x1] %v462
        %v464 = vld [vmem:[#allocation2 + $0x50] sm:$0x1]
        %v465 = vsel %vm445, 0, %v464
        %466 = vst [vmem:[#allocation2 + $0x50] sm:$0x1] %v465
        %v467 = vld [vmem:[#allocation2 + $0x5c] sm:$0x1]
        %v468 = vsel %vm445, 0, %v467
        %469 = vst [vmem:[#allocation2 + $0x5c] sm:$0x1] %v468
        %v470 = vld [vmem:[#allocation2 + $0x68] sm:$0x1]
        %v471 = vsel %vm445, 0, %v470
        %472 = vst [vmem:[#allocation2 + $0x68] sm:$0x1] %v471
        %v473 = vld [vmem:[#allocation2 + $0x74] sm:$0x1]
        %v474 = vsel %vm445, 0, %v473
        %475 = vst [vmem:[#allocation2 + $0x74] sm:$0x1] %v474
        %v476 = vld [vmem:[#allocation2 + $0x80] sm:$0x1]
        %v477 = vsel %vm445, 0, %v476
        %478 = vst [vmem:[#allocation2 + $0x80] sm:$0x1] %v477
        %v479 = vld [vmem:[#allocation2 + $0x8c] sm:$0x1]
        %v480 = vsel %vm445, 0, %v479
        %481 = vst [vmem:[#allocation2 + $0x8c] sm:$0x1] %v480
        %v482 = vld [vmem:[#allocation2 + $0x98] sm:$0x1]
        %v483 = vsel %vm445, 0, %v482
        %484 = vst [vmem:[#allocation2 + $0x98] sm:$0x1] %v483
        %v485 = vld [vmem:[#allocation2 + $0xa4] sm:$0x1]
        %v486 = vsel %vm445, 0, %v485
        %487 = vst [vmem:[#allocation2 + $0xa4] sm:$0x1] %v486
        %v488 = vld [vmem:[#allocation2 + $0xb0] sm:$0x1]
        %v489 = vsel %vm445, 0, %v488
        %490 = vst [vmem:[#allocation2 + $0xb0] sm:$0x1] %v489
        %v491 = vld [vmem:[#allocation2 + $0xbc] sm:$0x1]
        %v492 = vsel %vm445, 0, %v491
        %493 = vst [vmem:[#allocation2 + $0xbc] sm:$0x1] %v492
        %v494 = vld [vmem:[#allocation2 + $0xc8] sm:$0x1]
        %v495 = vsel %vm445, 0, %v494
        %496 = vst [vmem:[#allocation2 + $0xc8] sm:$0x1] %v495
        %v497 = vld [vmem:[#allocation2 + $0xd4] sm:$0x1]
        %v498 = vsel %vm445, 0, %v497
        %499 = vst [vmem:[#allocation2 + $0xd4] sm:$0x1] %v498
        %vm500 = vcmask 257024
        %501 = vst.msk [vmem:[#allocation3] sm:$0xf] %vm500, 0
        %502 = vst.msk [vmem:[#allocation3 + $0x4] sm:$0xf] %vm500, 0
        %vm503 = vcmask 253952
        %504 = vst.msk [vmem:[#allocation3 + $0x8] sm:$0x1] %vm503, 0
        %s505 = scalar_lea.vmem [#allocation3], 204
        %506 = vst.msk [vmem:[%s505] sm:$0xf] %vm500, 0
        %507 = vst.msk [vmem:[%s505 + $0x4] sm:$0xf] %vm500, 0
        %508 = vst.msk [vmem:[%s505 + $0x8] sm:$0x1] %vm503, 0
        %vm509 = vcmask 253952
        %vm510 = vmand %vm509, %vm388
        %v511 = vld [vmem:[#allocation3] sm:$0x1]
        %v512 = vsel %vm510, 0, %v511
        %513 = vst [vmem:[#allocation3] sm:$0x1] %v512
        %v514 = vld [vmem:[#allocation3 + $0xc] sm:$0x1]
        %v515 = vsel %vm510, 0, %v514
        %516 = vst [vmem:[#allocation3 + $0xc] sm:$0x1] %v515
        %v517 = vld [vmem:[#allocation3 + $0x18] sm:$0x1]
        %v518 = vsel %vm510, 0, %v517
        %519 = vst [vmem:[#allocation3 + $0x18] sm:$0x1] %v518
        %v520 = vld [vmem:[#allocation3 + $0x24] sm:$0x1]
        %v521 = vsel %vm510, 0, %v520
        %522 = vst [vmem:[#allocation3 + $0x24] sm:$0x1] %v521
        %v523 = vld [vmem:[#allocation3 + $0x30] sm:$0x1]
        %v524 = vsel %vm510, 0, %v523
        %525 = vst [vmem:[#allocation3 + $0x30] sm:$0x1] %v524
        %v526 = vld [vmem:[#allocation3 + $0x3c] sm:$0x1]
        %v527 = vsel %vm510, 0, %v526
        %528 = vst [vmem:[#allocation3 + $0x3c] sm:$0x1] %v527
        %v529 = vld [vmem:[#allocation3 + $0x48] sm:$0x1]
        %v530 = vsel %vm510, 0, %v529
        %531 = vst [vmem:[#allocation3 + $0x48] sm:$0x1] %v530
        %v532 = vld [vmem:[#allocation3 + $0x54] sm:$0x1]
        %v533 = vsel %vm510, 0, %v532
        %534 = vst [vmem:[#allocation3 + $0x54] sm:$0x1] %v533
        %v535 = vld [vmem:[#allocation3 + $0x60] sm:$0x1]
        %v536 = vsel %vm510, 0, %v535
        %537 = vst [vmem:[#allocation3 + $0x60] sm:$0x1] %v536
        %v538 = vld [vmem:[#allocation3 + $0x6c] sm:$0x1]
        %v539 = vsel %vm510, 0, %v538
        %540 = vst [vmem:[#allocation3 + $0x6c] sm:$0x1] %v539
        %v541 = vld [vmem:[#allocation3 + $0x78] sm:$0x1]
        %v542 = vsel %vm510, 0, %v541
        %543 = vst [vmem:[#allocation3 + $0x78] sm:$0x1] %v542
        %v544 = vld [vmem:[#allocation3 + $0x84] sm:$0x1]
        %v545 = vsel %vm510, 0, %v544
        %546 = vst [vmem:[#allocation3 + $0x84] sm:$0x1] %v545
        %v547 = vld [vmem:[#allocation3 + $0x90] sm:$0x1]
        %v548 = vsel %vm510, 0, %v547
        %549 = vst [vmem:[#allocation3 + $0x90] sm:$0x1] %v548
        %v550 = vld [vmem:[#allocation3 + $0x9c] sm:$0x1]
        %v551 = vsel %vm510, 0, %v550
        %552 = vst [vmem:[#allocation3 + $0x9c] sm:$0x1] %v551
        %v553 = vld [vmem:[#allocation3 + $0xa8] sm:$0x1]
        %v554 = vsel %vm510, 0, %v553
        %555 = vst [vmem:[#allocation3 + $0xa8] sm:$0x1] %v554
        %v556 = vld [vmem:[#allocation3 + $0xb4] sm:$0x1]
        %v557 = vsel %vm510, 0, %v556
        %558 = vst [vmem:[#allocation3 + $0xb4] sm:$0x1] %v557
        %v559 = vld [vmem:[#allocation3 + $0xc0] sm:$0x1]
        %v560 = vsel %vm510, 0, %v559
        %561 = vst [vmem:[#allocation3 + $0xc0] sm:$0x1] %v560
        %v562 = vld [vmem:[#allocation3 + $0xcc] sm:$0x1]
        %v563 = vsel %vm510, 0, %v562
        %564 = vst [vmem:[#allocation3 + $0xcc] sm:$0x1] %v563
        %vm565 = vmand %vm509, %vm444
        %v566 = vld [vmem:[#allocation3 + $0x8] sm:$0x1]
        %v567 = vsel %vm565, 0, %v566
        %568 = vst [vmem:[#allocation3 + $0x8] sm:$0x1] %v567
        %v569 = vld [vmem:[#allocation3 + $0x14] sm:$0x1]
        %v570 = vsel %vm565, 0, %v569
        %571 = vst [vmem:[#allocation3 + $0x14] sm:$0x1] %v570
        %v572 = vld [vmem:[#allocation3 + $0x20] sm:$0x1]
        %v573 = vsel %vm565, 0, %v572
        %574 = vst [vmem:[#allocation3 + $0x20] sm:$0x1] %v573
        %v575 = vld [vmem:[#allocation3 + $0x2c] sm:$0x1]
        %v576 = vsel %vm565, 0, %v575
        %577 = vst [vmem:[#allocation3 + $0x2c] sm:$0x1] %v576
        %v578 = vld [vmem:[#allocation3 + $0x38] sm:$0x1]
        %v579 = vsel %vm565, 0, %v578
        %580 = vst [vmem:[#allocation3 + $0x38] sm:$0x1] %v579
        %v581 = vld [vmem:[#allocation3 + $0x44] sm:$0x1]
        %v582 = vsel %vm565, 0, %v581
        %583 = vst [vmem:[#allocation3 + $0x44] sm:$0x1] %v582
        %v584 = vld [vmem:[#allocation3 + $0x50] sm:$0x1]
        %v585 = vsel %vm565, 0, %v584
        %586 = vst [vmem:[#allocation3 + $0x50] sm:$0x1] %v585
        %v587 = vld [vmem:[#allocation3 + $0x5c] sm:$0x1]
        %v588 = vsel %vm565, 0, %v587
        %589 = vst [vmem:[#allocation3 + $0x5c] sm:$0x1] %v588
        %v590 = vld [vmem:[#allocation3 + $0x68] sm:$0x1]
        %v591 = vsel %vm565, 0, %v590
        %592 = vst [vmem:[#allocation3 + $0x68] sm:$0x1] %v591
        %v593 = vld [vmem:[#allocation3 + $0x74] sm:$0x1]
        %v594 = vsel %vm565, 0, %v593
        %595 = vst [vmem:[#allocation3 + $0x74] sm:$0x1] %v594
        %v596 = vld [vmem:[#allocation3 + $0x80] sm:$0x1]
        %v597 = vsel %vm565, 0, %v596
        %598 = vst [vmem:[#allocation3 + $0x80] sm:$0x1] %v597
        %v599 = vld [vmem:[#allocation3 + $0x8c] sm:$0x1]
        %v600 = vsel %vm565, 0, %v599
        %601 = vst [vmem:[#allocation3 + $0x8c] sm:$0x1] %v600
        %v602 = vld [vmem:[#allocation3 + $0x98] sm:$0x1]
        %v603 = vsel %vm565, 0, %v602
        %604 = vst [vmem:[#allocation3 + $0x98] sm:$0x1] %v603
        %v605 = vld [vmem:[#allocation3 + $0xa4] sm:$0x1]
        %v606 = vsel %vm565, 0, %v605
        %607 = vst [vmem:[#allocation3 + $0xa4] sm:$0x1] %v606
        %v608 = vld [vmem:[#allocation3 + $0xb0] sm:$0x1]
        %v609 = vsel %vm565, 0, %v608
        %610 = vst [vmem:[#allocation3 + $0xb0] sm:$0x1] %v609
        %v611 = vld [vmem:[#allocation3 + $0xbc] sm:$0x1]
        %v612 = vsel %vm565, 0, %v611
        %613 = vst [vmem:[#allocation3 + $0xbc] sm:$0x1] %v612
        %v614 = vld [vmem:[#allocation3 + $0xc8] sm:$0x1]
        %v615 = vsel %vm565, 0, %v614
        %616 = vst [vmem:[#allocation3 + $0xc8] sm:$0x1] %v615
        %v617 = vld [vmem:[#allocation3 + $0xd4] sm:$0x1]
        %v618 = vsel %vm565, 0, %v617
        %619 = vst [vmem:[#allocation3 + $0xd4] sm:$0x1] %v618
        %v620 = vld [vmem:[%s373] sm:$0xff]
        %v621 = vld [vmem:[%s373 + $0x8] sm:$0xff]
        %v622 = vld [vmem:[%s373 + $0x10] sm:$0xff]
        %v623 = vld [vmem:[%s373 + $0x18] sm:$0xff]
        %v624 = vld [vmem:[%s373 + $0x20] sm:$0xff]
        %v625 = vld [vmem:[%s373 + $0x28] sm:$0xff]
        %v626 = vld [vmem:[%s373 + $0x30] sm:$0xff]
        %v627 = vld [vmem:[%s373 + $0x38] sm:$0xff]
        %v628 = vld [vmem:[%s373 + $0x40] sm:$0xff]
        %v629 = vld [vmem:[%s373 + $0x48] sm:$0xff]
        %v630 = vld [vmem:[%s373 + $0x50] sm:$0xff]
        %v631 = vld [vmem:[%s373 + $0x58] sm:$0xff]
        %v632 = vld [vmem:[%s373 + $0x60] sm:$0xff]
        %v633 = vld [vmem:[%s373 + $0x68] sm:$0xff]
        %v634 = vld [vmem:[%s373 + $0x70] sm:$0xff]
        %v635 = vld [vmem:[%s373 + $0x78] sm:$0xff]
        %v636 = vld [vmem:[%s373 + $0x80] sm:$0xff]
        %v637 = vld [vmem:[%s373 + $0x88] sm:$0xff]
        %v638 = vld [vmem:[%s373 + $0x90] sm:$0xff]
        %v639 = vld [vmem:[%s373 + $0x98] sm:$0xff]
        %v640 = vld [vmem:[%s373 + $0xa0] sm:$0xff]
        %v641 = vld [vmem:[%s373 + $0xa8] sm:$0xff]
        %v642 = vld [vmem:[%s373 + $0xb0] sm:$0xff]
        %v643 = vld [vmem:[%s373 + $0xb8] sm:$0xff]
        %v644 = vld [vmem:[%s373 + $0xc0] sm:$0xff]
        %v645 = vld [vmem:[%s373 + $0xc8] sm:$0xff]
        %v646 = vld [vmem:[%s373 + $0xd0] sm:$0xff]
        %v647 = vld [vmem:[%s373 + $0xd8] sm:$0xff]
        %v648 = vld [vmem:[%s373 + $0xe0] sm:$0xff]
        %v649 = vld [vmem:[%s373 + $0xe8] sm:$0xff]
        %v650 = vld [vmem:[%s373 + $0xf0] sm:$0xff]
        %v651 = vld [vmem:[%s373 + $0xf8] sm:$0xff]
        %v652 = vpack.c.bf16 %v621, %v620
        %v653 = vpack.c.bf16 %v623, %v622
        %v654 = vpack.c.bf16 %v625, %v624
        %v655 = vpack.c.bf16 %v627, %v626
        %v656 = vpack.c.bf16 %v629, %v628
        %v657 = vpack.c.bf16 %v631, %v630
        %v658 = vpack.c.bf16 %v633, %v632
        %v659 = vpack.c.bf16 %v635, %v634
        %v660 = vpack.c.bf16 %v637, %v636
        %v661 = vpack.c.bf16 %v639, %v638
        %v662 = vpack.c.bf16 %v641, %v640
        %v663 = vpack.c.bf16 %v643, %v642
        %v664 = vpack.c.bf16 %v645, %v644
        %v665 = vpack.c.bf16 %v647, %v646
        %v666 = vpack.c.bf16 %v649, %v648
        %v667 = vpack.c.bf16 %v651, %v650
        %v684 = vunpack.c.l.b16 %v652
        %v685 = vunpack.c.h.b16 %v652
        %v686 = vunpack.c.l.b16 %v653
        %v687 = vunpack.c.h.b16 %v653
        %v688 = vunpack.c.l.b16 %v654
        %v689 = vunpack.c.h.b16 %v654
        %v690 = vunpack.c.l.b16 %v655
        %v691 = vunpack.c.h.b16 %v655
        %v692 = vunpack.c.l.b16 %v656
        %v693 = vunpack.c.h.b16 %v656
        %v694 = vunpack.c.l.b16 %v657
        %v695 = vunpack.c.h.b16 %v657
        %v696 = vunpack.c.l.b16 %v658
        %v697 = vunpack.c.h.b16 %v658
        %v698 = vunpack.c.l.b16 %v659
        %v699 = vunpack.c.h.b16 %v659
        %v700 = vunpack.c.l.b16 %v660
        %v701 = vunpack.c.h.b16 %v660
        %v702 = vunpack.c.l.b16 %v661
        %v703 = vunpack.c.h.b16 %v661
        %v704 = vunpack.c.l.b16 %v662
        %v705 = vunpack.c.h.b16 %v662
        %v706 = vunpack.c.l.b16 %v663
        %v707 = vunpack.c.h.b16 %v663
        %v708 = vunpack.c.l.b16 %v664
        %v709 = vunpack.c.h.b16 %v664
        %v710 = vunpack.c.l.b16 %v665
        %v711 = vunpack.c.h.b16 %v665
        %v712 = vunpack.c.l.b16 %v666
        %v713 = vunpack.c.h.b16 %v666
        %v714 = vunpack.c.l.b16 %v667
        %v715 = vunpack.c.h.b16 %v667
        %v716 = vpack.c.b16 %v684, %v684
        %v717 = vpack.c.b16 %v685, %v685
        %v718 = vpack.c.b16 %v686, %v686
        %v719 = vpack.c.b16 %v687, %v687
        %v720 = vpack.c.b16 %v688, %v688
        %v721 = vpack.c.b16 %v689, %v689
        %v722 = vpack.c.b16 %v690, %v690
        %v723 = vpack.c.b16 %v691, %v691
        %v724 = vpack.c.b16 %v692, %v692
        %v725 = vpack.c.b16 %v693, %v693
        %v726 = vpack.c.b16 %v694, %v694
        %v727 = vpack.c.b16 %v695, %v695
        %v728 = vpack.c.b16 %v696, %v696
        %v729 = vpack.c.b16 %v697, %v697
        %v730 = vpack.c.b16 %v698, %v698
        %v731 = vpack.c.b16 %v699, %v699
        %v732 = vpack.c.b16 %v700, %v700
        %v733 = vpack.c.b16 %v701, %v701
        %v734 = vpack.c.b16 %v702, %v702
        %v735 = vpack.c.b16 %v703, %v703
        %v736 = vpack.c.b16 %v704, %v704
        %v737 = vpack.c.b16 %v705, %v705
        %v738 = vpack.c.b16 %v706, %v706
        %v739 = vpack.c.b16 %v707, %v707
        %v740 = vpack.c.b16 %v708, %v708
        %v741 = vpack.c.b16 %v709, %v709
        %v742 = vpack.c.b16 %v710, %v710
        %v743 = vpack.c.b16 %v711, %v711
        %v744 = vpack.c.b16 %v712, %v712
        %v745 = vpack.c.b16 %v713, %v713
        %v746 = vpack.c.b16 %v714, %v714
        %v747 = vpack.c.b16 %v715, %v715
        %vm748 = vsmask.f32 4368
        %vm749 = vmor %vm388, %vm748
        %v751 = vshrl.u32 %v716, 16
        %v753 = vrot.slane %v751, 7
        %v754 = vshll.u32 %v716, 16
        %v756 = vor.u32 %v753, %v754
        %v757 = vrot.slane %v753, 4
        %v759 = vshrl.u32 %v717, 16
        %v761 = vrot.slane %v759, 7
        %v762 = vshll.u32 %v717, 16
        %v764 = vor.u32 %v761, %v762
        %v765 = vsel %vm749, %v757, %v764
        %v766 = vrot.slane %v761, 4
        %v768 = vshrl.u32 %v718, 16
        %v770 = vrot.slane %v768, 7
        %v771 = vshll.u32 %v718, 16
        %v773 = vor.u32 %v770, %v771
        %v774 = vrot.slane %v770, 4
        %v776 = vshrl.u32 %v719, 16
        %v778 = vrot.slane %v776, 7
        %v779 = vshll.u32 %v719, 16
        %v781 = vor.u32 %v778, %v779
        %v782 = vsel %vm749, %v774, %v781
        %v783 = vrot.slane %v778, 4
        %v785 = vshrl.u32 %v720, 16
        %v787 = vrot.slane %v785, 7
        %v788 = vshll.u32 %v720, 16
        %v790 = vor.u32 %v787, %v788
        %v791 = vrot.slane %v787, 4
        %v793 = vshrl.u32 %v721, 16
        %v795 = vrot.slane %v793, 7
        %v796 = vshll.u32 %v721, 16
        %v798 = vor.u32 %v795, %v796
        %v799 = vsel %vm749, %v791, %v798
        %v800 = vrot.slane %v795, 4
        %v802 = vshrl.u32 %v722, 16
        %v804 = vrot.slane %v802, 7
        %v805 = vshll.u32 %v722, 16
        %v807 = vor.u32 %v804, %v805
        %v808 = vrot.slane %v804, 4
        %v810 = vshrl.u32 %v723, 16
        %v812 = vrot.slane %v810, 7
        %v813 = vshll.u32 %v723, 16
        %v815 = vor.u32 %v812, %v813
        %v816 = vsel %vm749, %v808, %v815
        %v817 = vrot.slane %v812, 4
        %v819 = vshrl.u32 %v724, 16
        %v821 = vrot.slane %v819, 7
        %v822 = vshll.u32 %v724, 16
        %v824 = vor.u32 %v821, %v822
        %v825 = vrot.slane %v821, 4
        %v827 = vshrl.u32 %v725, 16
        %v829 = vrot.slane %v827, 7
        %v830 = vshll.u32 %v725, 16
        %v832 = vor.u32 %v829, %v830
        %v833 = vsel %vm749, %v825, %v832
        %v834 = vrot.slane %v829, 4
        %v836 = vshrl.u32 %v726, 16
        %v838 = vrot.slane %v836, 7
        %v839 = vshll.u32 %v726, 16
        %v841 = vor.u32 %v838, %v839
        %v842 = vrot.slane %v838, 4
        %v844 = vshrl.u32 %v727, 16
        %v846 = vrot.slane %v844, 7
        %v847 = vshll.u32 %v727, 16
        %v849 = vor.u32 %v846, %v847
        %v850 = vsel %vm749, %v842, %v849
        %v851 = vrot.slane %v846, 4
        %v853 = vshrl.u32 %v728, 16
        %v855 = vrot.slane %v853, 7
        %v856 = vshll.u32 %v728, 16
        %v858 = vor.u32 %v855, %v856
        %v859 = vrot.slane %v855, 4
        %v861 = vshrl.u32 %v729, 16
        %v863 = vrot.slane %v861, 7
        %v864 = vshll.u32 %v729, 16
        %v866 = vor.u32 %v863, %v864
        %v867 = vsel %vm749, %v859, %v866
        %v868 = vrot.slane %v863, 4
        %v870 = vshrl.u32 %v730, 16
        %v872 = vrot.slane %v870, 7
        %v873 = vshll.u32 %v730, 16
        %v875 = vor.u32 %v872, %v873
        %v876 = vrot.slane %v872, 4
        %v878 = vshrl.u32 %v731, 16
        %v880 = vrot.slane %v878, 7
        %v881 = vshll.u32 %v731, 16
        %v883 = vor.u32 %v880, %v881
        %v884 = vsel %vm749, %v876, %v883
        %v885 = vrot.slane %v880, 4
        %v887 = vshrl.u32 %v732, 16
        %v889 = vrot.slane %v887, 7
        %v890 = vshll.u32 %v732, 16
        %v892 = vor.u32 %v889, %v890
        %v893 = vrot.slane %v889, 4
        %v895 = vshrl.u32 %v733, 16
        %v897 = vrot.slane %v895, 7
        %v898 = vshll.u32 %v733, 16
        %v900 = vor.u32 %v897, %v898
        %v901 = vsel %vm749, %v893, %v900
        %v902 = vrot.slane %v897, 4
        %v904 = vshrl.u32 %v734, 16
        %v906 = vrot.slane %v904, 7
        %v907 = vshll.u32 %v734, 16
        %v909 = vor.u32 %v906, %v907
        %v910 = vrot.slane %v906, 4
        %v912 = vshrl.u32 %v735, 16
        %v914 = vrot.slane %v912, 7
        %v915 = vshll.u32 %v735, 16
        %v917 = vor.u32 %v914, %v915
        %v918 = vsel %vm749, %v910, %v917
        %v919 = vrot.slane %v914, 4
        %v921 = vshrl.u32 %v736, 16
        %v923 = vrot.slane %v921, 7
        %v924 = vshll.u32 %v736, 16
        %v926 = vor.u32 %v923, %v924
        %v927 = vrot.slane %v923, 4
        %v929 = vshrl.u32 %v737, 16
        %v931 = vrot.slane %v929, 7
        %v932 = vshll.u32 %v737, 16
        %v934 = vor.u32 %v931, %v932
        %v935 = vsel %vm749, %v927, %v934
        %v936 = vrot.slane %v931, 4
        %v938 = vshrl.u32 %v738, 16
        %v940 = vrot.slane %v938, 7
        %v941 = vshll.u32 %v738, 16
        %v943 = vor.u32 %v940, %v941
        %v944 = vrot.slane %v940, 4
        %v946 = vshrl.u32 %v739, 16
        %v948 = vrot.slane %v946, 7
        %v949 = vshll.u32 %v739, 16
        %v951 = vor.u32 %v948, %v949
        %v952 = vsel %vm749, %v944, %v951
        %v953 = vrot.slane %v948, 4
        %v955 = vshrl.u32 %v740, 16
        %v957 = vrot.slane %v955, 7
        %v958 = vshll.u32 %v740, 16
        %v960 = vor.u32 %v957, %v958
        %v961 = vrot.slane %v957, 4
        %v963 = vshrl.u32 %v741, 16
        %v965 = vrot.slane %v963, 7
        %v966 = vshll.u32 %v741, 16
        %v968 = vor.u32 %v965, %v966
        %v969 = vsel %vm749, %v961, %v968
        %v970 = vrot.slane %v965, 4
        %v972 = vshrl.u32 %v742, 16
        %v974 = vrot.slane %v972, 7
        %v975 = vshll.u32 %v742, 16
        %v977 = vor.u32 %v974, %v975
        %v978 = vrot.slane %v974, 4
        %v980 = vshrl.u32 %v743, 16
        %v982 = vrot.slane %v980, 7
        %v983 = vshll.u32 %v743, 16
        %v985 = vor.u32 %v982, %v983
        %v986 = vsel %vm749, %v978, %v985
        %v987 = vrot.slane %v982, 4
        %v989 = vshrl.u32 %v744, 16
        %v991 = vrot.slane %v989, 7
        %v992 = vshll.u32 %v744, 16
        %v994 = vor.u32 %v991, %v992
        %v995 = vrot.slane %v991, 4
        %v997 = vshrl.u32 %v745, 16
        %v999 = vrot.slane %v997, 7
        %v1000 = vshll.u32 %v745, 16
        %v1002 = vor.u32 %v999, %v1000
        %v1003 = vsel %vm749, %v995, %v1002
        %v1004 = vrot.slane %v999, 4
        %v1006 = vshrl.u32 %v746, 16
        %v1008 = vrot.slane %v1006, 7
        %v1009 = vshll.u32 %v746, 16
        %v1011 = vor.u32 %v1008, %v1009
        %v1012 = vrot.slane %v1008, 4
        %v1014 = vshrl.u32 %v747, 16
        %v1016 = vrot.slane %v1014, 7
        %v1017 = vshll.u32 %v747, 16
        %v1019 = vor.u32 %v1016, %v1017
        %v1020 = vsel %vm749, %v1012, %v1019
        %v1021 = vrot.slane %v1016, 4
        %s1070 = scalar_lea.vmem [#allocation2], 12
        %vm1071 = vcmask 19456
        %vm1072 = vmand %vm1071, %vm444
        %v1073 = vld [vmem:[%s1070] sm:$0xf]
        %v1074 = vsel %vm1072, %v756, %v1073
        %1075 = vst [vmem:[%s1070] sm:$0xf] %v1074
        %1076 = vst.msk [vmem:[%s1070 + $0x4] sm:$0xf] %vm378, %v765
        %v1077 = vld [vmem:[%s1070 + $0x8] sm:$0x1]
        %v1078 = vsel %vm389, %v766, %v1077
        %1079 = vst [vmem:[%s1070 + $0x8] sm:$0x1] %v1078
        %v1080 = vld [vmem:[%s1070 + $0xc] sm:$0xf]
        %v1081 = vsel %vm1072, %v773, %v1080
        %1082 = vst [vmem:[%s1070 + $0xc] sm:$0xf] %v1081
        %1083 = vst.msk [vmem:[%s1070 + $0x10] sm:$0xf] %vm378, %v782
        %v1084 = vld [vmem:[%s1070 + $0x14] sm:$0x1]
        %v1085 = vsel %vm389, %v783, %v1084
        %1086 = vst [vmem:[%s1070 + $0x14] sm:$0x1] %v1085
        %v1087 = vld [vmem:[%s1070 + $0x18] sm:$0xf]
        %v1088 = vsel %vm1072, %v790, %v1087
        %1089 = vst [vmem:[%s1070 + $0x18] sm:$0xf] %v1088
        %1090 = vst.msk [vmem:[%s1070 + $0x1c] sm:$0xf] %vm378, %v799
        %v1091 = vld [vmem:[%s1070 + $0x20] sm:$0x1]
        %v1092 = vsel %vm389, %v800, %v1091
        %1093 = vst [vmem:[%s1070 + $0x20] sm:$0x1] %v1092
        %v1094 = vld [vmem:[%s1070 + $0x24] sm:$0xf]
        %v1095 = vsel %vm1072, %v807, %v1094
        %1096 = vst [vmem:[%s1070 + $0x24] sm:$0xf] %v1095
        %1097 = vst.msk [vmem:[%s1070 + $0x28] sm:$0xf] %vm378, %v816
        %v1098 = vld [vmem:[%s1070 + $0x2c] sm:$0x1]
        %v1099 = vsel %vm389, %v817, %v1098
        %1100 = vst [vmem:[%s1070 + $0x2c] sm:$0x1] %v1099
        %v1101 = vld [vmem:[%s1070 + $0x30] sm:$0xf]
        %v1102 = vsel %vm1072, %v824, %v1101
        %1103 = vst [vmem:[%s1070 + $0x30] sm:$0xf] %v1102
        %1104 = vst.msk [vmem:[%s1070 + $0x34] sm:$0xf] %vm378, %v833
        %v1105 = vld [vmem:[%s1070 + $0x38] sm:$0x1]
        %v1106 = vsel %vm389, %v834, %v1105
        %1107 = vst [vmem:[%s1070 + $0x38] sm:$0x1] %v1106
        %v1108 = vld [vmem:[%s1070 + $0x3c] sm:$0xf]
        %v1109 = vsel %vm1072, %v841, %v1108
        %1110 = vst [vmem:[%s1070 + $0x3c] sm:$0xf] %v1109
        %1111 = vst.msk [vmem:[%s1070 + $0x40] sm:$0xf] %vm378, %v850
        %v1112 = vld [vmem:[%s1070 + $0x44] sm:$0x1]
        %v1113 = vsel %vm389, %v851, %v1112
        %1114 = vst [vmem:[%s1070 + $0x44] sm:$0x1] %v1113
        %v1115 = vld [vmem:[%s1070 + $0x48] sm:$0xf]
        %v1116 = vsel %vm1072, %v858, %v1115
        %1117 = vst [vmem:[%s1070 + $0x48] sm:$0xf] %v1116
        %1118 = vst.msk [vmem:[%s1070 + $0x4c] sm:$0xf] %vm378, %v867
        %v1119 = vld [vmem:[%s1070 + $0x50] sm:$0x1]
        %v1120 = vsel %vm389, %v868, %v1119
        %1121 = vst [vmem:[%s1070 + $0x50] sm:$0x1] %v1120
        %v1122 = vld [vmem:[%s1070 + $0x54] sm:$0xf]
        %v1123 = vsel %vm1072, %v875, %v1122
        %1124 = vst [vmem:[%s1070 + $0x54] sm:$0xf] %v1123
        %1125 = vst.msk [vmem:[%s1070 + $0x58] sm:$0xf] %vm378, %v884
        %v1126 = vld [vmem:[%s1070 + $0x5c] sm:$0x1]
        %v1127 = vsel %vm389, %v885, %v1126
        %1128 = vst [vmem:[%s1070 + $0x5c] sm:$0x1] %v1127
        %v1129 = vld [vmem:[%s1070 + $0x60] sm:$0xf]
        %v1130 = vsel %vm1072, %v892, %v1129
        %1131 = vst [vmem:[%s1070 + $0x60] sm:$0xf] %v1130
        %1132 = vst.msk [vmem:[%s1070 + $0x64] sm:$0xf] %vm378, %v901
        %v1133 = vld [vmem:[%s1070 + $0x68] sm:$0x1]
        %v1134 = vsel %vm389, %v902, %v1133
        %1135 = vst [vmem:[%s1070 + $0x68] sm:$0x1] %v1134
        %v1136 = vld [vmem:[%s1070 + $0x6c] sm:$0xf]
        %v1137 = vsel %vm1072, %v909, %v1136
        %1138 = vst [vmem:[%s1070 + $0x6c] sm:$0xf] %v1137
        %1139 = vst.msk [vmem:[%s1070 + $0x70] sm:$0xf] %vm378, %v918
        %v1140 = vld [vmem:[%s1070 + $0x74] sm:$0x1]
        %v1141 = vsel %vm389, %v919, %v1140
        %1142 = vst [vmem:[%s1070 + $0x74] sm:$0x1] %v1141
        %v1143 = vld [vmem:[%s1070 + $0x78] sm:$0xf]
        %v1144 = vsel %vm1072, %v926, %v1143
        %1145 = vst [vmem:[%s1070 + $0x78] sm:$0xf] %v1144
        %1146 = vst.msk [vmem:[%s1070 + $0x7c] sm:$0xf] %vm378, %v935
        %v1147 = vld [vmem:[%s1070 + $0x80] sm:$0x1]
        %v1148 = vsel %vm389, %v936, %v1147
        %1149 = vst [vmem:[%s1070 + $0x80] sm:$0x1] %v1148
        %v1150 = vld [vmem:[%s1070 + $0x84] sm:$0xf]
        %v1151 = vsel %vm1072, %v943, %v1150
        %1152 = vst [vmem:[%s1070 + $0x84] sm:$0xf] %v1151
        %1153 = vst.msk [vmem:[%s1070 + $0x88] sm:$0xf] %vm378, %v952
        %v1154 = vld [vmem:[%s1070 + $0x8c] sm:$0x1]
        %v1155 = vsel %vm389, %v953, %v1154
        %1156 = vst [vmem:[%s1070 + $0x8c] sm:$0x1] %v1155
        %v1157 = vld [vmem:[%s1070 + $0x90] sm:$0xf]
        %v1158 = vsel %vm1072, %v960, %v1157
        %1159 = vst [vmem:[%s1070 + $0x90] sm:$0xf] %v1158
        %1160 = vst.msk [vmem:[%s1070 + $0x94] sm:$0xf] %vm378, %v969
        %v1161 = vld [vmem:[%s1070 + $0x98] sm:$0x1]
        %v1162 = vsel %vm389, %v970, %v1161
        %1163 = vst [vmem:[%s1070 + $0x98] sm:$0x1] %v1162
        %v1164 = vld [vmem:[%s1070 + $0x9c] sm:$0xf]
        %v1165 = vsel %vm1072, %v977, %v1164
        %1166 = vst [vmem:[%s1070 + $0x9c] sm:$0xf] %v1165
        %1167 = vst.msk [vmem:[%s1070 + $0xa0] sm:$0xf] %vm378, %v986
        %v1168 = vld [vmem:[%s1070 + $0xa4] sm:$0x1]
        %v1169 = vsel %vm389, %v987, %v1168
        %1170 = vst [vmem:[%s1070 + $0xa4] sm:$0x1] %v1169
        %v1171 = vld [vmem:[%s1070 + $0xa8] sm:$0xf]
        %v1172 = vsel %vm1072, %v994, %v1171
        %1173 = vst [vmem:[%s1070 + $0xa8] sm:$0xf] %v1172
        %1174 = vst.msk [vmem:[%s1070 + $0xac] sm:$0xf] %vm378, %v1003
        %v1175 = vld [vmem:[%s1070 + $0xb0] sm:$0x1]
        %v1176 = vsel %vm389, %v1004, %v1175
        %1177 = vst [vmem:[%s1070 + $0xb0] sm:$0x1] %v1176
        %v1178 = vld [vmem:[%s1070 + $0xb4] sm:$0xf]
        %v1179 = vsel %vm1072, %v1011, %v1178
        %1180 = vst [vmem:[%s1070 + $0xb4] sm:$0xf] %v1179
        %1181 = vst.msk [vmem:[%s1070 + $0xb8] sm:$0xf] %vm378, %v1020
        %v1182 = vld [vmem:[%s1070 + $0xbc] sm:$0x1]
        %v1183 = vsel %vm389, %v1021, %v1182
        %1184 = vst [vmem:[%s1070 + $0xbc] sm:$0x1] %v1183
        %v1185 = vld [vmem:[#allocation2] sm:$0xf]
        %v1186 = vld [vmem:[#allocation2 + $0x4] sm:$0xf]
        %v1187 = vld [vmem:[#allocation2 + $0xc] sm:$0xf]
        %v1188 = vld [vmem:[#allocation2 + $0x10] sm:$0xf]
        %v1189 = vld [vmem:[#allocation2 + $0x18] sm:$0xf]
        %v1190 = vld [vmem:[#allocation2 + $0x1c] sm:$0xf]
        %v1191 = vld [vmem:[#allocation2 + $0x24] sm:$0xf]
        %v1192 = vld [vmem:[#allocation2 + $0x28] sm:$0xf]
        %v1193 = vld [vmem:[#allocation2 + $0x30] sm:$0xf]
        %v1194 = vld [vmem:[#allocation2 + $0x34] sm:$0xf]
        %v1195 = vld [vmem:[#allocation2 + $0x3c] sm:$0xf]
        %v1196 = vld [vmem:[#allocation2 + $0x40] sm:$0xf]
        %v1197 = vld [vmem:[#allocation2 + $0x48] sm:$0xf]
        %v1198 = vld [vmem:[#allocation2 + $0x4c] sm:$0xf]
        %v1199 = vld [vmem:[#allocation2 + $0x54] sm:$0xf]
        %v1200 = vld [vmem:[#allocation2 + $0x58] sm:$0xf]
        %v1201 = vld [vmem:[#allocation2 + $0x60] sm:$0xf]
        %v1202 = vld [vmem:[#allocation2 + $0x64] sm:$0xf]
        %v1203 = vld [vmem:[#allocation2 + $0x6c] sm:$0xf]
        %v1204 = vld [vmem:[#allocation2 + $0x70] sm:$0xf]
        %v1205 = vld [vmem:[#allocation2 + $0x78] sm:$0xf]
        %v1206 = vld [vmem:[#allocation2 + $0x7c] sm:$0xf]
        %v1207 = vld [vmem:[#allocation2 + $0x84] sm:$0xf]
        %v1208 = vld [vmem:[#allocation2 + $0x88] sm:$0xf]
        %v1209 = vld [vmem:[#allocation2 + $0x90] sm:$0xf]
        %v1210 = vld [vmem:[#allocation2 + $0x94] sm:$0xf]
        %v1211 = vld [vmem:[#allocation2 + $0x9c] sm:$0xf]
        %v1212 = vld [vmem:[#allocation2 + $0xa0] sm:$0xf]
        %v1213 = vld [vmem:[#allocation2 + $0xa8] sm:$0xf]
        %v1214 = vld [vmem:[#allocation2 + $0xac] sm:$0xf]
        %v1215 = vld [vmem:[#allocation2 + $0xb4] sm:$0xf]
        %v1216 = vld [vmem:[#allocation2 + $0xb8] sm:$0xf]
        %v1217 = vld [vmem:[#allocation2 + $0x8] sm:$0x1]
        %v1218 = vld [vmem:[#allocation2 + $0x14] sm:$0x1]
        %v1219 = vld [vmem:[#allocation2 + $0x20] sm:$0x1]
        %v1220 = vld [vmem:[#allocation2 + $0x2c] sm:$0x1]
        %v1221 = vld [vmem:[#allocation2 + $0x38] sm:$0x1]
        %v1222 = vld [vmem:[#allocation2 + $0x44] sm:$0x1]
        %v1223 = vld [vmem:[#allocation2 + $0x50] sm:$0x1]
        %v1224 = vld [vmem:[#allocation2 + $0x5c] sm:$0x1]
        %v1225 = vld [vmem:[#allocation2 + $0x68] sm:$0x1]
        %v1226 = vld [vmem:[#allocation2 + $0x74] sm:$0x1]
        %v1227 = vld [vmem:[#allocation2 + $0x80] sm:$0x1]
        %v1228 = vld [vmem:[#allocation2 + $0x8c] sm:$0x1]
        %v1229 = vld [vmem:[#allocation2 + $0x98] sm:$0x1]
        %v1230 = vld [vmem:[#allocation2 + $0xa4] sm:$0x1]
        %v1231 = vld [vmem:[#allocation2 + $0xb0] sm:$0x1]
        %v1232 = vld [vmem:[#allocation2 + $0xbc] sm:$0x1]
        %v1233 = vld [vmem:[#allocation2] sm:$0xe]
        %v1234 = vld [vmem:[#allocation2 + $0xc] sm:$0xe]
        %v1235 = vld [vmem:[#allocation2 + $0x18] sm:$0xe]
        %v1236 = vld [vmem:[#allocation2 + $0x24] sm:$0xe]
        %v1237 = vld [vmem:[#allocation2 + $0x30] sm:$0xe]
        %v1238 = vld [vmem:[#allocation2 + $0x3c] sm:$0xe]
        %v1239 = vld [vmem:[#allocation2 + $0x48] sm:$0xe]
        %v1240 = vld [vmem:[#allocation2 + $0x54] sm:$0xe]
        %v1241 = vld [vmem:[#allocation2 + $0x60] sm:$0xe]
        %v1242 = vld [vmem:[#allocation2 + $0x6c] sm:$0xe]
        %v1243 = vld [vmem:[#allocation2 + $0x78] sm:$0xe]
        %v1244 = vld [vmem:[#allocation2 + $0x84] sm:$0xe]
        %v1245 = vld [vmem:[#allocation2 + $0x90] sm:$0xe]
        %v1246 = vld [vmem:[#allocation2 + $0x9c] sm:$0xe]
        %v1247 = vld [vmem:[#allocation2 + $0xa8] sm:$0xe]
        %v1248 = vld [vmem:[#allocation2 + $0xb4] sm:$0xe]
        %v1249 = vld [vmem:[%s1070] sm:$0xf]
        %v1250 = vld [vmem:[%s1070 + $0x4] sm:$0xf]
        %v1251 = vld [vmem:[%s1070 + $0xc] sm:$0xf]
        %v1252 = vld [vmem:[%s1070 + $0x10] sm:$0xf]
        %v1253 = vld [vmem:[%s1070 + $0x18] sm:$0xf]
        %v1254 = vld [vmem:[%s1070 + $0x1c] sm:$0xf]
        %v1255 = vld [vmem:[%s1070 + $0x24] sm:$0xf]
        %v1256 = vld [vmem:[%s1070 + $0x28] sm:$0xf]
        %v1257 = vld [vmem:[%s1070 + $0x30] sm:$0xf]
        %v1258 = vld [vmem:[%s1070 + $0x34] sm:$0xf]
        %v1259 = vld [vmem:[%s1070 + $0x3c] sm:$0xf]
        %v1260 = vld [vmem:[%s1070 + $0x40] sm:$0xf]
        %v1261 = vld [vmem:[%s1070 + $0x48] sm:$0xf]
        %v1262 = vld [vmem:[%s1070 + $0x4c] sm:$0xf]
        %v1263 = vld [vmem:[%s1070 + $0x54] sm:$0xf]
        %v1264 = vld [vmem:[%s1070 + $0x58] sm:$0xf]
        %v1265 = vld [vmem:[%s1070 + $0x60] sm:$0xf]
        %v1266 = vld [vmem:[%s1070 + $0x64] sm:$0xf]
        %v1267 = vld [vmem:[%s1070 + $0x6c] sm:$0xf]
        %v1268 = vld [vmem:[%s1070 + $0x70] sm:$0xf]
        %v1269 = vld [vmem:[%s1070 + $0x78] sm:$0xf]
        %v1270 = vld [vmem:[%s1070 + $0x7c] sm:$0xf]
        %v1271 = vld [vmem:[%s1070 + $0x84] sm:$0xf]
        %v1272 = vld [vmem:[%s1070 + $0x88] sm:$0xf]
        %v1273 = vld [vmem:[%s1070 + $0x90] sm:$0xf]
        %v1274 = vld [vmem:[%s1070 + $0x94] sm:$0xf]
        %v1275 = vld [vmem:[%s1070 + $0x9c] sm:$0xf]
        %v1276 = vld [vmem:[%s1070 + $0xa0] sm:$0xf]
        %v1277 = vld [vmem:[%s1070 + $0xa8] sm:$0xf]
        %v1278 = vld [vmem:[%s1070 + $0xac] sm:$0xf]
        %v1279 = vld [vmem:[%s1070 + $0xb4] sm:$0xf]
        %v1280 = vld [vmem:[%s1070 + $0xb8] sm:$0xf]
        %v1281 = vld [vmem:[%s1070 + $0x8] sm:$0x1]
        %v1282 = vld [vmem:[%s1070 + $0x14] sm:$0x1]
        %v1283 = vld [vmem:[%s1070 + $0x20] sm:$0x1]
        %v1284 = vld [vmem:[%s1070 + $0x2c] sm:$0x1]
        %v1285 = vld [vmem:[%s1070 + $0x38] sm:$0x1]
        %v1286 = vld [vmem:[%s1070 + $0x44] sm:$0x1]
        %v1287 = vld [vmem:[%s1070 + $0x50] sm:$0x1]
        %v1288 = vld [vmem:[%s1070 + $0x5c] sm:$0x1]
        %v1289 = vld [vmem:[%s1070 + $0x68] sm:$0x1]
        %v1290 = vld [vmem:[%s1070 + $0x74] sm:$0x1]
        %v1291 = vld [vmem:[%s1070 + $0x80] sm:$0x1]
        %v1292 = vld [vmem:[%s1070 + $0x8c] sm:$0x1]
        %v1293 = vld [vmem:[%s1070 + $0x98] sm:$0x1]
        %v1294 = vld [vmem:[%s1070 + $0xa4] sm:$0x1]
        %v1295 = vld [vmem:[%s1070 + $0xb0] sm:$0x1]
        %v1296 = vld [vmem:[%s1070 + $0xbc] sm:$0x1]
        %v1297 = vld [vmem:[%s1070] sm:$0xe]
        %v1298 = vld [vmem:[%s1070 + $0xc] sm:$0xe]
        %v1299 = vld [vmem:[%s1070 + $0x18] sm:$0xe]
        %v1300 = vld [vmem:[%s1070 + $0x24] sm:$0xe]
        %v1301 = vld [vmem:[%s1070 + $0x30] sm:$0xe]
        %v1302 = vld [vmem:[%s1070 + $0x3c] sm:$0xe]
        %v1303 = vld [vmem:[%s1070 + $0x48] sm:$0xe]
        %v1304 = vld [vmem:[%s1070 + $0x54] sm:$0xe]
        %v1305 = vld [vmem:[%s1070 + $0x60] sm:$0xe]
        %v1306 = vld [vmem:[%s1070 + $0x6c] sm:$0xe]
        %v1307 = vld [vmem:[%s1070 + $0x78] sm:$0xe]
        %v1308 = vld [vmem:[%s1070 + $0x84] sm:$0xe]
        %v1309 = vld [vmem:[%s1070 + $0x90] sm:$0xe]
        %v1310 = vld [vmem:[%s1070 + $0x9c] sm:$0xe]
        %v1311 = vld [vmem:[%s1070 + $0xa8] sm:$0xe]
        %v1312 = vld [vmem:[%s1070 + $0xb4] sm:$0xe]
        %s1313 = scalar_lea.vmem [#allocation2], 24
        %v1314 = vld [vmem:[%s1313] sm:$0xf]
        %v1315 = vld [vmem:[%s1313 + $0x4] sm:$0xf]
        %v1316 = vld [vmem:[%s1313 + $0xc] sm:$0xf]
        %v1317 = vld [vmem:[%s1313 + $0x10] sm:$0xf]
        %v1318 = vld [vmem:[%s1313 + $0x18] sm:$0xf]
        %v1319 = vld [vmem:[%s1313 + $0x1c] sm:$0xf]
        %v1320 = vld [vmem:[%s1313 + $0x24] sm:$0xf]
        %v1321 = vld [vmem:[%s1313 + $0x28] sm:$0xf]
        %v1322 = vld [vmem:[%s1313 + $0x30] sm:$0xf]
        %v1323 = vld [vmem:[%s1313 + $0x34] sm:$0xf]
        %v1324 = vld [vmem:[%s1313 + $0x3c] sm:$0xf]
        %v1325 = vld [vmem:[%s1313 + $0x40] sm:$0xf]
        %v1326 = vld [vmem:[%s1313 + $0x48] sm:$0xf]
        %v1327 = vld [vmem:[%s1313 + $0x4c] sm:$0xf]
        %v1328 = vld [vmem:[%s1313 + $0x54] sm:$0xf]
        %v1329 = vld [vmem:[%s1313 + $0x58] sm:$0xf]
        %v1330 = vld [vmem:[%s1313 + $0x60] sm:$0xf]
        %v1331 = vld [vmem:[%s1313 + $0x64] sm:$0xf]
        %v1332 = vld [vmem:[%s1313 + $0x6c] sm:$0xf]
        %v1333 = vld [vmem:[%s1313 + $0x70] sm:$0xf]
        %v1334 = vld [vmem:[%s1313 + $0x78] sm:$0xf]
        %v1335 = vld [vmem:[%s1313 + $0x7c] sm:$0xf]
        %v1336 = vld [vmem:[%s1313 + $0x84] sm:$0xf]
        %v1337 = vld [vmem:[%s1313 + $0x88] sm:$0xf]
        %v1338 = vld [vmem:[%s1313 + $0x90] sm:$0xf]
        %v1339 = vld [vmem:[%s1313 + $0x94] sm:$0xf]
        %v1340 = vld [vmem:[%s1313 + $0x9c] sm:$0xf]
        %v1341 = vld [vmem:[%s1313 + $0xa0] sm:$0xf]
        %v1342 = vld [vmem:[%s1313 + $0xa8] sm:$0xf]
        %v1343 = vld [vmem:[%s1313 + $0xac] sm:$0xf]
        %v1344 = vld [vmem:[%s1313 + $0xb4] sm:$0xf]
        %v1345 = vld [vmem:[%s1313 + $0xb8] sm:$0xf]
        %v1346 = vld [vmem:[%s1313 + $0x8] sm:$0x1]
        %v1347 = vld [vmem:[%s1313 + $0x14] sm:$0x1]
        %v1348 = vld [vmem:[%s1313 + $0x20] sm:$0x1]
        %v1349 = vld [vmem:[%s1313 + $0x2c] sm:$0x1]
        %v1350 = vld [vmem:[%s1313 + $0x38] sm:$0x1]
        %v1351 = vld [vmem:[%s1313 + $0x44] sm:$0x1]
        %v1352 = vld [vmem:[%s1313 + $0x50] sm:$0x1]
        %v1353 = vld [vmem:[%s1313 + $0x5c] sm:$0x1]
        %v1354 = vld [vmem:[%s1313 + $0x68] sm:$0x1]
        %v1355 = vld [vmem:[%s1313 + $0x74] sm:$0x1]
        %v1356 = vld [vmem:[%s1313 + $0x80] sm:$0x1]
        %v1357 = vld [vmem:[%s1313 + $0x8c] sm:$0x1]
        %v1358 = vld [vmem:[%s1313 + $0x98] sm:$0x1]
        %v1359 = vld [vmem:[%s1313 + $0xa4] sm:$0x1]
        %v1360 = vld [vmem:[%s1313 + $0xb0] sm:$0x1]
        %v1361 = vld [vmem:[%s1313 + $0xbc] sm:$0x1]
        %v1362 = vld [vmem:[%s1313] sm:$0xe]
        %v1363 = vld [vmem:[%s1313 + $0xc] sm:$0xe]
        %v1364 = vld [vmem:[%s1313 + $0x18] sm:$0xe]
        %v1365 = vld [vmem:[%s1313 + $0x24] sm:$0xe]
        %v1366 = vld [vmem:[%s1313 + $0x30] sm:$0xe]
        %v1367 = vld [vmem:[%s1313 + $0x3c] sm:$0xe]
        %v1368 = vld [vmem:[%s1313 + $0x48] sm:$0xe]
        %v1369 = vld [vmem:[%s1313 + $0x54] sm:$0xe]
        %v1370 = vld [vmem:[%s1313 + $0x60] sm:$0xe]
        %v1371 = vld [vmem:[%s1313 + $0x6c] sm:$0xe]
        %v1372 = vld [vmem:[%s1313 + $0x78] sm:$0xe]
        %v1373 = vld [vmem:[%s1313 + $0x84] sm:$0xe]
        %v1374 = vld [vmem:[%s1313 + $0x90] sm:$0xe]
        %v1375 = vld [vmem:[%s1313 + $0x9c] sm:$0xe]
        %v1376 = vld [vmem:[%s1313 + $0xa8] sm:$0xe]
        %v1377 = vld [vmem:[%s1313 + $0xb4] sm:$0xe]
        %v1410 = vunpack.c.l.b16 %v1185
        %v1411 = vunpack.c.l.b16 %v1186
        %v1412 = vunpack.c.l.b16 %v1187
        %v1413 = vunpack.c.l.b16 %v1188
        %v1414 = vunpack.c.l.b16 %v1189
        %v1415 = vunpack.c.l.b16 %v1190
        %v1416 = vunpack.c.l.b16 %v1191
        %v1417 = vunpack.c.l.b16 %v1192
        %v1418 = vunpack.c.l.b16 %v1193
        %v1419 = vunpack.c.l.b16 %v1194
        %v1420 = vunpack.c.l.b16 %v1195
        %v1421 = vunpack.c.l.b16 %v1196
        %v1422 = vunpack.c.l.b16 %v1197
        %v1423 = vunpack.c.l.b16 %v1198
        %v1424 = vunpack.c.l.b16 %v1199
        %v1425 = vunpack.c.l.b16 %v1200
        %v1426 = vunpack.c.l.b16 %v1201
        %v1427 = vunpack.c.l.b16 %v1202
        %v1428 = vunpack.c.l.b16 %v1203
        %v1429 = vunpack.c.l.b16 %v1204
        %v1430 = vunpack.c.l.b16 %v1205
        %v1431 = vunpack.c.l.b16 %v1206
        %v1432 = vunpack.c.l.b16 %v1207
        %v1433 = vunpack.c.l.b16 %v1208
        %v1434 = vunpack.c.l.b16 %v1209
        %v1435 = vunpack.c.l.b16 %v1210
        %v1436 = vunpack.c.l.b16 %v1211
        %v1437 = vunpack.c.l.b16 %v1212
        %v1438 = vunpack.c.l.b16 %v1213
        %v1439 = vunpack.c.l.b16 %v1214
        %v1440 = vunpack.c.l.b16 %v1215
        %v1441 = vunpack.c.l.b16 %v1216
        %v1442 = vpack.c.b16 %v1411, %v1410
        %v1443 = vpack.c.b16 %v1413, %v1412
        %v1444 = vpack.c.b16 %v1415, %v1414
        %v1445 = vpack.c.b16 %v1417, %v1416
        %v1446 = vpack.c.b16 %v1419, %v1418
        %v1447 = vpack.c.b16 %v1421, %v1420
        %v1448 = vpack.c.b16 %v1423, %v1422
        %v1449 = vpack.c.b16 %v1425, %v1424
        %v1450 = vpack.c.b16 %v1427, %v1426
        %v1451 = vpack.c.b16 %v1429, %v1428
        %v1452 = vpack.c.b16 %v1431, %v1430
        %v1453 = vpack.c.b16 %v1433, %v1432
        %v1454 = vpack.c.b16 %v1435, %v1434
        %v1455 = vpack.c.b16 %v1437, %v1436
        %v1456 = vpack.c.b16 %v1439, %v1438
        %v1457 = vpack.c.b16 %v1441, %v1440
        %v1474 = vunpack.c.l.b16 %v1217
        %v1475 = vunpack.c.l.b16 %v1218
        %v1476 = vunpack.c.l.b16 %v1219
        %v1477 = vunpack.c.l.b16 %v1220
        %v1478 = vunpack.c.l.b16 %v1221
        %v1479 = vunpack.c.l.b16 %v1222
        %v1480 = vunpack.c.l.b16 %v1223
        %v1481 = vunpack.c.l.b16 %v1224
        %v1482 = vunpack.c.l.b16 %v1225
        %v1483 = vunpack.c.l.b16 %v1226
        %v1484 = vunpack.c.l.b16 %v1227
        %v1485 = vunpack.c.l.b16 %v1228
        %v1486 = vunpack.c.l.b16 %v1229
        %v1487 = vunpack.c.l.b16 %v1230
        %v1488 = vunpack.c.l.b16 %v1231
        %v1489 = vunpack.c.l.b16 %v1232
        %v1490 = vpack.c.b16 %v1474, %v1474
        %v1491 = vpack.c.b16 %v1475, %v1475
        %v1492 = vpack.c.b16 %v1476, %v1476
        %v1493 = vpack.c.b16 %v1477, %v1477
        %v1494 = vpack.c.b16 %v1478, %v1478
        %v1495 = vpack.c.b16 %v1479, %v1479
        %v1496 = vpack.c.b16 %v1480, %v1480
        %v1497 = vpack.c.b16 %v1481, %v1481
        %v1498 = vpack.c.b16 %v1482, %v1482
        %v1499 = vpack.c.b16 %v1483, %v1483
        %v1500 = vpack.c.b16 %v1484, %v1484
        %v1501 = vpack.c.b16 %v1485, %v1485
        %v1502 = vpack.c.b16 %v1486, %v1486
        %v1503 = vpack.c.b16 %v1487, %v1487
        %v1504 = vpack.c.b16 %v1488, %v1488
        %v1505 = vpack.c.b16 %v1489, %v1489
        %vm1506 = vsmask.f32 7424
        %v1508 = vshrl.u32 %v1442, 16
        %v1510 = vshll.u32 %v1442, 16
        %v1512 = vrot.slane %v1510, 1
        %v1513 = vor.u32 %v1508, %v1512
        %v1515 = vshll.u32 %v1490, 16
        %v1517 = vrot.slane %v1515, 1
        %v1518 = vsel %vm1506, %v1513, %v1517
        %v1520 = vshrl.u32 %v1443, 16
        %v1522 = vshll.u32 %v1443, 16
        %v1524 = vrot.slane %v1522, 1
        %v1525 = vor.u32 %v1520, %v1524
        %v1527 = vshll.u32 %v1491, 16
        %v1529 = vrot.slane %v1527, 1
        %v1530 = vsel %vm1506, %v1525, %v1529
        %v1532 = vshrl.u32 %v1444, 16
        %v1534 = vshll.u32 %v1444, 16
        %v1536 = vrot.slane %v1534, 1
        %v1537 = vor.u32 %v1532, %v1536
        %v1539 = vshll.u32 %v1492, 16
        %v1541 = vrot.slane %v1539, 1
        %v1542 = vsel %vm1506, %v1537, %v1541
        %v1544 = vshrl.u32 %v1445, 16
        %v1546 = vshll.u32 %v1445, 16
        %v1548 = vrot.slane %v1546, 1
        %v1549 = vor.u32 %v1544, %v1548
        %v1551 = vshll.u32 %v1493, 16
        %v1553 = vrot.slane %v1551, 1
        %v1554 = vsel %vm1506, %v1549, %v1553
        %v1556 = vshrl.u32 %v1446, 16
        %v1558 = vshll.u32 %v1446, 16
        %v1560 = vrot.slane %v1558, 1
        %v1561 = vor.u32 %v1556, %v1560
        %v1563 = vshll.u32 %v1494, 16
        %v1565 = vrot.slane %v1563, 1
        %v1566 = vsel %vm1506, %v1561, %v1565
        %v1568 = vshrl.u32 %v1447, 16
        %v1570 = vshll.u32 %v1447, 16
        %v1572 = vrot.slane %v1570, 1
        %v1573 = vor.u32 %v1568, %v1572
        %v1575 = vshll.u32 %v1495, 16
        %v1577 = vrot.slane %v1575, 1
        %v1578 = vsel %vm1506, %v1573, %v1577
        %v1580 = vshrl.u32 %v1448, 16
        %v1582 = vshll.u32 %v1448, 16
        %v1584 = vrot.slane %v1582, 1
        %v1585 = vor.u32 %v1580, %v1584
        %v1587 = vshll.u32 %v1496, 16
        %v1589 = vrot.slane %v1587, 1
        %v1590 = vsel %vm1506, %v1585, %v1589
        %v1592 = vshrl.u32 %v1449, 16
        %v1594 = vshll.u32 %v1449, 16
        %v1596 = vrot.slane %v1594, 1
        %v1597 = vor.u32 %v1592, %v1596
        %v1599 = vshll.u32 %v1497, 16
        %v1601 = vrot.slane %v1599, 1
        %v1602 = vsel %vm1506, %v1597, %v1601
        %v1604 = vshrl.u32 %v1450, 16
        %v1606 = vshll.u32 %v1450, 16
        %v1608 = vrot.slane %v1606, 1
        %v1609 = vor.u32 %v1604, %v1608
        %v1611 = vshll.u32 %v1498, 16
        %v1613 = vrot.slane %v1611, 1
        %v1614 = vsel %vm1506, %v1609, %v1613
        %v1616 = vshrl.u32 %v1451, 16
        %v1618 = vshll.u32 %v1451, 16
        %v1620 = vrot.slane %v1618, 1
        %v1621 = vor.u32 %v1616, %v1620
        %v1623 = vshll.u32 %v1499, 16
        %v1625 = vrot.slane %v1623, 1
        %v1626 = vsel %vm1506, %v1621, %v1625
        %v1628 = vshrl.u32 %v1452, 16
        %v1630 = vshll.u32 %v1452, 16
        %v1632 = vrot.slane %v1630, 1
        %v1633 = vor.u32 %v1628, %v1632
        %v1635 = vshll.u32 %v1500, 16
        %v1637 = vrot.slane %v1635, 1
        %v1638 = vsel %vm1506, %v1633, %v1637
        %v1640 = vshrl.u32 %v1453, 16
        %v1642 = vshll.u32 %v1453, 16
        %v1644 = vrot.slane %v1642, 1
        %v1645 = vor.u32 %v1640, %v1644
        %v1647 = vshll.u32 %v1501, 16
        %v1649 = vrot.slane %v1647, 1
        %v1650 = vsel %vm1506, %v1645, %v1649
        %v1652 = vshrl.u32 %v1454, 16
        %v1654 = vshll.u32 %v1454, 16
        %v1656 = vrot.slane %v1654, 1
        %v1657 = vor.u32 %v1652, %v1656
        %v1659 = vshll.u32 %v1502, 16
        %v1661 = vrot.slane %v1659, 1
        %v1662 = vsel %vm1506, %v1657, %v1661
        %v1664 = vshrl.u32 %v1455, 16
        %v1666 = vshll.u32 %v1455, 16
        %v1668 = vrot.slane %v1666, 1
        %v1669 = vor.u32 %v1664, %v1668
        %v1671 = vshll.u32 %v1503, 16
        %v1673 = vrot.slane %v1671, 1
        %v1674 = vsel %vm1506, %v1669, %v1673
        %v1676 = vshrl.u32 %v1456, 16
        %v1678 = vshll.u32 %v1456, 16
        %v1680 = vrot.slane %v1678, 1
        %v1681 = vor.u32 %v1676, %v1680
        %v1683 = vshll.u32 %v1504, 16
        %v1685 = vrot.slane %v1683, 1
        %v1686 = vsel %vm1506, %v1681, %v1685
        %v1688 = vshrl.u32 %v1457, 16
        %v1690 = vshll.u32 %v1457, 16
        %v1692 = vrot.slane %v1690, 1
        %v1693 = vor.u32 %v1688, %v1692
        %v1695 = vshll.u32 %v1505, 16
        %v1697 = vrot.slane %v1695, 1
        %v1698 = vsel %vm1506, %v1693, %v1697
        %1699 = vrot.lane.b32.xlu0 %v1518, 3
        %v1700 = vpop.permute.xlu0 %1699
        %1701 = vrot.lane.b32.xlu0 %v1530, 3
        %v1702 = vpop.permute.xlu0 %1701
        %1703 = vrot.lane.b32.xlu0 %v1542, 3
        %v1704 = vpop.permute.xlu0 %1703
        %1705 = vrot.lane.b32.xlu0 %v1554, 3
        %v1706 = vpop.permute.xlu0 %1705
        %1707 = vrot.lane.b32.xlu0 %v1566, 3
        %v1708 = vpop.permute.xlu0 %1707
        %1709 = vrot.lane.b32.xlu0 %v1578, 3
        %v1710 = vpop.permute.xlu0 %1709
        %1711 = vrot.lane.b32.xlu0 %v1590, 3
        %v1712 = vpop.permute.xlu0 %1711
        %1713 = vrot.lane.b32.xlu0 %v1602, 3
        %v1714 = vpop.permute.xlu0 %1713
        %1715 = vrot.lane.b32.xlu0 %v1614, 3
        %v1716 = vpop.permute.xlu0 %1715
        %1717 = vrot.lane.b32.xlu0 %v1626, 3
        %v1718 = vpop.permute.xlu0 %1717
        %1719 = vrot.lane.b32.xlu0 %v1638, 3
        %v1720 = vpop.permute.xlu0 %1719
        %1721 = vrot.lane.b32.xlu0 %v1650, 3
        %v1722 = vpop.permute.xlu0 %1721
        %1723 = vrot.lane.b32.xlu0 %v1662, 3
        %v1724 = vpop.permute.xlu0 %1723
        %1725 = vrot.lane.b32.xlu0 %v1674, 3
        %v1726 = vpop.permute.xlu0 %1725
        %1727 = vrot.lane.b32.xlu0 %v1686, 3
        %v1728 = vpop.permute.xlu0 %1727
        %1729 = vrot.lane.b32.xlu0 %v1698, 3
        %v1730 = vpop.permute.xlu0 %1729
        %v1747 = vunpack.c.l.b16 %v1233
        %v1748 = vunpack.c.l.b16 %v1234
        %v1749 = vunpack.c.l.b16 %v1235
        %v1750 = vunpack.c.l.b16 %v1236
        %v1751 = vunpack.c.l.b16 %v1237
        %v1752 = vunpack.c.l.b16 %v1238
        %v1753 = vunpack.c.l.b16 %v1239
        %v1754 = vunpack.c.l.b16 %v1240
        %v1755 = vunpack.c.l.b16 %v1241
        %v1756 = vunpack.c.l.b16 %v1242
        %v1757 = vunpack.c.l.b16 %v1243
        %v1758 = vunpack.c.l.b16 %v1244
        %v1759 = vunpack.c.l.b16 %v1245
        %v1760 = vunpack.c.l.b16 %v1246
        %v1761 = vunpack.c.l.b16 %v1247
        %v1762 = vunpack.c.l.b16 %v1248
        %v1763 = vpack.c.b16 %v1411, %v1747
        %v1764 = vpack.c.b16 %v1413, %v1748
        %v1765 = vpack.c.b16 %v1415, %v1749
        %v1766 = vpack.c.b16 %v1417, %v1750
        %v1767 = vpack.c.b16 %v1419, %v1751
        %v1768 = vpack.c.b16 %v1421, %v1752
        %v1769 = vpack.c.b16 %v1423, %v1753
        %v1770 = vpack.c.b16 %v1425, %v1754
        %v1771 = vpack.c.b16 %v1427, %v1755
        %v1772 = vpack.c.b16 %v1429, %v1756
        %v1773 = vpack.c.b16 %v1431, %v1757
        %v1774 = vpack.c.b16 %v1433, %v1758
        %v1775 = vpack.c.b16 %v1435, %v1759
        %v1776 = vpack.c.b16 %v1437, %v1760
        %v1777 = vpack.c.b16 %v1439, %v1761
        %v1778 = vpack.c.b16 %v1441, %v1762
        %vm1779 = vcmask 1046528
        %v1780 = vrot.slane %v1763, 1
        %v1781 = vrot.slane %v1490, 1
        %v1782 = vsel %vm1779, %v1780, %v1781
        %v1783 = vrot.slane %v1764, 1
        %v1784 = vrot.slane %v1491, 1
        %v1785 = vsel %vm1779, %v1783, %v1784
        %v1786 = vrot.slane %v1765, 1
        %v1787 = vrot.slane %v1492, 1
        %v1788 = vsel %vm1779, %v1786, %v1787
        %v1789 = vrot.slane %v1766, 1
        %v1790 = vrot.slane %v1493, 1
        %v1791 = vsel %vm1779, %v1789, %v1790
        %v1792 = vrot.slane %v1767, 1
        %v1793 = vrot.slane %v1494, 1
        %v1794 = vsel %vm1779, %v1792, %v1793
        %v1795 = vrot.slane %v1768, 1
        %v1796 = vrot.slane %v1495, 1
        %v1797 = vsel %vm1779, %v1795, %v1796
        %v1798 = vrot.slane %v1769, 1
        %v1799 = vrot.slane %v1496, 1
        %v1800 = vsel %vm1779, %v1798, %v1799
        %v1801 = vrot.slane %v1770, 1
        %v1802 = vrot.slane %v1497, 1
        %v1803 = vsel %vm1779, %v1801, %v1802
        %v1804 = vrot.slane %v1771, 1
        %v1805 = vrot.slane %v1498, 1
        %v1806 = vsel %vm1779, %v1804, %v1805
        %v1807 = vrot.slane %v1772, 1
        %v1808 = vrot.slane %v1499, 1
        %v1809 = vsel %vm1779, %v1807, %v1808
        %v1810 = vrot.slane %v1773, 1
        %v1811 = vrot.slane %v1500, 1
        %v1812 = vsel %vm1779, %v1810, %v1811
        %v1813 = vrot.slane %v1774, 1
        %v1814 = vrot.slane %v1501, 1
        %v1815 = vsel %vm1779, %v1813, %v1814
        %v1816 = vrot.slane %v1775, 1
        %v1817 = vrot.slane %v1502, 1
        %v1818 = vsel %vm1779, %v1816, %v1817
        %v1819 = vrot.slane %v1776, 1
        %v1820 = vrot.slane %v1503, 1
        %v1821 = vsel %vm1779, %v1819, %v1820
        %v1822 = vrot.slane %v1777, 1
        %v1823 = vrot.slane %v1504, 1
        %v1824 = vsel %vm1779, %v1822, %v1823
        %v1825 = vrot.slane %v1778, 1
        %v1826 = vrot.slane %v1505, 1
        %v1827 = vsel %vm1779, %v1825, %v1826
        %1828 = vrot.lane.b32.xlu0 %v1782, 6
        %v1829 = vpop.permute.xlu0 %1828
        %1830 = vrot.lane.b32.xlu0 %v1785, 6
        %v1831 = vpop.permute.xlu0 %1830
        %1832 = vrot.lane.b32.xlu0 %v1788, 6
        %v1833 = vpop.permute.xlu0 %1832
        %1834 = vrot.lane.b32.xlu0 %v1791, 6
        %v1835 = vpop.permute.xlu0 %1834
        %1836 = vrot.lane.b32.xlu0 %v1794, 6
        %v1837 = vpop.permute.xlu0 %1836
        %1838 = vrot.lane.b32.xlu0 %v1797, 6
        %v1839 = vpop.permute.xlu0 %1838
        %1840 = vrot.lane.b32.xlu0 %v1800, 6
        %v1841 = vpop.permute.xlu0 %1840
        %1842 = vrot.lane.b32.xlu0 %v1803, 6
        %v1843 = vpop.permute.xlu0 %1842
        %1844 = vrot.lane.b32.xlu0 %v1806, 6
        %v1845 = vpop.permute.xlu0 %1844
        %1846 = vrot.lane.b32.xlu0 %v1809, 6
        %v1847 = vpop.permute.xlu0 %1846
        %1848 = vrot.lane.b32.xlu0 %v1812, 6
        %v1849 = vpop.permute.xlu0 %1848
        %1850 = vrot.lane.b32.xlu0 %v1815, 6
        %v1851 = vpop.permute.xlu0 %1850
        %1852 = vrot.lane.b32.xlu0 %v1818, 6
        %v1853 = vpop.permute.xlu0 %1852
        %1854 = vrot.lane.b32.xlu0 %v1821, 6
        %v1855 = vpop.permute.xlu0 %1854
        %1856 = vrot.lane.b32.xlu0 %v1824, 6
        %v1857 = vpop.permute.xlu0 %1856
        %1858 = vrot.lane.b32.xlu0 %v1827, 6
        %v1859 = vpop.permute.xlu0 %1858
        %v1892 = vunpack.c.l.b16 %v1249
        %v1893 = vunpack.c.l.b16 %v1250
        %v1894 = vunpack.c.l.b16 %v1251
        %v1895 = vunpack.c.l.b16 %v1252
        %v1896 = vunpack.c.l.b16 %v1253
        %v1897 = vunpack.c.l.b16 %v1254
        %v1898 = vunpack.c.l.b16 %v1255
        %v1899 = vunpack.c.l.b16 %v1256
        %v1900 = vunpack.c.l.b16 %v1257
        %v1901 = vunpack.c.l.b16 %v1258
        %v1902 = vunpack.c.l.b16 %v1259
        %v1903 = vunpack.c.l.b16 %v1260
        %v1904 = vunpack.c.l.b16 %v1261
        %v1905 = vunpack.c.l.b16 %v1262
        %v1906 = vunpack.c.l.b16 %v1263
        %v1907 = vunpack.c.l.b16 %v1264
        %v1908 = vunpack.c.l.b16 %v1265
        %v1909 = vunpack.c.l.b16 %v1266
        %v1910 = vunpack.c.l.b16 %v1267
        %v1911 = vunpack.c.l.b16 %v1268
        %v1912 = vunpack.c.l.b16 %v1269
        %v1913 = vunpack.c.l.b16 %v1270
        %v1914 = vunpack.c.l.b16 %v1271
        %v1915 = vunpack.c.l.b16 %v1272
        %v1916 = vunpack.c.l.b16 %v1273
        %v1917 = vunpack.c.l.b16 %v1274
        %v1918 = vunpack.c.l.b16 %v1275
        %v1919 = vunpack.c.l.b16 %v1276
        %v1920 = vunpack.c.l.b16 %v1277
        %v1921 = vunpack.c.l.b16 %v1278
        %v1922 = vunpack.c.l.b16 %v1279
        %v1923 = vunpack.c.l.b16 %v1280
        %v1924 = vpack.c.b16 %v1893, %v1892
        %v1925 = vpack.c.b16 %v1895, %v1894
        %v1926 = vpack.c.b16 %v1897, %v1896
        %v1927 = vpack.c.b16 %v1899, %v1898
        %v1928 = vpack.c.b16 %v1901, %v1900
        %v1929 = vpack.c.b16 %v1903, %v1902
        %v1930 = vpack.c.b16 %v1905, %v1904
        %v1931 = vpack.c.b16 %v1907, %v1906
        %v1932 = vpack.c.b16 %v1909, %v1908
        %v1933 = vpack.c.b16 %v1911, %v1910
        %v1934 = vpack.c.b16 %v1913, %v1912
        %v1935 = vpack.c.b16 %v1915, %v1914
        %v1936 = vpack.c.b16 %v1917, %v1916
        %v1937 = vpack.c.b16 %v1919, %v1918
        %v1938 = vpack.c.b16 %v1921, %v1920
        %v1939 = vpack.c.b16 %v1923, %v1922
        %1940 = vrot.lane.b32.xlu0 %v1924, 9
        %v1941 = vpop.permute.xlu0 %1940
        %1942 = vrot.lane.b32.xlu0 %v1925, 9
        %v1943 = vpop.permute.xlu0 %1942
        %1944 = vrot.lane.b32.xlu0 %v1926, 9
        %v1945 = vpop.permute.xlu0 %1944
        %1946 = vrot.lane.b32.xlu0 %v1927, 9
        %v1947 = vpop.permute.xlu0 %1946
        %1948 = vrot.lane.b32.xlu0 %v1928, 9
        %v1949 = vpop.permute.xlu0 %1948
        %1950 = vrot.lane.b32.xlu0 %v1929, 9
        %v1951 = vpop.permute.xlu0 %1950
        %1952 = vrot.lane.b32.xlu0 %v1930, 9
        %v1953 = vpop.permute.xlu0 %1952
        %1954 = vrot.lane.b32.xlu0 %v1931, 9
        %v1955 = vpop.permute.xlu0 %1954
        %1956 = vrot.lane.b32.xlu0 %v1932, 9
        %v1957 = vpop.permute.xlu0 %1956
        %1958 = vrot.lane.b32.xlu0 %v1933, 9
        %v1959 = vpop.permute.xlu0 %1958
        %1960 = vrot.lane.b32.xlu0 %v1934, 9
        %v1961 = vpop.permute.xlu0 %1960
        %1962 = vrot.lane.b32.xlu0 %v1935, 9
        %v1963 = vpop.permute.xlu0 %1962
        %1964 = vrot.lane.b32.xlu0 %v1936, 9
        %v1965 = vpop.permute.xlu0 %1964
        %1966 = vrot.lane.b32.xlu0 %v1937, 9
        %v1967 = vpop.permute.xlu0 %1966
        %1968 = vrot.lane.b32.xlu0 %v1938, 9
        %v1969 = vpop.permute.xlu0 %1968
        %1970 = vrot.lane.b32.xlu0 %v1939, 9
        %v1971 = vpop.permute.xlu0 %1970
        %v1988 = vunpack.c.l.b16 %v1281
        %v1989 = vunpack.c.l.b16 %v1282
        %v1990 = vunpack.c.l.b16 %v1283
        %v1991 = vunpack.c.l.b16 %v1284
        %v1992 = vunpack.c.l.b16 %v1285
        %v1993 = vunpack.c.l.b16 %v1286
        %v1994 = vunpack.c.l.b16 %v1287
        %v1995 = vunpack.c.l.b16 %v1288
        %v1996 = vunpack.c.l.b16 %v1289
        %v1997 = vunpack.c.l.b16 %v1290
        %v1998 = vunpack.c.l.b16 %v1291
        %v1999 = vunpack.c.l.b16 %v1292
        %v2000 = vunpack.c.l.b16 %v1293
        %v2001 = vunpack.c.l.b16 %v1294
        %v2002 = vunpack.c.l.b16 %v1295
        %v2003 = vunpack.c.l.b16 %v1296
        %v2004 = vpack.c.b16 %v1988, %v1988
        %v2005 = vpack.c.b16 %v1989, %v1989
        %v2006 = vpack.c.b16 %v1990, %v1990
        %v2007 = vpack.c.b16 %v1991, %v1991
        %v2008 = vpack.c.b16 %v1992, %v1992
        %v2009 = vpack.c.b16 %v1993, %v1993
        %v2010 = vpack.c.b16 %v1994, %v1994
        %v2011 = vpack.c.b16 %v1995, %v1995
        %v2012 = vpack.c.b16 %v1996, %v1996
        %v2013 = vpack.c.b16 %v1997, %v1997
        %v2014 = vpack.c.b16 %v1998, %v1998
        %v2015 = vpack.c.b16 %v1999, %v1999
        %v2016 = vpack.c.b16 %v2000, %v2000
        %v2017 = vpack.c.b16 %v2001, %v2001
        %v2018 = vpack.c.b16 %v2002, %v2002
        %v2019 = vpack.c.b16 %v2003, %v2003
        %v2021 = vshrl.u32 %v1924, 16
        %v2023 = vshll.u32 %v1924, 16
        %v2025 = vrot.slane %v2023, 1
        %v2026 = vor.u32 %v2021, %v2025
        %v2028 = vshll.u32 %v2004, 16
        %v2030 = vrot.slane %v2028, 1
        %v2031 = vsel %vm1506, %v2026, %v2030
        %v2033 = vshrl.u32 %v1925, 16
        %v2035 = vshll.u32 %v1925, 16
        %v2037 = vrot.slane %v2035, 1
        %v2038 = vor.u32 %v2033, %v2037
        %v2040 = vshll.u32 %v2005, 16
        %v2042 = vrot.slane %v2040, 1
        %v2043 = vsel %vm1506, %v2038, %v2042
        %v2045 = vshrl.u32 %v1926, 16
        %v2047 = vshll.u32 %v1926, 16
        %v2049 = vrot.slane %v2047, 1
        %v2050 = vor.u32 %v2045, %v2049
        %v2052 = vshll.u32 %v2006, 16
        %v2054 = vrot.slane %v2052, 1
        %v2055 = vsel %vm1506, %v2050, %v2054
        %v2057 = vshrl.u32 %v1927, 16
        %v2059 = vshll.u32 %v1927, 16
        %v2061 = vrot.slane %v2059, 1
        %v2062 = vor.u32 %v2057, %v2061
        %v2064 = vshll.u32 %v2007, 16
        %v2066 = vrot.slane %v2064, 1
        %v2067 = vsel %vm1506, %v2062, %v2066
        %v2069 = vshrl.u32 %v1928, 16
        %v2071 = vshll.u32 %v1928, 16
        %v2073 = vrot.slane %v2071, 1
        %v2074 = vor.u32 %v2069, %v2073
        %v2076 = vshll.u32 %v2008, 16
        %v2078 = vrot.slane %v2076, 1
        %v2079 = vsel %vm1506, %v2074, %v2078
        %v2081 = vshrl.u32 %v1929, 16
        %v2083 = vshll.u32 %v1929, 16
        %v2085 = vrot.slane %v2083, 1
        %v2086 = vor.u32 %v2081, %v2085
        %v2088 = vshll.u32 %v2009, 16
        %v2090 = vrot.slane %v2088, 1
        %v2091 = vsel %vm1506, %v2086, %v2090
        %v2093 = vshrl.u32 %v1930, 16
        %v2095 = vshll.u32 %v1930, 16
        %v2097 = vrot.slane %v2095, 1
        %v2098 = vor.u32 %v2093, %v2097
        %v2100 = vshll.u32 %v2010, 16
        %v2102 = vrot.slane %v2100, 1
        %v2103 = vsel %vm1506, %v2098, %v2102
        %v2105 = vshrl.u32 %v1931, 16
        %v2107 = vshll.u32 %v1931, 16
        %v2109 = vrot.slane %v2107, 1
        %v2110 = vor.u32 %v2105, %v2109
        %v2112 = vshll.u32 %v2011, 16
        %v2114 = vrot.slane %v2112, 1
        %v2115 = vsel %vm1506, %v2110, %v2114
        %v2117 = vshrl.u32 %v1932, 16
        %v2119 = vshll.u32 %v1932, 16
        %v2121 = vrot.slane %v2119, 1
        %v2122 = vor.u32 %v2117, %v2121
        %v2124 = vshll.u32 %v2012, 16
        %v2126 = vrot.slane %v2124, 1
        %v2127 = vsel %vm1506, %v2122, %v2126
        %v2129 = vshrl.u32 %v1933, 16
        %v2131 = vshll.u32 %v1933, 16
        %v2133 = vrot.slane %v2131, 1
        %v2134 = vor.u32 %v2129, %v2133
        %v2136 = vshll.u32 %v2013, 16
        %v2138 = vrot.slane %v2136, 1
        %v2139 = vsel %vm1506, %v2134, %v2138
        %v2141 = vshrl.u32 %v1934, 16
        %v2143 = vshll.u32 %v1934, 16
        %v2145 = vrot.slane %v2143, 1
        %v2146 = vor.u32 %v2141, %v2145
        %v2148 = vshll.u32 %v2014, 16
        %v2150 = vrot.slane %v2148, 1
        %v2151 = vsel %vm1506, %v2146, %v2150
        %v2153 = vshrl.u32 %v1935, 16
        %v2155 = vshll.u32 %v1935, 16
        %v2157 = vrot.slane %v2155, 1
        %v2158 = vor.u32 %v2153, %v2157
        %v2160 = vshll.u32 %v2015, 16
        %v2162 = vrot.slane %v2160, 1
        %v2163 = vsel %vm1506, %v2158, %v2162
        %v2165 = vshrl.u32 %v1936, 16
        %v2167 = vshll.u32 %v1936, 16
        %v2169 = vrot.slane %v2167, 1
        %v2170 = vor.u32 %v2165, %v2169
        %v2172 = vshll.u32 %v2016, 16
        %v2174 = vrot.slane %v2172, 1
        %v2175 = vsel %vm1506, %v2170, %v2174
        %v2177 = vshrl.u32 %v1937, 16
        %v2179 = vshll.u32 %v1937, 16
        %v2181 = vrot.slane %v2179, 1
        %v2182 = vor.u32 %v2177, %v2181
        %v2184 = vshll.u32 %v2017, 16
        %v2186 = vrot.slane %v2184, 1
        %v2187 = vsel %vm1506, %v2182, %v2186
        %v2189 = vshrl.u32 %v1938, 16
        %v2191 = vshll.u32 %v1938, 16
        %v2193 = vrot.slane %v2191, 1
        %v2194 = vor.u32 %v2189, %v2193
        %v2196 = vshll.u32 %v2018, 16
        %v2198 = vrot.slane %v2196, 1
        %v2199 = vsel %vm1506, %v2194, %v2198
        %v2201 = vshrl.u32 %v1939, 16
        %v2203 = vshll.u32 %v1939, 16
        %v2205 = vrot.slane %v2203, 1
        %v2206 = vor.u32 %v2201, %v2205
        %v2208 = vshll.u32 %v2019, 16
        %v2210 = vrot.slane %v2208, 1
        %v2211 = vsel %vm1506, %v2206, %v2210
        %2212 = vrot.lane.b32.xlu0 %v2031, 12
        %v2213 = vpop.permute.xlu0 %2212
        %2214 = vrot.lane.b32.xlu0 %v2043, 12
        %v2215 = vpop.permute.xlu0 %2214
        %2216 = vrot.lane.b32.xlu0 %v2055, 12
        %v2217 = vpop.permute.xlu0 %2216
        %2218 = vrot.lane.b32.xlu0 %v2067, 12
        %v2219 = vpop.permute.xlu0 %2218
        %2220 = vrot.lane.b32.xlu0 %v2079, 12
        %v2221 = vpop.permute.xlu0 %2220
        %2222 = vrot.lane.b32.xlu0 %v2091, 12
        %v2223 = vpop.permute.xlu0 %2222
        %2224 = vrot.lane.b32.xlu0 %v2103, 12
        %v2225 = vpop.permute.xlu0 %2224
        %2226 = vrot.lane.b32.xlu0 %v2115, 12
        %v2227 = vpop.permute.xlu0 %2226
        %2228 = vrot.lane.b32.xlu0 %v2127, 12
        %v2229 = vpop.permute.xlu0 %2228
        %2230 = vrot.lane.b32.xlu0 %v2139, 12
        %v2231 = vpop.permute.xlu0 %2230
        %2232 = vrot.lane.b32.xlu0 %v2151, 12
        %v2233 = vpop.permute.xlu0 %2232
        %2234 = vrot.lane.b32.xlu0 %v2163, 12
        %v2235 = vpop.permute.xlu0 %2234
        %2236 = vrot.lane.b32.xlu0 %v2175, 12
        %v2237 = vpop.permute.xlu0 %2236
        %2238 = vrot.lane.b32.xlu0 %v2187, 12
        %v2239 = vpop.permute.xlu0 %2238
        %2240 = vrot.lane.b32.xlu0 %v2199, 12
        %v2241 = vpop.permute.xlu0 %2240
        %2242 = vrot.lane.b32.xlu0 %v2211, 12
        %v2243 = vpop.permute.xlu0 %2242
        %v2260 = vunpack.c.l.b16 %v1297
        %v2261 = vunpack.c.l.b16 %v1298
        %v2262 = vunpack.c.l.b16 %v1299
        %v2263 = vunpack.c.l.b16 %v1300
        %v2264 = vunpack.c.l.b16 %v1301
        %v2265 = vunpack.c.l.b16 %v1302
        %v2266 = vunpack.c.l.b16 %v1303
        %v2267 = vunpack.c.l.b16 %v1304
        %v2268 = vunpack.c.l.b16 %v1305
        %v2269 = vunpack.c.l.b16 %v1306
        %v2270 = vunpack.c.l.b16 %v1307
        %v2271 = vunpack.c.l.b16 %v1308
        %v2272 = vunpack.c.l.b16 %v1309
        %v2273 = vunpack.c.l.b16 %v1310
        %v2274 = vunpack.c.l.b16 %v1311
        %v2275 = vunpack.c.l.b16 %v1312
        %v2276 = vpack.c.b16 %v1893, %v2260
        %v2277 = vpack.c.b16 %v1895, %v2261
        %v2278 = vpack.c.b16 %v1897, %v2262
        %v2279 = vpack.c.b16 %v1899, %v2263
        %v2280 = vpack.c.b16 %v1901, %v2264
        %v2281 = vpack.c.b16 %v1903, %v2265
        %v2282 = vpack.c.b16 %v1905, %v2266
        %v2283 = vpack.c.b16 %v1907, %v2267
        %v2284 = vpack.c.b16 %v1909, %v2268
        %v2285 = vpack.c.b16 %v1911, %v2269
        %v2286 = vpack.c.b16 %v1913, %v2270
        %v2287 = vpack.c.b16 %v1915, %v2271
        %v2288 = vpack.c.b16 %v1917, %v2272
        %v2289 = vpack.c.b16 %v1919, %v2273
        %v2290 = vpack.c.b16 %v1921, %v2274
        %v2291 = vpack.c.b16 %v1923, %v2275
        %v2292 = vrot.slane %v2276, 1
        %v2293 = vrot.slane %v2004, 1
        %v2294 = vsel %vm1779, %v2292, %v2293
        %v2295 = vrot.slane %v2277, 1
        %v2296 = vrot.slane %v2005, 1
        %v2297 = vsel %vm1779, %v2295, %v2296
        %v2298 = vrot.slane %v2278, 1
        %v2299 = vrot.slane %v2006, 1
        %v2300 = vsel %vm1779, %v2298, %v2299
        %v2301 = vrot.slane %v2279, 1
        %v2302 = vrot.slane %v2007, 1
        %v2303 = vsel %vm1779, %v2301, %v2302
        %v2304 = vrot.slane %v2280, 1
        %v2305 = vrot.slane %v2008, 1
        %v2306 = vsel %vm1779, %v2304, %v2305
        %v2307 = vrot.slane %v2281, 1
        %v2308 = vrot.slane %v2009, 1
        %v2309 = vsel %vm1779, %v2307, %v2308
        %v2310 = vrot.slane %v2282, 1
        %v2311 = vrot.slane %v2010, 1
        %v2312 = vsel %vm1779, %v2310, %v2311
        %v2313 = vrot.slane %v2283, 1
        %v2314 = vrot.slane %v2011, 1
        %v2315 = vsel %vm1779, %v2313, %v2314
        %v2316 = vrot.slane %v2284, 1
        %v2317 = vrot.slane %v2012, 1
        %v2318 = vsel %vm1779, %v2316, %v2317
        %v2319 = vrot.slane %v2285, 1
        %v2320 = vrot.slane %v2013, 1
        %v2321 = vsel %vm1779, %v2319, %v2320
        %v2322 = vrot.slane %v2286, 1
        %v2323 = vrot.slane %v2014, 1
        %v2324 = vsel %vm1779, %v2322, %v2323
        %v2325 = vrot.slane %v2287, 1
        %v2326 = vrot.slane %v2015, 1
        %v2327 = vsel %vm1779, %v2325, %v2326
        %v2328 = vrot.slane %v2288, 1
        %v2329 = vrot.slane %v2016, 1
        %v2330 = vsel %vm1779, %v2328, %v2329
        %v2331 = vrot.slane %v2289, 1
        %v2332 = vrot.slane %v2017, 1
        %v2333 = vsel %vm1779, %v2331, %v2332
        %v2334 = vrot.slane %v2290, 1
        %v2335 = vrot.slane %v2018, 1
        %v2336 = vsel %vm1779, %v2334, %v2335
        %v2337 = vrot.slane %v2291, 1
        %v2338 = vrot.slane %v2019, 1
        %v2339 = vsel %vm1779, %v2337, %v2338
        %2340 = vrot.lane.b32.xlu0 %v2294, 15
        %v2341 = vpop.permute.xlu0 %2340
        %2342 = vrot.lane.b32.xlu0 %v2297, 15
        %v2343 = vpop.permute.xlu0 %2342
        %2344 = vrot.lane.b32.xlu0 %v2300, 15
        %v2345 = vpop.permute.xlu0 %2344
        %2346 = vrot.lane.b32.xlu0 %v2303, 15
        %v2347 = vpop.permute.xlu0 %2346
        %2348 = vrot.lane.b32.xlu0 %v2306, 15
        %v2349 = vpop.permute.xlu0 %2348
        %2350 = vrot.lane.b32.xlu0 %v2309, 15
        %v2351 = vpop.permute.xlu0 %2350
        %2352 = vrot.lane.b32.xlu0 %v2312, 15
        %v2353 = vpop.permute.xlu0 %2352
        %2354 = vrot.lane.b32.xlu0 %v2315, 15
        %v2355 = vpop.permute.xlu0 %2354
        %2356 = vrot.lane.b32.xlu0 %v2318, 15
        %v2357 = vpop.permute.xlu0 %2356
        %2358 = vrot.lane.b32.xlu0 %v2321, 15
        %v2359 = vpop.permute.xlu0 %2358
        %2360 = vrot.lane.b32.xlu0 %v2324, 15
        %v2361 = vpop.permute.xlu0 %2360
        %2362 = vrot.lane.b32.xlu0 %v2327, 15
        %v2363 = vpop.permute.xlu0 %2362
        %2364 = vrot.lane.b32.xlu0 %v2330, 15
        %v2365 = vpop.permute.xlu0 %2364
        %2366 = vrot.lane.b32.xlu0 %v2333, 15
        %v2367 = vpop.permute.xlu0 %2366
        %2368 = vrot.lane.b32.xlu0 %v2336, 15
        %v2369 = vpop.permute.xlu0 %2368
        %2370 = vrot.lane.b32.xlu0 %v2339, 15
        %v2371 = vpop.permute.xlu0 %2370
        %v2404 = vunpack.c.l.b16 %v1314
        %v2405 = vunpack.c.l.b16 %v1315
        %v2406 = vunpack.c.l.b16 %v1316
        %v2407 = vunpack.c.l.b16 %v1317
        %v2408 = vunpack.c.l.b16 %v1318
        %v2409 = vunpack.c.l.b16 %v1319
        %v2410 = vunpack.c.l.b16 %v1320
        %v2411 = vunpack.c.l.b16 %v1321
        %v2412 = vunpack.c.l.b16 %v1322
        %v2413 = vunpack.c.l.b16 %v1323
        %v2414 = vunpack.c.l.b16 %v1324
        %v2415 = vunpack.c.l.b16 %v1325
        %v2416 = vunpack.c.l.b16 %v1326
        %v2417 = vunpack.c.l.b16 %v1327
        %v2418 = vunpack.c.l.b16 %v1328
        %v2419 = vunpack.c.l.b16 %v1329
        %v2420 = vunpack.c.l.b16 %v1330
        %v2421 = vunpack.c.l.b16 %v1331
        %v2422 = vunpack.c.l.b16 %v1332
        %v2423 = vunpack.c.l.b16 %v1333
        %v2424 = vunpack.c.l.b16 %v1334
        %v2425 = vunpack.c.l.b16 %v1335
        %v2426 = vunpack.c.l.b16 %v1336
        %v2427 = vunpack.c.l.b16 %v1337
        %v2428 = vunpack.c.l.b16 %v1338
        %v2429 = vunpack.c.l.b16 %v1339
        %v2430 = vunpack.c.l.b16 %v1340
        %v2431 = vunpack.c.l.b16 %v1341
        %v2432 = vunpack.c.l.b16 %v1342
        %v2433 = vunpack.c.l.b16 %v1343
        %v2434 = vunpack.c.l.b16 %v1344
        %v2435 = vunpack.c.l.b16 %v1345
        %v2436 = vpack.c.b16 %v2405, %v2404
        %v2437 = vpack.c.b16 %v2407, %v2406
        %v2438 = vpack.c.b16 %v2409, %v2408
        %v2439 = vpack.c.b16 %v2411, %v2410
        %v2440 = vpack.c.b16 %v2413, %v2412
        %v2441 = vpack.c.b16 %v2415, %v2414
        %v2442 = vpack.c.b16 %v2417, %v2416
        %v2443 = vpack.c.b16 %v2419, %v2418
        %v2444 = vpack.c.b16 %v2421, %v2420
        %v2445 = vpack.c.b16 %v2423, %v2422
        %v2446 = vpack.c.b16 %v2425, %v2424
        %v2447 = vpack.c.b16 %v2427, %v2426
        %v2448 = vpack.c.b16 %v2429, %v2428
        %v2449 = vpack.c.b16 %v2431, %v2430
        %v2450 = vpack.c.b16 %v2433, %v2432
        %v2451 = vpack.c.b16 %v2435, %v2434
        %2452 = vrot.lane.b32.xlu0 %v2436, 18
        %v2453 = vpop.permute.xlu0 %2452
        %2454 = vrot.lane.b32.xlu0 %v2437, 18
        %v2455 = vpop.permute.xlu0 %2454
        %2456 = vrot.lane.b32.xlu0 %v2438, 18
        %v2457 = vpop.permute.xlu0 %2456
        %2458 = vrot.lane.b32.xlu0 %v2439, 18
        %v2459 = vpop.permute.xlu0 %2458
        %2460 = vrot.lane.b32.xlu0 %v2440, 18
        %v2461 = vpop.permute.xlu0 %2460
        %2462 = vrot.lane.b32.xlu0 %v2441, 18
        %v2463 = vpop.permute.xlu0 %2462
        %2464 = vrot.lane.b32.xlu0 %v2442, 18
        %v2465 = vpop.permute.xlu0 %2464
        %2466 = vrot.lane.b32.xlu0 %v2443, 18
        %v2467 = vpop.permute.xlu0 %2466
        %2468 = vrot.lane.b32.xlu0 %v2444, 18
        %v2469 = vpop.permute.xlu0 %2468
        %2470 = vrot.lane.b32.xlu0 %v2445, 18
        %v2471 = vpop.permute.xlu0 %2470
        %2472 = vrot.lane.b32.xlu0 %v2446, 18
        %v2473 = vpop.permute.xlu0 %2472
        %2474 = vrot.lane.b32.xlu0 %v2447, 18
        %v2475 = vpop.permute.xlu0 %2474
        %2476 = vrot.lane.b32.xlu0 %v2448, 18
        %v2477 = vpop.permute.xlu0 %2476
        %2478 = vrot.lane.b32.xlu0 %v2449, 18
        %v2479 = vpop.permute.xlu0 %2478
        %2480 = vrot.lane.b32.xlu0 %v2450, 18
        %v2481 = vpop.permute.xlu0 %2480
        %2482 = vrot.lane.b32.xlu0 %v2451, 18
        %v2483 = vpop.permute.xlu0 %2482
        %v2500 = vunpack.c.l.b16 %v1346
        %v2501 = vunpack.c.l.b16 %v1347
        %v2502 = vunpack.c.l.b16 %v1348
        %v2503 = vunpack.c.l.b16 %v1349
        %v2504 = vunpack.c.l.b16 %v1350
        %v2505 = vunpack.c.l.b16 %v1351
        %v2506 = vunpack.c.l.b16 %v1352
        %v2507 = vunpack.c.l.b16 %v1353
        %v2508 = vunpack.c.l.b16 %v1354
        %v2509 = vunpack.c.l.b16 %v1355
        %v2510 = vunpack.c.l.b16 %v1356
        %v2511 = vunpack.c.l.b16 %v1357
        %v2512 = vunpack.c.l.b16 %v1358
        %v2513 = vunpack.c.l.b16 %v1359
        %v2514 = vunpack.c.l.b16 %v1360
        %v2515 = vunpack.c.l.b16 %v1361
        %v2516 = vpack.c.b16 %v2500, %v2500
        %v2517 = vpack.c.b16 %v2501, %v2501
        %v2518 = vpack.c.b16 %v2502, %v2502
        %v2519 = vpack.c.b16 %v2503, %v2503
        %v2520 = vpack.c.b16 %v2504, %v2504
        %v2521 = vpack.c.b16 %v2505, %v2505
        %v2522 = vpack.c.b16 %v2506, %v2506
        %v2523 = vpack.c.b16 %v2507, %v2507
        %v2524 = vpack.c.b16 %v2508, %v2508
        %v2525 = vpack.c.b16 %v2509, %v2509
        %v2526 = vpack.c.b16 %v2510, %v2510
        %v2527 = vpack.c.b16 %v2511, %v2511
        %v2528 = vpack.c.b16 %v2512, %v2512
        %v2529 = vpack.c.b16 %v2513, %v2513
        %v2530 = vpack.c.b16 %v2514, %v2514
        %v2531 = vpack.c.b16 %v2515, %v2515
        %v2533 = vshrl.u32 %v2436, 16
        %v2535 = vshll.u32 %v2436, 16
        %v2537 = vrot.slane %v2535, 1
        %v2538 = vor.u32 %v2533, %v2537
        %v2540 = vshll.u32 %v2516, 16
        %v2542 = vrot.slane %v2540, 1
        %v2543 = vsel %vm1506, %v2538, %v2542
        %v2545 = vshrl.u32 %v2437, 16
        %v2547 = vshll.u32 %v2437, 16
        %v2549 = vrot.slane %v2547, 1
        %v2550 = vor.u32 %v2545, %v2549
        %v2552 = vshll.u32 %v2517, 16
        %v2554 = vrot.slane %v2552, 1
        %v2555 = vsel %vm1506, %v2550, %v2554
        %v2557 = vshrl.u32 %v2438, 16
        %v2559 = vshll.u32 %v2438, 16
        %v2561 = vrot.slane %v2559, 1
        %v2562 = vor.u32 %v2557, %v2561
        %v2564 = vshll.u32 %v2518, 16
        %v2566 = vrot.slane %v2564, 1
        %v2567 = vsel %vm1506, %v2562, %v2566
        %v2569 = vshrl.u32 %v2439, 16
        %v2571 = vshll.u32 %v2439, 16
        %v2573 = vrot.slane %v2571, 1
        %v2574 = vor.u32 %v2569, %v2573
        %v2576 = vshll.u32 %v2519, 16
        %v2578 = vrot.slane %v2576, 1
        %v2579 = vsel %vm1506, %v2574, %v2578
        %v2581 = vshrl.u32 %v2440, 16
        %v2583 = vshll.u32 %v2440, 16
        %v2585 = vrot.slane %v2583, 1
        %v2586 = vor.u32 %v2581, %v2585
        %v2588 = vshll.u32 %v2520, 16
        %v2590 = vrot.slane %v2588, 1
        %v2591 = vsel %vm1506, %v2586, %v2590
        %v2593 = vshrl.u32 %v2441, 16
        %v2595 = vshll.u32 %v2441, 16
        %v2597 = vrot.slane %v2595, 1
        %v2598 = vor.u32 %v2593, %v2597
        %v2600 = vshll.u32 %v2521, 16
        %v2602 = vrot.slane %v2600, 1
        %v2603 = vsel %vm1506, %v2598, %v2602
        %v2605 = vshrl.u32 %v2442, 16
        %v2607 = vshll.u32 %v2442, 16
        %v2609 = vrot.slane %v2607, 1
        %v2610 = vor.u32 %v2605, %v2609
        %v2612 = vshll.u32 %v2522, 16
        %v2614 = vrot.slane %v2612, 1
        %v2615 = vsel %vm1506, %v2610, %v2614
        %v2617 = vshrl.u32 %v2443, 16
        %v2619 = vshll.u32 %v2443, 16
        %v2621 = vrot.slane %v2619, 1
        %v2622 = vor.u32 %v2617, %v2621
        %v2624 = vshll.u32 %v2523, 16
        %v2626 = vrot.slane %v2624, 1
        %v2627 = vsel %vm1506, %v2622, %v2626
        %v2629 = vshrl.u32 %v2444, 16
        %v2631 = vshll.u32 %v2444, 16
        %v2633 = vrot.slane %v2631, 1
        %v2634 = vor.u32 %v2629, %v2633
        %v2636 = vshll.u32 %v2524, 16
        %v2638 = vrot.slane %v2636, 1
        %v2639 = vsel %vm1506, %v2634, %v2638
        %v2641 = vshrl.u32 %v2445, 16
        %v2643 = vshll.u32 %v2445, 16
        %v2645 = vrot.slane %v2643, 1
        %v2646 = vor.u32 %v2641, %v2645
        %v2648 = vshll.u32 %v2525, 16
        %v2650 = vrot.slane %v2648, 1
        %v2651 = vsel %vm1506, %v2646, %v2650
        %v2653 = vshrl.u32 %v2446, 16
        %v2655 = vshll.u32 %v2446, 16
        %v2657 = vrot.slane %v2655, 1
        %v2658 = vor.u32 %v2653, %v2657
        %v2660 = vshll.u32 %v2526, 16
        %v2662 = vrot.slane %v2660, 1
        %v2663 = vsel %vm1506, %v2658, %v2662
        %v2665 = vshrl.u32 %v2447, 16
        %v2667 = vshll.u32 %v2447, 16
        %v2669 = vrot.slane %v2667, 1
        %v2670 = vor.u32 %v2665, %v2669
        %v2672 = vshll.u32 %v2527, 16
        %v2674 = vrot.slane %v2672, 1
        %v2675 = vsel %vm1506, %v2670, %v2674
        %v2677 = vshrl.u32 %v2448, 16
        %v2679 = vshll.u32 %v2448, 16
        %v2681 = vrot.slane %v2679, 1
        %v2682 = vor.u32 %v2677, %v2681
        %v2684 = vshll.u32 %v2528, 16
        %v2686 = vrot.slane %v2684, 1
        %v2687 = vsel %vm1506, %v2682, %v2686
        %v2689 = vshrl.u32 %v2449, 16
        %v2691 = vshll.u32 %v2449, 16
        %v2693 = vrot.slane %v2691, 1
        %v2694 = vor.u32 %v2689, %v2693
        %v2696 = vshll.u32 %v2529, 16
        %v2698 = vrot.slane %v2696, 1
        %v2699 = vsel %vm1506, %v2694, %v2698
        %v2701 = vshrl.u32 %v2450, 16
        %v2703 = vshll.u32 %v2450, 16
        %v2705 = vrot.slane %v2703, 1
        %v2706 = vor.u32 %v2701, %v2705
        %v2708 = vshll.u32 %v2530, 16
        %v2710 = vrot.slane %v2708, 1
        %v2711 = vsel %vm1506, %v2706, %v2710
        %v2713 = vshrl.u32 %v2451, 16
        %v2715 = vshll.u32 %v2451, 16
        %v2717 = vrot.slane %v2715, 1
        %v2718 = vor.u32 %v2713, %v2717
        %v2720 = vshll.u32 %v2531, 16
        %v2722 = vrot.slane %v2720, 1
        %v2723 = vsel %vm1506, %v2718, %v2722
        %2724 = vrot.lane.b32.xlu0 %v2543, 21
        %v2725 = vpop.permute.xlu0 %2724
        %2726 = vrot.lane.b32.xlu0 %v2555, 21
        %v2727 = vpop.permute.xlu0 %2726
        %2728 = vrot.lane.b32.xlu0 %v2567, 21
        %v2729 = vpop.permute.xlu0 %2728
        %2730 = vrot.lane.b32.xlu0 %v2579, 21
        %v2731 = vpop.permute.xlu0 %2730
        %2732 = vrot.lane.b32.xlu0 %v2591, 21
        %v2733 = vpop.permute.xlu0 %2732
        %2734 = vrot.lane.b32.xlu0 %v2603, 21
        %v2735 = vpop.permute.xlu0 %2734
        %2736 = vrot.lane.b32.xlu0 %v2615, 21
        %v2737 = vpop.permute.xlu0 %2736
        %2738 = vrot.lane.b32.xlu0 %v2627, 21
        %v2739 = vpop.permute.xlu0 %2738
        %2740 = vrot.lane.b32.xlu0 %v2639, 21
        %v2741 = vpop.permute.xlu0 %2740
        %2742 = vrot.lane.b32.xlu0 %v2651, 21
        %v2743 = vpop.permute.xlu0 %2742
        %2744 = vrot.lane.b32.xlu0 %v2663, 21
        %v2745 = vpop.permute.xlu0 %2744
        %2746 = vrot.lane.b32.xlu0 %v2675, 21
        %v2747 = vpop.permute.xlu0 %2746
        %2748 = vrot.lane.b32.xlu0 %v2687, 21
        %v2749 = vpop.permute.xlu0 %2748
        %2750 = vrot.lane.b32.xlu0 %v2699, 21
        %v2751 = vpop.permute.xlu0 %2750
        %2752 = vrot.lane.b32.xlu0 %v2711, 21
        %v2753 = vpop.permute.xlu0 %2752
        %2754 = vrot.lane.b32.xlu0 %v2723, 21
        %v2755 = vpop.permute.xlu0 %2754
        %v2772 = vunpack.c.l.b16 %v1362
        %v2773 = vunpack.c.l.b16 %v1363
        %v2774 = vunpack.c.l.b16 %v1364
        %v2775 = vunpack.c.l.b16 %v1365
        %v2776 = vunpack.c.l.b16 %v1366
        %v2777 = vunpack.c.l.b16 %v1367
        %v2778 = vunpack.c.l.b16 %v1368
        %v2779 = vunpack.c.l.b16 %v1369
        %v2780 = vunpack.c.l.b16 %v1370
        %v2781 = vunpack.c.l.b16 %v1371
        %v2782 = vunpack.c.l.b16 %v1372
        %v2783 = vunpack.c.l.b16 %v1373
        %v2784 = vunpack.c.l.b16 %v1374
        %v2785 = vunpack.c.l.b16 %v1375
        %v2786 = vunpack.c.l.b16 %v1376
        %v2787 = vunpack.c.l.b16 %v1377
        %v2788 = vpack.c.b16 %v2405, %v2772
        %v2789 = vpack.c.b16 %v2407, %v2773
        %v2790 = vpack.c.b16 %v2409, %v2774
        %v2791 = vpack.c.b16 %v2411, %v2775
        %v2792 = vpack.c.b16 %v2413, %v2776
        %v2793 = vpack.c.b16 %v2415, %v2777
        %v2794 = vpack.c.b16 %v2417, %v2778
        %v2795 = vpack.c.b16 %v2419, %v2779
        %v2796 = vpack.c.b16 %v2421, %v2780
        %v2797 = vpack.c.b16 %v2423, %v2781
        %v2798 = vpack.c.b16 %v2425, %v2782
        %v2799 = vpack.c.b16 %v2427, %v2783
        %v2800 = vpack.c.b16 %v2429, %v2784
        %v2801 = vpack.c.b16 %v2431, %v2785
        %v2802 = vpack.c.b16 %v2433, %v2786
        %v2803 = vpack.c.b16 %v2435, %v2787
        %v2804 = vrot.slane %v2788, 1
        %v2805 = vrot.slane %v2516, 1
        %v2806 = vsel %vm1779, %v2804, %v2805
        %v2807 = vrot.slane %v2789, 1
        %v2808 = vrot.slane %v2517, 1
        %v2809 = vsel %vm1779, %v2807, %v2808
        %v2810 = vrot.slane %v2790, 1
        %v2811 = vrot.slane %v2518, 1
        %v2812 = vsel %vm1779, %v2810, %v2811
        %v2813 = vrot.slane %v2791, 1
        %v2814 = vrot.slane %v2519, 1
        %v2815 = vsel %vm1779, %v2813, %v2814
        %v2816 = vrot.slane %v2792, 1
        %v2817 = vrot.slane %v2520, 1
        %v2818 = vsel %vm1779, %v2816, %v2817
        %v2819 = vrot.slane %v2793, 1
        %v2820 = vrot.slane %v2521, 1
        %v2821 = vsel %vm1779, %v2819, %v2820
        %v2822 = vrot.slane %v2794, 1
        %v2823 = vrot.slane %v2522, 1
        %v2824 = vsel %vm1779, %v2822, %v2823
        %v2825 = vrot.slane %v2795, 1
        %v2826 = vrot.slane %v2523, 1
        %v2827 = vsel %vm1779, %v2825, %v2826
        %v2828 = vrot.slane %v2796, 1
        %v2829 = vrot.slane %v2524, 1
        %v2830 = vsel %vm1779, %v2828, %v2829
        %v2831 = vrot.slane %v2797, 1
        %v2832 = vrot.slane %v2525, 1
        %v2833 = vsel %vm1779, %v2831, %v2832
        %v2834 = vrot.slane %v2798, 1
        %v2835 = vrot.slane %v2526, 1
        %v2836 = vsel %vm1779, %v2834, %v2835
        %v2837 = vrot.slane %v2799, 1
        %v2838 = vrot.slane %v2527, 1
        %v2839 = vsel %vm1779, %v2837, %v2838
        %v2840 = vrot.slane %v2800, 1
        %v2841 = vrot.slane %v2528, 1
        %v2842 = vsel %vm1779, %v2840, %v2841
        %v2843 = vrot.slane %v2801, 1
        %v2844 = vrot.slane %v2529, 1
        %v2845 = vsel %vm1779, %v2843, %v2844
        %v2846 = vrot.slane %v2802, 1
        %v2847 = vrot.slane %v2530, 1
        %v2848 = vsel %vm1779, %v2846, %v2847
        %v2849 = vrot.slane %v2803, 1
        %v2850 = vrot.slane %v2531, 1
        %v2851 = vsel %vm1779, %v2849, %v2850
        %2852 = vrot.lane.b32.xlu0 %v2806, 24
        %v2853 = vpop.permute.xlu0 %2852
        %2854 = vrot.lane.b32.xlu0 %v2809, 24
        %v2855 = vpop.permute.xlu0 %2854
        %2856 = vrot.lane.b32.xlu0 %v2812, 24
        %v2857 = vpop.permute.xlu0 %2856
        %2858 = vrot.lane.b32.xlu0 %v2815, 24
        %v2859 = vpop.permute.xlu0 %2858
        %2860 = vrot.lane.b32.xlu0 %v2818, 24
        %v2861 = vpop.permute.xlu0 %2860
        %2862 = vrot.lane.b32.xlu0 %v2821, 24
        %v2863 = vpop.permute.xlu0 %2862
        %2864 = vrot.lane.b32.xlu0 %v2824, 24
        %v2865 = vpop.permute.xlu0 %2864
        %2866 = vrot.lane.b32.xlu0 %v2827, 24
        %v2867 = vpop.permute.xlu0 %2866
        %2868 = vrot.lane.b32.xlu0 %v2830, 24
        %v2869 = vpop.permute.xlu0 %2868
        %2870 = vrot.lane.b32.xlu0 %v2833, 24
        %v2871 = vpop.permute.xlu0 %2870
        %2872 = vrot.lane.b32.xlu0 %v2836, 24
        %v2873 = vpop.permute.xlu0 %2872
        %2874 = vrot.lane.b32.xlu0 %v2839, 24
        %v2875 = vpop.permute.xlu0 %2874
        %2876 = vrot.lane.b32.xlu0 %v2842, 24
        %v2877 = vpop.permute.xlu0 %2876
        %2878 = vrot.lane.b32.xlu0 %v2845, 24
        %v2879 = vpop.permute.xlu0 %2878
        %2880 = vrot.lane.b32.xlu0 %v2848, 24
        %v2881 = vpop.permute.xlu0 %2880
        %2882 = vrot.lane.b32.xlu0 %v2851, 24
        %v2883 = vpop.permute.xlu0 %2882
        %vm2884 = vcmask 23552
        %v2886 = vsel %vm2884, %v1442, %v1700
        %v2888 = vsel %vm2884, %v1443, %v1702
        %v2890 = vsel %vm2884, %v1444, %v1704
        %v2892 = vsel %vm2884, %v1445, %v1706
        %v2894 = vsel %vm2884, %v1446, %v1708
        %v2896 = vsel %vm2884, %v1447, %v1710
        %v2898 = vsel %vm2884, %v1448, %v1712
        %v2900 = vsel %vm2884, %v1449, %v1714
        %v2902 = vsel %vm2884, %v1450, %v1716
        %v2904 = vsel %vm2884, %v1451, %v1718
        %v2906 = vsel %vm2884, %v1452, %v1720
        %v2908 = vsel %vm2884, %v1453, %v1722
        %v2910 = vsel %vm2884, %v1454, %v1724
        %v2912 = vsel %vm2884, %v1455, %v1726
        %v2914 = vsel %vm2884, %v1456, %v1728
        %v2916 = vsel %vm2884, %v1457, %v1730
        %vm2917 = vcmask 48128
        %v2919 = vsel %vm2917, %v2886, %v1829
        %v2921 = vsel %vm2917, %v2888, %v1831
        %v2923 = vsel %vm2917, %v2890, %v1833
        %v2925 = vsel %vm2917, %v2892, %v1835
        %v2927 = vsel %vm2917, %v2894, %v1837
        %v2929 = vsel %vm2917, %v2896, %v1839
        %v2931 = vsel %vm2917, %v2898, %v1841
        %v2933 = vsel %vm2917, %v2900, %v1843
        %v2935 = vsel %vm2917, %v2902, %v1845
        %v2937 = vsel %vm2917, %v2904, %v1847
        %v2939 = vsel %vm2917, %v2906, %v1849
        %v2941 = vsel %vm2917, %v2908, %v1851
        %v2943 = vsel %vm2917, %v2910, %v1853
        %v2945 = vsel %vm2917, %v2912, %v1855
        %v2947 = vsel %vm2917, %v2914, %v1857
        %v2949 = vsel %vm2917, %v2916, %v1859
        %vm2950 = vcmask 72704
        %v2952 = vsel %vm2950, %v2919, %v1941
        %v2954 = vsel %vm2950, %v2921, %v1943
        %v2956 = vsel %vm2950, %v2923, %v1945
        %v2958 = vsel %vm2950, %v2925, %v1947
        %v2960 = vsel %vm2950, %v2927, %v1949
        %v2962 = vsel %vm2950, %v2929, %v1951
        %v2964 = vsel %vm2950, %v2931, %v1953
        %v2966 = vsel %vm2950, %v2933, %v1955
        %v2968 = vsel %vm2950, %v2935, %v1957
        %v2970 = vsel %vm2950, %v2937, %v1959
        %v2972 = vsel %vm2950, %v2939, %v1961
        %v2974 = vsel %vm2950, %v2941, %v1963
        %v2976 = vsel %vm2950, %v2943, %v1965
        %v2978 = vsel %vm2950, %v2945, %v1967
        %v2980 = vsel %vm2950, %v2947, %v1969
        %v2982 = vsel %vm2950, %v2949, %v1971
        %vm2983 = vcmask 97280
        %v2985 = vsel %vm2983, %v2952, %v2213
        %v2987 = vsel %vm2983, %v2954, %v2215
        %v2989 = vsel %vm2983, %v2956, %v2217
        %v2991 = vsel %vm2983, %v2958, %v2219
        %v2993 = vsel %vm2983, %v2960, %v2221
        %v2995 = vsel %vm2983, %v2962, %v2223
        %v2997 = vsel %vm2983, %v2964, %v2225
        %v2999 = vsel %vm2983, %v2966, %v2227
        %v3001 = vsel %vm2983, %v2968, %v2229
        %v3003 = vsel %vm2983, %v2970, %v2231
        %v3005 = vsel %vm2983, %v2972, %v2233
        %v3007 = vsel %vm2983, %v2974, %v2235
        %v3009 = vsel %vm2983, %v2976, %v2237
        %v3011 = vsel %vm2983, %v2978, %v2239
        %v3013 = vsel %vm2983, %v2980, %v2241
        %v3015 = vsel %vm2983, %v2982, %v2243
        %vm3016 = vcmask 121856
        %v3018 = vsel %vm3016, %v2985, %v2341
        %v3020 = vsel %vm3016, %v2987, %v2343
        %v3022 = vsel %vm3016, %v2989, %v2345
        %v3024 = vsel %vm3016, %v2991, %v2347
        %v3026 = vsel %vm3016, %v2993, %v2349
        %v3028 = vsel %vm3016, %v2995, %v2351
        %v3030 = vsel %vm3016, %v2997, %v2353
        %v3032 = vsel %vm3016, %v2999, %v2355
        %v3034 = vsel %vm3016, %v3001, %v2357
        %v3036 = vsel %vm3016, %v3003, %v2359
        %v3038 = vsel %vm3016, %v3005, %v2361
        %v3040 = vsel %vm3016, %v3007, %v2363
        %v3042 = vsel %vm3016, %v3009, %v2365
        %v3044 = vsel %vm3016, %v3011, %v2367
        %v3046 = vsel %vm3016, %v3013, %v2369
        %v3048 = vsel %vm3016, %v3015, %v2371
        %vm3049 = vcmask 146432
        %v3051 = vsel %vm3049, %v3018, %v2453
        %v3053 = vsel %vm3049, %v3020, %v2455
        %v3055 = vsel %vm3049, %v3022, %v2457
        %v3057 = vsel %vm3049, %v3024, %v2459
        %v3059 = vsel %vm3049, %v3026, %v2461
        %v3061 = vsel %vm3049, %v3028, %v2463
        %v3063 = vsel %vm3049, %v3030, %v2465
        %v3065 = vsel %vm3049, %v3032, %v2467
        %v3067 = vsel %vm3049, %v3034, %v2469
        %v3069 = vsel %vm3049, %v3036, %v2471
        %v3071 = vsel %vm3049, %v3038, %v2473
        %v3073 = vsel %vm3049, %v3040, %v2475
        %v3075 = vsel %vm3049, %v3042, %v2477
        %v3077 = vsel %vm3049, %v3044, %v2479
        %v3079 = vsel %vm3049, %v3046, %v2481
        %v3081 = vsel %vm3049, %v3048, %v2483
        %vm3082 = vcmask 171008
        %v3084 = vsel %vm3082, %v3051, %v2725
        %v3086 = vsel %vm3082, %v3053, %v2727
        %v3088 = vsel %vm3082, %v3055, %v2729
        %v3090 = vsel %vm3082, %v3057, %v2731
        %v3092 = vsel %vm3082, %v3059, %v2733
        %v3094 = vsel %vm3082, %v3061, %v2735
        %v3096 = vsel %vm3082, %v3063, %v2737
        %v3098 = vsel %vm3082, %v3065, %v2739
        %v3100 = vsel %vm3082, %v3067, %v2741
        %v3102 = vsel %vm3082, %v3069, %v2743
        %v3104 = vsel %vm3082, %v3071, %v2745
        %v3106 = vsel %vm3082, %v3073, %v2747
        %v3108 = vsel %vm3082, %v3075, %v2749
        %v3110 = vsel %vm3082, %v3077, %v2751
        %v3112 = vsel %vm3082, %v3079, %v2753
        %v3114 = vsel %vm3082, %v3081, %v2755
        %vm3115 = vcmask 195584
        %v3117 = vsel %vm3115, %v3084, %v2853
        %v3119 = vsel %vm3115, %v3086, %v2855
        %v3121 = vsel %vm3115, %v3088, %v2857
        %v3123 = vsel %vm3115, %v3090, %v2859
        %v3125 = vsel %vm3115, %v3092, %v2861
        %v3127 = vsel %vm3115, %v3094, %v2863
        %v3129 = vsel %vm3115, %v3096, %v2865
        %v3131 = vsel %vm3115, %v3098, %v2867
        %v3133 = vsel %vm3115, %v3100, %v2869
        %v3135 = vsel %vm3115, %v3102, %v2871
        %v3137 = vsel %vm3115, %v3104, %v2873
        %v3139 = vsel %vm3115, %v3106, %v2875
        %v3141 = vsel %vm3115, %v3108, %v2877
        %v3143 = vsel %vm3115, %v3110, %v2879
        %v3145 = vsel %vm3115, %v3112, %v2881
        %v3147 = vsel %vm3115, %v3114, %v2883
        %v3148 = vld [vmem:[%s1] sm:$0xf]
        %v3149 = vld [vmem:[%s1 + $0x4] sm:$0xf]
        %v3150 = vld [vmem:[%s1 + $0x8] sm:$0xf]
        %v3151 = vld [vmem:[%s1 + $0xc] sm:$0x3]
        %v3152 = vld [vmem:[%s7] sm:$0x1]
        %v3153 = vlaneseq
        %v3154 = vshrl.u32 %v3153, 7
        %v3155 = vsub.s32 0, %v3154
        %v3156 = vrot.slane %v3152, %v3155
        %v3161 = vunpack.c.l.b16 %v3148
        %v3162 = vunpack.c.l.b16 %v3149
        %v3163 = vunpack.c.l.b16 %v3150
        %v3164 = vunpack.c.l.b16 %v3151
        %v3165 = vpack.c.b16 %v3162, %v3161
        %v3166 = vpack.c.b16 %v3164, %v3163
        %vm3168 = vcmask 220160
        %v3169 = vsel %vm3168, %v3117, 0
        %v3171 = vsel %vm3168, %v3119, 0
        %v3173 = vsel %vm3168, %v3121, 0
        %v3175 = vsel %vm3168, %v3123, 0
        %v3177 = vsel %vm3168, %v3125, 0
        %v3179 = vsel %vm3168, %v3127, 0
        %v3181 = vsel %vm3168, %v3129, 0
        %v3183 = vsel %vm3168, %v3131, 0
        %v3185 = vsel %vm3168, %v3133, 0
        %v3187 = vsel %vm3168, %v3135, 0
        %v3189 = vsel %vm3168, %v3137, 0
        %v3191 = vsel %vm3168, %v3139, 0
        %v3193 = vsel %vm3168, %v3141, 0
        %v3195 = vsel %vm3168, %v3143, 0
        %v3197 = vsel %vm3168, %v3145, 0
        %v3199 = vsel %vm3168, %v3147, 0
        %vm3201 = vcmask 1044480
        %vm3202 = vcmask 1045504
        %v3203 = vsel %vm3201, 4294967295, 65535
        %v3204 = vsel %vm3202, %v3203, 0
        %v3206 = vand.u32 %v3166, %v3204
        %3208 = vmatprep.subr.bf16.mxu0 0
        %3209 = vmatpush1.bf16.msra.mxu0 0
        %3210 = vmatprep.subr.bf16.mxu0 0
        %3211 = vmatpush1.bf16.msra.mxu0 0
        %3212 = vmatprep.subr.bf16.mxu0 0
        %3213 = vmatpush1.bf16.msra.mxu0 0
        %3214 = vmatprep.subr.bf16.mxu0 0
        %3215 = vmatpush1.bf16.msra.mxu0 0
        %3216 = vmatprep.subr.bf16.mxu0 0
        %3217 = vmatpush1.bf16.msra.mxu0 0
        %3218 = vmatprep.subr.bf16.mxu0 0
        %3219 = vmatpush1.bf16.msra.mxu0 0
        %3220 = vmatprep.subr.bf16.mxu0 0
        %3221 = vmatpush1.bf16.msra.mxu0 %v3206
        %3222 = vmatprep.subr.bf16.mxu0 0
        %3223 = vmatpush1.bf16.msra.mxu0 %v3165
        %3224 = vmatprep.subr.bf16.mxu0 0
        %3225 = vmatpush2.bf16.msra.mxu0 0
        %3226 = vmatprep.subr.bf16.mxu0 0
        %3227 = vmatpush2.bf16.msra.mxu0 0
        %3228 = vmatprep.subr.bf16.mxu0 0
        %3229 = vmatpush2.bf16.msra.mxu0 0
        %3230 = vmatprep.subr.bf16.mxu0 0
        %3231 = vmatpush2.bf16.msra.mxu0 0
        %3232 = vmatprep.subr.bf16.mxu0 0
        %3233 = vmatpush2.bf16.msra.mxu0 0
        %3234 = vmatprep.subr.bf16.mxu0 0
        %3235 = vmatpush2.bf16.msra.mxu0 0
        %3236 = vmatprep.subr.bf16.mxu0 0
        %3237 = vmatpush2.bf16.msra.mxu0 0
        %3238 = vmatprep.subr.bf16.mxu0 0
        %3239 = vmatpush2.bf16.msra.mxu0 0
        %3240 = vmatprep.mubr.bf16.mxu0 0
        %3241 = vmatmul.mubr.bf16.gmra.mxu0 %v3169
        %v3242 = vpop.f32.mrf.mxu0
        %v3243 = vadd.f32 %v3156, %v3242
        %v3244 = vpop.f32.mrf.mxu0
        %v3245 = vpop.f32.mrf.mxu0
        %v3246 = vadd.f32 %v3156, %v3245
        %v3247 = vpop.f32.mrf.mxu0
        %3248 = vmatprep.mubr.bf16.mxu0 0
        %3249 = vmatmul.mubr.bf16.gmra.mxu0 %v3171
        %v3250 = vpop.f32.mrf.mxu0
        %v3251 = vadd.f32 %v3156, %v3250
        %v3252 = vpop.f32.mrf.mxu0
        %v3253 = vpop.f32.mrf.mxu0
        %v3254 = vadd.f32 %v3156, %v3253
        %v3255 = vpop.f32.mrf.mxu0
        %3256 = vmatprep.mubr.bf16.mxu0 0
        %3257 = vmatmul.mubr.bf16.gmra.mxu0 %v3173
        %v3258 = vpop.f32.mrf.mxu0
        %v3259 = vadd.f32 %v3156, %v3258
        %v3260 = vpop.f32.mrf.mxu0
        %v3261 = vpop.f32.mrf.mxu0
        %v3262 = vadd.f32 %v3156, %v3261
        %v3263 = vpop.f32.mrf.mxu0
        %3264 = vmatprep.mubr.bf16.mxu0 0
        %3265 = vmatmul.mubr.bf16.gmra.mxu0 %v3175
        %v3266 = vpop.f32.mrf.mxu0
        %v3267 = vadd.f32 %v3156, %v3266
        %v3268 = vpop.f32.mrf.mxu0
        %v3269 = vpop.f32.mrf.mxu0
        %v3270 = vadd.f32 %v3156, %v3269
        %v3271 = vpop.f32.mrf.mxu0
        %3272 = vmatprep.mubr.bf16.mxu0 0
        %3273 = vmatmul.mubr.bf16.gmra.mxu0 %v3177
        %v3274 = vpop.f32.mrf.mxu0
        %v3275 = vadd.f32 %v3156, %v3274
        %v3276 = vpop.f32.mrf.mxu0
        %v3277 = vpop.f32.mrf.mxu0
        %v3278 = vadd.f32 %v3156, %v3277
        %v3279 = vpop.f32.mrf.mxu0
        %3280 = vmatprep.mubr.bf16.mxu0 0
        %3281 = vmatmul.mubr.bf16.gmra.mxu0 %v3179
        %v3282 = vpop.f32.mrf.mxu0
        %v3283 = vadd.f32 %v3156, %v3282
        %v3284 = vpop.f32.mrf.mxu0
        %v3285 = vpop.f32.mrf.mxu0
        %v3286 = vadd.f32 %v3156, %v3285
        %v3287 = vpop.f32.mrf.mxu0
        %3288 = vmatprep.mubr.bf16.mxu0 0
        %3289 = vmatmul.mubr.bf16.gmra.mxu0 %v3181
        %v3290 = vpop.f32.mrf.mxu0
        %v3291 = vadd.f32 %v3156, %v3290
        %v3292 = vpop.f32.mrf.mxu0
        %v3293 = vpop.f32.mrf.mxu0
        %v3294 = vadd.f32 %v3156, %v3293
        %v3295 = vpop.f32.mrf.mxu0
        %3296 = vmatprep.mubr.bf16.mxu0 0
        %3297 = vmatmul.mubr.bf16.gmra.mxu0 %v3183
        %v3298 = vpop.f32.mrf.mxu0
        %v3299 = vadd.f32 %v3156, %v3298
        %v3300 = vpop.f32.mrf.mxu0
        %v3301 = vpop.f32.mrf.mxu0
        %v3302 = vadd.f32 %v3156, %v3301
        %v3303 = vpop.f32.mrf.mxu0
        %3304 = vmatprep.mubr.bf16.mxu0 0
        %3305 = vmatmul.mubr.bf16.gmra.mxu0 %v3185
        %v3306 = vpop.f32.mrf.mxu0
        %v3307 = vadd.f32 %v3156, %v3306
        %v3308 = vpop.f32.mrf.mxu0
        %v3309 = vpop.f32.mrf.mxu0
        %v3310 = vadd.f32 %v3156, %v3309
        %v3311 = vpop.f32.mrf.mxu0
        %3312 = vmatprep.mubr.bf16.mxu0 0
        %3313 = vmatmul.mubr.bf16.gmra.mxu0 %v3187
        %v3314 = vpop.f32.mrf.mxu0
        %v3315 = vadd.f32 %v3156, %v3314
        %v3316 = vpop.f32.mrf.mxu0
        %v3317 = vpop.f32.mrf.mxu0
        %v3318 = vadd.f32 %v3156, %v3317
        %v3319 = vpop.f32.mrf.mxu0
        %3320 = vmatprep.mubr.bf16.mxu0 0
        %3321 = vmatmul.mubr.bf16.gmra.mxu0 %v3189
        %v3322 = vpop.f32.mrf.mxu0
        %v3323 = vadd.f32 %v3156, %v3322
        %v3324 = vpop.f32.mrf.mxu0
        %v3325 = vpop.f32.mrf.mxu0
        %v3326 = vadd.f32 %v3156, %v3325
        %v3327 = vpop.f32.mrf.mxu0
        %3328 = vmatprep.mubr.bf16.mxu0 0
        %3329 = vmatmul.mubr.bf16.gmra.mxu0 %v3191
        %v3330 = vpop.f32.mrf.mxu0
        %v3331 = vadd.f32 %v3156, %v3330
        %v3332 = vpop.f32.mrf.mxu0
        %v3333 = vpop.f32.mrf.mxu0
        %v3334 = vadd.f32 %v3156, %v3333
        %v3335 = vpop.f32.mrf.mxu0
        %3336 = vmatprep.mubr.bf16.mxu0 0
        %3337 = vmatmul.mubr.bf16.gmra.mxu0 %v3193
        %v3338 = vpop.f32.mrf.mxu0
        %v3339 = vadd.f32 %v3156, %v3338
        %v3340 = vpop.f32.mrf.mxu0
        %v3341 = vpop.f32.mrf.mxu0
        %v3342 = vadd.f32 %v3156, %v3341
        %v3343 = vpop.f32.mrf.mxu0
        %3344 = vmatprep.mubr.bf16.mxu0 0
        %3345 = vmatmul.mubr.bf16.gmra.mxu0 %v3195
        %v3346 = vpop.f32.mrf.mxu0
        %v3347 = vadd.f32 %v3156, %v3346
        %v3348 = vpop.f32.mrf.mxu0
        %v3349 = vpop.f32.mrf.mxu0
        %v3350 = vadd.f32 %v3156, %v3349
        %v3351 = vpop.f32.mrf.mxu0
        %3352 = vmatprep.mubr.bf16.mxu0 0
        %3353 = vmatmul.mubr.bf16.gmra.mxu0 %v3197
        %v3354 = vpop.f32.mrf.mxu0
        %v3355 = vadd.f32 %v3156, %v3354
        %v3356 = vpop.f32.mrf.mxu0
        %v3357 = vpop.f32.mrf.mxu0
        %v3358 = vadd.f32 %v3156, %v3357
        %v3359 = vpop.f32.mrf.mxu0
        %3360 = vmatprep.mubr.bf16.mxu0 0
        %3361 = vmatmul.mubr.bf16.gmra.mxu0 %v3199
        %v3362 = vpop.f32.mrf.mxu0
        %v3363 = vadd.f32 %v3156, %v3362
        %v3364 = vpop.f32.mrf.mxu0
        %v3365 = vpop.f32.mrf.mxu0
        %v3366 = vadd.f32 %v3156, %v3365
        %v3367 = vpop.f32.mrf.mxu0
        %3368 = vdwg.mxu0
        %v3369 = vmax.f32 %v3243, 0.0
        %v3370 = vmax.f32 %v3246, 0.0
        %v3371 = vmax.f32 %v3251, 0.0
        %v3372 = vmax.f32 %v3254, 0.0
        %v3373 = vmax.f32 %v3259, 0.0
        %v3374 = vmax.f32 %v3262, 0.0
        %v3375 = vmax.f32 %v3267, 0.0
        %v3376 = vmax.f32 %v3270, 0.0
        %v3377 = vmax.f32 %v3275, 0.0
        %v3378 = vmax.f32 %v3278, 0.0
        %v3379 = vmax.f32 %v3283, 0.0
        %v3380 = vmax.f32 %v3286, 0.0
        %v3381 = vmax.f32 %v3291, 0.0
        %v3382 = vmax.f32 %v3294, 0.0
        %v3383 = vmax.f32 %v3299, 0.0
        %v3384 = vmax.f32 %v3302, 0.0
        %v3385 = vmax.f32 %v3307, 0.0
        %v3386 = vmax.f32 %v3310, 0.0
        %v3387 = vmax.f32 %v3315, 0.0
        %v3388 = vmax.f32 %v3318, 0.0
        %v3389 = vmax.f32 %v3323, 0.0
        %v3390 = vmax.f32 %v3326, 0.0
        %v3391 = vmax.f32 %v3331, 0.0
        %v3392 = vmax.f32 %v3334, 0.0
        %v3393 = vmax.f32 %v3339, 0.0
        %v3394 = vmax.f32 %v3342, 0.0
        %v3395 = vmax.f32 %v3347, 0.0
        %v3396 = vmax.f32 %v3350, 0.0
        %v3397 = vmax.f32 %v3355, 0.0
        %v3398 = vmax.f32 %v3358, 0.0
        %v3399 = vmax.f32 %v3363, 0.0
        %v3400 = vmax.f32 %v3366, 0.0
        %vm3401 = vcmask 261120
        %v3402 = vsel %vm3401, %v3369, 0.0
        %v3403 = vsel %vm3401, %v3370, 0.0
        %v3404 = vadd.f32 %v3402, %v3403
        %v3405 = vsel %vm3401, %v3371, 0.0
        %v3406 = vadd.f32 %v3404, %v3405
        %v3407 = vsel %vm3401, %v3372, 0.0
        %v3408 = vadd.f32 %v3406, %v3407
        %v3409 = vsel %vm3401, %v3373, 0.0
        %v3410 = vadd.f32 %v3408, %v3409
        %v3411 = vsel %vm3401, %v3374, 0.0
        %v3412 = vadd.f32 %v3410, %v3411
        %v3413 = vsel %vm3401, %v3375, 0.0
        %v3414 = vadd.f32 %v3412, %v3413
        %v3415 = vsel %vm3401, %v3376, 0.0
        %v3416 = vadd.f32 %v3414, %v3415
        %v3417 = vsel %vm3401, %v3377, 0.0
        %v3418 = vadd.f32 %v3416, %v3417
        %v3419 = vsel %vm3401, %v3378, 0.0
        %v3420 = vadd.f32 %v3418, %v3419
        %v3421 = vsel %vm3401, %v3379, 0.0
        %v3422 = vadd.f32 %v3420, %v3421
        %v3423 = vsel %vm3401, %v3380, 0.0
        %v3424 = vadd.f32 %v3422, %v3423
        %v3425 = vsel %vm3401, %v3381, 0.0
        %v3426 = vadd.f32 %v3424, %v3425
        %v3427 = vsel %vm3401, %v3382, 0.0
        %v3428 = vadd.f32 %v3426, %v3427
        %v3429 = vsel %vm3401, %v3383, 0.0
        %v3430 = vadd.f32 %v3428, %v3429
        %v3431 = vsel %vm3401, %v3384, 0.0
        %v3432 = vadd.f32 %v3430, %v3431
        %v3433 = vsel %vm3401, %v3385, 0.0
        %v3434 = vadd.f32 %v3432, %v3433
        %v3435 = vsel %vm3401, %v3386, 0.0
        %v3436 = vadd.f32 %v3434, %v3435
        %v3437 = vsel %vm3401, %v3387, 0.0
        %v3438 = vadd.f32 %v3436, %v3437
        %v3439 = vsel %vm3401, %v3388, 0.0
        %v3440 = vadd.f32 %v3438, %v3439
        %v3441 = vsel %vm3401, %v3389, 0.0
        %v3442 = vadd.f32 %v3440, %v3441
        %v3443 = vsel %vm3401, %v3390, 0.0
        %v3444 = vadd.f32 %v3442, %v3443
        %v3445 = vsel %vm3401, %v3391, 0.0
        %v3446 = vadd.f32 %v3444, %v3445
        %v3447 = vsel %vm3401, %v3392, 0.0
        %v3448 = vadd.f32 %v3446, %v3447
        %v3449 = vsel %vm3401, %v3393, 0.0
        %v3450 = vadd.f32 %v3448, %v3449
        %v3451 = vsel %vm3401, %v3394, 0.0
        %v3452 = vadd.f32 %v3450, %v3451
        %v3453 = vsel %vm3401, %v3395, 0.0
        %v3454 = vadd.f32 %v3452, %v3453
        %v3455 = vsel %vm3401, %v3396, 0.0
        %v3456 = vadd.f32 %v3454, %v3455
        %v3457 = vsel %vm3401, %v3397, 0.0
        %v3458 = vadd.f32 %v3456, %v3457
        %v3459 = vsel %vm3401, %v3398, 0.0
        %v3460 = vadd.f32 %v3458, %v3459
        %v3461 = vsel %vm3401, %v3399, 0.0
        %v3462 = vadd.f32 %v3460, %v3461
        %v3463 = vsel %vm3401, %v3400, 0.0
        %v3464 = vadd.f32 %v3462, %v3463
        %v3465 = vrot.slane %v3464, 4
        %v3466 = vadd.f32 %v3464, %v3465
        %v3467 = vrot.slane %v3466, 2
        %v3468 = vadd.f32 %v3466, %v3467
        %v3469 = vrot.slane %v3468, 1
        %v3470 = vadd.f32 %v3468, %v3469
        %v3471 = vrcp.pop 256.0
        %v3472 = vmul.f32 %v3470, %v3471
        %v3473 = vpack.c.bf16 %v3472, %v3472
        %v3474 = vpack.c.bf16 %v3370, %v3369
        %v3475 = vpack.c.bf16 %v3372, %v3371
        %v3476 = vpack.c.bf16 %v3374, %v3373
        %v3477 = vpack.c.bf16 %v3376, %v3375
        %v3478 = vpack.c.bf16 %v3378, %v3377
        %v3479 = vpack.c.bf16 %v3380, %v3379
        %v3480 = vpack.c.bf16 %v3382, %v3381
        %v3481 = vpack.c.bf16 %v3384, %v3383
        %v3482 = vpack.c.bf16 %v3386, %v3385
        %v3483 = vpack.c.bf16 %v3388, %v3387
        %v3484 = vpack.c.bf16 %v3390, %v3389
        %v3485 = vpack.c.bf16 %v3392, %v3391
        %v3486 = vpack.c.bf16 %v3394, %v3393
        %v3487 = vpack.c.bf16 %v3396, %v3395
        %v3488 = vpack.c.bf16 %v3398, %v3397
        %v3489 = vpack.c.bf16 %v3400, %v3399
        %v3506 = vunpack.c.l.b16 %v3474
        %v3507 = vunpack.c.h.b16 %v3474
        %v3508 = vunpack.c.l.b16 %v3475
        %v3509 = vunpack.c.h.b16 %v3475
        %v3510 = vunpack.c.l.b16 %v3476
        %v3511 = vunpack.c.h.b16 %v3476
        %v3512 = vunpack.c.l.b16 %v3477
        %v3513 = vunpack.c.h.b16 %v3477
        %v3514 = vunpack.c.l.b16 %v3478
        %v3515 = vunpack.c.h.b16 %v3478
        %v3516 = vunpack.c.l.b16 %v3479
        %v3517 = vunpack.c.h.b16 %v3479
        %v3518 = vunpack.c.l.b16 %v3480
        %v3519 = vunpack.c.h.b16 %v3480
        %v3520 = vunpack.c.l.b16 %v3481
        %v3521 = vunpack.c.h.b16 %v3481
        %v3522 = vunpack.c.l.b16 %v3482
        %v3523 = vunpack.c.h.b16 %v3482
        %v3524 = vunpack.c.l.b16 %v3483
        %v3525 = vunpack.c.h.b16 %v3483
        %v3526 = vunpack.c.l.b16 %v3484
        %v3527 = vunpack.c.h.b16 %v3484
        %v3528 = vunpack.c.l.b16 %v3485
        %v3529 = vunpack.c.h.b16 %v3485
        %v3530 = vunpack.c.l.b16 %v3486
        %v3531 = vunpack.c.h.b16 %v3486
        %v3532 = vunpack.c.l.b16 %v3487
        %v3533 = vunpack.c.h.b16 %v3487
        %v3534 = vunpack.c.l.b16 %v3488
        %v3535 = vunpack.c.h.b16 %v3488
        %v3536 = vunpack.c.l.b16 %v3489
        %v3537 = vunpack.c.h.b16 %v3489
        %v3538 = vpack.c.b16 %v3506, %v3506
        %v3539 = vpack.c.b16 %v3507, %v3507
        %v3540 = vpack.c.b16 %v3508, %v3508
        %v3541 = vpack.c.b16 %v3509, %v3509
        %v3542 = vpack.c.b16 %v3510, %v3510
        %v3543 = vpack.c.b16 %v3511, %v3511
        %v3544 = vpack.c.b16 %v3512, %v3512
        %v3545 = vpack.c.b16 %v3513, %v3513
        %v3546 = vpack.c.b16 %v3514, %v3514
        %v3547 = vpack.c.b16 %v3515, %v3515
        %v3548 = vpack.c.b16 %v3516, %v3516
        %v3549 = vpack.c.b16 %v3517, %v3517
        %v3550 = vpack.c.b16 %v3518, %v3518
        %v3551 = vpack.c.b16 %v3519, %v3519
        %v3552 = vpack.c.b16 %v3520, %v3520
        %v3553 = vpack.c.b16 %v3521, %v3521
        %v3554 = vpack.c.b16 %v3522, %v3522
        %v3555 = vpack.c.b16 %v3523, %v3523
        %v3556 = vpack.c.b16 %v3524, %v3524
        %v3557 = vpack.c.b16 %v3525, %v3525
        %v3558 = vpack.c.b16 %v3526, %v3526
        %v3559 = vpack.c.b16 %v3527, %v3527
        %v3560 = vpack.c.b16 %v3528, %v3528
        %v3561 = vpack.c.b16 %v3529, %v3529
        %v3562 = vpack.c.b16 %v3530, %v3530
        %v3563 = vpack.c.b16 %v3531, %v3531
        %v3564 = vpack.c.b16 %v3532, %v3532
        %v3565 = vpack.c.b16 %v3533, %v3533
        %v3566 = vpack.c.b16 %v3534, %v3534
        %v3567 = vpack.c.b16 %v3535, %v3535
        %v3568 = vpack.c.b16 %v3536, %v3536
        %v3569 = vpack.c.b16 %v3537, %v3537
        %v3571 = vshrl.u32 %v3538, 16
        %v3573 = vrot.slane %v3571, 7
        %v3574 = vshll.u32 %v3538, 16
        %v3576 = vor.u32 %v3573, %v3574
        %v3577 = vrot.slane %v3573, 4
        %v3579 = vshrl.u32 %v3539, 16
        %v3581 = vrot.slane %v3579, 7
        %v3582 = vshll.u32 %v3539, 16
        %v3584 = vor.u32 %v3581, %v3582
        %v3585 = vsel %vm749, %v3577, %v3584
        %v3586 = vrot.slane %v3581, 4
        %v3588 = vshrl.u32 %v3540, 16
        %v3590 = vrot.slane %v3588, 7
        %v3591 = vshll.u32 %v3540, 16
        %v3593 = vor.u32 %v3590, %v3591
        %v3594 = vrot.slane %v3590, 4
        %v3596 = vshrl.u32 %v3541, 16
        %v3598 = vrot.slane %v3596, 7
        %v3599 = vshll.u32 %v3541, 16
        %v3601 = vor.u32 %v3598, %v3599
        %v3602 = vsel %vm749, %v3594, %v3601
        %v3603 = vrot.slane %v3598, 4
        %v3605 = vshrl.u32 %v3542, 16
        %v3607 = vrot.slane %v3605, 7
        %v3608 = vshll.u32 %v3542, 16
        %v3610 = vor.u32 %v3607, %v3608
        %v3611 = vrot.slane %v3607, 4
        %v3613 = vshrl.u32 %v3543, 16
        %v3615 = vrot.slane %v3613, 7
        %v3616 = vshll.u32 %v3543, 16
        %v3618 = vor.u32 %v3615, %v3616
        %v3619 = vsel %vm749, %v3611, %v3618
        %v3620 = vrot.slane %v3615, 4
        %v3622 = vshrl.u32 %v3544, 16
        %v3624 = vrot.slane %v3622, 7
        %v3625 = vshll.u32 %v3544, 16
        %v3627 = vor.u32 %v3624, %v3625
        %v3628 = vrot.slane %v3624, 4
        %v3630 = vshrl.u32 %v3545, 16
        %v3632 = vrot.slane %v3630, 7
        %v3633 = vshll.u32 %v3545, 16
        %v3635 = vor.u32 %v3632, %v3633
        %v3636 = vsel %vm749, %v3628, %v3635
        %v3637 = vrot.slane %v3632, 4
        %v3639 = vshrl.u32 %v3546, 16
        %v3641 = vrot.slane %v3639, 7
        %v3642 = vshll.u32 %v3546, 16
        %v3644 = vor.u32 %v3641, %v3642
        %v3645 = vrot.slane %v3641, 4
        %v3647 = vshrl.u32 %v3547, 16
        %v3649 = vrot.slane %v3647, 7
        %v3650 = vshll.u32 %v3547, 16
        %v3652 = vor.u32 %v3649, %v3650
        %v3653 = vsel %vm749, %v3645, %v3652
        %v3654 = vrot.slane %v3649, 4
        %v3656 = vshrl.u32 %v3548, 16
        %v3658 = vrot.slane %v3656, 7
        %v3659 = vshll.u32 %v3548, 16
        %v3661 = vor.u32 %v3658, %v3659
        %v3662 = vrot.slane %v3658, 4
        %v3664 = vshrl.u32 %v3549, 16
        %v3666 = vrot.slane %v3664, 7
        %v3667 = vshll.u32 %v3549, 16
        %v3669 = vor.u32 %v3666, %v3667
        %v3670 = vsel %vm749, %v3662, %v3669
        %v3671 = vrot.slane %v3666, 4
        %v3673 = vshrl.u32 %v3550, 16
        %v3675 = vrot.slane %v3673, 7
        %v3676 = vshll.u32 %v3550, 16
        %v3678 = vor.u32 %v3675, %v3676
        %v3679 = vrot.slane %v3675, 4
        %v3681 = vshrl.u32 %v3551, 16
        %v3683 = vrot.slane %v3681, 7
        %v3684 = vshll.u32 %v3551, 16
        %v3686 = vor.u32 %v3683, %v3684
        %v3687 = vsel %vm749, %v3679, %v3686
        %v3688 = vrot.slane %v3683, 4
        %v3690 = vshrl.u32 %v3552, 16
        %v3692 = vrot.slane %v3690, 7
        %v3693 = vshll.u32 %v3552, 16
        %v3695 = vor.u32 %v3692, %v3693
        %v3696 = vrot.slane %v3692, 4
        %v3698 = vshrl.u32 %v3553, 16
        %v3700 = vrot.slane %v3698, 7
        %v3701 = vshll.u32 %v3553, 16
        %v3703 = vor.u32 %v3700, %v3701
        %v3704 = vsel %vm749, %v3696, %v3703
        %v3705 = vrot.slane %v3700, 4
        %v3707 = vshrl.u32 %v3554, 16
        %v3709 = vrot.slane %v3707, 7
        %v3710 = vshll.u32 %v3554, 16
        %v3712 = vor.u32 %v3709, %v3710
        %v3713 = vrot.slane %v3709, 4
        %v3715 = vshrl.u32 %v3555, 16
        %v3717 = vrot.slane %v3715, 7
        %v3718 = vshll.u32 %v3555, 16
        %v3720 = vor.u32 %v3717, %v3718
        %v3721 = vsel %vm749, %v3713, %v3720
        %v3722 = vrot.slane %v3717, 4
        %v3724 = vshrl.u32 %v3556, 16
        %v3726 = vrot.slane %v3724, 7
        %v3727 = vshll.u32 %v3556, 16
        %v3729 = vor.u32 %v3726, %v3727
        %v3730 = vrot.slane %v3726, 4
        %v3732 = vshrl.u32 %v3557, 16
        %v3734 = vrot.slane %v3732, 7
        %v3735 = vshll.u32 %v3557, 16
        %v3737 = vor.u32 %v3734, %v3735
        %v3738 = vsel %vm749, %v3730, %v3737
        %v3739 = vrot.slane %v3734, 4
        %v3741 = vshrl.u32 %v3558, 16
        %v3743 = vrot.slane %v3741, 7
        %v3744 = vshll.u32 %v3558, 16
        %v3746 = vor.u32 %v3743, %v3744
        %v3747 = vrot.slane %v3743, 4
        %v3749 = vshrl.u32 %v3559, 16
        %v3751 = vrot.slane %v3749, 7
        %v3752 = vshll.u32 %v3559, 16
        %v3754 = vor.u32 %v3751, %v3752
        %v3755 = vsel %vm749, %v3747, %v3754
        %v3756 = vrot.slane %v3751, 4
        %v3758 = vshrl.u32 %v3560, 16
        %v3760 = vrot.slane %v3758, 7
        %v3761 = vshll.u32 %v3560, 16
        %v3763 = vor.u32 %v3760, %v3761
        %v3764 = vrot.slane %v3760, 4
        %v3766 = vshrl.u32 %v3561, 16
        %v3768 = vrot.slane %v3766, 7
        %v3769 = vshll.u32 %v3561, 16
        %v3771 = vor.u32 %v3768, %v3769
        %v3772 = vsel %vm749, %v3764, %v3771
        %v3773 = vrot.slane %v3768, 4
        %v3775 = vshrl.u32 %v3562, 16
        %v3777 = vrot.slane %v3775, 7
        %v3778 = vshll.u32 %v3562, 16
        %v3780 = vor.u32 %v3777, %v3778
        %v3781 = vrot.slane %v3777, 4
        %v3783 = vshrl.u32 %v3563, 16
        %v3785 = vrot.slane %v3783, 7
        %v3786 = vshll.u32 %v3563, 16
        %v3788 = vor.u32 %v3785, %v3786
        %v3789 = vsel %vm749, %v3781, %v3788
        %v3790 = vrot.slane %v3785, 4
        %v3792 = vshrl.u32 %v3564, 16
        %v3794 = vrot.slane %v3792, 7
        %v3795 = vshll.u32 %v3564, 16
        %v3797 = vor.u32 %v3794, %v3795
        %v3798 = vrot.slane %v3794, 4
        %v3800 = vshrl.u32 %v3565, 16
        %v3802 = vrot.slane %v3800, 7
        %v3803 = vshll.u32 %v3565, 16
        %v3805 = vor.u32 %v3802, %v3803
        %v3806 = vsel %vm749, %v3798, %v3805
        %v3807 = vrot.slane %v3802, 4
        %v3809 = vshrl.u32 %v3566, 16
        %v3811 = vrot.slane %v3809, 7
        %v3812 = vshll.u32 %v3566, 16
        %v3814 = vor.u32 %v3811, %v3812
        %v3815 = vrot.slane %v3811, 4
        %v3817 = vshrl.u32 %v3567, 16
        %v3819 = vrot.slane %v3817, 7
        %v3820 = vshll.u32 %v3567, 16
        %v3822 = vor.u32 %v3819, %v3820
        %v3823 = vsel %vm749, %v3815, %v3822
        %v3824 = vrot.slane %v3819, 4
        %v3826 = vshrl.u32 %v3568, 16
        %v3828 = vrot.slane %v3826, 7
        %v3829 = vshll.u32 %v3568, 16
        %v3831 = vor.u32 %v3828, %v3829
        %v3832 = vrot.slane %v3828, 4
        %v3834 = vshrl.u32 %v3569, 16
        %v3836 = vrot.slane %v3834, 7
        %v3837 = vshll.u32 %v3569, 16
        %v3839 = vor.u32 %v3836, %v3837
        %v3840 = vsel %vm749, %v3832, %v3839
        %v3841 = vrot.slane %v3836, 4
        %s3890 = scalar_lea.vmem [#allocation3], 12
        %vm3891 = vcmask 257024
        %vm3892 = vmand %vm3891, %vm444
        %v3893 = vld [vmem:[%s3890] sm:$0xf]
        %v3894 = vsel %vm3892, %v3576, %v3893
        %3895 = vst [vmem:[%s3890] sm:$0xf] %v3894
        %3896 = vst.msk [vmem:[%s3890 + $0x4] sm:$0xf] %vm500, %v3585
        %v3897 = vld [vmem:[%s3890 + $0x8] sm:$0x1]
        %v3898 = vsel %vm510, %v3586, %v3897
        %3899 = vst [vmem:[%s3890 + $0x8] sm:$0x1] %v3898
        %v3900 = vld [vmem:[%s3890 + $0xc] sm:$0xf]
        %v3901 = vsel %vm3892, %v3593, %v3900
        %3902 = vst [vmem:[%s3890 + $0xc] sm:$0xf] %v3901
        %3903 = vst.msk [vmem:[%s3890 + $0x10] sm:$0xf] %vm500, %v3602
        %v3904 = vld [vmem:[%s3890 + $0x14] sm:$0x1]
        %v3905 = vsel %vm510, %v3603, %v3904
        %3906 = vst [vmem:[%s3890 + $0x14] sm:$0x1] %v3905
        %v3907 = vld [vmem:[%s3890 + $0x18] sm:$0xf]
        %v3908 = vsel %vm3892, %v3610, %v3907
        %3909 = vst [vmem:[%s3890 + $0x18] sm:$0xf] %v3908
        %3910 = vst.msk [vmem:[%s3890 + $0x1c] sm:$0xf] %vm500, %v3619
        %v3911 = vld [vmem:[%s3890 + $0x20] sm:$0x1]
        %v3912 = vsel %vm510, %v3620, %v3911
        %3913 = vst [vmem:[%s3890 + $0x20] sm:$0x1] %v3912
        %v3914 = vld [vmem:[%s3890 + $0x24] sm:$0xf]
        %v3915 = vsel %vm3892, %v3627, %v3914
        %3916 = vst [vmem:[%s3890 + $0x24] sm:$0xf] %v3915
        %3917 = vst.msk [vmem:[%s3890 + $0x28] sm:$0xf] %vm500, %v3636
        %v3918 = vld [vmem:[%s3890 + $0x2c] sm:$0x1]
        %v3919 = vsel %vm510, %v3637, %v3918
        %3920 = vst [vmem:[%s3890 + $0x2c] sm:$0x1] %v3919
        %v3921 = vld [vmem:[%s3890 + $0x30] sm:$0xf]
        %v3922 = vsel %vm3892, %v3644, %v3921
        %3923 = vst [vmem:[%s3890 + $0x30] sm:$0xf] %v3922
        %3924 = vst.msk [vmem:[%s3890 + $0x34] sm:$0xf] %vm500, %v3653
        %v3925 = vld [vmem:[%s3890 + $0x38] sm:$0x1]
        %v3926 = vsel %vm510, %v3654, %v3925
        %3927 = vst [vmem:[%s3890 + $0x38] sm:$0x1] %v3926
        %v3928 = vld [vmem:[%s3890 + $0x3c] sm:$0xf]
        %v3929 = vsel %vm3892, %v3661, %v3928
        %3930 = vst [vmem:[%s3890 + $0x3c] sm:$0xf] %v3929
        %3931 = vst.msk [vmem:[%s3890 + $0x40] sm:$0xf] %vm500, %v3670
        %v3932 = vld [vmem:[%s3890 + $0x44] sm:$0x1]
        %v3933 = vsel %vm510, %v3671, %v3932
        %3934 = vst [vmem:[%s3890 + $0x44] sm:$0x1] %v3933
        %v3935 = vld [vmem:[%s3890 + $0x48] sm:$0xf]
        %v3936 = vsel %vm3892, %v3678, %v3935
        %3937 = vst [vmem:[%s3890 + $0x48] sm:$0xf] %v3936
        %3938 = vst.msk [vmem:[%s3890 + $0x4c] sm:$0xf] %vm500, %v3687
        %v3939 = vld [vmem:[%s3890 + $0x50] sm:$0x1]
        %v3940 = vsel %vm510, %v3688, %v3939
        %3941 = vst [vmem:[%s3890 + $0x50] sm:$0x1] %v3940
        %v3942 = vld [vmem:[%s3890 + $0x54] sm:$0xf]
        %v3943 = vsel %vm3892, %v3695, %v3942
        %3944 = vst [vmem:[%s3890 + $0x54] sm:$0xf] %v3943
        %3945 = vst.msk [vmem:[%s3890 + $0x58] sm:$0xf] %vm500, %v3704
        %v3946 = vld [vmem:[%s3890 + $0x5c] sm:$0x1]
        %v3947 = vsel %vm510, %v3705, %v3946
        %3948 = vst [vmem:[%s3890 + $0x5c] sm:$0x1] %v3947
        %v3949 = vld [vmem:[%s3890 + $0x60] sm:$0xf]
        %v3950 = vsel %vm3892, %v3712, %v3949
        %3951 = vst [vmem:[%s3890 + $0x60] sm:$0xf] %v3950
        %3952 = vst.msk [vmem:[%s3890 + $0x64] sm:$0xf] %vm500, %v3721
        %v3953 = vld [vmem:[%s3890 + $0x68] sm:$0x1]
        %v3954 = vsel %vm510, %v3722, %v3953
        %3955 = vst [vmem:[%s3890 + $0x68] sm:$0x1] %v3954
        %v3956 = vld [vmem:[%s3890 + $0x6c] sm:$0xf]
        %v3957 = vsel %vm3892, %v3729, %v3956
        %3958 = vst [vmem:[%s3890 + $0x6c] sm:$0xf] %v3957
        %3959 = vst.msk [vmem:[%s3890 + $0x70] sm:$0xf] %vm500, %v3738
        %v3960 = vld [vmem:[%s3890 + $0x74] sm:$0x1]
        %v3961 = vsel %vm510, %v3739, %v3960
        %3962 = vst [vmem:[%s3890 + $0x74] sm:$0x1] %v3961
        %v3963 = vld [vmem:[%s3890 + $0x78] sm:$0xf]
        %v3964 = vsel %vm3892, %v3746, %v3963
        %3965 = vst [vmem:[%s3890 + $0x78] sm:$0xf] %v3964
        %3966 = vst.msk [vmem:[%s3890 + $0x7c] sm:$0xf] %vm500, %v3755
        %v3967 = vld [vmem:[%s3890 + $0x80] sm:$0x1]
        %v3968 = vsel %vm510, %v3756, %v3967
        %3969 = vst [vmem:[%s3890 + $0x80] sm:$0x1] %v3968
        %v3970 = vld [vmem:[%s3890 + $0x84] sm:$0xf]
        %v3971 = vsel %vm3892, %v3763, %v3970
        %3972 = vst [vmem:[%s3890 + $0x84] sm:$0xf] %v3971
        %3973 = vst.msk [vmem:[%s3890 + $0x88] sm:$0xf] %vm500, %v3772
        %v3974 = vld [vmem:[%s3890 + $0x8c] sm:$0x1]
        %v3975 = vsel %vm510, %v3773, %v3974
        %3976 = vst [vmem:[%s3890 + $0x8c] sm:$0x1] %v3975
        %v3977 = vld [vmem:[%s3890 + $0x90] sm:$0xf]
        %v3978 = vsel %vm3892, %v3780, %v3977
        %3979 = vst [vmem:[%s3890 + $0x90] sm:$0xf] %v3978
        %3980 = vst.msk [vmem:[%s3890 + $0x94] sm:$0xf] %vm500, %v3789
        %v3981 = vld [vmem:[%s3890 + $0x98] sm:$0x1]
        %v3982 = vsel %vm510, %v3790, %v3981
        %3983 = vst [vmem:[%s3890 + $0x98] sm:$0x1] %v3982
        %v3984 = vld [vmem:[%s3890 + $0x9c] sm:$0xf]
        %v3985 = vsel %vm3892, %v3797, %v3984
        %3986 = vst [vmem:[%s3890 + $0x9c] sm:$0xf] %v3985
        %3987 = vst.msk [vmem:[%s3890 + $0xa0] sm:$0xf] %vm500, %v3806
        %v3988 = vld [vmem:[%s3890 + $0xa4] sm:$0x1]
        %v3989 = vsel %vm510, %v3807, %v3988
        %3990 = vst [vmem:[%s3890 + $0xa4] sm:$0x1] %v3989
        %v3991 = vld [vmem:[%s3890 + $0xa8] sm:$0xf]
        %v3992 = vsel %vm3892, %v3814, %v3991
        %3993 = vst [vmem:[%s3890 + $0xa8] sm:$0xf] %v3992
        %3994 = vst.msk [vmem:[%s3890 + $0xac] sm:$0xf] %vm500, %v3823
        %v3995 = vld [vmem:[%s3890 + $0xb0] sm:$0x1]
        %v3996 = vsel %vm510, %v3824, %v3995
        %3997 = vst [vmem:[%s3890 + $0xb0] sm:$0x1] %v3996
        %v3998 = vld [vmem:[%s3890 + $0xb4] sm:$0xf]
        %v3999 = vsel %vm3892, %v3831, %v3998
        %4000 = vst [vmem:[%s3890 + $0xb4] sm:$0xf] %v3999
        %4001 = vst.msk [vmem:[%s3890 + $0xb8] sm:$0xf] %vm500, %v3840
        %v4002 = vld [vmem:[%s3890 + $0xbc] sm:$0x1]
        %v4003 = vsel %vm510, %v3841, %v4002
        %4004 = vst [vmem:[%s3890 + $0xbc] sm:$0x1] %v4003
        %v4005 = vld [vmem:[%s3] sm:$0xf]
        %v4006 = vld [vmem:[%s3 + $0x4] sm:$0xf]
        %v4007 = vld [vmem:[%s3 + $0x8] sm:$0xf]
        %v4008 = vld [vmem:[%s3 + $0xc] sm:$0xf]
        %v4009 = vld [vmem:[%s7 + $0x1] sm:$0x1]
        %v4014 = vunpack.c.l.b16 %v4005
        %v4015 = vunpack.c.l.b16 %v4006
        %v4016 = vunpack.c.l.b16 %v4007
        %v4017 = vunpack.c.l.b16 %v4008
        %v4018 = vpack.c.b16 %v4015, %v4014
        %v4019 = vpack.c.b16 %v4017, %v4016
        %v4023 = vsel %vm3401, %v3473, 0
        %4025 = vmatprep.subr.bf16.mxu0 0
        %4026 = vmatpush1.bf16.msra.mxu0 0
        %4027 = vmatprep.subr.bf16.mxu0 0
        %4028 = vmatpush1.bf16.msra.mxu0 0
        %4029 = vmatprep.subr.bf16.mxu0 0
        %4030 = vmatpush1.bf16.msra.mxu0 0
        %4031 = vmatprep.subr.bf16.mxu0 0
        %4032 = vmatpush1.bf16.msra.mxu0 0
        %4033 = vmatprep.subr.bf16.mxu0 0
        %4034 = vmatpush1.bf16.msra.mxu0 0
        %4035 = vmatprep.subr.bf16.mxu0 0
        %4036 = vmatpush1.bf16.msra.mxu0 0
        %4037 = vmatprep.subr.bf16.mxu0 0
        %4038 = vmatpush1.bf16.msra.mxu0 %v4019
        %4039 = vmatprep.subr.bf16.mxu0 0
        %4040 = vmatpush1.bf16.msra.mxu0 %v4018
        %4041 = vmatprep.subr.bf16.mxu0 0
        %4042 = vmatpush2.bf16.msra.mxu0 0
        %4043 = vmatprep.subr.bf16.mxu0 0
        %4044 = vmatpush2.bf16.msra.mxu0 0
        %4045 = vmatprep.subr.bf16.mxu0 0
        %4046 = vmatpush2.bf16.msra.mxu0 0
        %4047 = vmatprep.subr.bf16.mxu0 0
        %4048 = vmatpush2.bf16.msra.mxu0 0
        %4049 = vmatprep.subr.bf16.mxu0 0
        %4050 = vmatpush2.bf16.msra.mxu0 0
        %4051 = vmatprep.subr.bf16.mxu0 0
        %4052 = vmatpush2.bf16.msra.mxu0 0
        %4053 = vmatprep.subr.bf16.mxu0 0
        %4054 = vmatpush2.bf16.msra.mxu0 0
        %4055 = vmatprep.subr.bf16.mxu0 0
        %4056 = vmatpush2.bf16.msra.mxu0 0
        %4057 = vmatprep.mubr.bf16.mxu0 0
        %4058 = vmatmul.mubr.bf16.gmra.mxu0 %v4023
        %v4059 = vpop.f32.mrf.mxu0
        %v4060 = vadd.f32 %v4009, %v4059
        %v4061 = vpop.f32.mrf.mxu0
        %v4062 = vpop.f32.mrf.mxu0
        %v4063 = vpop.f32.mrf.mxu0
        %4064 = vdwg.mxu0
        %v4065 = vmax.f32 %v4060, 0.0
        %v4066 = vpack.c.bf16 %v4065, %v4065
        %v4067 = vld [vmem:[%s4] sm:$0xf]
        %v4068 = vld [vmem:[%s4 + $0x4] sm:$0xf]
        %v4069 = vld [vmem:[%s4 + $0x8] sm:$0xf]
        %v4070 = vld [vmem:[%s4 + $0xc] sm:$0xf]
        %v4071 = vld [vmem:[%s4 + $0x10] sm:$0xf]
        %v4072 = vld [vmem:[%s4 + $0x14] sm:$0xf]
        %v4073 = vld [vmem:[%s4 + $0x18] sm:$0xf]
        %v4074 = vld [vmem:[%s4 + $0x1c] sm:$0xf]
        %v4075 = vld [vmem:[%s4 + $0x20] sm:$0xf]
        %v4076 = vld [vmem:[%s4 + $0x24] sm:$0xf]
        %v4077 = vld [vmem:[%s7 + $0x6] sm:$0x1]
        %v4088 = vunpack.c.l.b16 %v4067
        %v4089 = vunpack.c.l.b16 %v4068
        %v4090 = vunpack.c.l.b16 %v4069
        %v4091 = vunpack.c.l.b16 %v4070
        %v4092 = vunpack.c.l.b16 %v4071
        %v4093 = vunpack.c.l.b16 %v4072
        %v4094 = vunpack.c.l.b16 %v4073
        %v4095 = vunpack.c.l.b16 %v4074
        %v4096 = vunpack.c.l.b16 %v4075
        %v4097 = vunpack.c.l.b16 %v4076
        %v4098 = vpack.c.b16 %v4089, %v4088
        %v4099 = vpack.c.b16 %v4091, %v4090
        %v4100 = vpack.c.b16 %v4093, %v4092
        %v4101 = vpack.c.b16 %v4095, %v4094
        %v4102 = vpack.c.b16 %v4097, %v4096
        %vm4108 = vcmask 654336
        %v4110 = vsel %vm4108, %v4066, 0
        %4112 = vmatprep.subr.bf16.mxu0 0
        %4113 = vmatpush1.bf16.msra.mxu0 0
        %4114 = vmatprep.subr.bf16.mxu0 0
        %4115 = vmatpush1.bf16.msra.mxu0 0
        %4116 = vmatprep.subr.bf16.mxu0 0
        %4117 = vmatpush1.bf16.msra.mxu0 0
        %4118 = vmatprep.subr.bf16.mxu0 0
        %4119 = vmatpush1.bf16.msra.mxu0 %v4102
        %4120 = vmatprep.subr.bf16.mxu0 0
        %4121 = vmatpush1.bf16.msra.mxu0 %v4101
        %4122 = vmatprep.subr.bf16.mxu0 0
        %4123 = vmatpush1.bf16.msra.mxu0 %v4100
        %4124 = vmatprep.subr.bf16.mxu0 0
        %4125 = vmatpush1.bf16.msra.mxu0 %v4099
        %4126 = vmatprep.subr.bf16.mxu0 0
        %4127 = vmatpush1.bf16.msra.mxu0 %v4098
        %4128 = vmatprep.subr.bf16.mxu0 0
        %4129 = vmatpush2.bf16.msra.mxu0 0
        %4130 = vmatprep.subr.bf16.mxu0 0
        %4131 = vmatpush2.bf16.msra.mxu0 0
        %4132 = vmatprep.subr.bf16.mxu0 0
        %4133 = vmatpush2.bf16.msra.mxu0 0
        %4134 = vmatprep.subr.bf16.mxu0 0
        %4135 = vmatpush2.bf16.msra.mxu0 0
        %4136 = vmatprep.subr.bf16.mxu0 0
        %4137 = vmatpush2.bf16.msra.mxu0 0
        %4138 = vmatprep.subr.bf16.mxu0 0
        %4139 = vmatpush2.bf16.msra.mxu0 0
        %4140 = vmatprep.subr.bf16.mxu0 0
        %4141 = vmatpush2.bf16.msra.mxu0 0
        %4142 = vmatprep.subr.bf16.mxu0 0
        %4143 = vmatpush2.bf16.msra.mxu0 0
        %4144 = vmatprep.mubr.bf16.mxu0 0
        %4145 = vmatmul.mubr.bf16.gmra.mxu0 %v4110
        %v4146 = vpop.f32.mrf.mxu0
        %v4147 = vadd.f32 %v4077, %v4146
        %v4148 = vpop.f32.mrf.mxu0
        %v4149 = vpop.f32.mrf.mxu0
        %v4150 = vpop.f32.mrf.mxu0
        %4151 = vdwg.mxu0
        %v4152 = vlaneseq
        %v4153 = vand.u32 %v4152, 127
        %vm4154 = vcmp.eq.s32.totalorder %v4153, 2
        %v4155 = vxor.u32 %v4147, 2147483648
        %v4156 = vmul.f32 %v4155, 1.442695
        %v4157 = vpow.pop %v4156
        %v4158 = vadd.f32 %v4157, 1.0
        %v4159 = vrcp.pop %v4158
        %v4160 = vmul.f32 1.0, %v4159
        %v4161 = vsel %vm4154, %v4160, %v4147
        %4162 = vst.msk [vmem:[%s376] sm:$0x1] %vm381, %v4161
        %v4163 = vld [vmem:[#allocation3] sm:$0xf]
        %v4164 = vld [vmem:[#allocation3 + $0x4] sm:$0xf]
        %v4165 = vld [vmem:[#allocation3 + $0xc] sm:$0xf]
        %v4166 = vld [vmem:[#allocation3 + $0x10] sm:$0xf]
        %v4167 = vld [vmem:[#allocation3 + $0x18] sm:$0xf]
        %v4168 = vld [vmem:[#allocation3 + $0x1c] sm:$0xf]
        %v4169 = vld [vmem:[#allocation3 + $0x24] sm:$0xf]
        %v4170 = vld [vmem:[#allocation3 + $0x28] sm:$0xf]
        %v4171 = vld [vmem:[#allocation3 + $0x30] sm:$0xf]
        %v4172 = vld [vmem:[#allocation3 + $0x34] sm:$0xf]
        %v4173 = vld [vmem:[#allocation3 + $0x3c] sm:$0xf]
        %v4174 = vld [vmem:[#allocation3 + $0x40] sm:$0xf]
        %v4175 = vld [vmem:[#allocation3 + $0x48] sm:$0xf]
        %v4176 = vld [vmem:[#allocation3 + $0x4c] sm:$0xf]
        %v4177 = vld [vmem:[#allocation3 + $0x54] sm:$0xf]
        %v4178 = vld [vmem:[#allocation3 + $0x58] sm:$0xf]
        %v4179 = vld [vmem:[#allocation3 + $0x60] sm:$0xf]
        %v4180 = vld [vmem:[#allocation3 + $0x64] sm:$0xf]
        %v4181 = vld [vmem:[#allocation3 + $0x6c] sm:$0xf]
        %v4182 = vld [vmem:[#allocation3 + $0x70] sm:$0xf]
        %v4183 = vld [vmem:[#allocation3 + $0x78] sm:$0xf]
        %v4184 = vld [vmem:[#allocation3 + $0x7c] sm:$0xf]
        %v4185 = vld [vmem:[#allocation3 + $0x84] sm:$0xf]
        %v4186 = vld [vmem:[#allocation3 + $0x88] sm:$0xf]
        %v4187 = vld [vmem:[#allocation3 + $0x90] sm:$0xf]
        %v4188 = vld [vmem:[#allocation3 + $0x94] sm:$0xf]
        %v4189 = vld [vmem:[#allocation3 + $0x9c] sm:$0xf]
        %v4190 = vld [vmem:[#allocation3 + $0xa0] sm:$0xf]
        %v4191 = vld [vmem:[#allocation3 + $0xa8] sm:$0xf]
        %v4192 = vld [vmem:[#allocation3 + $0xac] sm:$0xf]
        %v4193 = vld [vmem:[#allocation3 + $0xb4] sm:$0xf]
        %v4194 = vld [vmem:[#allocation3 + $0xb8] sm:$0xf]
        %v4195 = vld [vmem:[#allocation3 + $0x8] sm:$0x1]
        %v4196 = vld [vmem:[#allocation3 + $0x14] sm:$0x1]
        %v4197 = vld [vmem:[#allocation3 + $0x20] sm:$0x1]
        %v4198 = vld [vmem:[#allocation3 + $0x2c] sm:$0x1]
        %v4199 = vld [vmem:[#allocation3 + $0x38] sm:$0x1]
        %v4200 = vld [vmem:[#allocation3 + $0x44] sm:$0x1]
        %v4201 = vld [vmem:[#allocation3 + $0x50] sm:$0x1]
        %v4202 = vld [vmem:[#allocation3 + $0x5c] sm:$0x1]
        %v4203 = vld [vmem:[#allocation3 + $0x68] sm:$0x1]
        %v4204 = vld [vmem:[#allocation3 + $0x74] sm:$0x1]
        %v4205 = vld [vmem:[#allocation3 + $0x80] sm:$0x1]
        %v4206 = vld [vmem:[#allocation3 + $0x8c] sm:$0x1]
        %v4207 = vld [vmem:[#allocation3 + $0x98] sm:$0x1]
        %v4208 = vld [vmem:[#allocation3 + $0xa4] sm:$0x1]
        %v4209 = vld [vmem:[#allocation3 + $0xb0] sm:$0x1]
        %v4210 = vld [vmem:[#allocation3 + $0xbc] sm:$0x1]
        %v4211 = vld [vmem:[#allocation3] sm:$0xe]
        %v4212 = vld [vmem:[#allocation3 + $0xc] sm:$0xe]
        %v4213 = vld [vmem:[#allocation3 + $0x18] sm:$0xe]
        %v4214 = vld [vmem:[#allocation3 + $0x24] sm:$0xe]
        %v4215 = vld [vmem:[#allocation3 + $0x30] sm:$0xe]
        %v4216 = vld [vmem:[#allocation3 + $0x3c] sm:$0xe]
        %v4217 = vld [vmem:[#allocation3 + $0x48] sm:$0xe]
        %v4218 = vld [vmem:[#allocation3 + $0x54] sm:$0xe]
        %v4219 = vld [vmem:[#allocation3 + $0x60] sm:$0xe]
        %v4220 = vld [vmem:[#allocation3 + $0x6c] sm:$0xe]
        %v4221 = vld [vmem:[#allocation3 + $0x78] sm:$0xe]
        %v4222 = vld [vmem:[#allocation3 + $0x84] sm:$0xe]
        %v4223 = vld [vmem:[#allocation3 + $0x90] sm:$0xe]
        %v4224 = vld [vmem:[#allocation3 + $0x9c] sm:$0xe]
        %v4225 = vld [vmem:[#allocation3 + $0xa8] sm:$0xe]
        %v4226 = vld [vmem:[#allocation3 + $0xb4] sm:$0xe]
        %v4227 = vld [vmem:[%s3890] sm:$0xf]
        %v4228 = vld [vmem:[%s3890 + $0x4] sm:$0xf]
        %v4229 = vld [vmem:[%s3890 + $0xc] sm:$0xf]
        %v4230 = vld [vmem:[%s3890 + $0x10] sm:$0xf]
        %v4231 = vld [vmem:[%s3890 + $0x18] sm:$0xf]
        %v4232 = vld [vmem:[%s3890 + $0x1c] sm:$0xf]
        %v4233 = vld [vmem:[%s3890 + $0x24] sm:$0xf]
        %v4234 = vld [vmem:[%s3890 + $0x28] sm:$0xf]
        %v4235 = vld [vmem:[%s3890 + $0x30] sm:$0xf]
        %v4236 = vld [vmem:[%s3890 + $0x34] sm:$0xf]
        %v4237 = vld [vmem:[%s3890 + $0x3c] sm:$0xf]
        %v4238 = vld [vmem:[%s3890 + $0x40] sm:$0xf]
        %v4239 = vld [vmem:[%s3890 + $0x48] sm:$0xf]
        %v4240 = vld [vmem:[%s3890 + $0x4c] sm:$0xf]
        %v4241 = vld [vmem:[%s3890 + $0x54] sm:$0xf]
        %v4242 = vld [vmem:[%s3890 + $0x58] sm:$0xf]
        %v4243 = vld [vmem:[%s3890 + $0x60] sm:$0xf]
        %v4244 = vld [vmem:[%s3890 + $0x64] sm:$0xf]
        %v4245 = vld [vmem:[%s3890 + $0x6c] sm:$0xf]
        %v4246 = vld [vmem:[%s3890 + $0x70] sm:$0xf]
        %v4247 = vld [vmem:[%s3890 + $0x78] sm:$0xf]
        %v4248 = vld [vmem:[%s3890 + $0x7c] sm:$0xf]
        %v4249 = vld [vmem:[%s3890 + $0x84] sm:$0xf]
        %v4250 = vld [vmem:[%s3890 + $0x88] sm:$0xf]
        %v4251 = vld [vmem:[%s3890 + $0x90] sm:$0xf]
        %v4252 = vld [vmem:[%s3890 + $0x94] sm:$0xf]
        %v4253 = vld [vmem:[%s3890 + $0x9c] sm:$0xf]
        %v4254 = vld [vmem:[%s3890 + $0xa0] sm:$0xf]
        %v4255 = vld [vmem:[%s3890 + $0xa8] sm:$0xf]
        %v4256 = vld [vmem:[%s3890 + $0xac] sm:$0xf]
        %v4257 = vld [vmem:[%s3890 + $0xb4] sm:$0xf]
        %v4258 = vld [vmem:[%s3890 + $0xb8] sm:$0xf]
        %v4259 = vld [vmem:[%s3890 + $0x8] sm:$0x1]
        %v4260 = vld [vmem:[%s3890 + $0x14] sm:$0x1]
        %v4261 = vld [vmem:[%s3890 + $0x20] sm:$0x1]
        %v4262 = vld [vmem:[%s3890 + $0x2c] sm:$0x1]
        %v4263 = vld [vmem:[%s3890 + $0x38] sm:$0x1]
        %v4264 = vld [vmem:[%s3890 + $0x44] sm:$0x1]
        %v4265 = vld [vmem:[%s3890 + $0x50] sm:$0x1]
        %v4266 = vld [vmem:[%s3890 + $0x5c] sm:$0x1]
        %v4267 = vld [vmem:[%s3890 + $0x68] sm:$0x1]
        %v4268 = vld [vmem:[%s3890 + $0x74] sm:$0x1]
        %v4269 = vld [vmem:[%s3890 + $0x80] sm:$0x1]
        %v4270 = vld [vmem:[%s3890 + $0x8c] sm:$0x1]
        %v4271 = vld [vmem:[%s3890 + $0x98] sm:$0x1]
        %v4272 = vld [vmem:[%s3890 + $0xa4] sm:$0x1]
        %v4273 = vld [vmem:[%s3890 + $0xb0] sm:$0x1]
        %v4274 = vld [vmem:[%s3890 + $0xbc] sm:$0x1]
        %v4275 = vld [vmem:[%s3890] sm:$0xe]
        %v4276 = vld [vmem:[%s3890 + $0xc] sm:$0xe]
        %v4277 = vld [vmem:[%s3890 + $0x18] sm:$0xe]
        %v4278 = vld [vmem:[%s3890 + $0x24] sm:$0xe]
        %v4279 = vld [vmem:[%s3890 + $0x30] sm:$0xe]
        %v4280 = vld [vmem:[%s3890 + $0x3c] sm:$0xe]
        %v4281 = vld [vmem:[%s3890 + $0x48] sm:$0xe]
        %v4282 = vld [vmem:[%s3890 + $0x54] sm:$0xe]
        %v4283 = vld [vmem:[%s3890 + $0x60] sm:$0xe]
        %v4284 = vld [vmem:[%s3890 + $0x6c] sm:$0xe]
        %v4285 = vld [vmem:[%s3890 + $0x78] sm:$0xe]
        %v4286 = vld [vmem:[%s3890 + $0x84] sm:$0xe]
        %v4287 = vld [vmem:[%s3890 + $0x90] sm:$0xe]
        %v4288 = vld [vmem:[%s3890 + $0x9c] sm:$0xe]
        %v4289 = vld [vmem:[%s3890 + $0xa8] sm:$0xe]
        %v4290 = vld [vmem:[%s3890 + $0xb4] sm:$0xe]
        %s4291 = scalar_lea.vmem [#allocation3], 24
        %v4292 = vld [vmem:[%s4291] sm:$0xf]
        %v4293 = vld [vmem:[%s4291 + $0x4] sm:$0xf]
        %v4294 = vld [vmem:[%s4291 + $0xc] sm:$0xf]
        %v4295 = vld [vmem:[%s4291 + $0x10] sm:$0xf]
        %v4296 = vld [vmem:[%s4291 + $0x18] sm:$0xf]
        %v4297 = vld [vmem:[%s4291 + $0x1c] sm:$0xf]
        %v4298 = vld [vmem:[%s4291 + $0x24] sm:$0xf]
        %v4299 = vld [vmem:[%s4291 + $0x28] sm:$0xf]
        %v4300 = vld [vmem:[%s4291 + $0x30] sm:$0xf]
        %v4301 = vld [vmem:[%s4291 + $0x34] sm:$0xf]
        %v4302 = vld [vmem:[%s4291 + $0x3c] sm:$0xf]
        %v4303 = vld [vmem:[%s4291 + $0x40] sm:$0xf]
        %v4304 = vld [vmem:[%s4291 + $0x48] sm:$0xf]
        %v4305 = vld [vmem:[%s4291 + $0x4c] sm:$0xf]
        %v4306 = vld [vmem:[%s4291 + $0x54] sm:$0xf]
        %v4307 = vld [vmem:[%s4291 + $0x58] sm:$0xf]
        %v4308 = vld [vmem:[%s4291 + $0x60] sm:$0xf]
        %v4309 = vld [vmem:[%s4291 + $0x64] sm:$0xf]
        %v4310 = vld [vmem:[%s4291 + $0x6c] sm:$0xf]
        %v4311 = vld [vmem:[%s4291 + $0x70] sm:$0xf]
        %v4312 = vld [vmem:[%s4291 + $0x78] sm:$0xf]
        %v4313 = vld [vmem:[%s4291 + $0x7c] sm:$0xf]
        %v4314 = vld [vmem:[%s4291 + $0x84] sm:$0xf]
        %v4315 = vld [vmem:[%s4291 + $0x88] sm:$0xf]
        %v4316 = vld [vmem:[%s4291 + $0x90] sm:$0xf]
        %v4317 = vld [vmem:[%s4291 + $0x94] sm:$0xf]
        %v4318 = vld [vmem:[%s4291 + $0x9c] sm:$0xf]
        %v4319 = vld [vmem:[%s4291 + $0xa0] sm:$0xf]
        %v4320 = vld [vmem:[%s4291 + $0xa8] sm:$0xf]
        %v4321 = vld [vmem:[%s4291 + $0xac] sm:$0xf]
        %v4322 = vld [vmem:[%s4291 + $0xb4] sm:$0xf]
        %v4323 = vld [vmem:[%s4291 + $0xb8] sm:$0xf]
        %v4324 = vld [vmem:[%s4291 + $0x8] sm:$0x1]
        %v4325 = vld [vmem:[%s4291 + $0x14] sm:$0x1]
        %v4326 = vld [vmem:[%s4291 + $0x20] sm:$0x1]
        %v4327 = vld [vmem:[%s4291 + $0x2c] sm:$0x1]
        %v4328 = vld [vmem:[%s4291 + $0x38] sm:$0x1]
        %v4329 = vld [vmem:[%s4291 + $0x44] sm:$0x1]
        %v4330 = vld [vmem:[%s4291 + $0x50] sm:$0x1]
        %v4331 = vld [vmem:[%s4291 + $0x5c] sm:$0x1]
        %v4332 = vld [vmem:[%s4291 + $0x68] sm:$0x1]
        %v4333 = vld [vmem:[%s4291 + $0x74] sm:$0x1]
        %v4334 = vld [vmem:[%s4291 + $0x80] sm:$0x1]
        %v4335 = vld [vmem:[%s4291 + $0x8c] sm:$0x1]
        %v4336 = vld [vmem:[%s4291 + $0x98] sm:$0x1]
        %v4337 = vld [vmem:[%s4291 + $0xa4] sm:$0x1]
        %v4338 = vld [vmem:[%s4291 + $0xb0] sm:$0x1]
        %v4339 = vld [vmem:[%s4291 + $0xbc] sm:$0x1]
        %v4340 = vld [vmem:[%s4291] sm:$0xe]
        %v4341 = vld [vmem:[%s4291 + $0xc] sm:$0xe]
        %v4342 = vld [vmem:[%s4291 + $0x18] sm:$0xe]
        %v4343 = vld [vmem:[%s4291 + $0x24] sm:$0xe]
        %v4344 = vld [vmem:[%s4291 + $0x30] sm:$0xe]
        %v4345 = vld [vmem:[%s4291 + $0x3c] sm:$0xe]
        %v4346 = vld [vmem:[%s4291 + $0x48] sm:$0xe]
        %v4347 = vld [vmem:[%s4291 + $0x54] sm:$0xe]
        %v4348 = vld [vmem:[%s4291 + $0x60] sm:$0xe]
        %v4349 = vld [vmem:[%s4291 + $0x6c] sm:$0xe]
        %v4350 = vld [vmem:[%s4291 + $0x78] sm:$0xe]
        %v4351 = vld [vmem:[%s4291 + $0x84] sm:$0xe]
        %v4352 = vld [vmem:[%s4291 + $0x90] sm:$0xe]
        %v4353 = vld [vmem:[%s4291 + $0x9c] sm:$0xe]
        %v4354 = vld [vmem:[%s4291 + $0xa8] sm:$0xe]
        %v4355 = vld [vmem:[%s4291 + $0xb4] sm:$0xe]
        %v4388 = vunpack.c.l.b16 %v4163
        %v4389 = vunpack.c.l.b16 %v4164
        %v4390 = vunpack.c.l.b16 %v4165
        %v4391 = vunpack.c.l.b16 %v4166
        %v4392 = vunpack.c.l.b16 %v4167
        %v4393 = vunpack.c.l.b16 %v4168
        %v4394 = vunpack.c.l.b16 %v4169
        %v4395 = vunpack.c.l.b16 %v4170
        %v4396 = vunpack.c.l.b16 %v4171
        %v4397 = vunpack.c.l.b16 %v4172
        %v4398 = vunpack.c.l.b16 %v4173
        %v4399 = vunpack.c.l.b16 %v4174
        %v4400 = vunpack.c.l.b16 %v4175
        %v4401 = vunpack.c.l.b16 %v4176
        %v4402 = vunpack.c.l.b16 %v4177
        %v4403 = vunpack.c.l.b16 %v4178
        %v4404 = vunpack.c.l.b16 %v4179
        %v4405 = vunpack.c.l.b16 %v4180
        %v4406 = vunpack.c.l.b16 %v4181
        %v4407 = vunpack.c.l.b16 %v4182
        %v4408 = vunpack.c.l.b16 %v4183
        %v4409 = vunpack.c.l.b16 %v4184
        %v4410 = vunpack.c.l.b16 %v4185
        %v4411 = vunpack.c.l.b16 %v4186
        %v4412 = vunpack.c.l.b16 %v4187
        %v4413 = vunpack.c.l.b16 %v4188
        %v4414 = vunpack.c.l.b16 %v4189
        %v4415 = vunpack.c.l.b16 %v4190
        %v4416 = vunpack.c.l.b16 %v4191
        %v4417 = vunpack.c.l.b16 %v4192
        %v4418 = vunpack.c.l.b16 %v4193
        %v4419 = vunpack.c.l.b16 %v4194
        %v4420 = vpack.c.b16 %v4389, %v4388
        %v4421 = vpack.c.b16 %v4391, %v4390
        %v4422 = vpack.c.b16 %v4393, %v4392
        %v4423 = vpack.c.b16 %v4395, %v4394
        %v4424 = vpack.c.b16 %v4397, %v4396
        %v4425 = vpack.c.b16 %v4399, %v4398
        %v4426 = vpack.c.b16 %v4401, %v4400
        %v4427 = vpack.c.b16 %v4403, %v4402
        %v4428 = vpack.c.b16 %v4405, %v4404
        %v4429 = vpack.c.b16 %v4407, %v4406
        %v4430 = vpack.c.b16 %v4409, %v4408
        %v4431 = vpack.c.b16 %v4411, %v4410
        %v4432 = vpack.c.b16 %v4413, %v4412
        %v4433 = vpack.c.b16 %v4415, %v4414
        %v4434 = vpack.c.b16 %v4417, %v4416
        %v4435 = vpack.c.b16 %v4419, %v4418
        %v4452 = vunpack.c.l.b16 %v4195
        %v4453 = vunpack.c.l.b16 %v4196
        %v4454 = vunpack.c.l.b16 %v4197
        %v4455 = vunpack.c.l.b16 %v4198
        %v4456 = vunpack.c.l.b16 %v4199
        %v4457 = vunpack.c.l.b16 %v4200
        %v4458 = vunpack.c.l.b16 %v4201
        %v4459 = vunpack.c.l.b16 %v4202
        %v4460 = vunpack.c.l.b16 %v4203
        %v4461 = vunpack.c.l.b16 %v4204
        %v4462 = vunpack.c.l.b16 %v4205
        %v4463 = vunpack.c.l.b16 %v4206
        %v4464 = vunpack.c.l.b16 %v4207
        %v4465 = vunpack.c.l.b16 %v4208
        %v4466 = vunpack.c.l.b16 %v4209
        %v4467 = vunpack.c.l.b16 %v4210
        %v4468 = vpack.c.b16 %v4452, %v4452
        %v4469 = vpack.c.b16 %v4453, %v4453
        %v4470 = vpack.c.b16 %v4454, %v4454
        %v4471 = vpack.c.b16 %v4455, %v4455
        %v4472 = vpack.c.b16 %v4456, %v4456
        %v4473 = vpack.c.b16 %v4457, %v4457
        %v4474 = vpack.c.b16 %v4458, %v4458
        %v4475 = vpack.c.b16 %v4459, %v4459
        %v4476 = vpack.c.b16 %v4460, %v4460
        %v4477 = vpack.c.b16 %v4461, %v4461
        %v4478 = vpack.c.b16 %v4462, %v4462
        %v4479 = vpack.c.b16 %v4463, %v4463
        %v4480 = vpack.c.b16 %v4464, %v4464
        %v4481 = vpack.c.b16 %v4465, %v4465
        %v4482 = vpack.c.b16 %v4466, %v4466
        %v4483 = vpack.c.b16 %v4467, %v4467
        %v4485 = vshrl.u32 %v4420, 16
        %v4487 = vshll.u32 %v4420, 16
        %v4489 = vrot.slane %v4487, 1
        %v4490 = vor.u32 %v4485, %v4489
        %v4492 = vshll.u32 %v4468, 16
        %v4494 = vrot.slane %v4492, 1
        %v4495 = vsel %vm1506, %v4490, %v4494
        %v4497 = vshrl.u32 %v4421, 16
        %v4499 = vshll.u32 %v4421, 16
        %v4501 = vrot.slane %v4499, 1
        %v4502 = vor.u32 %v4497, %v4501
        %v4504 = vshll.u32 %v4469, 16
        %v4506 = vrot.slane %v4504, 1
        %v4507 = vsel %vm1506, %v4502, %v4506
        %v4509 = vshrl.u32 %v4422, 16
        %v4511 = vshll.u32 %v4422, 16
        %v4513 = vrot.slane %v4511, 1
        %v4514 = vor.u32 %v4509, %v4513
        %v4516 = vshll.u32 %v4470, 16
        %v4518 = vrot.slane %v4516, 1
        %v4519 = vsel %vm1506, %v4514, %v4518
        %v4521 = vshrl.u32 %v4423, 16
        %v4523 = vshll.u32 %v4423, 16
        %v4525 = vrot.slane %v4523, 1
        %v4526 = vor.u32 %v4521, %v4525
        %v4528 = vshll.u32 %v4471, 16
        %v4530 = vrot.slane %v4528, 1
        %v4531 = vsel %vm1506, %v4526, %v4530
        %v4533 = vshrl.u32 %v4424, 16
        %v4535 = vshll.u32 %v4424, 16
        %v4537 = vrot.slane %v4535, 1
        %v4538 = vor.u32 %v4533, %v4537
        %v4540 = vshll.u32 %v4472, 16
        %v4542 = vrot.slane %v4540, 1
        %v4543 = vsel %vm1506, %v4538, %v4542
        %v4545 = vshrl.u32 %v4425, 16
        %v4547 = vshll.u32 %v4425, 16
        %v4549 = vrot.slane %v4547, 1
        %v4550 = vor.u32 %v4545, %v4549
        %v4552 = vshll.u32 %v4473, 16
        %v4554 = vrot.slane %v4552, 1
        %v4555 = vsel %vm1506, %v4550, %v4554
        %v4557 = vshrl.u32 %v4426, 16
        %v4559 = vshll.u32 %v4426, 16
        %v4561 = vrot.slane %v4559, 1
        %v4562 = vor.u32 %v4557, %v4561
        %v4564 = vshll.u32 %v4474, 16
        %v4566 = vrot.slane %v4564, 1
        %v4567 = vsel %vm1506, %v4562, %v4566
        %v4569 = vshrl.u32 %v4427, 16
        %v4571 = vshll.u32 %v4427, 16
        %v4573 = vrot.slane %v4571, 1
        %v4574 = vor.u32 %v4569, %v4573
        %v4576 = vshll.u32 %v4475, 16
        %v4578 = vrot.slane %v4576, 1
        %v4579 = vsel %vm1506, %v4574, %v4578
        %v4581 = vshrl.u32 %v4428, 16
        %v4583 = vshll.u32 %v4428, 16
        %v4585 = vrot.slane %v4583, 1
        %v4586 = vor.u32 %v4581, %v4585
        %v4588 = vshll.u32 %v4476, 16
        %v4590 = vrot.slane %v4588, 1
        %v4591 = vsel %vm1506, %v4586, %v4590
        %v4593 = vshrl.u32 %v4429, 16
        %v4595 = vshll.u32 %v4429, 16
        %v4597 = vrot.slane %v4595, 1
        %v4598 = vor.u32 %v4593, %v4597
        %v4600 = vshll.u32 %v4477, 16
        %v4602 = vrot.slane %v4600, 1
        %v4603 = vsel %vm1506, %v4598, %v4602
        %v4605 = vshrl.u32 %v4430, 16
        %v4607 = vshll.u32 %v4430, 16
        %v4609 = vrot.slane %v4607, 1
        %v4610 = vor.u32 %v4605, %v4609
        %v4612 = vshll.u32 %v4478, 16
        %v4614 = vrot.slane %v4612, 1
        %v4615 = vsel %vm1506, %v4610, %v4614
        %v4617 = vshrl.u32 %v4431, 16
        %v4619 = vshll.u32 %v4431, 16
        %v4621 = vrot.slane %v4619, 1
        %v4622 = vor.u32 %v4617, %v4621
        %v4624 = vshll.u32 %v4479, 16
        %v4626 = vrot.slane %v4624, 1
        %v4627 = vsel %vm1506, %v4622, %v4626
        %v4629 = vshrl.u32 %v4432, 16
        %v4631 = vshll.u32 %v4432, 16
        %v4633 = vrot.slane %v4631, 1
        %v4634 = vor.u32 %v4629, %v4633
        %v4636 = vshll.u32 %v4480, 16
        %v4638 = vrot.slane %v4636, 1
        %v4639 = vsel %vm1506, %v4634, %v4638
        %v4641 = vshrl.u32 %v4433, 16
        %v4643 = vshll.u32 %v4433, 16
        %v4645 = vrot.slane %v4643, 1
        %v4646 = vor.u32 %v4641, %v4645
        %v4648 = vshll.u32 %v4481, 16
        %v4650 = vrot.slane %v4648, 1
        %v4651 = vsel %vm1506, %v4646, %v4650
        %v4653 = vshrl.u32 %v4434, 16
        %v4655 = vshll.u32 %v4434, 16
        %v4657 = vrot.slane %v4655, 1
        %v4658 = vor.u32 %v4653, %v4657
        %v4660 = vshll.u32 %v4482, 16
        %v4662 = vrot.slane %v4660, 1
        %v4663 = vsel %vm1506, %v4658, %v4662
        %v4665 = vshrl.u32 %v4435, 16
        %v4667 = vshll.u32 %v4435, 16
        %v4669 = vrot.slane %v4667, 1
        %v4670 = vor.u32 %v4665, %v4669
        %v4672 = vshll.u32 %v4483, 16
        %v4674 = vrot.slane %v4672, 1
        %v4675 = vsel %vm1506, %v4670, %v4674
        %4676 = vrot.lane.b32.xlu0 %v4495, 32
        %v4677 = vpop.permute.xlu0 %4676
        %4678 = vrot.lane.b32.xlu0 %v4507, 32
        %v4679 = vpop.permute.xlu0 %4678
        %4680 = vrot.lane.b32.xlu0 %v4519, 32
        %v4681 = vpop.permute.xlu0 %4680
        %4682 = vrot.lane.b32.xlu0 %v4531, 32
        %v4683 = vpop.permute.xlu0 %4682
        %4684 = vrot.lane.b32.xlu0 %v4543, 32
        %v4685 = vpop.permute.xlu0 %4684
        %4686 = vrot.lane.b32.xlu0 %v4555, 32
        %v4687 = vpop.permute.xlu0 %4686
        %4688 = vrot.lane.b32.xlu0 %v4567, 32
        %v4689 = vpop.permute.xlu0 %4688
        %4690 = vrot.lane.b32.xlu0 %v4579, 32
        %v4691 = vpop.permute.xlu0 %4690
        %4692 = vrot.lane.b32.xlu0 %v4591, 32
        %v4693 = vpop.permute.xlu0 %4692
        %4694 = vrot.lane.b32.xlu0 %v4603, 32
        %v4695 = vpop.permute.xlu0 %4694
        %4696 = vrot.lane.b32.xlu0 %v4615, 32
        %v4697 = vpop.permute.xlu0 %4696
        %4698 = vrot.lane.b32.xlu0 %v4627, 32
        %v4699 = vpop.permute.xlu0 %4698
        %4700 = vrot.lane.b32.xlu0 %v4639, 32
        %v4701 = vpop.permute.xlu0 %4700
        %4702 = vrot.lane.b32.xlu0 %v4651, 32
        %v4703 = vpop.permute.xlu0 %4702
        %4704 = vrot.lane.b32.xlu0 %v4663, 32
        %v4705 = vpop.permute.xlu0 %4704
        %4706 = vrot.lane.b32.xlu0 %v4675, 32
        %v4707 = vpop.permute.xlu0 %4706
        %v4724 = vunpack.c.l.b16 %v4211
        %v4725 = vunpack.c.l.b16 %v4212
        %v4726 = vunpack.c.l.b16 %v4213
        %v4727 = vunpack.c.l.b16 %v4214
        %v4728 = vunpack.c.l.b16 %v4215
        %v4729 = vunpack.c.l.b16 %v4216
        %v4730 = vunpack.c.l.b16 %v4217
        %v4731 = vunpack.c.l.b16 %v4218
        %v4732 = vunpack.c.l.b16 %v4219
        %v4733 = vunpack.c.l.b16 %v4220
        %v4734 = vunpack.c.l.b16 %v4221
        %v4735 = vunpack.c.l.b16 %v4222
        %v4736 = vunpack.c.l.b16 %v4223
        %v4737 = vunpack.c.l.b16 %v4224
        %v4738 = vunpack.c.l.b16 %v4225
        %v4739 = vunpack.c.l.b16 %v4226
        %v4740 = vpack.c.b16 %v4389, %v4724
        %v4741 = vpack.c.b16 %v4391, %v4725
        %v4742 = vpack.c.b16 %v4393, %v4726
        %v4743 = vpack.c.b16 %v4395, %v4727
        %v4744 = vpack.c.b16 %v4397, %v4728
        %v4745 = vpack.c.b16 %v4399, %v4729
        %v4746 = vpack.c.b16 %v4401, %v4730
        %v4747 = vpack.c.b16 %v4403, %v4731
        %v4748 = vpack.c.b16 %v4405, %v4732
        %v4749 = vpack.c.b16 %v4407, %v4733
        %v4750 = vpack.c.b16 %v4409, %v4734
        %v4751 = vpack.c.b16 %v4411, %v4735
        %v4752 = vpack.c.b16 %v4413, %v4736
        %v4753 = vpack.c.b16 %v4415, %v4737
        %v4754 = vpack.c.b16 %v4417, %v4738
        %v4755 = vpack.c.b16 %v4419, %v4739
        %v4756 = vrot.slane %v4740, 1
        %v4757 = vrot.slane %v4468, 1
        %v4758 = vsel %vm1779, %v4756, %v4757
        %v4759 = vrot.slane %v4741, 1
        %v4760 = vrot.slane %v4469, 1
        %v4761 = vsel %vm1779, %v4759, %v4760
        %v4762 = vrot.slane %v4742, 1
        %v4763 = vrot.slane %v4470, 1
        %v4764 = vsel %vm1779, %v4762, %v4763
        %v4765 = vrot.slane %v4743, 1
        %v4766 = vrot.slane %v4471, 1
        %v4767 = vsel %vm1779, %v4765, %v4766
        %v4768 = vrot.slane %v4744, 1
        %v4769 = vrot.slane %v4472, 1
        %v4770 = vsel %vm1779, %v4768, %v4769
        %v4771 = vrot.slane %v4745, 1
        %v4772 = vrot.slane %v4473, 1
        %v4773 = vsel %vm1779, %v4771, %v4772
        %v4774 = vrot.slane %v4746, 1
        %v4775 = vrot.slane %v4474, 1
        %v4776 = vsel %vm1779, %v4774, %v4775
        %v4777 = vrot.slane %v4747, 1
        %v4778 = vrot.slane %v4475, 1
        %v4779 = vsel %vm1779, %v4777, %v4778
        %v4780 = vrot.slane %v4748, 1
        %v4781 = vrot.slane %v4476, 1
        %v4782 = vsel %vm1779, %v4780, %v4781
        %v4783 = vrot.slane %v4749, 1
        %v4784 = vrot.slane %v4477, 1
        %v4785 = vsel %vm1779, %v4783, %v4784
        %v4786 = vrot.slane %v4750, 1
        %v4787 = vrot.slane %v4478, 1
        %v4788 = vsel %vm1779, %v4786, %v4787
        %v4789 = vrot.slane %v4751, 1
        %v4790 = vrot.slane %v4479, 1
        %v4791 = vsel %vm1779, %v4789, %v4790
        %v4792 = vrot.slane %v4752, 1
        %v4793 = vrot.slane %v4480, 1
        %v4794 = vsel %vm1779, %v4792, %v4793
        %v4795 = vrot.slane %v4753, 1
        %v4796 = vrot.slane %v4481, 1
        %v4797 = vsel %vm1779, %v4795, %v4796
        %v4798 = vrot.slane %v4754, 1
        %v4799 = vrot.slane %v4482, 1
        %v4800 = vsel %vm1779, %v4798, %v4799
        %v4801 = vrot.slane %v4755, 1
        %v4802 = vrot.slane %v4483, 1
        %v4803 = vsel %vm1779, %v4801, %v4802
        %4804 = vrot.lane.b32.xlu0 %v4758, 64
        %v4805 = vpop.permute.xlu0 %4804
        %4806 = vrot.lane.b32.xlu0 %v4761, 64
        %v4807 = vpop.permute.xlu0 %4806
        %4808 = vrot.lane.b32.xlu0 %v4764, 64
        %v4809 = vpop.permute.xlu0 %4808
        %4810 = vrot.lane.b32.xlu0 %v4767, 64
        %v4811 = vpop.permute.xlu0 %4810
        %4812 = vrot.lane.b32.xlu0 %v4770, 64
        %v4813 = vpop.permute.xlu0 %4812
        %4814 = vrot.lane.b32.xlu0 %v4773, 64
        %v4815 = vpop.permute.xlu0 %4814
        %4816 = vrot.lane.b32.xlu0 %v4776, 64
        %v4817 = vpop.permute.xlu0 %4816
        %4818 = vrot.lane.b32.xlu0 %v4779, 64
        %v4819 = vpop.permute.xlu0 %4818
        %4820 = vrot.lane.b32.xlu0 %v4782, 64
        %v4821 = vpop.permute.xlu0 %4820
        %4822 = vrot.lane.b32.xlu0 %v4785, 64
        %v4823 = vpop.permute.xlu0 %4822
        %4824 = vrot.lane.b32.xlu0 %v4788, 64
        %v4825 = vpop.permute.xlu0 %4824
        %4826 = vrot.lane.b32.xlu0 %v4791, 64
        %v4827 = vpop.permute.xlu0 %4826
        %4828 = vrot.lane.b32.xlu0 %v4794, 64
        %v4829 = vpop.permute.xlu0 %4828
        %4830 = vrot.lane.b32.xlu0 %v4797, 64
        %v4831 = vpop.permute.xlu0 %4830
        %4832 = vrot.lane.b32.xlu0 %v4800, 64
        %v4833 = vpop.permute.xlu0 %4832
        %4834 = vrot.lane.b32.xlu0 %v4803, 64
        %v4835 = vpop.permute.xlu0 %4834
        %v4868 = vunpack.c.l.b16 %v4227
        %v4869 = vunpack.c.l.b16 %v4228
        %v4870 = vunpack.c.l.b16 %v4229
        %v4871 = vunpack.c.l.b16 %v4230
        %v4872 = vunpack.c.l.b16 %v4231
        %v4873 = vunpack.c.l.b16 %v4232
        %v4874 = vunpack.c.l.b16 %v4233
        %v4875 = vunpack.c.l.b16 %v4234
        %v4876 = vunpack.c.l.b16 %v4235
        %v4877 = vunpack.c.l.b16 %v4236
        %v4878 = vunpack.c.l.b16 %v4237
        %v4879 = vunpack.c.l.b16 %v4238
        %v4880 = vunpack.c.l.b16 %v4239
        %v4881 = vunpack.c.l.b16 %v4240
        %v4882 = vunpack.c.l.b16 %v4241
        %v4883 = vunpack.c.l.b16 %v4242
        %v4884 = vunpack.c.l.b16 %v4243
        %v4885 = vunpack.c.l.b16 %v4244
        %v4886 = vunpack.c.l.b16 %v4245
        %v4887 = vunpack.c.l.b16 %v4246
        %v4888 = vunpack.c.l.b16 %v4247
        %v4889 = vunpack.c.l.b16 %v4248
        %v4890 = vunpack.c.l.b16 %v4249
        %v4891 = vunpack.c.l.b16 %v4250
        %v4892 = vunpack.c.l.b16 %v4251
        %v4893 = vunpack.c.l.b16 %v4252
        %v4894 = vunpack.c.l.b16 %v4253
        %v4895 = vunpack.c.l.b16 %v4254
        %v4896 = vunpack.c.l.b16 %v4255
        %v4897 = vunpack.c.l.b16 %v4256
        %v4898 = vunpack.c.l.b16 %v4257
        %v4899 = vunpack.c.l.b16 %v4258
        %v4900 = vpack.c.b16 %v4869, %v4868
        %v4901 = vpack.c.b16 %v4871, %v4870
        %v4902 = vpack.c.b16 %v4873, %v4872
        %v4903 = vpack.c.b16 %v4875, %v4874
        %v4904 = vpack.c.b16 %v4877, %v4876
        %v4905 = vpack.c.b16 %v4879, %v4878
        %v4906 = vpack.c.b16 %v4881, %v4880
        %v4907 = vpack.c.b16 %v4883, %v4882
        %v4908 = vpack.c.b16 %v4885, %v4884
        %v4909 = vpack.c.b16 %v4887, %v4886
        %v4910 = vpack.c.b16 %v4889, %v4888
        %v4911 = vpack.c.b16 %v4891, %v4890
        %v4912 = vpack.c.b16 %v4893, %v4892
        %v4913 = vpack.c.b16 %v4895, %v4894
        %v4914 = vpack.c.b16 %v4897, %v4896
        %v4915 = vpack.c.b16 %v4899, %v4898
        %4916 = vrot.lane.b32.xlu0 %v4900, 96
        %v4917 = vpop.permute.xlu0 %4916
        %4918 = vrot.lane.b32.xlu0 %v4901, 96
        %v4919 = vpop.permute.xlu0 %4918
        %4920 = vrot.lane.b32.xlu0 %v4902, 96
        %v4921 = vpop.permute.xlu0 %4920
        %4922 = vrot.lane.b32.xlu0 %v4903, 96
        %v4923 = vpop.permute.xlu0 %4922
        %4924 = vrot.lane.b32.xlu0 %v4904, 96
        %v4925 = vpop.permute.xlu0 %4924
        %4926 = vrot.lane.b32.xlu0 %v4905, 96
        %v4927 = vpop.permute.xlu0 %4926
        %4928 = vrot.lane.b32.xlu0 %v4906, 96
        %v4929 = vpop.permute.xlu0 %4928
        %4930 = vrot.lane.b32.xlu0 %v4907, 96
        %v4931 = vpop.permute.xlu0 %4930
        %4932 = vrot.lane.b32.xlu0 %v4908, 96
        %v4933 = vpop.permute.xlu0 %4932
        %4934 = vrot.lane.b32.xlu0 %v4909, 96
        %v4935 = vpop.permute.xlu0 %4934
        %4936 = vrot.lane.b32.xlu0 %v4910, 96
        %v4937 = vpop.permute.xlu0 %4936
        %4938 = vrot.lane.b32.xlu0 %v4911, 96
        %v4939 = vpop.permute.xlu0 %4938
        %4940 = vrot.lane.b32.xlu0 %v4912, 96
        %v4941 = vpop.permute.xlu0 %4940
        %4942 = vrot.lane.b32.xlu0 %v4913, 96
        %v4943 = vpop.permute.xlu0 %4942
        %4944 = vrot.lane.b32.xlu0 %v4914, 96
        %v4945 = vpop.permute.xlu0 %4944
        %4946 = vrot.lane.b32.xlu0 %v4915, 96
        %v4947 = vpop.permute.xlu0 %4946
        %v4964 = vunpack.c.l.b16 %v4259
        %v4965 = vunpack.c.l.b16 %v4260
        %v4966 = vunpack.c.l.b16 %v4261
        %v4967 = vunpack.c.l.b16 %v4262
        %v4968 = vunpack.c.l.b16 %v4263
        %v4969 = vunpack.c.l.b16 %v4264
        %v4970 = vunpack.c.l.b16 %v4265
        %v4971 = vunpack.c.l.b16 %v4266
        %v4972 = vunpack.c.l.b16 %v4267
        %v4973 = vunpack.c.l.b16 %v4268
        %v4974 = vunpack.c.l.b16 %v4269
        %v4975 = vunpack.c.l.b16 %v4270
        %v4976 = vunpack.c.l.b16 %v4271
        %v4977 = vunpack.c.l.b16 %v4272
        %v4978 = vunpack.c.l.b16 %v4273
        %v4979 = vunpack.c.l.b16 %v4274
        %v4980 = vpack.c.b16 %v4964, %v4964
        %v4981 = vpack.c.b16 %v4965, %v4965
        %v4982 = vpack.c.b16 %v4966, %v4966
        %v4983 = vpack.c.b16 %v4967, %v4967
        %v4984 = vpack.c.b16 %v4968, %v4968
        %v4985 = vpack.c.b16 %v4969, %v4969
        %v4986 = vpack.c.b16 %v4970, %v4970
        %v4987 = vpack.c.b16 %v4971, %v4971
        %v4988 = vpack.c.b16 %v4972, %v4972
        %v4989 = vpack.c.b16 %v4973, %v4973
        %v4990 = vpack.c.b16 %v4974, %v4974
        %v4991 = vpack.c.b16 %v4975, %v4975
        %v4992 = vpack.c.b16 %v4976, %v4976
        %v4993 = vpack.c.b16 %v4977, %v4977
        %v4994 = vpack.c.b16 %v4978, %v4978
        %v4995 = vpack.c.b16 %v4979, %v4979
        %v4997 = vshrl.u32 %v4900, 16
        %v4999 = vshll.u32 %v4900, 16
        %v5001 = vrot.slane %v4999, 1
        %v5002 = vor.u32 %v4997, %v5001
        %v5004 = vshll.u32 %v4980, 16
        %v5006 = vrot.slane %v5004, 1
        %v5007 = vsel %vm1506, %v5002, %v5006
        %v5009 = vshrl.u32 %v4901, 16
        %v5011 = vshll.u32 %v4901, 16
        %v5013 = vrot.slane %v5011, 1
        %v5014 = vor.u32 %v5009, %v5013
        %v5016 = vshll.u32 %v4981, 16
        %v5018 = vrot.slane %v5016, 1
        %v5019 = vsel %vm1506, %v5014, %v5018
        %v5021 = vshrl.u32 %v4902, 16
        %v5023 = vshll.u32 %v4902, 16
        %v5025 = vrot.slane %v5023, 1
        %v5026 = vor.u32 %v5021, %v5025
        %v5028 = vshll.u32 %v4982, 16
        %v5030 = vrot.slane %v5028, 1
        %v5031 = vsel %vm1506, %v5026, %v5030
        %v5033 = vshrl.u32 %v4903, 16
        %v5035 = vshll.u32 %v4903, 16
        %v5037 = vrot.slane %v5035, 1
        %v5038 = vor.u32 %v5033, %v5037
        %v5040 = vshll.u32 %v4983, 16
        %v5042 = vrot.slane %v5040, 1
        %v5043 = vsel %vm1506, %v5038, %v5042
        %v5045 = vshrl.u32 %v4904, 16
        %v5047 = vshll.u32 %v4904, 16
        %v5049 = vrot.slane %v5047, 1
        %v5050 = vor.u32 %v5045, %v5049
        %v5052 = vshll.u32 %v4984, 16
        %v5054 = vrot.slane %v5052, 1
        %v5055 = vsel %vm1506, %v5050, %v5054
        %v5057 = vshrl.u32 %v4905, 16
        %v5059 = vshll.u32 %v4905, 16
        %v5061 = vrot.slane %v5059, 1
        %v5062 = vor.u32 %v5057, %v5061
        %v5064 = vshll.u32 %v4985, 16
        %v5066 = vrot.slane %v5064, 1
        %v5067 = vsel %vm1506, %v5062, %v5066
        %v5069 = vshrl.u32 %v4906, 16
        %v5071 = vshll.u32 %v4906, 16
        %v5073 = vrot.slane %v5071, 1
        %v5074 = vor.u32 %v5069, %v5073
        %v5076 = vshll.u32 %v4986, 16
        %v5078 = vrot.slane %v5076, 1
        %v5079 = vsel %vm1506, %v5074, %v5078
        %v5081 = vshrl.u32 %v4907, 16
        %v5083 = vshll.u32 %v4907, 16
        %v5085 = vrot.slane %v5083, 1
        %v5086 = vor.u32 %v5081, %v5085
        %v5088 = vshll.u32 %v4987, 16
        %v5090 = vrot.slane %v5088, 1
        %v5091 = vsel %vm1506, %v5086, %v5090
        %v5093 = vshrl.u32 %v4908, 16
        %v5095 = vshll.u32 %v4908, 16
        %v5097 = vrot.slane %v5095, 1
        %v5098 = vor.u32 %v5093, %v5097
        %v5100 = vshll.u32 %v4988, 16
        %v5102 = vrot.slane %v5100, 1
        %v5103 = vsel %vm1506, %v5098, %v5102
        %v5105 = vshrl.u32 %v4909, 16
        %v5107 = vshll.u32 %v4909, 16
        %v5109 = vrot.slane %v5107, 1
        %v5110 = vor.u32 %v5105, %v5109
        %v5112 = vshll.u32 %v4989, 16
        %v5114 = vrot.slane %v5112, 1
        %v5115 = vsel %vm1506, %v5110, %v5114
        %v5117 = vshrl.u32 %v4910, 16
        %v5119 = vshll.u32 %v4910, 16
        %v5121 = vrot.slane %v5119, 1
        %v5122 = vor.u32 %v5117, %v5121
        %v5124 = vshll.u32 %v4990, 16
        %v5126 = vrot.slane %v5124, 1
        %v5127 = vsel %vm1506, %v5122, %v5126
        %v5129 = vshrl.u32 %v4911, 16
        %v5131 = vshll.u32 %v4911, 16
        %v5133 = vrot.slane %v5131, 1
        %v5134 = vor.u32 %v5129, %v5133
        %v5136 = vshll.u32 %v4991, 16
        %v5138 = vrot.slane %v5136, 1
        %v5139 = vsel %vm1506, %v5134, %v5138
        %v5141 = vshrl.u32 %v4912, 16
        %v5143 = vshll.u32 %v4912, 16
        %v5145 = vrot.slane %v5143, 1
        %v5146 = vor.u32 %v5141, %v5145
        %v5148 = vshll.u32 %v4992, 16
        %v5150 = vrot.slane %v5148, 1
        %v5151 = vsel %vm1506, %v5146, %v5150
        %v5153 = vshrl.u32 %v4913, 16
        %v5155 = vshll.u32 %v4913, 16
        %v5157 = vrot.slane %v5155, 1
        %v5158 = vor.u32 %v5153, %v5157
        %v5160 = vshll.u32 %v4993, 16
        %v5162 = vrot.slane %v5160, 1
        %v5163 = vsel %vm1506, %v5158, %v5162
        %v5165 = vshrl.u32 %v4914, 16
        %v5167 = vshll.u32 %v4914, 16
        %v5169 = vrot.slane %v5167, 1
        %v5170 = vor.u32 %v5165, %v5169
        %v5172 = vshll.u32 %v4994, 16
        %v5174 = vrot.slane %v5172, 1
        %v5175 = vsel %vm1506, %v5170, %v5174
        %v5177 = vshrl.u32 %v4915, 16
        %v5179 = vshll.u32 %v4915, 16
        %v5181 = vrot.slane %v5179, 1
        %v5182 = vor.u32 %v5177, %v5181
        %v5184 = vshll.u32 %v4995, 16
        %v5186 = vrot.slane %v5184, 1
        %v5187 = vsel %vm1506, %v5182, %v5186
        %v5204 = vunpack.c.l.b16 %v4275
        %v5205 = vunpack.c.l.b16 %v4276
        %v5206 = vunpack.c.l.b16 %v4277
        %v5207 = vunpack.c.l.b16 %v4278
        %v5208 = vunpack.c.l.b16 %v4279
        %v5209 = vunpack.c.l.b16 %v4280
        %v5210 = vunpack.c.l.b16 %v4281
        %v5211 = vunpack.c.l.b16 %v4282
        %v5212 = vunpack.c.l.b16 %v4283
        %v5213 = vunpack.c.l.b16 %v4284
        %v5214 = vunpack.c.l.b16 %v4285
        %v5215 = vunpack.c.l.b16 %v4286
        %v5216 = vunpack.c.l.b16 %v4287
        %v5217 = vunpack.c.l.b16 %v4288
        %v5218 = vunpack.c.l.b16 %v4289
        %v5219 = vunpack.c.l.b16 %v4290
        %v5220 = vpack.c.b16 %v4869, %v5204
        %v5221 = vpack.c.b16 %v4871, %v5205
        %v5222 = vpack.c.b16 %v4873, %v5206
        %v5223 = vpack.c.b16 %v4875, %v5207
        %v5224 = vpack.c.b16 %v4877, %v5208
        %v5225 = vpack.c.b16 %v4879, %v5209
        %v5226 = vpack.c.b16 %v4881, %v5210
        %v5227 = vpack.c.b16 %v4883, %v5211
        %v5228 = vpack.c.b16 %v4885, %v5212
        %v5229 = vpack.c.b16 %v4887, %v5213
        %v5230 = vpack.c.b16 %v4889, %v5214
        %v5231 = vpack.c.b16 %v4891, %v5215
        %v5232 = vpack.c.b16 %v4893, %v5216
        %v5233 = vpack.c.b16 %v4895, %v5217
        %v5234 = vpack.c.b16 %v4897, %v5218
        %v5235 = vpack.c.b16 %v4899, %v5219
        %v5236 = vrot.slane %v5220, 1
        %v5237 = vrot.slane %v4980, 1
        %v5238 = vsel %vm1779, %v5236, %v5237
        %v5239 = vrot.slane %v5221, 1
        %v5240 = vrot.slane %v4981, 1
        %v5241 = vsel %vm1779, %v5239, %v5240
        %v5242 = vrot.slane %v5222, 1
        %v5243 = vrot.slane %v4982, 1
        %v5244 = vsel %vm1779, %v5242, %v5243
        %v5245 = vrot.slane %v5223, 1
        %v5246 = vrot.slane %v4983, 1
        %v5247 = vsel %vm1779, %v5245, %v5246
        %v5248 = vrot.slane %v5224, 1
        %v5249 = vrot.slane %v4984, 1
        %v5250 = vsel %vm1779, %v5248, %v5249
        %v5251 = vrot.slane %v5225, 1
        %v5252 = vrot.slane %v4985, 1
        %v5253 = vsel %vm1779, %v5251, %v5252
        %v5254 = vrot.slane %v5226, 1
        %v5255 = vrot.slane %v4986, 1
        %v5256 = vsel %vm1779, %v5254, %v5255
        %v5257 = vrot.slane %v5227, 1
        %v5258 = vrot.slane %v4987, 1
        %v5259 = vsel %vm1779, %v5257, %v5258
        %v5260 = vrot.slane %v5228, 1
        %v5261 = vrot.slane %v4988, 1
        %v5262 = vsel %vm1779, %v5260, %v5261
        %v5263 = vrot.slane %v5229, 1
        %v5264 = vrot.slane %v4989, 1
        %v5265 = vsel %vm1779, %v5263, %v5264
        %v5266 = vrot.slane %v5230, 1
        %v5267 = vrot.slane %v4990, 1
        %v5268 = vsel %vm1779, %v5266, %v5267
        %v5269 = vrot.slane %v5231, 1
        %v5270 = vrot.slane %v4991, 1
        %v5271 = vsel %vm1779, %v5269, %v5270
        %v5272 = vrot.slane %v5232, 1
        %v5273 = vrot.slane %v4992, 1
        %v5274 = vsel %vm1779, %v5272, %v5273
        %v5275 = vrot.slane %v5233, 1
        %v5276 = vrot.slane %v4993, 1
        %v5277 = vsel %vm1779, %v5275, %v5276
        %v5278 = vrot.slane %v5234, 1
        %v5279 = vrot.slane %v4994, 1
        %v5280 = vsel %vm1779, %v5278, %v5279
        %v5281 = vrot.slane %v5235, 1
        %v5282 = vrot.slane %v4995, 1
        %v5283 = vsel %vm1779, %v5281, %v5282
        %5284 = vrot.lane.b32.xlu0 %v5238, 32
        %v5285 = vpop.permute.xlu0 %5284
        %5286 = vrot.lane.b32.xlu0 %v5241, 32
        %v5287 = vpop.permute.xlu0 %5286
        %5288 = vrot.lane.b32.xlu0 %v5244, 32
        %v5289 = vpop.permute.xlu0 %5288
        %5290 = vrot.lane.b32.xlu0 %v5247, 32
        %v5291 = vpop.permute.xlu0 %5290
        %5292 = vrot.lane.b32.xlu0 %v5250, 32
        %v5293 = vpop.permute.xlu0 %5292
        %5294 = vrot.lane.b32.xlu0 %v5253, 32
        %v5295 = vpop.permute.xlu0 %5294
        %5296 = vrot.lane.b32.xlu0 %v5256, 32
        %v5297 = vpop.permute.xlu0 %5296
        %5298 = vrot.lane.b32.xlu0 %v5259, 32
        %v5299 = vpop.permute.xlu0 %5298
        %5300 = vrot.lane.b32.xlu0 %v5262, 32
        %v5301 = vpop.permute.xlu0 %5300
        %5302 = vrot.lane.b32.xlu0 %v5265, 32
        %v5303 = vpop.permute.xlu0 %5302
        %5304 = vrot.lane.b32.xlu0 %v5268, 32
        %v5305 = vpop.permute.xlu0 %5304
        %5306 = vrot.lane.b32.xlu0 %v5271, 32
        %v5307 = vpop.permute.xlu0 %5306
        %5308 = vrot.lane.b32.xlu0 %v5274, 32
        %v5309 = vpop.permute.xlu0 %5308
        %5310 = vrot.lane.b32.xlu0 %v5277, 32
        %v5311 = vpop.permute.xlu0 %5310
        %5312 = vrot.lane.b32.xlu0 %v5280, 32
        %v5313 = vpop.permute.xlu0 %5312
        %5314 = vrot.lane.b32.xlu0 %v5283, 32
        %v5315 = vpop.permute.xlu0 %5314
        %v5348 = vunpack.c.l.b16 %v4292
        %v5349 = vunpack.c.l.b16 %v4293
        %v5350 = vunpack.c.l.b16 %v4294
        %v5351 = vunpack.c.l.b16 %v4295
        %v5352 = vunpack.c.l.b16 %v4296
        %v5353 = vunpack.c.l.b16 %v4297
        %v5354 = vunpack.c.l.b16 %v4298
        %v5355 = vunpack.c.l.b16 %v4299
        %v5356 = vunpack.c.l.b16 %v4300
        %v5357 = vunpack.c.l.b16 %v4301
        %v5358 = vunpack.c.l.b16 %v4302
        %v5359 = vunpack.c.l.b16 %v4303
        %v5360 = vunpack.c.l.b16 %v4304
        %v5361 = vunpack.c.l.b16 %v4305
        %v5362 = vunpack.c.l.b16 %v4306
        %v5363 = vunpack.c.l.b16 %v4307
        %v5364 = vunpack.c.l.b16 %v4308
        %v5365 = vunpack.c.l.b16 %v4309
        %v5366 = vunpack.c.l.b16 %v4310
        %v5367 = vunpack.c.l.b16 %v4311
        %v5368 = vunpack.c.l.b16 %v4312
        %v5369 = vunpack.c.l.b16 %v4313
        %v5370 = vunpack.c.l.b16 %v4314
        %v5371 = vunpack.c.l.b16 %v4315
        %v5372 = vunpack.c.l.b16 %v4316
        %v5373 = vunpack.c.l.b16 %v4317
        %v5374 = vunpack.c.l.b16 %v4318
        %v5375 = vunpack.c.l.b16 %v4319
        %v5376 = vunpack.c.l.b16 %v4320
        %v5377 = vunpack.c.l.b16 %v4321
        %v5378 = vunpack.c.l.b16 %v4322
        %v5379 = vunpack.c.l.b16 %v4323
        %v5380 = vpack.c.b16 %v5349, %v5348
        %v5381 = vpack.c.b16 %v5351, %v5350
        %v5382 = vpack.c.b16 %v5353, %v5352
        %v5383 = vpack.c.b16 %v5355, %v5354
        %v5384 = vpack.c.b16 %v5357, %v5356
        %v5385 = vpack.c.b16 %v5359, %v5358
        %v5386 = vpack.c.b16 %v5361, %v5360
        %v5387 = vpack.c.b16 %v5363, %v5362
        %v5388 = vpack.c.b16 %v5365, %v5364
        %v5389 = vpack.c.b16 %v5367, %v5366
        %v5390 = vpack.c.b16 %v5369, %v5368
        %v5391 = vpack.c.b16 %v5371, %v5370
        %v5392 = vpack.c.b16 %v5373, %v5372
        %v5393 = vpack.c.b16 %v5375, %v5374
        %v5394 = vpack.c.b16 %v5377, %v5376
        %v5395 = vpack.c.b16 %v5379, %v5378
        %5396 = vrot.lane.b32.xlu0 %v5380, 64
        %v5397 = vpop.permute.xlu0 %5396
        %5398 = vrot.lane.b32.xlu0 %v5381, 64
        %v5399 = vpop.permute.xlu0 %5398
        %5400 = vrot.lane.b32.xlu0 %v5382, 64
        %v5401 = vpop.permute.xlu0 %5400
        %5402 = vrot.lane.b32.xlu0 %v5383, 64
        %v5403 = vpop.permute.xlu0 %5402
        %5404 = vrot.lane.b32.xlu0 %v5384, 64
        %v5405 = vpop.permute.xlu0 %5404
        %5406 = vrot.lane.b32.xlu0 %v5385, 64
        %v5407 = vpop.permute.xlu0 %5406
        %5408 = vrot.lane.b32.xlu0 %v5386, 64
        %v5409 = vpop.permute.xlu0 %5408
        %5410 = vrot.lane.b32.xlu0 %v5387, 64
        %v5411 = vpop.permute.xlu0 %5410
        %5412 = vrot.lane.b32.xlu0 %v5388, 64
        %v5413 = vpop.permute.xlu0 %5412
        %5414 = vrot.lane.b32.xlu0 %v5389, 64
        %v5415 = vpop.permute.xlu0 %5414
        %5416 = vrot.lane.b32.xlu0 %v5390, 64
        %v5417 = vpop.permute.xlu0 %5416
        %5418 = vrot.lane.b32.xlu0 %v5391, 64
        %v5419 = vpop.permute.xlu0 %5418
        %5420 = vrot.lane.b32.xlu0 %v5392, 64
        %v5421 = vpop.permute.xlu0 %5420
        %5422 = vrot.lane.b32.xlu0 %v5393, 64
        %v5423 = vpop.permute.xlu0 %5422
        %5424 = vrot.lane.b32.xlu0 %v5394, 64
        %v5425 = vpop.permute.xlu0 %5424
        %5426 = vrot.lane.b32.xlu0 %v5395, 64
        %v5427 = vpop.permute.xlu0 %5426
        %v5444 = vunpack.c.l.b16 %v4324
        %v5445 = vunpack.c.l.b16 %v4325
        %v5446 = vunpack.c.l.b16 %v4326
        %v5447 = vunpack.c.l.b16 %v4327
        %v5448 = vunpack.c.l.b16 %v4328
        %v5449 = vunpack.c.l.b16 %v4329
        %v5450 = vunpack.c.l.b16 %v4330
        %v5451 = vunpack.c.l.b16 %v4331
        %v5452 = vunpack.c.l.b16 %v4332
        %v5453 = vunpack.c.l.b16 %v4333
        %v5454 = vunpack.c.l.b16 %v4334
        %v5455 = vunpack.c.l.b16 %v4335
        %v5456 = vunpack.c.l.b16 %v4336
        %v5457 = vunpack.c.l.b16 %v4337
        %v5458 = vunpack.c.l.b16 %v4338
        %v5459 = vunpack.c.l.b16 %v4339
        %v5460 = vpack.c.b16 %v5444, %v5444
        %v5461 = vpack.c.b16 %v5445, %v5445
        %v5462 = vpack.c.b16 %v5446, %v5446
        %v5463 = vpack.c.b16 %v5447, %v5447
        %v5464 = vpack.c.b16 %v5448, %v5448
        %v5465 = vpack.c.b16 %v5449, %v5449
        %v5466 = vpack.c.b16 %v5450, %v5450
        %v5467 = vpack.c.b16 %v5451, %v5451
        %v5468 = vpack.c.b16 %v5452, %v5452
        %v5469 = vpack.c.b16 %v5453, %v5453
        %v5470 = vpack.c.b16 %v5454, %v5454
        %v5471 = vpack.c.b16 %v5455, %v5455
        %v5472 = vpack.c.b16 %v5456, %v5456
        %v5473 = vpack.c.b16 %v5457, %v5457
        %v5474 = vpack.c.b16 %v5458, %v5458
        %v5475 = vpack.c.b16 %v5459, %v5459
        %v5477 = vshrl.u32 %v5380, 16
        %v5479 = vshll.u32 %v5380, 16
        %v5481 = vrot.slane %v5479, 1
        %v5482 = vor.u32 %v5477, %v5481
        %v5484 = vshll.u32 %v5460, 16
        %v5486 = vrot.slane %v5484, 1
        %v5487 = vsel %vm1506, %v5482, %v5486
        %v5489 = vshrl.u32 %v5381, 16
        %v5491 = vshll.u32 %v5381, 16
        %v5493 = vrot.slane %v5491, 1
        %v5494 = vor.u32 %v5489, %v5493
        %v5496 = vshll.u32 %v5461, 16
        %v5498 = vrot.slane %v5496, 1
        %v5499 = vsel %vm1506, %v5494, %v5498
        %v5501 = vshrl.u32 %v5382, 16
        %v5503 = vshll.u32 %v5382, 16
        %v5505 = vrot.slane %v5503, 1
        %v5506 = vor.u32 %v5501, %v5505
        %v5508 = vshll.u32 %v5462, 16
        %v5510 = vrot.slane %v5508, 1
        %v5511 = vsel %vm1506, %v5506, %v5510
        %v5513 = vshrl.u32 %v5383, 16
        %v5515 = vshll.u32 %v5383, 16
        %v5517 = vrot.slane %v5515, 1
        %v5518 = vor.u32 %v5513, %v5517
        %v5520 = vshll.u32 %v5463, 16
        %v5522 = vrot.slane %v5520, 1
        %v5523 = vsel %vm1506, %v5518, %v5522
        %v5525 = vshrl.u32 %v5384, 16
        %v5527 = vshll.u32 %v5384, 16
        %v5529 = vrot.slane %v5527, 1
        %v5530 = vor.u32 %v5525, %v5529
        %v5532 = vshll.u32 %v5464, 16
        %v5534 = vrot.slane %v5532, 1
        %v5535 = vsel %vm1506, %v5530, %v5534
        %v5537 = vshrl.u32 %v5385, 16
        %v5539 = vshll.u32 %v5385, 16
        %v5541 = vrot.slane %v5539, 1
        %v5542 = vor.u32 %v5537, %v5541
        %v5544 = vshll.u32 %v5465, 16
        %v5546 = vrot.slane %v5544, 1
        %v5547 = vsel %vm1506, %v5542, %v5546
        %v5549 = vshrl.u32 %v5386, 16
        %v5551 = vshll.u32 %v5386, 16
        %v5553 = vrot.slane %v5551, 1
        %v5554 = vor.u32 %v5549, %v5553
        %v5556 = vshll.u32 %v5466, 16
        %v5558 = vrot.slane %v5556, 1
        %v5559 = vsel %vm1506, %v5554, %v5558
        %v5561 = vshrl.u32 %v5387, 16
        %v5563 = vshll.u32 %v5387, 16
        %v5565 = vrot.slane %v5563, 1
        %v5566 = vor.u32 %v5561, %v5565
        %v5568 = vshll.u32 %v5467, 16
        %v5570 = vrot.slane %v5568, 1
        %v5571 = vsel %vm1506, %v5566, %v5570
        %v5573 = vshrl.u32 %v5388, 16
        %v5575 = vshll.u32 %v5388, 16
        %v5577 = vrot.slane %v5575, 1
        %v5578 = vor.u32 %v5573, %v5577
        %v5580 = vshll.u32 %v5468, 16
        %v5582 = vrot.slane %v5580, 1
        %v5583 = vsel %vm1506, %v5578, %v5582
        %v5585 = vshrl.u32 %v5389, 16
        %v5587 = vshll.u32 %v5389, 16
        %v5589 = vrot.slane %v5587, 1
        %v5590 = vor.u32 %v5585, %v5589
        %v5592 = vshll.u32 %v5469, 16
        %v5594 = vrot.slane %v5592, 1
        %v5595 = vsel %vm1506, %v5590, %v5594
        %v5597 = vshrl.u32 %v5390, 16
        %v5599 = vshll.u32 %v5390, 16
        %v5601 = vrot.slane %v5599, 1
        %v5602 = vor.u32 %v5597, %v5601
        %v5604 = vshll.u32 %v5470, 16
        %v5606 = vrot.slane %v5604, 1
        %v5607 = vsel %vm1506, %v5602, %v5606
        %v5609 = vshrl.u32 %v5391, 16
        %v5611 = vshll.u32 %v5391, 16
        %v5613 = vrot.slane %v5611, 1
        %v5614 = vor.u32 %v5609, %v5613
        %v5616 = vshll.u32 %v5471, 16
        %v5618 = vrot.slane %v5616, 1
        %v5619 = vsel %vm1506, %v5614, %v5618
        %v5621 = vshrl.u32 %v5392, 16
        %v5623 = vshll.u32 %v5392, 16
        %v5625 = vrot.slane %v5623, 1
        %v5626 = vor.u32 %v5621, %v5625
        %v5628 = vshll.u32 %v5472, 16
        %v5630 = vrot.slane %v5628, 1
        %v5631 = vsel %vm1506, %v5626, %v5630
        %v5633 = vshrl.u32 %v5393, 16
        %v5635 = vshll.u32 %v5393, 16
        %v5637 = vrot.slane %v5635, 1
        %v5638 = vor.u32 %v5633, %v5637
        %v5640 = vshll.u32 %v5473, 16
        %v5642 = vrot.slane %v5640, 1
        %v5643 = vsel %vm1506, %v5638, %v5642
        %v5645 = vshrl.u32 %v5394, 16
        %v5647 = vshll.u32 %v5394, 16
        %v5649 = vrot.slane %v5647, 1
        %v5650 = vor.u32 %v5645, %v5649
        %v5652 = vshll.u32 %v5474, 16
        %v5654 = vrot.slane %v5652, 1
        %v5655 = vsel %vm1506, %v5650, %v5654
        %v5657 = vshrl.u32 %v5395, 16
        %v5659 = vshll.u32 %v5395, 16
        %v5661 = vrot.slane %v5659, 1
        %v5662 = vor.u32 %v5657, %v5661
        %v5664 = vshll.u32 %v5475, 16
        %v5666 = vrot.slane %v5664, 1
        %v5667 = vsel %vm1506, %v5662, %v5666
        %5668 = vrot.lane.b32.xlu0 %v5487, 96
        %v5669 = vpop.permute.xlu0 %5668
        %5670 = vrot.lane.b32.xlu0 %v5499, 96
        %v5671 = vpop.permute.xlu0 %5670
        %5672 = vrot.lane.b32.xlu0 %v5511, 96
        %v5673 = vpop.permute.xlu0 %5672
        %5674 = vrot.lane.b32.xlu0 %v5523, 96
        %v5675 = vpop.permute.xlu0 %5674
        %5676 = vrot.lane.b32.xlu0 %v5535, 96
        %v5677 = vpop.permute.xlu0 %5676
        %5678 = vrot.lane.b32.xlu0 %v5547, 96
        %v5679 = vpop.permute.xlu0 %5678
        %5680 = vrot.lane.b32.xlu0 %v5559, 96
        %v5681 = vpop.permute.xlu0 %5680
        %5682 = vrot.lane.b32.xlu0 %v5571, 96
        %v5683 = vpop.permute.xlu0 %5682
        %5684 = vrot.lane.b32.xlu0 %v5583, 96
        %v5685 = vpop.permute.xlu0 %5684
        %5686 = vrot.lane.b32.xlu0 %v5595, 96
        %v5687 = vpop.permute.xlu0 %5686
        %5688 = vrot.lane.b32.xlu0 %v5607, 96
        %v5689 = vpop.permute.xlu0 %5688
        %5690 = vrot.lane.b32.xlu0 %v5619, 96
        %v5691 = vpop.permute.xlu0 %5690
        %5692 = vrot.lane.b32.xlu0 %v5631, 96
        %v5693 = vpop.permute.xlu0 %5692
        %5694 = vrot.lane.b32.xlu0 %v5643, 96
        %v5695 = vpop.permute.xlu0 %5694
        %5696 = vrot.lane.b32.xlu0 %v5655, 96
        %v5697 = vpop.permute.xlu0 %5696
        %5698 = vrot.lane.b32.xlu0 %v5667, 96
        %v5699 = vpop.permute.xlu0 %5698
        %v5716 = vunpack.c.l.b16 %v4340
        %v5717 = vunpack.c.l.b16 %v4341
        %v5718 = vunpack.c.l.b16 %v4342
        %v5719 = vunpack.c.l.b16 %v4343
        %v5720 = vunpack.c.l.b16 %v4344
        %v5721 = vunpack.c.l.b16 %v4345
        %v5722 = vunpack.c.l.b16 %v4346
        %v5723 = vunpack.c.l.b16 %v4347
        %v5724 = vunpack.c.l.b16 %v4348
        %v5725 = vunpack.c.l.b16 %v4349
        %v5726 = vunpack.c.l.b16 %v4350
        %v5727 = vunpack.c.l.b16 %v4351
        %v5728 = vunpack.c.l.b16 %v4352
        %v5729 = vunpack.c.l.b16 %v4353
        %v5730 = vunpack.c.l.b16 %v4354
        %v5731 = vunpack.c.l.b16 %v4355
        %v5732 = vpack.c.b16 %v5349, %v5716
        %v5733 = vpack.c.b16 %v5351, %v5717
        %v5734 = vpack.c.b16 %v5353, %v5718
        %v5735 = vpack.c.b16 %v5355, %v5719
        %v5736 = vpack.c.b16 %v5357, %v5720
        %v5737 = vpack.c.b16 %v5359, %v5721
        %v5738 = vpack.c.b16 %v5361, %v5722
        %v5739 = vpack.c.b16 %v5363, %v5723
        %v5740 = vpack.c.b16 %v5365, %v5724
        %v5741 = vpack.c.b16 %v5367, %v5725
        %v5742 = vpack.c.b16 %v5369, %v5726
        %v5743 = vpack.c.b16 %v5371, %v5727
        %v5744 = vpack.c.b16 %v5373, %v5728
        %v5745 = vpack.c.b16 %v5375, %v5729
        %v5746 = vpack.c.b16 %v5377, %v5730
        %v5747 = vpack.c.b16 %v5379, %v5731
        %v5748 = vrot.slane %v5732, 1
        %v5749 = vrot.slane %v5460, 1
        %v5750 = vsel %vm1779, %v5748, %v5749
        %v5751 = vrot.slane %v5733, 1
        %v5752 = vrot.slane %v5461, 1
        %v5753 = vsel %vm1779, %v5751, %v5752
        %v5754 = vrot.slane %v5734, 1
        %v5755 = vrot.slane %v5462, 1
        %v5756 = vsel %vm1779, %v5754, %v5755
        %v5757 = vrot.slane %v5735, 1
        %v5758 = vrot.slane %v5463, 1
        %v5759 = vsel %vm1779, %v5757, %v5758
        %v5760 = vrot.slane %v5736, 1
        %v5761 = vrot.slane %v5464, 1
        %v5762 = vsel %vm1779, %v5760, %v5761
        %v5763 = vrot.slane %v5737, 1
        %v5764 = vrot.slane %v5465, 1
        %v5765 = vsel %vm1779, %v5763, %v5764
        %v5766 = vrot.slane %v5738, 1
        %v5767 = vrot.slane %v5466, 1
        %v5768 = vsel %vm1779, %v5766, %v5767
        %v5769 = vrot.slane %v5739, 1
        %v5770 = vrot.slane %v5467, 1
        %v5771 = vsel %vm1779, %v5769, %v5770
        %v5772 = vrot.slane %v5740, 1
        %v5773 = vrot.slane %v5468, 1
        %v5774 = vsel %vm1779, %v5772, %v5773
        %v5775 = vrot.slane %v5741, 1
        %v5776 = vrot.slane %v5469, 1
        %v5777 = vsel %vm1779, %v5775, %v5776
        %v5778 = vrot.slane %v5742, 1
        %v5779 = vrot.slane %v5470, 1
        %v5780 = vsel %vm1779, %v5778, %v5779
        %v5781 = vrot.slane %v5743, 1
        %v5782 = vrot.slane %v5471, 1
        %v5783 = vsel %vm1779, %v5781, %v5782
        %v5784 = vrot.slane %v5744, 1
        %v5785 = vrot.slane %v5472, 1
        %v5786 = vsel %vm1779, %v5784, %v5785
        %v5787 = vrot.slane %v5745, 1
        %v5788 = vrot.slane %v5473, 1
        %v5789 = vsel %vm1779, %v5787, %v5788
        %v5790 = vrot.slane %v5746, 1
        %v5791 = vrot.slane %v5474, 1
        %v5792 = vsel %vm1779, %v5790, %v5791
        %v5793 = vrot.slane %v5747, 1
        %v5794 = vrot.slane %v5475, 1
        %v5795 = vsel %vm1779, %v5793, %v5794
        %v5797 = vsel %vm3401, %v4420, %v4677
        %v5799 = vsel %vm3401, %v4421, %v4679
        %v5801 = vsel %vm3401, %v4422, %v4681
        %v5803 = vsel %vm3401, %v4423, %v4683
        %v5805 = vsel %vm3401, %v4424, %v4685
        %v5807 = vsel %vm3401, %v4425, %v4687
        %v5809 = vsel %vm3401, %v4426, %v4689
        %v5811 = vsel %vm3401, %v4427, %v4691
        %v5813 = vsel %vm3401, %v4428, %v4693
        %v5815 = vsel %vm3401, %v4429, %v4695
        %v5817 = vsel %vm3401, %v4430, %v4697
        %v5819 = vsel %vm3401, %v4431, %v4699
        %v5821 = vsel %vm3401, %v4432, %v4701
        %v5823 = vsel %vm3401, %v4433, %v4703
        %v5825 = vsel %vm3401, %v4434, %v4705
        %v5827 = vsel %vm3401, %v4435, %v4707
        %vm5828 = vcmask 523264
        %v5830 = vsel %vm5828, %v5797, %v4805
        %v5832 = vsel %vm5828, %v5799, %v4807
        %v5834 = vsel %vm5828, %v5801, %v4809
        %v5836 = vsel %vm5828, %v5803, %v4811
        %v5838 = vsel %vm5828, %v5805, %v4813
        %v5840 = vsel %vm5828, %v5807, %v4815
        %v5842 = vsel %vm5828, %v5809, %v4817
        %v5844 = vsel %vm5828, %v5811, %v4819
        %v5846 = vsel %vm5828, %v5813, %v4821
        %v5848 = vsel %vm5828, %v5815, %v4823
        %v5850 = vsel %vm5828, %v5817, %v4825
        %v5852 = vsel %vm5828, %v5819, %v4827
        %v5854 = vsel %vm5828, %v5821, %v4829
        %v5856 = vsel %vm5828, %v5823, %v4831
        %v5858 = vsel %vm5828, %v5825, %v4833
        %v5860 = vsel %vm5828, %v5827, %v4835
        %vm5861 = vcmask 785408
        %v5863 = vsel %vm5861, %v5830, %v4917
        %v5866 = vsel %vm5861, %v5832, %v4919
        %v5869 = vsel %vm5861, %v5834, %v4921
        %v5872 = vsel %vm5861, %v5836, %v4923
        %v5875 = vsel %vm5861, %v5838, %v4925
        %v5878 = vsel %vm5861, %v5840, %v4927
        %v5881 = vsel %vm5861, %v5842, %v4929
        %v5884 = vsel %vm5861, %v5844, %v4931
        %v5887 = vsel %vm5861, %v5846, %v4933
        %v5890 = vsel %vm5861, %v5848, %v4935
        %v5893 = vsel %vm5861, %v5850, %v4937
        %v5896 = vsel %vm5861, %v5852, %v4939
        %v5899 = vsel %vm5861, %v5854, %v4941
        %v5902 = vsel %vm5861, %v5856, %v4943
        %v5905 = vsel %vm5861, %v5858, %v4945
        %v5908 = vsel %vm5861, %v5860, %v4947
        %v5912 = vsel %vm3401, %v5007, %v5285
        %v5915 = vsel %vm3401, %v5019, %v5287
        %v5918 = vsel %vm3401, %v5031, %v5289
        %v5921 = vsel %vm3401, %v5043, %v5291
        %v5924 = vsel %vm3401, %v5055, %v5293
        %v5927 = vsel %vm3401, %v5067, %v5295
        %v5930 = vsel %vm3401, %v5079, %v5297
        %v5933 = vsel %vm3401, %v5091, %v5299
        %v5936 = vsel %vm3401, %v5103, %v5301
        %v5939 = vsel %vm3401, %v5115, %v5303
        %v5942 = vsel %vm3401, %v5127, %v5305
        %v5945 = vsel %vm3401, %v5139, %v5307
        %v5948 = vsel %vm3401, %v5151, %v5309
        %v5951 = vsel %vm3401, %v5163, %v5311
        %v5954 = vsel %vm3401, %v5175, %v5313
        %v5957 = vsel %vm3401, %v5187, %v5315
        %v5959 = vsel %vm5828, %v5912, %v5397
        %v5961 = vsel %vm5828, %v5915, %v5399
        %v5963 = vsel %vm5828, %v5918, %v5401
        %v5965 = vsel %vm5828, %v5921, %v5403
        %v5967 = vsel %vm5828, %v5924, %v5405
        %v5969 = vsel %vm5828, %v5927, %v5407
        %v5971 = vsel %vm5828, %v5930, %v5409
        %v5973 = vsel %vm5828, %v5933, %v5411
        %v5975 = vsel %vm5828, %v5936, %v5413
        %v5977 = vsel %vm5828, %v5939, %v5415
        %v5979 = vsel %vm5828, %v5942, %v5417
        %v5981 = vsel %vm5828, %v5945, %v5419
        %v5983 = vsel %vm5828, %v5948, %v5421
        %v5985 = vsel %vm5828, %v5951, %v5423
        %v5987 = vsel %vm5828, %v5954, %v5425
        %v5989 = vsel %vm5828, %v5957, %v5427
        %v5991 = vsel %vm5861, %v5959, %v5669
        %v5994 = vsel %vm5861, %v5961, %v5671
        %v5997 = vsel %vm5861, %v5963, %v5673
        %v6000 = vsel %vm5861, %v5965, %v5675
        %v6003 = vsel %vm5861, %v5967, %v5677
        %v6006 = vsel %vm5861, %v5969, %v5679
        %v6009 = vsel %vm5861, %v5971, %v5681
        %v6012 = vsel %vm5861, %v5973, %v5683
        %v6015 = vsel %vm5861, %v5975, %v5685
        %v6018 = vsel %vm5861, %v5977, %v5687
        %v6021 = vsel %vm5861, %v5979, %v5689
        %v6024 = vsel %vm5861, %v5981, %v5691
        %v6027 = vsel %vm5861, %v5983, %v5693
        %v6030 = vsel %vm5861, %v5985, %v5695
        %v6033 = vsel %vm5861, %v5987, %v5697
        %v6036 = vsel %vm5861, %v5989, %v5699
        %v6038 = vld [vmem:[%s2] sm:$0xf]
        %v6039 = vld [vmem:[%s2 + $0x4] sm:$0xf]
        %v6040 = vld [vmem:[%s2 + $0x8] sm:$0xf]
        %v6041 = vld [vmem:[%s2 + $0xc] sm:$0xf]
        %v6042 = vld [vmem:[%s2 + $0x10] sm:$0xf]
        %v6043 = vld [vmem:[%s2 + $0x14] sm:$0xf]
        %v6044 = vld [vmem:[%s2 + $0x18] sm:$0xf]
        %v6045 = vld [vmem:[%s2 + $0x1c] sm:$0xf]
        %v6046 = vld [vmem:[%s2 + $0x20] sm:$0xf]
        %v6047 = vld [vmem:[%s2 + $0x24] sm:$0xf]
        %v6048 = vld [vmem:[%s2 + $0x28] sm:$0xf]
        %v6049 = vld [vmem:[%s2 + $0x2c] sm:$0xf]
        %v6050 = vld [vmem:[%s2 + $0x30] sm:$0xf]
        %v6051 = vld [vmem:[%s2 + $0x34] sm:$0xf]
        %v6052 = vld [vmem:[%s2 + $0x38] sm:$0xf]
        %v6053 = vld [vmem:[%s2 + $0x3c] sm:$0xf]
        %v6054 = vld [vmem:[%s2 + $0x40] sm:$0xf]
        %v6055 = vld [vmem:[%s2 + $0x44] sm:$0xf]
        %v6056 = vld [vmem:[%s2 + $0x48] sm:$0xf]
        %v6057 = vld [vmem:[%s2 + $0x4c] sm:$0xf]
        %v6058 = vld [vmem:[%s2 + $0x50] sm:$0xf]
        %v6059 = vld [vmem:[%s2 + $0x54] sm:$0xf]
        %v6060 = vld [vmem:[%s2 + $0x58] sm:$0xf]
        %v6061 = vld [vmem:[%s2 + $0x5c] sm:$0xf]
        %v6062 = vld [vmem:[%s2 + $0x60] sm:$0xf]
        %v6063 = vld [vmem:[%s2 + $0x64] sm:$0xf]
        %v6064 = vld [vmem:[%s2 + $0x68] sm:$0xf]
        %v6065 = vld [vmem:[%s2 + $0x6c] sm:$0xf]
        %v6066 = vld [vmem:[%s2 + $0x70] sm:$0xf]
        %v6067 = vld [vmem:[%s2 + $0x74] sm:$0xf]
        %v6068 = vld [vmem:[%s2 + $0x78] sm:$0xf]
        %v6069 = vld [vmem:[%s2 + $0x7c] sm:$0xf]
        %v6070 = vld [vmem:[%s2 + $0x80] sm:$0xf]
        %v6071 = vld [vmem:[%s2 + $0x84] sm:$0xf]
        %v6072 = vld [vmem:[%s2 + $0x88] sm:$0xf]
        %v6073 = vld [vmem:[%s2 + $0x8c] sm:$0xf]
        %v6110 = vunpack.c.l.b16 %v6038
        %v6111 = vunpack.c.l.b16 %v6039
        %v6112 = vunpack.c.l.b16 %v6040
        %v6113 = vunpack.c.l.b16 %v6041
        %v6114 = vunpack.c.l.b16 %v6042
        %v6115 = vunpack.c.l.b16 %v6043
        %v6116 = vunpack.c.l.b16 %v6044
        %v6117 = vunpack.c.l.b16 %v6045
        %v6118 = vunpack.c.l.b16 %v6046
        %v6119 = vunpack.c.l.b16 %v6047
        %v6120 = vunpack.c.l.b16 %v6048
        %v6121 = vunpack.c.l.b16 %v6049
        %v6122 = vunpack.c.l.b16 %v6050
        %v6123 = vunpack.c.l.b16 %v6051
        %v6124 = vunpack.c.l.b16 %v6052
        %v6125 = vunpack.c.l.b16 %v6053
        %v6126 = vunpack.c.l.b16 %v6054
        %v6127 = vunpack.c.l.b16 %v6055
        %v6128 = vunpack.c.l.b16 %v6056
        %v6129 = vunpack.c.l.b16 %v6057
        %v6130 = vunpack.c.l.b16 %v6058
        %v6131 = vunpack.c.l.b16 %v6059
        %v6132 = vunpack.c.l.b16 %v6060
        %v6133 = vunpack.c.l.b16 %v6061
        %v6134 = vunpack.c.l.b16 %v6062
        %v6135 = vunpack.c.l.b16 %v6063
        %v6136 = vunpack.c.l.b16 %v6064
        %v6137 = vunpack.c.l.b16 %v6065
        %v6138 = vunpack.c.l.b16 %v6066
        %v6139 = vunpack.c.l.b16 %v6067
        %v6140 = vunpack.c.l.b16 %v6068
        %v6141 = vunpack.c.l.b16 %v6069
        %v6142 = vunpack.c.l.b16 %v6070
        %v6143 = vunpack.c.l.b16 %v6071
        %v6144 = vunpack.c.l.b16 %v6072
        %v6145 = vunpack.c.l.b16 %v6073
        %v6146 = vpack.c.b16 %v6111, %v6110
        %v6147 = vpack.c.b16 %v6113, %v6112
        %v6148 = vpack.c.b16 %v6115, %v6114
        %v6149 = vpack.c.b16 %v6117, %v6116
        %v6150 = vpack.c.b16 %v6119, %v6118
        %v6151 = vpack.c.b16 %v6121, %v6120
        %v6152 = vpack.c.b16 %v6123, %v6122
        %v6153 = vpack.c.b16 %v6125, %v6124
        %v6154 = vpack.c.b16 %v6127, %v6126
        %v6155 = vpack.c.b16 %v6129, %v6128
        %v6156 = vpack.c.b16 %v6131, %v6130
        %v6157 = vpack.c.b16 %v6133, %v6132
        %v6158 = vpack.c.b16 %v6135, %v6134
        %v6159 = vpack.c.b16 %v6137, %v6136
        %v6160 = vpack.c.b16 %v6139, %v6138
        %v6161 = vpack.c.b16 %v6141, %v6140
        %v6162 = vpack.c.b16 %v6143, %v6142
        %v6163 = vpack.c.b16 %v6145, %v6144
        %v6183 = vsel %vm3401, %v5750, 0
        %v6186 = vsel %vm3401, %v5753, 0
        %v6189 = vsel %vm3401, %v5756, 0
        %v6192 = vsel %vm3401, %v5759, 0
        %v6195 = vsel %vm3401, %v5762, 0
        %v6198 = vsel %vm3401, %v5765, 0
        %v6201 = vsel %vm3401, %v5768, 0
        %v6204 = vsel %vm3401, %v5771, 0
        %v6207 = vsel %vm3401, %v5774, 0
        %v6210 = vsel %vm3401, %v5777, 0
        %v6213 = vsel %vm3401, %v5780, 0
        %v6216 = vsel %vm3401, %v5783, 0
        %v6219 = vsel %vm3401, %v5786, 0
        %v6222 = vsel %vm3401, %v5789, 0
        %v6225 = vsel %vm3401, %v5792, 0
        %v6228 = vsel %vm3401, %v5795, 0
        %6230 = vmatprep.subr.bf16.mxu0 0
        %6231 = vmatpush1.bf16.msra.mxu0 %v6153
        %6232 = vmatprep.subr.bf16.mxu0 0
        %6233 = vmatpush1.bf16.msra.mxu0 %v6152
        %6234 = vmatprep.subr.bf16.mxu0 0
        %6235 = vmatpush1.bf16.msra.mxu0 %v6151
        %6236 = vmatprep.subr.bf16.mxu0 0
        %6237 = vmatpush1.bf16.msra.mxu0 %v6150
        %6238 = vmatprep.subr.bf16.mxu0 0
        %6239 = vmatpush1.bf16.msra.mxu0 %v6149
        %6240 = vmatprep.subr.bf16.mxu0 0
        %6241 = vmatpush1.bf16.msra.mxu0 %v6148
        %6242 = vmatprep.subr.bf16.mxu0 0
        %6243 = vmatpush1.bf16.msra.mxu0 %v6147
        %6244 = vmatprep.subr.bf16.mxu0 0
        %6245 = vmatpush1.bf16.msra.mxu0 %v6146
        %6246 = vmatprep.subr.bf16.mxu0 0
        %6247 = vmatpush2.bf16.msra.mxu0 %v6161
        %6248 = vmatprep.subr.bf16.mxu0 0
        %6249 = vmatpush2.bf16.msra.mxu0 %v6160
        %6250 = vmatprep.subr.bf16.mxu0 0
        %6251 = vmatpush2.bf16.msra.mxu0 %v6159
        %6252 = vmatprep.subr.bf16.mxu0 0
        %6253 = vmatpush2.bf16.msra.mxu0 %v6158
        %6254 = vmatprep.subr.bf16.mxu0 0
        %6255 = vmatpush2.bf16.msra.mxu0 %v6157
        %6256 = vmatprep.subr.bf16.mxu0 0
        %6257 = vmatpush2.bf16.msra.mxu0 %v6156
        %6258 = vmatprep.subr.bf16.mxu0 0
        %6259 = vmatpush2.bf16.msra.mxu0 %v6155
        %6260 = vmatprep.subr.bf16.mxu0 0
        %6261 = vmatpush2.bf16.msra.mxu0 %v6154
        %6262 = vmatprep.mubr.bf16.mxu0 %v5991
        %6263 = vmatmul.mubr.bf16.gmra.mxu0 %v5863
        %v6264 = vpop.f32.mrf.mxu0
        %v6265 = vadd.f32 0.0, %v6264
        %v6266 = vpop.f32.mrf.mxu0
        %v6267 = vpop.f32.mrf.mxu0
        %v6268 = vadd.f32 0.0, %v6267
        %v6269 = vpop.f32.mrf.mxu0
        %6270 = vmatprep.mubr.bf16.mxu0 %v5994
        %6271 = vmatmul.mubr.bf16.gmra.mxu0 %v5866
        %v6272 = vpop.f32.mrf.mxu0
        %v6273 = vadd.f32 0.0, %v6272
        %v6274 = vpop.f32.mrf.mxu0
        %v6275 = vpop.f32.mrf.mxu0
        %v6276 = vadd.f32 0.0, %v6275
        %v6277 = vpop.f32.mrf.mxu0
        %6278 = vmatprep.mubr.bf16.mxu0 %v5997
        %6279 = vmatmul.mubr.bf16.gmra.mxu0 %v5869
        %v6280 = vpop.f32.mrf.mxu0
        %v6281 = vadd.f32 0.0, %v6280
        %v6282 = vpop.f32.mrf.mxu0
        %v6283 = vpop.f32.mrf.mxu0
        %v6284 = vadd.f32 0.0, %v6283
        %v6285 = vpop.f32.mrf.mxu0
        %6286 = vmatprep.mubr.bf16.mxu0 %v6000
        %6287 = vmatmul.mubr.bf16.gmra.mxu0 %v5872
        %v6288 = vpop.f32.mrf.mxu0
        %v6289 = vadd.f32 0.0, %v6288
        %v6290 = vpop.f32.mrf.mxu0
        %v6291 = vpop.f32.mrf.mxu0
        %v6292 = vadd.f32 0.0, %v6291
        %v6293 = vpop.f32.mrf.mxu0
        %6294 = vmatprep.mubr.bf16.mxu0 %v6003
        %6295 = vmatmul.mubr.bf16.gmra.mxu0 %v5875
        %v6296 = vpop.f32.mrf.mxu0
        %v6297 = vadd.f32 0.0, %v6296
        %v6298 = vpop.f32.mrf.mxu0
        %v6299 = vpop.f32.mrf.mxu0
        %v6300 = vadd.f32 0.0, %v6299
        %v6301 = vpop.f32.mrf.mxu0
        %6302 = vmatprep.mubr.bf16.mxu0 %v6006
        %6303 = vmatmul.mubr.bf16.gmra.mxu0 %v5878
        %v6304 = vpop.f32.mrf.mxu0
        %v6305 = vadd.f32 0.0, %v6304
        %v6306 = vpop.f32.mrf.mxu0
        %v6307 = vpop.f32.mrf.mxu0
        %v6308 = vadd.f32 0.0, %v6307
        %v6309 = vpop.f32.mrf.mxu0
        %6310 = vmatprep.mubr.bf16.mxu0 %v6009
        %6311 = vmatmul.mubr.bf16.gmra.mxu0 %v5881
        %v6312 = vpop.f32.mrf.mxu0
        %v6313 = vadd.f32 0.0, %v6312
        %v6314 = vpop.f32.mrf.mxu0
        %v6315 = vpop.f32.mrf.mxu0
        %v6316 = vadd.f32 0.0, %v6315
        %v6317 = vpop.f32.mrf.mxu0
        %6318 = vmatprep.mubr.bf16.mxu0 %v6012
        %6319 = vmatmul.mubr.bf16.gmra.mxu0 %v5884
        %v6320 = vpop.f32.mrf.mxu0
        %v6321 = vadd.f32 0.0, %v6320
        %v6322 = vpop.f32.mrf.mxu0
        %v6323 = vpop.f32.mrf.mxu0
        %v6324 = vadd.f32 0.0, %v6323
        %v6325 = vpop.f32.mrf.mxu0
        %6326 = vmatprep.mubr.bf16.mxu0 %v6015
        %6327 = vmatmul.mubr.bf16.gmra.mxu0 %v5887
        %v6328 = vpop.f32.mrf.mxu0
        %v6329 = vadd.f32 0.0, %v6328
        %v6330 = vpop.f32.mrf.mxu0
        %v6331 = vpop.f32.mrf.mxu0
        %v6332 = vadd.f32 0.0, %v6331
        %v6333 = vpop.f32.mrf.mxu0
        %6334 = vmatprep.mubr.bf16.mxu0 %v6018
        %6335 = vmatmul.mubr.bf16.gmra.mxu0 %v5890
        %v6336 = vpop.f32.mrf.mxu0
        %v6337 = vadd.f32 0.0, %v6336
        %v6338 = vpop.f32.mrf.mxu0
        %v6339 = vpop.f32.mrf.mxu0
        %v6340 = vadd.f32 0.0, %v6339
        %v6341 = vpop.f32.mrf.mxu0
        %6342 = vmatprep.mubr.bf16.mxu0 %v6021
        %6343 = vmatmul.mubr.bf16.gmra.mxu0 %v5893
        %v6344 = vpop.f32.mrf.mxu0
        %v6345 = vadd.f32 0.0, %v6344
        %v6346 = vpop.f32.mrf.mxu0
        %v6347 = vpop.f32.mrf.mxu0
        %v6348 = vadd.f32 0.0, %v6347
        %v6349 = vpop.f32.mrf.mxu0
        %6350 = vmatprep.mubr.bf16.mxu0 %v6024
        %6351 = vmatmul.mubr.bf16.gmra.mxu0 %v5896
        %v6352 = vpop.f32.mrf.mxu0
        %v6353 = vadd.f32 0.0, %v6352
        %v6354 = vpop.f32.mrf.mxu0
        %v6355 = vpop.f32.mrf.mxu0
        %v6356 = vadd.f32 0.0, %v6355
        %v6357 = vpop.f32.mrf.mxu0
        %6358 = vmatprep.mubr.bf16.mxu0 %v6027
        %6359 = vmatmul.mubr.bf16.gmra.mxu0 %v5899
        %v6360 = vpop.f32.mrf.mxu0
        %v6361 = vadd.f32 0.0, %v6360
        %v6362 = vpop.f32.mrf.mxu0
        %v6363 = vpop.f32.mrf.mxu0
        %v6364 = vadd.f32 0.0, %v6363
        %v6365 = vpop.f32.mrf.mxu0
        %6366 = vmatprep.mubr.bf16.mxu0 %v6030
        %6367 = vmatmul.mubr.bf16.gmra.mxu0 %v5902
        %v6368 = vpop.f32.mrf.mxu0
        %v6369 = vadd.f32 0.0, %v6368
        %v6370 = vpop.f32.mrf.mxu0
        %v6371 = vpop.f32.mrf.mxu0
        %v6372 = vadd.f32 0.0, %v6371
        %v6373 = vpop.f32.mrf.mxu0
        %6374 = vmatprep.mubr.bf16.mxu0 %v6033
        %6375 = vmatmul.mubr.bf16.gmra.mxu0 %v5905
        %v6376 = vpop.f32.mrf.mxu0
        %v6377 = vadd.f32 0.0, %v6376
        %v6378 = vpop.f32.mrf.mxu0
        %v6379 = vpop.f32.mrf.mxu0
        %v6380 = vadd.f32 0.0, %v6379
        %v6381 = vpop.f32.mrf.mxu0
        %6382 = vmatprep.mubr.bf16.mxu0 %v6036
        %6383 = vmatmul.mubr.bf16.gmra.mxu0 %v5908
        %v6384 = vpop.f32.mrf.mxu0
        %v6385 = vadd.f32 0.0, %v6384
        %v6386 = vpop.f32.mrf.mxu0
        %v6387 = vpop.f32.mrf.mxu0
        %v6388 = vadd.f32 0.0, %v6387
        %v6389 = vpop.f32.mrf.mxu0
        %6390 = vdwg.mxu0
        %6391 = vmatprep.subr.bf16.mxu0 0
        %6392 = vmatpush1.bf16.msra.mxu0 0
        %6393 = vmatprep.subr.bf16.mxu0 0
        %6394 = vmatpush1.bf16.msra.mxu0 0
        %6395 = vmatprep.subr.bf16.mxu0 0
        %6396 = vmatpush1.bf16.msra.mxu0 0
        %6397 = vmatprep.subr.bf16.mxu0 0
        %6398 = vmatpush1.bf16.msra.mxu0 0
        %6399 = vmatprep.subr.bf16.mxu0 0
        %6400 = vmatpush1.bf16.msra.mxu0 0
        %6401 = vmatprep.subr.bf16.mxu0 0
        %6402 = vmatpush1.bf16.msra.mxu0 0
        %6403 = vmatprep.subr.bf16.mxu0 0
        %6404 = vmatpush1.bf16.msra.mxu0 %v6163
        %6405 = vmatprep.subr.bf16.mxu0 0
        %6406 = vmatpush1.bf16.msra.mxu0 %v6162
        %6407 = vmatprep.subr.bf16.mxu0 0
        %6408 = vmatpush2.bf16.msra.mxu0 0
        %6409 = vmatprep.subr.bf16.mxu0 0
        %6410 = vmatpush2.bf16.msra.mxu0 0
        %6411 = vmatprep.subr.bf16.mxu0 0
        %6412 = vmatpush2.bf16.msra.mxu0 0
        %6413 = vmatprep.subr.bf16.mxu0 0
        %6414 = vmatpush2.bf16.msra.mxu0 0
        %6415 = vmatprep.subr.bf16.mxu0 0
        %6416 = vmatpush2.bf16.msra.mxu0 0
        %6417 = vmatprep.subr.bf16.mxu0 0
        %6418 = vmatpush2.bf16.msra.mxu0 0
        %6419 = vmatprep.subr.bf16.mxu0 0
        %6420 = vmatpush2.bf16.msra.mxu0 0
        %6421 = vmatprep.subr.bf16.mxu0 0
        %6422 = vmatpush2.bf16.msra.mxu0 0
        %6423 = vmatprep.mubr.bf16.mxu0 0
        %6424 = vmatmul.mubr.bf16.gmra.mxu0 %v6183
        %v6425 = vpop.f32.mrf.mxu0
        %v6426 = vadd.f32 %v6265, %v6425
        %v6427 = vpop.f32.mrf.mxu0
        %v6428 = vpop.f32.mrf.mxu0
        %v6429 = vadd.f32 %v6268, %v6428
        %v6430 = vpop.f32.mrf.mxu0
        %6431 = vmatprep.mubr.bf16.mxu0 0
        %6432 = vmatmul.mubr.bf16.gmra.mxu0 %v6186
        %v6433 = vpop.f32.mrf.mxu0
        %v6434 = vadd.f32 %v6273, %v6433
        %v6435 = vpop.f32.mrf.mxu0
        %v6436 = vpop.f32.mrf.mxu0
        %v6437 = vadd.f32 %v6276, %v6436
        %v6438 = vpop.f32.mrf.mxu0
        %6439 = vmatprep.mubr.bf16.mxu0 0
        %6440 = vmatmul.mubr.bf16.gmra.mxu0 %v6189
        %v6441 = vpop.f32.mrf.mxu0
        %v6442 = vadd.f32 %v6281, %v6441
        %v6443 = vpop.f32.mrf.mxu0
        %v6444 = vpop.f32.mrf.mxu0
        %v6445 = vadd.f32 %v6284, %v6444
        %v6446 = vpop.f32.mrf.mxu0
        %6447 = vmatprep.mubr.bf16.mxu0 0
        %6448 = vmatmul.mubr.bf16.gmra.mxu0 %v6192
        %v6449 = vpop.f32.mrf.mxu0
        %v6450 = vadd.f32 %v6289, %v6449
        %v6451 = vpop.f32.mrf.mxu0
        %v6452 = vpop.f32.mrf.mxu0
        %v6453 = vadd.f32 %v6292, %v6452
        %v6454 = vpop.f32.mrf.mxu0
        %6455 = vmatprep.mubr.bf16.mxu0 0
        %6456 = vmatmul.mubr.bf16.gmra.mxu0 %v6195
        %v6457 = vpop.f32.mrf.mxu0
        %v6458 = vadd.f32 %v6297, %v6457
        %v6459 = vpop.f32.mrf.mxu0
        %v6460 = vpop.f32.mrf.mxu0
        %v6461 = vadd.f32 %v6300, %v6460
        %v6462 = vpop.f32.mrf.mxu0
        %6463 = vmatprep.mubr.bf16.mxu0 0
        %6464 = vmatmul.mubr.bf16.gmra.mxu0 %v6198
        %v6465 = vpop.f32.mrf.mxu0
        %v6466 = vadd.f32 %v6305, %v6465
        %v6467 = vpop.f32.mrf.mxu0
        %v6468 = vpop.f32.mrf.mxu0
        %v6469 = vadd.f32 %v6308, %v6468
        %v6470 = vpop.f32.mrf.mxu0
        %6471 = vmatprep.mubr.bf16.mxu0 0
        %6472 = vmatmul.mubr.bf16.gmra.mxu0 %v6201
        %v6473 = vpop.f32.mrf.mxu0
        %v6474 = vadd.f32 %v6313, %v6473
        %v6475 = vpop.f32.mrf.mxu0
        %v6476 = vpop.f32.mrf.mxu0
        %v6477 = vadd.f32 %v6316, %v6476
        %v6478 = vpop.f32.mrf.mxu0
        %6479 = vmatprep.mubr.bf16.mxu0 0
        %6480 = vmatmul.mubr.bf16.gmra.mxu0 %v6204
        %v6481 = vpop.f32.mrf.mxu0
        %v6482 = vadd.f32 %v6321, %v6481
        %v6483 = vpop.f32.mrf.mxu0
        %v6484 = vpop.f32.mrf.mxu0
        %v6485 = vadd.f32 %v6324, %v6484
        %v6486 = vpop.f32.mrf.mxu0
        %6487 = vmatprep.mubr.bf16.mxu0 0
        %6488 = vmatmul.mubr.bf16.gmra.mxu0 %v6207
        %v6489 = vpop.f32.mrf.mxu0
        %v6490 = vadd.f32 %v6329, %v6489
        %v6491 = vpop.f32.mrf.mxu0
        %v6492 = vpop.f32.mrf.mxu0
        %v6493 = vadd.f32 %v6332, %v6492
        %v6494 = vpop.f32.mrf.mxu0
        %6495 = vmatprep.mubr.bf16.mxu0 0
        %6496 = vmatmul.mubr.bf16.gmra.mxu0 %v6210
        %v6497 = vpop.f32.mrf.mxu0
        %v6498 = vadd.f32 %v6337, %v6497
        %v6499 = vpop.f32.mrf.mxu0
        %v6500 = vpop.f32.mrf.mxu0
        %v6501 = vadd.f32 %v6340, %v6500
        %v6502 = vpop.f32.mrf.mxu0
        %6503 = vmatprep.mubr.bf16.mxu0 0
        %6504 = vmatmul.mubr.bf16.gmra.mxu0 %v6213
        %v6505 = vpop.f32.mrf.mxu0
        %v6506 = vadd.f32 %v6345, %v6505
        %v6507 = vpop.f32.mrf.mxu0
        %v6508 = vpop.f32.mrf.mxu0
        %v6509 = vadd.f32 %v6348, %v6508
        %v6510 = vpop.f32.mrf.mxu0
        %6511 = vmatprep.mubr.bf16.mxu0 0
        %6512 = vmatmul.mubr.bf16.gmra.mxu0 %v6216
        %v6513 = vpop.f32.mrf.mxu0
        %v6514 = vadd.f32 %v6353, %v6513
        %v6515 = vpop.f32.mrf.mxu0
        %v6516 = vpop.f32.mrf.mxu0
        %v6517 = vadd.f32 %v6356, %v6516
        %v6518 = vpop.f32.mrf.mxu0
        %6519 = vmatprep.mubr.bf16.mxu0 0
        %6520 = vmatmul.mubr.bf16.gmra.mxu0 %v6219
        %v6521 = vpop.f32.mrf.mxu0
        %v6522 = vadd.f32 %v6361, %v6521
        %v6523 = vpop.f32.mrf.mxu0
        %v6524 = vpop.f32.mrf.mxu0
        %v6525 = vadd.f32 %v6364, %v6524
        %v6526 = vpop.f32.mrf.mxu0
        %6527 = vmatprep.mubr.bf16.mxu0 0
        %6528 = vmatmul.mubr.bf16.gmra.mxu0 %v6222
        %v6529 = vpop.f32.mrf.mxu0
        %v6530 = vadd.f32 %v6369, %v6529
        %v6531 = vpop.f32.mrf.mxu0
        %v6532 = vpop.f32.mrf.mxu0
        %v6533 = vadd.f32 %v6372, %v6532
        %v6534 = vpop.f32.mrf.mxu0
        %6535 = vmatprep.mubr.bf16.mxu0 0
        %6536 = vmatmul.mubr.bf16.gmra.mxu0 %v6225
        %v6537 = vpop.f32.mrf.mxu0
        %v6538 = vadd.f32 %v6377, %v6537
        %v6539 = vpop.f32.mrf.mxu0
        %v6540 = vpop.f32.mrf.mxu0
        %v6541 = vadd.f32 %v6380, %v6540
        %v6542 = vpop.f32.mrf.mxu0
        %6543 = vmatprep.mubr.bf16.mxu0 0
        %6544 = vmatmul.mubr.bf16.gmra.mxu0 %v6228
        %v6545 = vpop.f32.mrf.mxu0
        %v6546 = vadd.f32 %v6385, %v6545
        %v6547 = vpop.f32.mrf.mxu0
        %v6548 = vpop.f32.mrf.mxu0
        %v6549 = vadd.f32 %v6388, %v6548
        %v6550 = vpop.f32.mrf.mxu0
        %6551 = vdwg.mxu0
        %v6552 = vld [vmem:[%s7 + $0x2] sm:$0x1]
        %v6553 = vlaneseq
        %v6554 = vshrl.u32 %v6553, 7
        %v6555 = vsub.s32 0, %v6554
        %v6556 = vrot.slane %v6552, %v6555
        %v6557 = vmul.f32 %v6426, %v6556
        %v6558 = vmul.f32 %v6429, %v6556
        %v6559 = vmul.f32 %v6434, %v6556
        %v6560 = vmul.f32 %v6437, %v6556
        %v6561 = vmul.f32 %v6442, %v6556
        %v6562 = vmul.f32 %v6445, %v6556
        %v6563 = vmul.f32 %v6450, %v6556
        %v6564 = vmul.f32 %v6453, %v6556
        %v6565 = vmul.f32 %v6458, %v6556
        %v6566 = vmul.f32 %v6461, %v6556
        %v6567 = vmul.f32 %v6466, %v6556
        %v6568 = vmul.f32 %v6469, %v6556
        %v6569 = vmul.f32 %v6474, %v6556
        %v6570 = vmul.f32 %v6477, %v6556
        %v6571 = vmul.f32 %v6482, %v6556
        %v6572 = vmul.f32 %v6485, %v6556
        %v6573 = vmul.f32 %v6490, %v6556
        %v6574 = vmul.f32 %v6493, %v6556
        %v6575 = vmul.f32 %v6498, %v6556
        %v6576 = vmul.f32 %v6501, %v6556
        %v6577 = vmul.f32 %v6506, %v6556
        %v6578 = vmul.f32 %v6509, %v6556
        %v6579 = vmul.f32 %v6514, %v6556
        %v6580 = vmul.f32 %v6517, %v6556
        %v6581 = vmul.f32 %v6522, %v6556
        %v6582 = vmul.f32 %v6525, %v6556
        %v6583 = vmul.f32 %v6530, %v6556
        %v6584 = vmul.f32 %v6533, %v6556
        %v6585 = vmul.f32 %v6538, %v6556
        %v6586 = vmul.f32 %v6541, %v6556
        %v6587 = vmul.f32 %v6546, %v6556
        %v6588 = vmul.f32 %v6549, %v6556
        %v6589 = vld [vmem:[%s7 + $0x3] sm:$0x1]
        %v6590 = vlaneseq
        %v6591 = vshrl.u32 %v6590, 7
        %v6592 = vsub.s32 0, %v6591
        %v6593 = vrot.slane %v6589, %v6592
        %v6594 = vadd.f32 %v6557, %v6593
        %v6595 = vadd.f32 %v6558, %v6593
        %v6596 = vadd.f32 %v6559, %v6593
        %v6597 = vadd.f32 %v6560, %v6593
        %v6598 = vadd.f32 %v6561, %v6593
        %v6599 = vadd.f32 %v6562, %v6593
        %v6600 = vadd.f32 %v6563, %v6593
        %v6601 = vadd.f32 %v6564, %v6593
        %v6602 = vadd.f32 %v6565, %v6593
        %v6603 = vadd.f32 %v6566, %v6593
        %v6604 = vadd.f32 %v6567, %v6593
        %v6605 = vadd.f32 %v6568, %v6593
        %v6606 = vadd.f32 %v6569, %v6593
        %v6607 = vadd.f32 %v6570, %v6593
        %v6608 = vadd.f32 %v6571, %v6593
        %v6609 = vadd.f32 %v6572, %v6593
        %v6610 = vadd.f32 %v6573, %v6593
        %v6611 = vadd.f32 %v6574, %v6593
        %v6612 = vadd.f32 %v6575, %v6593
        %v6613 = vadd.f32 %v6576, %v6593
        %v6614 = vadd.f32 %v6577, %v6593
        %v6615 = vadd.f32 %v6578, %v6593
        %v6616 = vadd.f32 %v6579, %v6593
        %v6617 = vadd.f32 %v6580, %v6593
        %v6618 = vadd.f32 %v6581, %v6593
        %v6619 = vadd.f32 %v6582, %v6593
        %v6620 = vadd.f32 %v6583, %v6593
        %v6621 = vadd.f32 %v6584, %v6593
        %v6622 = vadd.f32 %v6585, %v6593
        %v6623 = vadd.f32 %v6586, %v6593
        %v6624 = vadd.f32 %v6587, %v6593
        %v6625 = vadd.f32 %v6588, %v6593
        %v6626 = vmax.f32 %v6594, 0.0
        %v6627 = vmax.f32 %v6595, 0.0
        %v6628 = vmax.f32 %v6596, 0.0
        %v6629 = vmax.f32 %v6597, 0.0
        %v6630 = vmax.f32 %v6598, 0.0
        %v6631 = vmax.f32 %v6599, 0.0
        %v6632 = vmax.f32 %v6600, 0.0
        %v6633 = vmax.f32 %v6601, 0.0
        %v6634 = vmax.f32 %v6602, 0.0
        %v6635 = vmax.f32 %v6603, 0.0
        %v6636 = vmax.f32 %v6604, 0.0
        %v6637 = vmax.f32 %v6605, 0.0
        %v6638 = vmax.f32 %v6606, 0.0
        %v6639 = vmax.f32 %v6607, 0.0
        %v6640 = vmax.f32 %v6608, 0.0
        %v6641 = vmax.f32 %v6609, 0.0
        %v6642 = vmax.f32 %v6610, 0.0
        %v6643 = vmax.f32 %v6611, 0.0
        %v6644 = vmax.f32 %v6612, 0.0
        %v6645 = vmax.f32 %v6613, 0.0
        %v6646 = vmax.f32 %v6614, 0.0
        %v6647 = vmax.f32 %v6615, 0.0
        %v6648 = vmax.f32 %v6616, 0.0
        %v6649 = vmax.f32 %v6617, 0.0
        %v6650 = vmax.f32 %v6618, 0.0
        %v6651 = vmax.f32 %v6619, 0.0
        %v6652 = vmax.f32 %v6620, 0.0
        %v6653 = vmax.f32 %v6621, 0.0
        %v6654 = vmax.f32 %v6622, 0.0
        %v6655 = vmax.f32 %v6623, 0.0
        %v6656 = vmax.f32 %v6624, 0.0
        %v6657 = vmax.f32 %v6625, 0.0
        %v6658 = vld [vmem:[%s7 + $0x4] sm:$0x1]
        %v6659 = vlaneseq
        %v6660 = vshrl.u32 %v6659, 7
        %v6661 = vsub.s32 0, %v6660
        %v6662 = vrot.slane %v6658, %v6661
        %v6663 = vmul.f32 %v6626, %v6662
        %v6664 = vmul.f32 %v6627, %v6662
        %v6665 = vmul.f32 %v6628, %v6662
        %v6666 = vmul.f32 %v6629, %v6662
        %v6667 = vmul.f32 %v6630, %v6662
        %v6668 = vmul.f32 %v6631, %v6662
        %v6669 = vmul.f32 %v6632, %v6662
        %v6670 = vmul.f32 %v6633, %v6662
        %v6671 = vmul.f32 %v6634, %v6662
        %v6672 = vmul.f32 %v6635, %v6662
        %v6673 = vmul.f32 %v6636, %v6662
        %v6674 = vmul.f32 %v6637, %v6662
        %v6675 = vmul.f32 %v6638, %v6662
        %v6676 = vmul.f32 %v6639, %v6662
        %v6677 = vmul.f32 %v6640, %v6662
        %v6678 = vmul.f32 %v6641, %v6662
        %v6679 = vmul.f32 %v6642, %v6662
        %v6680 = vmul.f32 %v6643, %v6662
        %v6681 = vmul.f32 %v6644, %v6662
        %v6682 = vmul.f32 %v6645, %v6662
        %v6683 = vmul.f32 %v6646, %v6662
        %v6684 = vmul.f32 %v6647, %v6662
        %v6685 = vmul.f32 %v6648, %v6662
        %v6686 = vmul.f32 %v6649, %v6662
        %v6687 = vmul.f32 %v6650, %v6662
        %v6688 = vmul.f32 %v6651, %v6662
        %v6689 = vmul.f32 %v6652, %v6662
        %v6690 = vmul.f32 %v6653, %v6662
        %v6691 = vmul.f32 %v6654, %v6662
        %v6692 = vmul.f32 %v6655, %v6662
        %v6693 = vmul.f32 %v6656, %v6662
        %v6694 = vmul.f32 %v6657, %v6662
        %v6695 = vsel %vm3401, %v6663, 0.0
        %6696 = vadd.xlane.f32.xlu0 %v6695
        %v6697 = vpop.xlane.xlu0 %6696
        %v6698 = vsel %vm3401, %v6664, 0.0
        %6699 = vadd.xlane.f32.xlu0 %v6698
        %v6700 = vpop.xlane.xlu0 %6699
        %v6701 = vsel %vm3401, %v6665, 0.0
        %6702 = vadd.xlane.f32.xlu0 %v6701
        %v6703 = vpop.xlane.xlu0 %6702
        %v6704 = vsel %vm3401, %v6666, 0.0
        %6705 = vadd.xlane.f32.xlu0 %v6704
        %v6706 = vpop.xlane.xlu0 %6705
        %v6707 = vsel %vm3401, %v6667, 0.0
        %6708 = vadd.xlane.f32.xlu0 %v6707
        %v6709 = vpop.xlane.xlu0 %6708
        %v6710 = vsel %vm3401, %v6668, 0.0
        %6711 = vadd.xlane.f32.xlu0 %v6710
        %v6712 = vpop.xlane.xlu0 %6711
        %v6713 = vsel %vm3401, %v6669, 0.0
        %6714 = vadd.xlane.f32.xlu0 %v6713
        %v6715 = vpop.xlane.xlu0 %6714
        %v6716 = vsel %vm3401, %v6670, 0.0
        %6717 = vadd.xlane.f32.xlu0 %v6716
        %v6718 = vpop.xlane.xlu0 %6717
        %v6719 = vsel %vm3401, %v6671, 0.0
        %6720 = vadd.xlane.f32.xlu0 %v6719
        %v6721 = vpop.xlane.xlu0 %6720
        %v6722 = vsel %vm3401, %v6672, 0.0
        %6723 = vadd.xlane.f32.xlu0 %v6722
        %v6724 = vpop.xlane.xlu0 %6723
        %v6725 = vsel %vm3401, %v6673, 0.0
        %6726 = vadd.xlane.f32.xlu0 %v6725
        %v6727 = vpop.xlane.xlu0 %6726
        %v6728 = vsel %vm3401, %v6674, 0.0
        %6729 = vadd.xlane.f32.xlu0 %v6728
        %v6730 = vpop.xlane.xlu0 %6729
        %v6731 = vsel %vm3401, %v6675, 0.0
        %6732 = vadd.xlane.f32.xlu0 %v6731
        %v6733 = vpop.xlane.xlu0 %6732
        %v6734 = vsel %vm3401, %v6676, 0.0
        %6735 = vadd.xlane.f32.xlu0 %v6734
        %v6736 = vpop.xlane.xlu0 %6735
        %v6737 = vsel %vm3401, %v6677, 0.0
        %6738 = vadd.xlane.f32.xlu0 %v6737
        %v6739 = vpop.xlane.xlu0 %6738
        %v6740 = vsel %vm3401, %v6678, 0.0
        %6741 = vadd.xlane.f32.xlu0 %v6740
        %v6742 = vpop.xlane.xlu0 %6741
        %v6743 = vsel %vm3401, %v6679, 0.0
        %6744 = vadd.xlane.f32.xlu0 %v6743
        %v6745 = vpop.xlane.xlu0 %6744
        %v6746 = vsel %vm3401, %v6680, 0.0
        %6747 = vadd.xlane.f32.xlu0 %v6746
        %v6748 = vpop.xlane.xlu0 %6747
        %v6749 = vsel %vm3401, %v6681, 0.0
        %6750 = vadd.xlane.f32.xlu0 %v6749
        %v6751 = vpop.xlane.xlu0 %6750
        %v6752 = vsel %vm3401, %v6682, 0.0
        %6753 = vadd.xlane.f32.xlu0 %v6752
        %v6754 = vpop.xlane.xlu0 %6753
        %v6755 = vsel %vm3401, %v6683, 0.0
        %6756 = vadd.xlane.f32.xlu0 %v6755
        %v6757 = vpop.xlane.xlu0 %6756
        %v6758 = vsel %vm3401, %v6684, 0.0
        %6759 = vadd.xlane.f32.xlu0 %v6758
        %v6760 = vpop.xlane.xlu0 %6759
        %v6761 = vsel %vm3401, %v6685, 0.0
        %6762 = vadd.xlane.f32.xlu0 %v6761
        %v6763 = vpop.xlane.xlu0 %6762
        %v6764 = vsel %vm3401, %v6686, 0.0
        %6765 = vadd.xlane.f32.xlu0 %v6764
        %v6766 = vpop.xlane.xlu0 %6765
        %v6767 = vsel %vm3401, %v6687, 0.0
        %6768 = vadd.xlane.f32.xlu0 %v6767
        %v6769 = vpop.xlane.xlu0 %6768
        %v6770 = vsel %vm3401, %v6688, 0.0
        %6771 = vadd.xlane.f32.xlu0 %v6770
        %v6772 = vpop.xlane.xlu0 %6771
        %v6773 = vsel %vm3401, %v6689, 0.0
        %6774 = vadd.xlane.f32.xlu0 %v6773
        %v6775 = vpop.xlane.xlu0 %6774
        %v6776 = vsel %vm3401, %v6690, 0.0
        %6777 = vadd.xlane.f32.xlu0 %v6776
        %v6778 = vpop.xlane.xlu0 %6777
        %v6779 = vsel %vm3401, %v6691, 0.0
        %6780 = vadd.xlane.f32.xlu0 %v6779
        %v6781 = vpop.xlane.xlu0 %6780
        %v6782 = vsel %vm3401, %v6692, 0.0
        %6783 = vadd.xlane.f32.xlu0 %v6782
        %v6784 = vpop.xlane.xlu0 %6783
        %v6785 = vsel %vm3401, %v6693, 0.0
        %6786 = vadd.xlane.f32.xlu0 %v6785
        %v6787 = vpop.xlane.xlu0 %6786
        %v6788 = vsel %vm3401, %v6694, 0.0
        %6789 = vadd.xlane.f32.xlu0 %v6788
        %v6790 = vpop.xlane.xlu0 %6789
        %v6791 = vld [vmem:[%s7 + $0x7] sm:$0x1]
        %s6793 = vtos %v6791
        %v6794 = vstv %s6793
        %v6796 = vadd.f32 %v6697, %v6794
        %v6797 = vadd.f32 %v6700, %v6794
        %v6798 = vadd.f32 %v6703, %v6794
        %v6799 = vadd.f32 %v6706, %v6794
        %v6800 = vadd.f32 %v6709, %v6794
        %v6801 = vadd.f32 %v6712, %v6794
        %v6802 = vadd.f32 %v6715, %v6794
        %v6803 = vadd.f32 %v6718, %v6794
        %v6804 = vadd.f32 %v6721, %v6794
        %v6805 = vadd.f32 %v6724, %v6794
        %v6806 = vadd.f32 %v6727, %v6794
        %v6807 = vadd.f32 %v6730, %v6794
        %v6808 = vadd.f32 %v6733, %v6794
        %v6809 = vadd.f32 %v6736, %v6794
        %v6810 = vadd.f32 %v6739, %v6794
        %v6811 = vadd.f32 %v6742, %v6794
        %v6812 = vadd.f32 %v6745, %v6794
        %v6813 = vadd.f32 %v6748, %v6794
        %v6814 = vadd.f32 %v6751, %v6794
        %v6815 = vadd.f32 %v6754, %v6794
        %v6816 = vadd.f32 %v6757, %v6794
        %v6817 = vadd.f32 %v6760, %v6794
        %v6818 = vadd.f32 %v6763, %v6794
        %v6819 = vadd.f32 %v6766, %v6794
        %v6820 = vadd.f32 %v6769, %v6794
        %v6821 = vadd.f32 %v6772, %v6794
        %v6822 = vadd.f32 %v6775, %v6794
        %v6823 = vadd.f32 %v6778, %v6794
        %v6824 = vadd.f32 %v6781, %v6794
        %v6825 = vadd.f32 %v6784, %v6794
        %v6826 = vadd.f32 %v6787, %v6794
        %v6827 = vadd.f32 %v6790, %v6794
        %v6828 = vld [vmem:[%s7 + $0x5] sm:$0x1]
        %v6829 = vlaneseq
        %v6830 = vshrl.u32 %v6829, 7
        %v6831 = vsub.s32 0, %v6830
        %v6832 = vrot.slane %v6828, %v6831
        %v6833 = vmul.f32 %v6626, %v6832
        %v6834 = vmul.f32 %v6627, %v6832
        %v6835 = vmul.f32 %v6628, %v6832
        %v6836 = vmul.f32 %v6629, %v6832
        %v6837 = vmul.f32 %v6630, %v6832
        %v6838 = vmul.f32 %v6631, %v6832
        %v6839 = vmul.f32 %v6632, %v6832
        %v6840 = vmul.f32 %v6633, %v6832
        %v6841 = vmul.f32 %v6634, %v6832
        %v6842 = vmul.f32 %v6635, %v6832
        %v6843 = vmul.f32 %v6636, %v6832
        %v6844 = vmul.f32 %v6637, %v6832
        %v6845 = vmul.f32 %v6638, %v6832
        %v6846 = vmul.f32 %v6639, %v6832
        %v6847 = vmul.f32 %v6640, %v6832
        %v6848 = vmul.f32 %v6641, %v6832
        %v6849 = vmul.f32 %v6642, %v6832
        %v6850 = vmul.f32 %v6643, %v6832
        %v6851 = vmul.f32 %v6644, %v6832
        %v6852 = vmul.f32 %v6645, %v6832
        %v6853 = vmul.f32 %v6646, %v6832
        %v6854 = vmul.f32 %v6647, %v6832
        %v6855 = vmul.f32 %v6648, %v6832
        %v6856 = vmul.f32 %v6649, %v6832
        %v6857 = vmul.f32 %v6650, %v6832
        %v6858 = vmul.f32 %v6651, %v6832
        %v6859 = vmul.f32 %v6652, %v6832
        %v6860 = vmul.f32 %v6653, %v6832
        %v6861 = vmul.f32 %v6654, %v6832
        %v6862 = vmul.f32 %v6655, %v6832
        %v6863 = vmul.f32 %v6656, %v6832
        %v6864 = vmul.f32 %v6657, %v6832
        %v6865 = vsel %vm3401, %v6833, 0.0
        %6866 = vadd.xlane.f32.xlu0 %v6865
        %v6867 = vpop.xlane.xlu0 %6866
        %v6868 = vsel %vm3401, %v6834, 0.0
        %6869 = vadd.xlane.f32.xlu0 %v6868
        %v6870 = vpop.xlane.xlu0 %6869
        %v6871 = vsel %vm3401, %v6835, 0.0
        %6872 = vadd.xlane.f32.xlu0 %v6871
        %v6873 = vpop.xlane.xlu0 %6872
        %v6874 = vsel %vm3401, %v6836, 0.0
        %6875 = vadd.xlane.f32.xlu0 %v6874
        %v6876 = vpop.xlane.xlu0 %6875
        %v6877 = vsel %vm3401, %v6837, 0.0
        %6878 = vadd.xlane.f32.xlu0 %v6877
        %v6879 = vpop.xlane.xlu0 %6878
        %v6880 = vsel %vm3401, %v6838, 0.0
        %6881 = vadd.xlane.f32.xlu0 %v6880
        %v6882 = vpop.xlane.xlu0 %6881
        %v6883 = vsel %vm3401, %v6839, 0.0
        %6884 = vadd.xlane.f32.xlu0 %v6883
        %v6885 = vpop.xlane.xlu0 %6884
        %v6886 = vsel %vm3401, %v6840, 0.0
        %6887 = vadd.xlane.f32.xlu0 %v6886
        %v6888 = vpop.xlane.xlu0 %6887
        %v6889 = vsel %vm3401, %v6841, 0.0
        %6890 = vadd.xlane.f32.xlu0 %v6889
        %v6891 = vpop.xlane.xlu0 %6890
        %v6892 = vsel %vm3401, %v6842, 0.0
        %6893 = vadd.xlane.f32.xlu0 %v6892
        %v6894 = vpop.xlane.xlu0 %6893
        %v6895 = vsel %vm3401, %v6843, 0.0
        %6896 = vadd.xlane.f32.xlu0 %v6895
        %v6897 = vpop.xlane.xlu0 %6896
        %v6898 = vsel %vm3401, %v6844, 0.0
        %6899 = vadd.xlane.f32.xlu0 %v6898
        %v6900 = vpop.xlane.xlu0 %6899
        %v6901 = vsel %vm3401, %v6845, 0.0
        %6902 = vadd.xlane.f32.xlu0 %v6901
        %v6903 = vpop.xlane.xlu0 %6902
        %v6904 = vsel %vm3401, %v6846, 0.0
        %6905 = vadd.xlane.f32.xlu0 %v6904
        %v6906 = vpop.xlane.xlu0 %6905
        %v6907 = vsel %vm3401, %v6847, 0.0
        %6908 = vadd.xlane.f32.xlu0 %v6907
        %v6909 = vpop.xlane.xlu0 %6908
        %v6910 = vsel %vm3401, %v6848, 0.0
        %6911 = vadd.xlane.f32.xlu0 %v6910
        %v6912 = vpop.xlane.xlu0 %6911
        %v6913 = vsel %vm3401, %v6849, 0.0
        %6914 = vadd.xlane.f32.xlu0 %v6913
        %v6915 = vpop.xlane.xlu0 %6914
        %v6916 = vsel %vm3401, %v6850, 0.0
        %6917 = vadd.xlane.f32.xlu0 %v6916
        %v6918 = vpop.xlane.xlu0 %6917
        %v6919 = vsel %vm3401, %v6851, 0.0
        %6920 = vadd.xlane.f32.xlu0 %v6919
        %v6921 = vpop.xlane.xlu0 %6920
        %v6922 = vsel %vm3401, %v6852, 0.0
        %6923 = vadd.xlane.f32.xlu0 %v6922
        %v6924 = vpop.xlane.xlu0 %6923
        %v6925 = vsel %vm3401, %v6853, 0.0
        %6926 = vadd.xlane.f32.xlu0 %v6925
        %v6927 = vpop.xlane.xlu0 %6926
        %v6928 = vsel %vm3401, %v6854, 0.0
        %6929 = vadd.xlane.f32.xlu0 %v6928
        %v6930 = vpop.xlane.xlu0 %6929
        %v6931 = vsel %vm3401, %v6855, 0.0
        %6932 = vadd.xlane.f32.xlu0 %v6931
        %v6933 = vpop.xlane.xlu0 %6932
        %v6934 = vsel %vm3401, %v6856, 0.0
        %6935 = vadd.xlane.f32.xlu0 %v6934
        %v6936 = vpop.xlane.xlu0 %6935
        %v6937 = vsel %vm3401, %v6857, 0.0
        %6938 = vadd.xlane.f32.xlu0 %v6937
        %v6939 = vpop.xlane.xlu0 %6938
        %v6940 = vsel %vm3401, %v6858, 0.0
        %6941 = vadd.xlane.f32.xlu0 %v6940
        %v6942 = vpop.xlane.xlu0 %6941
        %v6943 = vsel %vm3401, %v6859, 0.0
        %6944 = vadd.xlane.f32.xlu0 %v6943
        %v6945 = vpop.xlane.xlu0 %6944
        %v6946 = vsel %vm3401, %v6860, 0.0
        %6947 = vadd.xlane.f32.xlu0 %v6946
        %v6948 = vpop.xlane.xlu0 %6947
        %v6949 = vsel %vm3401, %v6861, 0.0
        %6950 = vadd.xlane.f32.xlu0 %v6949
        %v6951 = vpop.xlane.xlu0 %6950
        %v6952 = vsel %vm3401, %v6862, 0.0
        %6953 = vadd.xlane.f32.xlu0 %v6952
        %v6954 = vpop.xlane.xlu0 %6953
        %v6955 = vsel %vm3401, %v6863, 0.0
        %6956 = vadd.xlane.f32.xlu0 %v6955
        %v6957 = vpop.xlane.xlu0 %6956
        %v6958 = vsel %vm3401, %v6864, 0.0
        %6959 = vadd.xlane.f32.xlu0 %v6958
        %v6960 = vpop.xlane.xlu0 %6959
        %v6961 = vld [vmem:[%s7 + $0x8] sm:$0x1]
        %s6963 = vtos %v6961
        %v6964 = vstv %s6963
        %v6966 = vadd.f32 %v6867, %v6964
        %v6967 = vadd.f32 %v6870, %v6964
        %v6968 = vadd.f32 %v6873, %v6964
        %v6969 = vadd.f32 %v6876, %v6964
        %v6970 = vadd.f32 %v6879, %v6964
        %v6971 = vadd.f32 %v6882, %v6964
        %v6972 = vadd.f32 %v6885, %v6964
        %v6973 = vadd.f32 %v6888, %v6964
        %v6974 = vadd.f32 %v6891, %v6964
        %v6975 = vadd.f32 %v6894, %v6964
        %v6976 = vadd.f32 %v6897, %v6964
        %v6977 = vadd.f32 %v6900, %v6964
        %v6978 = vadd.f32 %v6903, %v6964
        %v6979 = vadd.f32 %v6906, %v6964
        %v6980 = vadd.f32 %v6909, %v6964
        %v6981 = vadd.f32 %v6912, %v6964
        %v6982 = vadd.f32 %v6915, %v6964
        %v6983 = vadd.f32 %v6918, %v6964
        %v6984 = vadd.f32 %v6921, %v6964
        %v6985 = vadd.f32 %v6924, %v6964
        %v6986 = vadd.f32 %v6927, %v6964
        %v6987 = vadd.f32 %v6930, %v6964
        %v6988 = vadd.f32 %v6933, %v6964
        %v6989 = vadd.f32 %v6936, %v6964
        %v6990 = vadd.f32 %v6939, %v6964
        %v6991 = vadd.f32 %v6942, %v6964
        %v6992 = vadd.f32 %v6945, %v6964
        %v6993 = vadd.f32 %v6948, %v6964
        %v6994 = vadd.f32 %v6951, %v6964
        %v6995 = vadd.f32 %v6954, %v6964
        %v6996 = vadd.f32 %v6957, %v6964
        %v6997 = vadd.f32 %v6960, %v6964
        %v6998 = vxor.u32 %v6966, 2147483648
        %v6999 = vxor.u32 %v6967, 2147483648
        %v7000 = vxor.u32 %v6968, 2147483648
        %v7001 = vxor.u32 %v6969, 2147483648
        %v7002 = vxor.u32 %v6970, 2147483648
        %v7003 = vxor.u32 %v6971, 2147483648
        %v7004 = vxor.u32 %v6972, 2147483648
        %v7005 = vxor.u32 %v6973, 2147483648
        %v7006 = vxor.u32 %v6974, 2147483648
        %v7007 = vxor.u32 %v6975, 2147483648
        %v7008 = vxor.u32 %v6976, 2147483648
        %v7009 = vxor.u32 %v6977, 2147483648
        %v7010 = vxor.u32 %v6978, 2147483648
        %v7011 = vxor.u32 %v6979, 2147483648
        %v7012 = vxor.u32 %v6980, 2147483648
        %v7013 = vxor.u32 %v6981, 2147483648
        %v7014 = vxor.u32 %v6982, 2147483648
        %v7015 = vxor.u32 %v6983, 2147483648
        %v7016 = vxor.u32 %v6984, 2147483648
        %v7017 = vxor.u32 %v6985, 2147483648
        %v7018 = vxor.u32 %v6986, 2147483648
        %v7019 = vxor.u32 %v6987, 2147483648
        %v7020 = vxor.u32 %v6988, 2147483648
        %v7021 = vxor.u32 %v6989, 2147483648
        %v7022 = vxor.u32 %v6990, 2147483648
        %v7023 = vxor.u32 %v6991, 2147483648
        %v7024 = vxor.u32 %v6992, 2147483648
        %v7025 = vxor.u32 %v6993, 2147483648
        %v7026 = vxor.u32 %v6994, 2147483648
        %v7027 = vxor.u32 %v6995, 2147483648
        %v7028 = vxor.u32 %v6996, 2147483648
        %v7029 = vxor.u32 %v6997, 2147483648
        %v7030 = vmul.f32 %v6998, 1.442695
        %v7031 = vpow.pop %v7030
        %v7032 = vmul.f32 %v6999, 1.442695
        %v7033 = vpow.pop %v7032
        %v7034 = vmul.f32 %v7000, 1.442695
        %v7035 = vpow.pop %v7034
        %v7036 = vmul.f32 %v7001, 1.442695
        %v7037 = vpow.pop %v7036
        %v7038 = vmul.f32 %v7002, 1.442695
        %v7039 = vpow.pop %v7038
        %v7040 = vmul.f32 %v7003, 1.442695
        %v7041 = vpow.pop %v7040
        %v7042 = vmul.f32 %v7004, 1.442695
        %v7043 = vpow.pop %v7042
        %v7044 = vmul.f32 %v7005, 1.442695
        %v7045 = vpow.pop %v7044
        %v7046 = vmul.f32 %v7006, 1.442695
        %v7047 = vpow.pop %v7046
        %v7048 = vmul.f32 %v7007, 1.442695
        %v7049 = vpow.pop %v7048
        %v7050 = vmul.f32 %v7008, 1.442695
        %v7051 = vpow.pop %v7050
        %v7052 = vmul.f32 %v7009, 1.442695
        %v7053 = vpow.pop %v7052
        %v7054 = vmul.f32 %v7010, 1.442695
        %v7055 = vpow.pop %v7054
        %v7056 = vmul.f32 %v7011, 1.442695
        %v7057 = vpow.pop %v7056
        %v7058 = vmul.f32 %v7012, 1.442695
        %v7059 = vpow.pop %v7058
        %v7060 = vmul.f32 %v7013, 1.442695
        %v7061 = vpow.pop %v7060
        %v7062 = vmul.f32 %v7014, 1.442695
        %v7063 = vpow.pop %v7062
        %v7064 = vmul.f32 %v7015, 1.442695
        %v7065 = vpow.pop %v7064
        %v7066 = vmul.f32 %v7016, 1.442695
        %v7067 = vpow.pop %v7066
        %v7068 = vmul.f32 %v7017, 1.442695
        %v7069 = vpow.pop %v7068
        %v7070 = vmul.f32 %v7018, 1.442695
        %v7071 = vpow.pop %v7070
        %v7072 = vmul.f32 %v7019, 1.442695
        %v7073 = vpow.pop %v7072
        %v7074 = vmul.f32 %v7020, 1.442695
        %v7075 = vpow.pop %v7074
        %v7076 = vmul.f32 %v7021, 1.442695
        %v7077 = vpow.pop %v7076
        %v7078 = vmul.f32 %v7022, 1.442695
        %v7079 = vpow.pop %v7078
        %v7080 = vmul.f32 %v7023, 1.442695
        %v7081 = vpow.pop %v7080
        %v7082 = vmul.f32 %v7024, 1.442695
        %v7083 = vpow.pop %v7082
        %v7084 = vmul.f32 %v7025, 1.442695
        %v7085 = vpow.pop %v7084
        %v7086 = vmul.f32 %v7026, 1.442695
        %v7087 = vpow.pop %v7086
        %v7088 = vmul.f32 %v7027, 1.442695
        %v7089 = vpow.pop %v7088
        %v7090 = vmul.f32 %v7028, 1.442695
        %v7091 = vpow.pop %v7090
        %v7092 = vmul.f32 %v7029, 1.442695
        %v7093 = vpow.pop %v7092
        %v7094 = vadd.f32 %v7031, 1.0
        %v7095 = vadd.f32 %v7033, 1.0
        %v7096 = vadd.f32 %v7035, 1.0
        %v7097 = vadd.f32 %v7037, 1.0
        %v7098 = vadd.f32 %v7039, 1.0
        %v7099 = vadd.f32 %v7041, 1.0
        %v7100 = vadd.f32 %v7043, 1.0
        %v7101 = vadd.f32 %v7045, 1.0
        %v7102 = vadd.f32 %v7047, 1.0
        %v7103 = vadd.f32 %v7049, 1.0
        %v7104 = vadd.f32 %v7051, 1.0
        %v7105 = vadd.f32 %v7053, 1.0
        %v7106 = vadd.f32 %v7055, 1.0
        %v7107 = vadd.f32 %v7057, 1.0
        %v7108 = vadd.f32 %v7059, 1.0
        %v7109 = vadd.f32 %v7061, 1.0
        %v7110 = vadd.f32 %v7063, 1.0
        %v7111 = vadd.f32 %v7065, 1.0
        %v7112 = vadd.f32 %v7067, 1.0
        %v7113 = vadd.f32 %v7069, 1.0
        %v7114 = vadd.f32 %v7071, 1.0
        %v7115 = vadd.f32 %v7073, 1.0
        %v7116 = vadd.f32 %v7075, 1.0
        %v7117 = vadd.f32 %v7077, 1.0
        %v7118 = vadd.f32 %v7079, 1.0
        %v7119 = vadd.f32 %v7081, 1.0
        %v7120 = vadd.f32 %v7083, 1.0
        %v7121 = vadd.f32 %v7085, 1.0
        %v7122 = vadd.f32 %v7087, 1.0
        %v7123 = vadd.f32 %v7089, 1.0
        %v7124 = vadd.f32 %v7091, 1.0
        %v7125 = vadd.f32 %v7093, 1.0
        %v7126 = vrcp.pop %v7094
        %v7127 = vmul.f32 1.0, %v7126
        %v7128 = vrcp.pop %v7095
        %v7129 = vmul.f32 1.0, %v7128
        %v7130 = vrcp.pop %v7096
        %v7131 = vmul.f32 1.0, %v7130
        %v7132 = vrcp.pop %v7097
        %v7133 = vmul.f32 1.0, %v7132
        %v7134 = vrcp.pop %v7098
        %v7135 = vmul.f32 1.0, %v7134
        %v7136 = vrcp.pop %v7099
        %v7137 = vmul.f32 1.0, %v7136
        %v7138 = vrcp.pop %v7100
        %v7139 = vmul.f32 1.0, %v7138
        %v7140 = vrcp.pop %v7101
        %v7141 = vmul.f32 1.0, %v7140
        %v7142 = vrcp.pop %v7102
        %v7143 = vmul.f32 1.0, %v7142
        %v7144 = vrcp.pop %v7103
        %v7145 = vmul.f32 1.0, %v7144
        %v7146 = vrcp.pop %v7104
        %v7147 = vmul.f32 1.0, %v7146
        %v7148 = vrcp.pop %v7105
        %v7149 = vmul.f32 1.0, %v7148
        %v7150 = vrcp.pop %v7106
        %v7151 = vmul.f32 1.0, %v7150
        %v7152 = vrcp.pop %v7107
        %v7153 = vmul.f32 1.0, %v7152
        %v7154 = vrcp.pop %v7108
        %v7155 = vmul.f32 1.0, %v7154
        %v7156 = vrcp.pop %v7109
        %v7157 = vmul.f32 1.0, %v7156
        %v7158 = vrcp.pop %v7110
        %v7159 = vmul.f32 1.0, %v7158
        %v7160 = vrcp.pop %v7111
        %v7161 = vmul.f32 1.0, %v7160
        %v7162 = vrcp.pop %v7112
        %v7163 = vmul.f32 1.0, %v7162
        %v7164 = vrcp.pop %v7113
        %v7165 = vmul.f32 1.0, %v7164
        %v7166 = vrcp.pop %v7114
        %v7167 = vmul.f32 1.0, %v7166
        %v7168 = vrcp.pop %v7115
        %v7169 = vmul.f32 1.0, %v7168
        %v7170 = vrcp.pop %v7116
        %v7171 = vmul.f32 1.0, %v7170
        %v7172 = vrcp.pop %v7117
        %v7173 = vmul.f32 1.0, %v7172
        %v7174 = vrcp.pop %v7118
        %v7175 = vmul.f32 1.0, %v7174
        %v7176 = vrcp.pop %v7119
        %v7177 = vmul.f32 1.0, %v7176
        %v7178 = vrcp.pop %v7120
        %v7179 = vmul.f32 1.0, %v7178
        %v7180 = vrcp.pop %v7121
        %v7181 = vmul.f32 1.0, %v7180
        %v7182 = vrcp.pop %v7122
        %v7183 = vmul.f32 1.0, %v7182
        %v7184 = vrcp.pop %v7123
        %v7185 = vmul.f32 1.0, %v7184
        %v7186 = vrcp.pop %v7124
        %v7187 = vmul.f32 1.0, %v7186
        %v7188 = vrcp.pop %v7125
        %v7189 = vmul.f32 1.0, %v7188
        %v7222 = vlaneseq
        %v7223 = vshrl.u32 %v7222, 7
        %v7224 = vsub.s32 %v4153, %v7223
        %v7225 = vrot.slane %v7127, %v7224
        %v7226 = vadd.s32 %v4153, 4294967288
        %v7227 = vlaneseq
        %v7228 = vshrl.u32 %v7227, 7
        %v7229 = vsub.s32 %v7226, %v7228
        %v7230 = vrot.slane %v7129, %v7229
        %vm7231 = vcmask 130112
        %v7232 = vsel %vm7231, %v7230, %v7225
        %v7233 = vlaneseq
        %v7234 = vshrl.u32 %v7233, 7
        %v7235 = vsub.s32 %v4153, %v7234
        %v7236 = vrot.slane %v7131, %v7235
        %v7237 = vlaneseq
        %v7238 = vshrl.u32 %v7237, 7
        %v7239 = vsub.s32 %v7226, %v7238
        %v7240 = vrot.slane %v7133, %v7239
        %v7241 = vsel %vm7231, %v7240, %v7236
        %v7242 = vlaneseq
        %v7243 = vshrl.u32 %v7242, 7
        %v7244 = vsub.s32 %v4153, %v7243
        %v7245 = vrot.slane %v7135, %v7244
        %v7246 = vlaneseq
        %v7247 = vshrl.u32 %v7246, 7
        %v7248 = vsub.s32 %v7226, %v7247
        %v7249 = vrot.slane %v7137, %v7248
        %v7250 = vsel %vm7231, %v7249, %v7245
        %v7251 = vlaneseq
        %v7252 = vshrl.u32 %v7251, 7
        %v7253 = vsub.s32 %v4153, %v7252
        %v7254 = vrot.slane %v7139, %v7253
        %v7255 = vlaneseq
        %v7256 = vshrl.u32 %v7255, 7
        %v7257 = vsub.s32 %v7226, %v7256
        %v7258 = vrot.slane %v7141, %v7257
        %v7259 = vsel %vm7231, %v7258, %v7254
        %v7260 = vlaneseq
        %v7261 = vshrl.u32 %v7260, 7
        %v7262 = vsub.s32 %v4153, %v7261
        %v7263 = vrot.slane %v7143, %v7262
        %v7264 = vlaneseq
        %v7265 = vshrl.u32 %v7264, 7
        %v7266 = vsub.s32 %v7226, %v7265
        %v7267 = vrot.slane %v7145, %v7266
        %v7268 = vsel %vm7231, %v7267, %v7263
        %v7269 = vlaneseq
        %v7270 = vshrl.u32 %v7269, 7
        %v7271 = vsub.s32 %v4153, %v7270
        %v7272 = vrot.slane %v7147, %v7271
        %v7273 = vlaneseq
        %v7274 = vshrl.u32 %v7273, 7
        %v7275 = vsub.s32 %v7226, %v7274
        %v7276 = vrot.slane %v7149, %v7275
        %v7277 = vsel %vm7231, %v7276, %v7272
        %v7278 = vlaneseq
        %v7279 = vshrl.u32 %v7278, 7
        %v7280 = vsub.s32 %v4153, %v7279
        %v7281 = vrot.slane %v7151, %v7280
        %v7282 = vlaneseq
        %v7283 = vshrl.u32 %v7282, 7
        %v7284 = vsub.s32 %v7226, %v7283
        %v7285 = vrot.slane %v7153, %v7284
        %v7286 = vsel %vm7231, %v7285, %v7281
        %v7287 = vlaneseq
        %v7288 = vshrl.u32 %v7287, 7
        %v7289 = vsub.s32 %v4153, %v7288
        %v7290 = vrot.slane %v7155, %v7289
        %v7291 = vlaneseq
        %v7292 = vshrl.u32 %v7291, 7
        %v7293 = vsub.s32 %v7226, %v7292
        %v7294 = vrot.slane %v7157, %v7293
        %v7295 = vsel %vm7231, %v7294, %v7290
        %v7296 = vlaneseq
        %v7297 = vshrl.u32 %v7296, 7
        %v7298 = vsub.s32 %v4153, %v7297
        %v7299 = vrot.slane %v7159, %v7298
        %v7300 = vlaneseq
        %v7301 = vshrl.u32 %v7300, 7
        %v7302 = vsub.s32 %v7226, %v7301
        %v7303 = vrot.slane %v7161, %v7302
        %v7304 = vsel %vm7231, %v7303, %v7299
        %v7305 = vlaneseq
        %v7306 = vshrl.u32 %v7305, 7
        %v7307 = vsub.s32 %v4153, %v7306
        %v7308 = vrot.slane %v7163, %v7307
        %v7309 = vlaneseq
        %v7310 = vshrl.u32 %v7309, 7
        %v7311 = vsub.s32 %v7226, %v7310
        %v7312 = vrot.slane %v7165, %v7311
        %v7313 = vsel %vm7231, %v7312, %v7308
        %v7314 = vlaneseq
        %v7315 = vshrl.u32 %v7314, 7
        %v7316 = vsub.s32 %v4153, %v7315
        %v7317 = vrot.slane %v7167, %v7316
        %v7318 = vlaneseq
        %v7319 = vshrl.u32 %v7318, 7
        %v7320 = vsub.s32 %v7226, %v7319
        %v7321 = vrot.slane %v7169, %v7320
        %v7322 = vsel %vm7231, %v7321, %v7317
        %v7323 = vlaneseq
        %v7324 = vshrl.u32 %v7323, 7
        %v7325 = vsub.s32 %v4153, %v7324
        %v7326 = vrot.slane %v7171, %v7325
        %v7327 = vlaneseq
        %v7328 = vshrl.u32 %v7327, 7
        %v7329 = vsub.s32 %v7226, %v7328
        %v7330 = vrot.slane %v7173, %v7329
        %v7331 = vsel %vm7231, %v7330, %v7326
        %v7332 = vlaneseq
        %v7333 = vshrl.u32 %v7332, 7
        %v7334 = vsub.s32 %v4153, %v7333
        %v7335 = vrot.slane %v7175, %v7334
        %v7336 = vlaneseq
        %v7337 = vshrl.u32 %v7336, 7
        %v7338 = vsub.s32 %v7226, %v7337
        %v7339 = vrot.slane %v7177, %v7338
        %v7340 = vsel %vm7231, %v7339, %v7335
        %v7341 = vlaneseq
        %v7342 = vshrl.u32 %v7341, 7
        %v7343 = vsub.s32 %v4153, %v7342
        %v7344 = vrot.slane %v7179, %v7343
        %v7345 = vlaneseq
        %v7346 = vshrl.u32 %v7345, 7
        %v7347 = vsub.s32 %v7226, %v7346
        %v7348 = vrot.slane %v7181, %v7347
        %v7349 = vsel %vm7231, %v7348, %v7344
        %v7350 = vlaneseq
        %v7351 = vshrl.u32 %v7350, 7
        %v7352 = vsub.s32 %v4153, %v7351
        %v7353 = vrot.slane %v7183, %v7352
        %v7354 = vlaneseq
        %v7355 = vshrl.u32 %v7354, 7
        %v7356 = vsub.s32 %v7226, %v7355
        %v7357 = vrot.slane %v7185, %v7356
        %v7358 = vsel %vm7231, %v7357, %v7353
        %v7359 = vlaneseq
        %v7360 = vshrl.u32 %v7359, 7
        %v7361 = vsub.s32 %v4153, %v7360
        %v7362 = vrot.slane %v7187, %v7361
        %v7363 = vlaneseq
        %v7364 = vshrl.u32 %v7363, 7
        %v7365 = vsub.s32 %v7226, %v7364
        %v7366 = vrot.slane %v7189, %v7365
        %v7367 = vsel %vm7231, %v7366, %v7362
        %vm7368 = vcmask 1041409
        %v7369 = vsel %vm7368, %v7241, %v7232
        %vm7370 = vcmask 1042434
        %v7371 = vsel %vm7370, %v7250, %v7369
        %vm7372 = vcmask 1043459
        %v7373 = vsel %vm7372, %v7259, %v7371
        %vm7374 = vcmask 1044484
        %v7375 = vsel %vm7374, %v7268, %v7373
        %vm7376 = vcmask 1045509
        %v7377 = vsel %vm7376, %v7277, %v7375
        %vm7378 = vcmask 1046534
        %v7379 = vsel %vm7378, %v7286, %v7377
        %vm7380 = vcmask 1047559
        %v7381 = vsel %vm7380, %v7295, %v7379
        %v7382 = vsel %vm7368, %v7313, %v7304
        %v7383 = vsel %vm7370, %v7322, %v7382
        %v7384 = vsel %vm7372, %v7331, %v7383
        %v7385 = vsel %vm7374, %v7340, %v7384
        %v7386 = vsel %vm7376, %v7349, %v7385
        %v7387 = vsel %vm7378, %v7358, %v7386
        %v7388 = vsel %vm7380, %v7367, %v7387
        %vm7391 = vcmask 130048
        %7392 = vst.msk [vmem:[%s368] sm:$0xff] %vm7391, %v7381
        %7393 = vst.msk [vmem:[%s368 + $0x8] sm:$0xff] %vm7391, %v7388
        %v7394 = vld [vmem:[%s5] sm:$0xf]
        %v7395 = vld [vmem:[%s5 + $0x4] sm:$0xf]
        %v7396 = vld [vmem:[%s5 + $0x8] sm:$0xf]
        %v7397 = vld [vmem:[%s5 + $0xc] sm:$0xf]
        %v7398 = vpack.c.bf16 %v6797, %v6796
        %v7399 = vpack.c.bf16 %v6799, %v6798
        %v7400 = vpack.c.bf16 %v6801, %v6800
        %v7401 = vpack.c.bf16 %v6803, %v6802
        %v7402 = vpack.c.bf16 %v6805, %v6804
        %v7403 = vpack.c.bf16 %v6807, %v6806
        %v7404 = vpack.c.bf16 %v6809, %v6808
        %v7405 = vpack.c.bf16 %v6811, %v6810
        %v7406 = vpack.c.bf16 %v6813, %v6812
        %v7407 = vpack.c.bf16 %v6815, %v6814
        %v7408 = vpack.c.bf16 %v6817, %v6816
        %v7409 = vpack.c.bf16 %v6819, %v6818
        %v7410 = vpack.c.bf16 %v6821, %v6820
        %v7411 = vpack.c.bf16 %v6823, %v6822
        %v7412 = vpack.c.bf16 %v6825, %v6824
        %v7413 = vpack.c.bf16 %v6827, %v6826
        %v7418 = vunpack.c.l.b16 %v7394
        %v7419 = vunpack.c.l.b16 %v7395
        %v7420 = vunpack.c.l.b16 %v7396
        %v7421 = vunpack.c.l.b16 %v7397
        %v7422 = vpack.c.b16 %v7419, %v7418
        %v7423 = vpack.c.b16 %v7421, %v7420
        %v7440 = vunpack.c.l.b16 %v7398
        %v7441 = vunpack.c.h.b16 %v7398
        %v7442 = vunpack.c.l.b16 %v7399
        %v7443 = vunpack.c.h.b16 %v7399
        %v7444 = vunpack.c.l.b16 %v7400
        %v7445 = vunpack.c.h.b16 %v7400
        %v7446 = vunpack.c.l.b16 %v7401
        %v7447 = vunpack.c.h.b16 %v7401
        %v7448 = vunpack.c.l.b16 %v7402
        %v7449 = vunpack.c.h.b16 %v7402
        %v7450 = vunpack.c.l.b16 %v7403
        %v7451 = vunpack.c.h.b16 %v7403
        %v7452 = vunpack.c.l.b16 %v7404
        %v7453 = vunpack.c.h.b16 %v7404
        %v7454 = vunpack.c.l.b16 %v7405
        %v7455 = vunpack.c.h.b16 %v7405
        %v7456 = vunpack.c.l.b16 %v7406
        %v7457 = vunpack.c.h.b16 %v7406
        %v7458 = vunpack.c.l.b16 %v7407
        %v7459 = vunpack.c.h.b16 %v7407
        %v7460 = vunpack.c.l.b16 %v7408
        %v7461 = vunpack.c.h.b16 %v7408
        %v7462 = vunpack.c.l.b16 %v7409
        %v7463 = vunpack.c.h.b16 %v7409
        %v7464 = vunpack.c.l.b16 %v7410
        %v7465 = vunpack.c.h.b16 %v7410
        %v7466 = vunpack.c.l.b16 %v7411
        %v7467 = vunpack.c.h.b16 %v7411
        %v7468 = vunpack.c.l.b16 %v7412
        %v7469 = vunpack.c.h.b16 %v7412
        %v7470 = vunpack.c.l.b16 %v7413
        %v7471 = vunpack.c.h.b16 %v7413
        %v7472 = vlaneseq
        %v7473 = vshrl.u32 %v7472, 7
        %v7474 = vsub.s32 %v4153, %v7473
        %v7475 = vrot.slane %v7440, %v7474
        %v7476 = vlaneseq
        %v7477 = vshrl.u32 %v7476, 7
        %v7478 = vsub.s32 %v7226, %v7477
        %v7479 = vrot.slane %v7441, %v7478
        %v7480 = vsel %vm7231, %v7479, %v7475
        %v7481 = vlaneseq
        %v7482 = vshrl.u32 %v7481, 7
        %v7483 = vsub.s32 %v4153, %v7482
        %v7484 = vrot.slane %v7442, %v7483
        %v7485 = vlaneseq
        %v7486 = vshrl.u32 %v7485, 7
        %v7487 = vsub.s32 %v7226, %v7486
        %v7488 = vrot.slane %v7443, %v7487
        %v7489 = vsel %vm7231, %v7488, %v7484
        %v7490 = vlaneseq
        %v7491 = vshrl.u32 %v7490, 7
        %v7492 = vsub.s32 %v4153, %v7491
        %v7493 = vrot.slane %v7444, %v7492
        %v7494 = vlaneseq
        %v7495 = vshrl.u32 %v7494, 7
        %v7496 = vsub.s32 %v7226, %v7495
        %v7497 = vrot.slane %v7445, %v7496
        %v7498 = vsel %vm7231, %v7497, %v7493
        %v7499 = vlaneseq
        %v7500 = vshrl.u32 %v7499, 7
        %v7501 = vsub.s32 %v4153, %v7500
        %v7502 = vrot.slane %v7446, %v7501
        %v7503 = vlaneseq
        %v7504 = vshrl.u32 %v7503, 7
        %v7505 = vsub.s32 %v7226, %v7504
        %v7506 = vrot.slane %v7447, %v7505
        %v7507 = vsel %vm7231, %v7506, %v7502
        %v7508 = vlaneseq
        %v7509 = vshrl.u32 %v7508, 7
        %v7510 = vsub.s32 %v4153, %v7509
        %v7511 = vrot.slane %v7448, %v7510
        %v7512 = vlaneseq
        %v7513 = vshrl.u32 %v7512, 7
        %v7514 = vsub.s32 %v7226, %v7513
        %v7515 = vrot.slane %v7449, %v7514
        %v7516 = vsel %vm7231, %v7515, %v7511
        %v7517 = vlaneseq
        %v7518 = vshrl.u32 %v7517, 7
        %v7519 = vsub.s32 %v4153, %v7518
        %v7520 = vrot.slane %v7450, %v7519
        %v7521 = vlaneseq
        %v7522 = vshrl.u32 %v7521, 7
        %v7523 = vsub.s32 %v7226, %v7522
        %v7524 = vrot.slane %v7451, %v7523
        %v7525 = vsel %vm7231, %v7524, %v7520
        %v7526 = vlaneseq
        %v7527 = vshrl.u32 %v7526, 7
        %v7528 = vsub.s32 %v4153, %v7527
        %v7529 = vrot.slane %v7452, %v7528
        %v7530 = vlaneseq
        %v7531 = vshrl.u32 %v7530, 7
        %v7532 = vsub.s32 %v7226, %v7531
        %v7533 = vrot.slane %v7453, %v7532
        %v7534 = vsel %vm7231, %v7533, %v7529
        %v7535 = vlaneseq
        %v7536 = vshrl.u32 %v7535, 7
        %v7537 = vsub.s32 %v4153, %v7536
        %v7538 = vrot.slane %v7454, %v7537
        %v7539 = vlaneseq
        %v7540 = vshrl.u32 %v7539, 7
        %v7541 = vsub.s32 %v7226, %v7540
        %v7542 = vrot.slane %v7455, %v7541
        %v7543 = vsel %vm7231, %v7542, %v7538
        %v7544 = vlaneseq
        %v7545 = vshrl.u32 %v7544, 7
        %v7546 = vsub.s32 %v4153, %v7545
        %v7547 = vrot.slane %v7456, %v7546
        %v7548 = vlaneseq
        %v7549 = vshrl.u32 %v7548, 7
        %v7550 = vsub.s32 %v7226, %v7549
        %v7551 = vrot.slane %v7457, %v7550
        %v7552 = vsel %vm7231, %v7551, %v7547
        %v7553 = vlaneseq
        %v7554 = vshrl.u32 %v7553, 7
        %v7555 = vsub.s32 %v4153, %v7554
        %v7556 = vrot.slane %v7458, %v7555
        %v7557 = vlaneseq
        %v7558 = vshrl.u32 %v7557, 7
        %v7559 = vsub.s32 %v7226, %v7558
        %v7560 = vrot.slane %v7459, %v7559
        %v7561 = vsel %vm7231, %v7560, %v7556
        %v7562 = vlaneseq
        %v7563 = vshrl.u32 %v7562, 7
        %v7564 = vsub.s32 %v4153, %v7563
        %v7565 = vrot.slane %v7460, %v7564
        %v7566 = vlaneseq
        %v7567 = vshrl.u32 %v7566, 7
        %v7568 = vsub.s32 %v7226, %v7567
        %v7569 = vrot.slane %v7461, %v7568
        %v7570 = vsel %vm7231, %v7569, %v7565
        %v7571 = vlaneseq
        %v7572 = vshrl.u32 %v7571, 7
        %v7573 = vsub.s32 %v4153, %v7572
        %v7574 = vrot.slane %v7462, %v7573
        %v7575 = vlaneseq
        %v7576 = vshrl.u32 %v7575, 7
        %v7577 = vsub.s32 %v7226, %v7576
        %v7578 = vrot.slane %v7463, %v7577
        %v7579 = vsel %vm7231, %v7578, %v7574
        %v7580 = vlaneseq
        %v7581 = vshrl.u32 %v7580, 7
        %v7582 = vsub.s32 %v4153, %v7581
        %v7583 = vrot.slane %v7464, %v7582
        %v7584 = vlaneseq
        %v7585 = vshrl.u32 %v7584, 7
        %v7586 = vsub.s32 %v7226, %v7585
        %v7587 = vrot.slane %v7465, %v7586
        %v7588 = vsel %vm7231, %v7587, %v7583
        %v7589 = vlaneseq
        %v7590 = vshrl.u32 %v7589, 7
        %v7591 = vsub.s32 %v4153, %v7590
        %v7592 = vrot.slane %v7466, %v7591
        %v7593 = vlaneseq
        %v7594 = vshrl.u32 %v7593, 7
        %v7595 = vsub.s32 %v7226, %v7594
        %v7596 = vrot.slane %v7467, %v7595
        %v7597 = vsel %vm7231, %v7596, %v7592
        %v7598 = vlaneseq
        %v7599 = vshrl.u32 %v7598, 7
        %v7600 = vsub.s32 %v4153, %v7599
        %v7601 = vrot.slane %v7468, %v7600
        %v7602 = vlaneseq
        %v7603 = vshrl.u32 %v7602, 7
        %v7604 = vsub.s32 %v7226, %v7603
        %v7605 = vrot.slane %v7469, %v7604
        %v7606 = vsel %vm7231, %v7605, %v7601
        %v7607 = vlaneseq
        %v7608 = vshrl.u32 %v7607, 7
        %v7609 = vsub.s32 %v4153, %v7608
        %v7610 = vrot.slane %v7470, %v7609
        %v7611 = vlaneseq
        %v7612 = vshrl.u32 %v7611, 7
        %v7613 = vsub.s32 %v7226, %v7612
        %v7614 = vrot.slane %v7471, %v7613
        %v7615 = vsel %vm7231, %v7614, %v7610
        %v7616 = vsel %vm7368, %v7489, %v7480
        %v7617 = vsel %vm7370, %v7498, %v7616
        %v7618 = vsel %vm7372, %v7507, %v7617
        %v7619 = vsel %vm7374, %v7516, %v7618
        %v7620 = vsel %vm7376, %v7525, %v7619
        %v7621 = vsel %vm7378, %v7534, %v7620
        %v7622 = vsel %vm7380, %v7543, %v7621
        %v7623 = vsel %vm7368, %v7561, %v7552
        %v7624 = vsel %vm7370, %v7570, %v7623
        %v7625 = vsel %vm7372, %v7579, %v7624
        %v7626 = vsel %vm7374, %v7588, %v7625
        %v7627 = vsel %vm7376, %v7597, %v7626
        %v7628 = vsel %vm7378, %v7606, %v7627
        %v7629 = vsel %vm7380, %v7615, %v7628
        %v7630 = vpack.c.b16 %v7629, %v7622
        %v7633 = vsel %vm7391, %v7422, 0
        %v7636 = vsel %vm7391, %v7423, 0
        %7638 = vmatprep.subr.bf16.mxu0 0
        %7639 = vmatpush1.bf16.msra.mxu0 0
        %7640 = vmatprep.subr.bf16.mxu0 0
        %7641 = vmatpush1.bf16.msra.mxu0 0
        %7642 = vmatprep.subr.bf16.mxu0 0
        %7643 = vmatpush1.bf16.msra.mxu0 0
        %7644 = vmatprep.subr.bf16.mxu0 0
        %7645 = vmatpush1.bf16.msra.mxu0 0
        %7646 = vmatprep.subr.bf16.mxu0 0
        %7647 = vmatpush1.bf16.msra.mxu0 0
        %7648 = vmatprep.subr.bf16.mxu0 0
        %7649 = vmatpush1.bf16.msra.mxu0 0
        %7650 = vmatprep.subr.bf16.mxu0 0
        %7651 = vmatpush1.bf16.msra.mxu0 0
        %7652 = vmatprep.subr.bf16.mxu0 0
        %7653 = vmatpush1.bf16.msra.mxu0 %v7630
        %7654 = vmatprep.subr.bf16.mxu0 0
        %7655 = vmatpush2.bf16.msra.mxu0 0
        %7656 = vmatprep.subr.bf16.mxu0 0
        %7657 = vmatpush2.bf16.msra.mxu0 0
        %7658 = vmatprep.subr.bf16.mxu0 0
        %7659 = vmatpush2.bf16.msra.mxu0 0
        %7660 = vmatprep.subr.bf16.mxu0 0
        %7661 = vmatpush2.bf16.msra.mxu0 0
        %7662 = vmatprep.subr.bf16.mxu0 0
        %7663 = vmatpush2.bf16.msra.mxu0 0
        %7664 = vmatprep.subr.bf16.mxu0 0
        %7665 = vmatpush2.bf16.msra.mxu0 0
        %7666 = vmatprep.subr.bf16.mxu0 0
        %7667 = vmatpush2.bf16.msra.mxu0 0
        %7668 = vmatprep.subr.bf16.mxu0 0
        %7669 = vmatpush2.bf16.msra.mxu0 0
        %7670 = vmatprep.mubr.bf16.mxu0 0
        %7671 = vmatmul.mubr.bf16.gmra.mxu0 %v7633
        %v7672 = vpop.f32.mrf.mxu0
        %v7673 = vadd.f32 0.0, %v7672
        %v7674 = vpop.f32.mrf.mxu0
        %v7675 = vpop.f32.mrf.mxu0
        %v7676 = vadd.f32 0.0, %v7675
        %v7677 = vpop.f32.mrf.mxu0
        %7678 = vmatprep.mubr.bf16.mxu0 0
        %7679 = vmatmul.mubr.bf16.gmra.mxu0 %v7636
        %v7680 = vpop.f32.mrf.mxu0
        %v7681 = vadd.f32 0.0, %v7680
        %v7682 = vpop.f32.mrf.mxu0
        %v7683 = vpop.f32.mrf.mxu0
        %v7684 = vadd.f32 0.0, %v7683
        %v7685 = vpop.f32.mrf.mxu0
        %7686 = vdwg.mxu0
        %v7687 = vpack.c.bf16 %v7676, %v7673
        %v7688 = vpack.c.bf16 %v7684, %v7681
        %v7689 = vld [vmem:[%s6] sm:$0xf]
        %v7690 = vld [vmem:[%s6 + $0x4] sm:$0xf]
        %v7693 = vunpack.c.l.b16 %v7689
        %v7694 = vunpack.c.l.b16 %v7690
        %v7695 = vpack.c.b16 %v7694, %v7693
        %v7698 = vsel %vm7391, %v7687, 0
        %v7701 = vsel %vm7391, %v7688, 0
        %7703 = vmatprep.subr.bf16.mxu0 0
        %7704 = vmatpush1.bf16.msra.mxu0 0
        %7705 = vmatprep.subr.bf16.mxu0 0
        %7706 = vmatpush1.bf16.msra.mxu0 0
        %7707 = vmatprep.subr.bf16.mxu0 0
        %7708 = vmatpush1.bf16.msra.mxu0 0
        %7709 = vmatprep.subr.bf16.mxu0 0
        %7710 = vmatpush1.bf16.msra.mxu0 0
        %7711 = vmatprep.subr.bf16.mxu0 0
        %7712 = vmatpush1.bf16.msra.mxu0 0
        %7713 = vmatprep.subr.bf16.mxu0 0
        %7714 = vmatpush1.bf16.msra.mxu0 0
        %7715 = vmatprep.subr.bf16.mxu0 0
        %7716 = vmatpush1.bf16.msra.mxu0 0
        %7717 = vmatprep.subr.bf16.mxu0 0
        %7718 = vmatpush1.bf16.msra.mxu0 %v7695
        %7719 = vmatprep.subr.bf16.mxu0 0
        %7720 = vmatpush2.bf16.msra.mxu0 0
        %7721 = vmatprep.subr.bf16.mxu0 0
        %7722 = vmatpush2.bf16.msra.mxu0 0
        %7723 = vmatprep.subr.bf16.mxu0 0
        %7724 = vmatpush2.bf16.msra.mxu0 0
        %7725 = vmatprep.subr.bf16.mxu0 0
        %7726 = vmatpush2.bf16.msra.mxu0 0
        %7727 = vmatprep.subr.bf16.mxu0 0
        %7728 = vmatpush2.bf16.msra.mxu0 0
        %7729 = vmatprep.subr.bf16.mxu0 0
        %7730 = vmatpush2.bf16.msra.mxu0 0
        %7731 = vmatprep.subr.bf16.mxu0 0
        %7732 = vmatpush2.bf16.msra.mxu0 0
        %7733 = vmatprep.subr.bf16.mxu0 0
        %7734 = vmatpush2.bf16.msra.mxu0 0
        %7735 = vmatprep.mubr.bf16.mxu0 0
        %7736 = vmatmul.mubr.bf16.gmra.mxu0 %v7698
        %v7737 = vpop.f32.mrf.mxu0
        %v7738 = vadd.f32 0.0, %v7737
        %v7739 = vpop.f32.mrf.mxu0
        %v7740 = vpop.f32.mrf.mxu0
        %v7741 = vadd.f32 0.0, %v7740
        %v7742 = vpop.f32.mrf.mxu0
        %7743 = vmatprep.mubr.bf16.mxu0 0
        %7744 = vmatmul.mubr.bf16.gmra.mxu0 %v7701
        %v7745 = vpop.f32.mrf.mxu0
        %v7746 = vadd.f32 0.0, %v7745
        %v7747 = vpop.f32.mrf.mxu0
        %v7748 = vpop.f32.mrf.mxu0
        %v7749 = vadd.f32 0.0, %v7748
        %v7750 = vpop.f32.mrf.mxu0
        %7751 = vdwg.mxu0
        %7752 = vst.msk [vmem:[%s361] sm:$0xff] %vm3401, %v7738
        %7753 = vst.msk [vmem:[%s361 + $0x8] sm:$0xff] %vm3401, %v7741
        %7754 = vst.msk [vmem:[%s361 + $0x10] sm:$0xff] %vm3401, %v7746
        %7755 = vst.msk [vmem:[%s361 + $0x18] sm:$0xff] %vm3401, %v7749
        %p7756 = scmp.lt.s32.totalorder %s28, 1
        %s7757 = scalar_select %p7756, %s28, 1
        %s7758 = scalar_lea.vmem %s8, %s7757
        %s7759 = sand.u32 %s235, 1
        %s7760 = scalar_lea.sflag [#allocation5], %s7759
        %s7761 = sand.u32 %s235, 1
        %s7762 = smul.addr %s7761, 32
        %s7763 = scalar_lea.vmem [#allocation4], %s7762
        %s7764 = sand.u32 %s261, 1
        %s7765 = scalar_lea.sflag [#allocation7], %s7764
        %s7766 = sand.u32 %s261, 1
        %s7767 = smul.addr %s7766, 16
        %s7768 = scalar_lea.vmem [#allocation6], %s7767
        // Predicated region
        $region53: #{forgery_detector_forward.1} parent=51 // pred_check
          %p7769 = pneg %p219
        $region54: #{forgery_detector_forward.1} parent=51 // pred_check_branch
          %7771 = sbr.rel (%p7769) target = $region56
        $region55: #{forgery_detector_forward.1} parent=51 // pred_region
          _
        $region56: #{forgery_detector_forward.1} parent=51 // pred_fallthru
          _
        // Predicated region
        $region57: #{forgery_detector_forward.1} parent=51 // pred_check
          %p7772 = pneg %p245
        $region58: #{forgery_detector_forward.1} parent=51 // pred_check_branch
          %7774 = sbr.rel (%p7772) target = $region60
        $region59: #{forgery_detector_forward.1} parent=51 // pred_region
          %s7776 = ssub.s32 512, 512
          %7777 = vsyncadd %s7760, %s7776
          %s7778 = smul.addr %s28, 4
          %s7779 = smul.addr %s7778, 128
          %s7780 = scalar_lea.hbm %s9, %s7779
          %s7781 = sshll.u32 %s7763, 4
          %s7782 = int_to_ptr.vmem [resolvable:$true] %s7781
          %7787 = dma.vmem_to_hbm [thread:$0]  %s7782, 512, %s7780, %s7760, 128, 128, 8
        $region60: #{forgery_detector_forward.1} parent=51 // pred_fallthru
          _
        // Predicated region
        $region61: #{forgery_detector_forward.1} parent=51 // pred_check
          %p7788 = pneg %p271
        $region62: #{forgery_detector_forward.1} parent=51 // pred_check_branch
          %7790 = sbr.rel (%p7788) target = $region64
        $region63: #{forgery_detector_forward.1} parent=51 // pred_region
          %s7792 = ssub.s32 256, 256
          %7793 = vsyncadd %s7765, %s7792
          %s7794 = smul.addr %s28, 2
          %s7795 = smul.addr %s7794, 128
          %s7796 = scalar_lea.hbm %s10, %s7795
          %s7797 = sshll.u32 %s7768, 4
          %s7798 = int_to_ptr.vmem [resolvable:$true] %s7797
          %7803 = dma.vmem_to_hbm [thread:$0]  %s7798, 256, %s7796, %s7765, 128, 128, 8
        $region64: #{forgery_detector_forward.1} parent=51 // pred_fallthru
          _
      $region52: #{forgery_detector_forward.1} parent=5 // pred_fallthru
        _
      %p7804 = scmp.le.s32.totalorder 2, %s23
      // Predicated region
      $region65: #{forgery_detector_forward.1} parent=5 // pred_check
        %p7805 = pneg %p7804
      $region66: #{forgery_detector_forward.1} parent=5 // pred_check_branch
        %7807 = sbr.rel (%p7805) target = $region68
      $region67: #{forgery_detector_forward.1} parent=5 // pred_region
        %s7808 = ssub.s32 %s23, 2
        // Predicated region
        $region69: #{forgery_detector_forward.1} parent=67 // pred_check
          %p7809 = pneg %p225
        $region70: #{forgery_detector_forward.1} parent=67 // pred_check_branch
          %7811 = sbr.rel (%p7809) target = $region72
        $region71: #{forgery_detector_forward.1} parent=67 // pred_region
          %p7812 = scmp.lt.s32.totalorder %s29, 1
          %s7813 = scalar_select %p7812, %s29, 1
          %s7814 = scalar_lea.vmem %s8, %s7813
        $region72: #{forgery_detector_forward.1} parent=67 // pred_fallthru
          _
        // Predicated region
        $region73: #{forgery_detector_forward.1} parent=67 // pred_check
          %p7815 = pneg %p251
        $region74: #{forgery_detector_forward.1} parent=67 // pred_check_branch
          %7817 = sbr.rel (%p7815) target = $region76
        $region75: #{forgery_detector_forward.1} parent=67 // pred_region
          %s7818 = sand.u32 %s236, 1
          %s7819 = scalar_lea.sflag [#allocation5], %s7818
          %s7820 = sand.u32 %s236, 1
          %s7821 = smul.addr %s7820, 32
          %s7822 = scalar_lea.vmem [#allocation4], %s7821
          %7823 = dma.done %s7819, 512
        $region76: #{forgery_detector_forward.1} parent=67 // pred_fallthru
          _
        // Predicated region
        $region77: #{forgery_detector_forward.1} parent=67 // pred_check
          %p7824 = pneg %p277
        $region78: #{forgery_detector_forward.1} parent=67 // pred_check_branch
          %7826 = sbr.rel (%p7824) target = $region80
        $region79: #{forgery_detector_forward.1} parent=67 // pred_region
          %s7827 = sand.u32 %s262, 1
          %s7828 = scalar_lea.sflag [#allocation7], %s7827
          %s7829 = sand.u32 %s262, 1
          %s7830 = smul.addr %s7829, 16
          %s7831 = scalar_lea.vmem [#allocation6], %s7830
          %7832 = dma.done %s7828, 256
        $region80: #{forgery_detector_forward.1} parent=67 // pred_fallthru
          _
      $region68: #{forgery_detector_forward.1} parent=5 // pred_fallthru
        _
    $region6: #{forgery_detector_forward.1} parent=1 // loop_footer
      %s27 = sadd.s32 1, %s23
    $region7: #{forgery_detector_forward.1} parent=1 // loop_footer_branch
      %22 = sbr.rel target = $region3
    $region8: #{forgery_detector_forward.1} parent=1 // loop_exit
      _
    %7833 = vsyncpa [#allocation5], 1
    %s7834 = scalar_lea.sflag [#allocation5], 1
    %7835 = vsyncpa %s7834, 1
    %7836 = vsyncpa [#allocation7], 1
    %s7837 = scalar_lea.sflag [#allocation7], 1
    %7838 = vsyncpa %s7837, 1

</llo_original>
